<compile_context>
chip_gen: v6e
topology: v6e:2x2x1
jax: 0.10.0
libtpu: 0.0.40
codegen_flags: <defaults>
</compile_context>

<pallas_src>
import functools

import jax
import jax.numpy as jnp
from jax.experimental import pallas as pl
from jax.experimental.pallas import tpu as pltpu


def _round_up(x, m):
    return (x + m - 1) // m * m


# ----------------------------------------------------------------------------
# Fused Pallas kernel: whole RRCNN block for one batch sample, channels-first.
# ----------------------------------------------------------------------------
def _rrcnn_fused_kernel(x_ref, w1_ref, b1_ref, wa_ref, wb_ref, bn_ref,
                        mask_ref, o_ref, col_ref, *, D, H, W, Cp, mxu_dtype):
    # x_ref   : (1, Cf, M)    per-sample input, channels-first, lane-dense
    # w1_ref  : (Cp, Cf)      pointwise conv weights (out-channel padded)
    # b1_ref  : (Cp, 1)       pointwise conv bias
    # wa_ref  : (Cp, 27*Cp)   rb1 conv weights, transposed im2col layout
    # wb_ref  : (Cp, 27*Cp)   rb2 conv weights, transposed im2col layout
    # bn_ref  : (Cp, 8)       cols: [2sa, 2ta, sa, ta, 2sb, 2tb, sb, tb]
    #                         (conv bias already folded into the shifts)
    # mask_ref: (27, M)       per-tap boundary mask (1 in-bounds, 0 at halo)
    # o_ref   : (1, Cout, M)  lane-dense output block
    # col_ref : (27*Cp, M)    VMEM im2col scratch (dense sublane-slice writes)
    M = D * H * W

    # Static tap table: (row index t, flat voxel shift s).
    taps = []
    for kd in range(3):
        for kh in range(3):
            for kw in range(3):
                t = (kd * 3 + kh) * 3 + kw
                s = (kd - 1) * H * W + (kh - 1) * W + (kw - 1)
                taps.append((t, s))

    def cbr(act, w_ref, col):
        """Conv3d(k=3, pad=1, bias) + BatchNorm3d(eval) + ReLU, on (Cp, M)."""
        # Build the transposed im2col slab: each tap is a lane roll (XLU) +
        # boundary-mask multiply (VPU) + one dense sublane-aligned store.
        for t, s in taps:
            if s == 0:
                slab = act                                   # center tap
            else:
                # slab[m] = act[m + s] for in-bounds voxels; wrap-around
                # positions are zeroed by the precomputed mask.
                shifted = pltpu.roll(act, shift=(-s) % M, axis=1)
                slab = shifted * mask_ref[t:t + 1, :]
            col_ref[t * Cp:(t + 1) * Cp, :] = slab.astype(mxu_dtype)
        acc = jnp.dot(w_ref[...], col_ref[...],
                      preferred_element_type=jnp.float32)    # (Cp, M)
        scale = bn_ref[:, col:col + 1]                       # (Cp, 1)
        shift = bn_ref[:, col + 1:col + 2]                   # (Cp, 1)
        return jnp.maximum(acc * scale + shift, 0.0)

    # --- x1 = Conv(x): pointwise (1x1x1) stand-in, one MXU matmul -> (Cp, M) --
    x1 = jnp.dot(w1_ref[...], x_ref[0].astype(mxu_dtype),
                 preferred_element_type=jnp.float32) + b1_ref[...]

    # --- Recurrent_block #1 (t=2): z = CBR(2 * CBR(x1)) -----------------------
    # Columns 0/1 of bn_ref hold (2*scale, 2*shift): the "x + x" is folded into
    # the first application's epilogue (relu(2a) == 2*relu(a)).
    y = cbr(x1, wa_ref, 0)
    z = cbr(y, wa_ref, 2)

    # --- Recurrent_block #2 ---------------------------------------------------
    y2 = cbr(z, wb_ref, 4)
    x2 = cbr(y2, wb_ref, 6)

    # --- residual add; already channels-in-sublanes / M-in-lanes -------------
    out = x1 + x2                                            # (Cp, M)
    o_ref[0] = out[:o_ref.shape[1], :].astype(o_ref.dtype)


# ----------------------------------------------------------------------------
# Wrapper: parameter packing (constant folding) + single pallas_call.
# ----------------------------------------------------------------------------
def rrcnn_block(x_ncdhw, params, *, mxu_dtype=jnp.float32):
    # x_ncdhw: (N, num_features, D, H, W)  ->  (N, out_ch, D, H, W)
    # mxu_dtype: set to jnp.bfloat16 on v6e/v7x to halve the col-slab footprint
    #            (accumulation stays f32); default f32 for strict accuracy.
    N, Cf, D, H, W = x_ncdhw.shape
    M = D * H * W
    Cout = params["conv1x1_w"].shape[1]
    Cp = _round_up(Cout, 8)

    # Input: NCDHW -> (N, Cf, M). Channels already lead, so this is a free
    # reshape -- no pad, no transpose, lane-dense minor dimension.
    x_cf = x_ncdhw.reshape(N, Cf, M).astype(jnp.float32)

    # ---- parameter packing (outside the kernel; tiny, constant-foldable) ----
    w1 = jnp.pad(params["conv1x1_w"].T,
                 ((0, Cp - Cout), (0, 0))).astype(mxu_dtype)        # (Cp, Cf)
    b1 = jnp.pad(params["conv1x1_b"], (0, Cp - Cout)).reshape(Cp, 1)

    def pack_rb(p):
        # (3,3,3,Cin,Cout) -> (Cp, 27*Cp): row = cout, col = tap*Cp + cin;
        # conv bias folded into the BN shift: shift' = scale*b + shift.
        w = jnp.pad(p["w"],
                    ((0, 0),) * 3 + ((0, Cp - Cout), (0, Cp - Cout)))
        w = jnp.transpose(w, (4, 0, 1, 2, 3)).reshape(Cp, 27 * Cp)
        scale = jnp.pad(p["scale"], (0, Cp - Cout))
        shift = jnp.pad(p["scale"] * p["b"] + p["shift"], (0, Cp - Cout))
        return w.astype(mxu_dtype), scale, shift

    wa, sa, ta = pack_rb(params["rb1"])
    wb, sb, tb = pack_rb(params["rb2"])
    # Columns 0/1 and 4/5 carry the folded "x + x" factor of each block.
    bn = jnp.stack([2.0 * sa, 2.0 * ta, sa, ta,
                    2.0 * sb, 2.0 * tb, sb, tb], axis=1)            # (Cp, 8)

    # Per-tap boundary masks (27, M): 1 where the shifted voxel stays inside
    # the volume (replaces the zero-padded halo scratch).
    zi = jax.lax.broadcasted_iota(jnp.int32, (D, H, W), 0)
    yi = jax.lax.broadcasted_iota(jnp.int32, (D, H, W), 1)
    xi = jax.lax.broadcasted_iota(jnp.int32, (D, H, W), 2)
    rows = []
    for kd in range(3):
        for kh in range(3):
            for kw in range(3):
                dz, dy, dx = kd - 1, kh - 1, kw - 1
                ok = ((zi + dz >= 0) & (zi + dz < D) &
                      (yi + dy >= 0) & (yi + dy < H) &
                      (xi + dx >= 0) & (xi + dx < W))
                rows.append(ok.reshape(M))
    mask = jnp.stack(rows).astype(jnp.float32)                      # (27, M)

    # Advisory cost estimate for XLA scheduling.
    flops = N * (2 * M * Cf * Cp + 4 * 2 * M * (27 * Cp) * Cp)
    bytes_accessed = (int(x_cf.size) * 4 + N * Cout * M * 4
                      + sum(int(a.size) * a.dtype.itemsize
                            for a in (w1, b1, wa, wb, bn, mask)))

    kern = functools.partial(_rrcnn_fused_kernel, D=D, H=H, W=W, Cp=Cp,
                             mxu_dtype=mxu_dtype)
    out = pl.pallas_call(
        kern,
        out_shape=jax.ShapeDtypeStruct((N, Cout, M), jnp.float32),
        grid_spec=pltpu.PrefetchScalarGridSpec(
            num_scalar_prefetch=0,
            grid=(N,),
            in_specs=[
                pl.BlockSpec((1, Cf, M), lambda n: (n, 0, 0)),
                pl.BlockSpec((Cp, Cf), lambda n: (0, 0)),
                pl.BlockSpec((Cp, 1), lambda n: (0, 0)),
                pl.BlockSpec((Cp, 27 * Cp), lambda n: (0, 0)),
                pl.BlockSpec((Cp, 27 * Cp), lambda n: (0, 0)),
                pl.BlockSpec((Cp, 8), lambda n: (0, 0)),
                pl.BlockSpec((27, M), lambda n: (0, 0)),
            ],
            out_specs=pl.BlockSpec((1, Cout, M), lambda n: (n, 0, 0)),
            scratch_shapes=[
                pltpu.VMEM((27 * Cp, M), mxu_dtype),   # transposed im2col slab
            ],
        ),
        compiler_params=pltpu.CompilerParams(
            dimension_semantics=("parallel",)),
        cost_estimate=pl.CostEstimate(flops=int(flops), transcendentals=0,
                                      bytes_accessed=int(bytes_accessed)),
    )(x_cf, w1, b1, wa, wb, bn, mask)

    # (N, out_ch, M) is already NCDHW-ordered; only a free reshape remains.
    return out.reshape(N, Cout, D, H, W)


# ----------------------------------------------------------------------------
# Pure-JAX (XLA) reference mirroring the PyTorch module, for verification.
# ----------------------------------------------------------------------------
def _reference(x_ncdhw, params):
    hi = jax.lax.Precision.HIGHEST
    x = jnp.transpose(x_ncdhw, (0, 2, 3, 4, 1)).astype(jnp.float32)  # NDHWC
    D, H, W = x.shape[1:4]
    x1 = jnp.einsum("ndhwc,co->ndhwo", x, params["conv1x1_w"],
                    precision=hi) + params["conv1x1_b"]

    def cbr(v, p):
        vp = jnp.pad(v, ((0, 0), (1, 1), (1, 1), (1, 1), (0, 0)))
        acc = jnp.zeros_like(v)
        for kd in range(3):
            for kh in range(3):
                for kw in range(3):
                    acc = acc + jnp.einsum(
                        "ndhwc,co->ndhwo",
                        vp[:, kd:kd + D, kh:kh + H, kw:kw + W, :],
                        p["w"][kd, kh, kw], precision=hi)
        acc = (acc + p["b"]) * p["scale"] + p["shift"]
        return jnp.maximum(acc, 0.0)

    def rb(v, p):
        y = cbr(v, p)
        return cbr(y + y, p)

    out = x1 + rb(rb(x1, params["rb1"]), params["rb2"])
    return jnp.transpose(out, (0, 4, 1, 2, 3))


# ----------------------------------------------------------------------------
# Deterministic parameter init (synthetic; shapes follow the nn.Module).
# ----------------------------------------------------------------------------
def init_params(key, num_features, out_ch, eps=1e-5):
    keys = jax.random.split(key, 10)

    def bn_fold(kg, kb):
        gamma = jax.random.uniform(kg, (out_ch,), jnp.float32, 0.5, 1.5)
        beta = 0.1 * jax.random.normal(kb, (out_ch,), jnp.float32)
        running_mean = jnp.zeros((out_ch,), jnp.float32)
        running_var = jnp.ones((out_ch,), jnp.float32)
        scale = gamma * jax.lax.rsqrt(running_var + eps)
        shift = beta - running_mean * scale
        return scale, shift

    def rb_params(kw, kb, kg, kbeta):
        # Synthetic weights in (3,3,3,Cin,Cout) layout.
        w = 0.1 * jax.random.normal(kw, (3, 3, 3, out_ch, out_ch), jnp.float32)
        b = 0.1 * jax.random.normal(kb, (out_ch,), jnp.float32)
        scale, shift = bn_fold(kg, kbeta)
        return dict(w=w, b=b, scale=scale, shift=shift)

    conv1x1_w = 0.1 * jax.random.normal(keys[0], (num_features, out_ch),
                                        jnp.float32)
    conv1x1_b = 0.1 * jax.random.normal(keys[1], (out_ch,), jnp.float32)
    return dict(
        conv1x1_w=conv1x1_w,
        conv1x1_b=conv1x1_b,
        rb1=rb_params(keys[2], keys[3], keys[4], keys[5]),
        rb2=rb_params(keys[6], keys[7], keys[8], keys[9]),
    )


# ----------------------------------------------------------------------------
if __name__ == "__main__":
    key = jax.random.PRNGKey(0)
    kx, kp = jax.random.split(key)

    N, num_features, D, H, W = 2, 6, 8, 8, 8
    out_ch = 4

    x = jax.random.normal(kx, (N, num_features, D, H, W), dtype=jnp.float32)
    params = init_params(kp, num_features, out_ch)

    fwd = jax.jit(lambda xx: rrcnn_block(xx, params))
    out = fwd(x)
    jax.block_until_ready(out)

    assert out.shape == (N, out_ch, D, H, W), out.shape
    assert out.dtype == jnp.float32
    assert bool(jnp.all(jnp.isfinite(out)))

    ref = _reference(x, params)
    max_err = float(jnp.max(jnp.abs(out - ref)))
    assert bool(jnp.allclose(out, ref, rtol=5e-3, atol=5e-4)), \
        f"mismatch vs reference, max |err| = {max_err}"
    print("KERNEL_OK")
</pallas_src>

<mosaic_0001>
module attributes {stable_mosaic.version = 11 : i64} {
  func.func @_rrcnn_fused_kernel(%arg0: i32, %arg1: memref<1x6x512xf32, #tpu.memory_space<vmem>>, %arg2: memref<8x6xf32, #tpu.memory_space<vmem>>, %arg3: memref<8x1xf32, #tpu.memory_space<vmem>>, %arg4: memref<8x216xf32, #tpu.memory_space<vmem>>, %arg5: memref<8x216xf32, #tpu.memory_space<vmem>>, %arg6: memref<8x8xf32, #tpu.memory_space<vmem>>, %arg7: memref<27x512xf32, #tpu.memory_space<vmem>>, %arg8: memref<1x4x512xf32, #tpu.memory_space<vmem>>, %arg9: memref<216x512xf32, #tpu.memory_space<vmem>>) attributes {dimension_semantics = [#tpu.dimension_semantics<parallel>], iteration_bounds = array<i64: 2>, scalar_prefetch = 0 : i64, scratch_operands = 1 : i64, tpu.core_type = #tpu.core_type<tc>, window_params = [{transform_indices = @transform_0, window_bounds = array<i64: 1, 6, 512>}, {pipeline_mode = #tpu.pipeline_mode<synchronous>, transform_indices = @transform_1, window_bounds = array<i64: 8, 6>}, {pipeline_mode = #tpu.pipeline_mode<synchronous>, transform_indices = @transform_2, window_bounds = array<i64: 8, 1>}, {pipeline_mode = #tpu.pipeline_mode<synchronous>, transform_indices = @transform_3, window_bounds = array<i64: 8, 216>}, {pipeline_mode = #tpu.pipeline_mode<synchronous>, transform_indices = @transform_4, window_bounds = array<i64: 8, 216>}, {pipeline_mode = #tpu.pipeline_mode<synchronous>, transform_indices = @transform_5, window_bounds = array<i64: 8, 8>}, {pipeline_mode = #tpu.pipeline_mode<synchronous>, transform_indices = @transform_6, window_bounds = array<i64: 27, 512>}, {transform_indices = @transform_7, window_bounds = array<i64: 1, 4, 512>}]} {
    %c0 = arith.constant 0 : index
    %c0_0 = arith.constant 0 : index
    %0 = vector.load %arg2[%c0, %c0_0] : memref<8x6xf32, #tpu.memory_space<vmem>>, vector<8x6xf32>
    %c0_1 = arith.constant 0 : index
    %c0_2 = arith.constant 0 : index
    %c0_3 = arith.constant 0 : index
    %1 = vector.load %arg1[%c0_1, %c0_2, %c0_3] : memref<1x6x512xf32, #tpu.memory_space<vmem>>, vector<1x6x512xf32>
    %2 = vector.shape_cast %1 : vector<1x6x512xf32> to vector<6x512xf32>
    %cst = arith.constant dense<0.000000e+00> : vector<8x512xf32>
    %3 = tpu.matmul %0, %2, %cst {dimension_numbers = #tpu.dot_dimension_numbers<[1], [0], [0], [1], [0, 0, 1, 1], [], []>} : vector<8x6xf32>, vector<6x512xf32>, vector<8x512xf32> -> vector<8x512xf32>
    %c0_4 = arith.constant 0 : index
    %c0_5 = arith.constant 0 : index
    %4 = vector.load %arg3[%c0_4, %c0_5] : memref<8x1xf32, #tpu.memory_space<vmem>>, vector<8x1xf32>
    %5 = vector.broadcast %4 : vector<8x1xf32> to vector<8x512xf32>
    %6 = arith.addf %3, %5 : vector<8x512xf32>
    %c73_i32 = arith.constant 73 : i32
    %7 = tpu.dynamic_rotate %6 by %c73_i32 dim 1 : vector<8x512xf32>, i32 -> vector<8x512xf32>
    %c0_6 = arith.constant 0 : index
    %c0_7 = arith.constant 0 : index
    %8 = vector.load %arg7[%c0_6, %c0_7] : memref<27x512xf32, #tpu.memory_space<vmem>>, vector<1x512xf32>
    %9 = vector.broadcast %8 : vector<1x512xf32> to vector<8x512xf32>
    %10 = arith.mulf %7, %9 : vector<8x512xf32>
    %c0_8 = arith.constant 0 : index
    %c0_9 = arith.constant 0 : index
    %11 = vector.load %arg9[%c0_8, %c0_9] : memref<216x512xf32, #tpu.memory_space<vmem>>, vector<8x512xf32>
    tpu.vector_store %arg9[%c0_8, %c0_9], %10 {strides = array<i32>} : memref<216x512xf32, #tpu.memory_space<vmem>>, vector<8x512xf32>,
    %c72_i32 = arith.constant 72 : i32
    %12 = tpu.dynamic_rotate %6 by %c72_i32 dim 1 : vector<8x512xf32>, i32 -> vector<8x512xf32>
    %c1 = arith.constant 1 : index
    %c0_10 = arith.constant 0 : index
    %13 = vector.load %arg7[%c1, %c0_10] : memref<27x512xf32, #tpu.memory_space<vmem>>, vector<1x512xf32>
    %14 = vector.broadcast %13 : vector<1x512xf32> to vector<8x512xf32>
    %15 = arith.mulf %12, %14 : vector<8x512xf32>
    %c8 = arith.constant 8 : index
    %c0_11 = arith.constant 0 : index
    %16 = vector.load %arg9[%c8, %c0_11] : memref<216x512xf32, #tpu.memory_space<vmem>>, vector<8x512xf32>
    tpu.vector_store %arg9[%c8, %c0_11], %15 {strides = array<i32>} : memref<216x512xf32, #tpu.memory_space<vmem>>, vector<8x512xf32>,
    %c71_i32 = arith.constant 71 : i32
    %17 = tpu.dynamic_rotate %6 by %c71_i32 dim 1 : vector<8x512xf32>, i32 -> vector<8x512xf32>
    %c2 = arith.constant 2 : index
    %c0_12 = arith.constant 0 : index
    %18 = vector.load %arg7[%c2, %c0_12] : memref<27x512xf32, #tpu.memory_space<vmem>>, vector<1x512xf32>
    %19 = vector.broadcast %18 : vector<1x512xf32> to vector<8x512xf32>
    %20 = arith.mulf %17, %19 : vector<8x512xf32>
    %c16 = arith.constant 16 : index
    %c0_13 = arith.constant 0 : index
    %21 = vector.load %arg9[%c16, %c0_13] : memref<216x512xf32, #tpu.memory_space<vmem>>, vector<8x512xf32>
    tpu.vector_store %arg9[%c16, %c0_13], %20 {strides = array<i32>} : memref<216x512xf32, #tpu.memory_space<vmem>>, vector<8x512xf32>,
    %c65_i32 = arith.constant 65 : i32
    %22 = tpu.dynamic_rotate %6 by %c65_i32 dim 1 : vector<8x512xf32>, i32 -> vector<8x512xf32>
    %c3 = arith.constant 3 : index
    %c0_14 = arith.constant 0 : index
    %23 = vector.load %arg7[%c3, %c0_14] : memref<27x512xf32, #tpu.memory_space<vmem>>, vector<1x512xf32>
    %24 = vector.broadcast %23 : vector<1x512xf32> to vector<8x512xf32>
    %25 = arith.mulf %22, %24 : vector<8x512xf32>
    %c24 = arith.constant 24 : index
    %c0_15 = arith.constant 0 : index
    %26 = vector.load %arg9[%c24, %c0_15] : memref<216x512xf32, #tpu.memory_space<vmem>>, vector<8x512xf32>
    tpu.vector_store %arg9[%c24, %c0_15], %25 {strides = array<i32>} : memref<216x512xf32, #tpu.memory_space<vmem>>, vector<8x512xf32>,
    %c64_i32 = arith.constant 64 : i32
    %27 = tpu.dynamic_rotate %6 by %c64_i32 dim 1 : vector<8x512xf32>, i32 -> vector<8x512xf32>
    %c4 = arith.constant 4 : index
    %c0_16 = arith.constant 0 : index
    %28 = vector.load %arg7[%c4, %c0_16] : memref<27x512xf32, #tpu.memory_space<vmem>>, vector<1x512xf32>
    %29 = vector.broadcast %28 : vector<1x512xf32> to vector<8x512xf32>
    %30 = arith.mulf %27, %29 : vector<8x512xf32>
    %c32 = arith.constant 32 : index
    %c0_17 = arith.constant 0 : index
    %31 = vector.load %arg9[%c32, %c0_17] : memref<216x512xf32, #tpu.memory_space<vmem>>, vector<8x512xf32>
    tpu.vector_store %arg9[%c32, %c0_17], %30 {strides = array<i32>} : memref<216x512xf32, #tpu.memory_space<vmem>>, vector<8x512xf32>,
    %c63_i32 = arith.constant 63 : i32
    %32 = tpu.dynamic_rotate %6 by %c63_i32 dim 1 : vector<8x512xf32>, i32 -> vector<8x512xf32>
    %c5 = arith.constant 5 : index
    %c0_18 = arith.constant 0 : index
    %33 = vector.load %arg7[%c5, %c0_18] : memref<27x512xf32, #tpu.memory_space<vmem>>, vector<1x512xf32>
    %34 = vector.broadcast %33 : vector<1x512xf32> to vector<8x512xf32>
    %35 = arith.mulf %32, %34 : vector<8x512xf32>
    %c40 = arith.constant 40 : index
    %c0_19 = arith.constant 0 : index
    %36 = vector.load %arg9[%c40, %c0_19] : memref<216x512xf32, #tpu.memory_space<vmem>>, vector<8x512xf32>
    tpu.vector_store %arg9[%c40, %c0_19], %35 {strides = array<i32>} : memref<216x512xf32, #tpu.memory_space<vmem>>, vector<8x512xf32>,
    %c57_i32 = arith.constant 57 : i32
    %37 = tpu.dynamic_rotate %6 by %c57_i32 dim 1 : vector<8x512xf32>, i32 -> vector<8x512xf32>
    %c6 = arith.constant 6 : index
    %c0_20 = arith.constant 0 : index
    %38 = vector.load %arg7[%c6, %c0_20] : memref<27x512xf32, #tpu.memory_space<vmem>>, vector<1x512xf32>
    %39 = vector.broadcast %38 : vector<1x512xf32> to vector<8x512xf32>
    %40 = arith.mulf %37, %39 : vector<8x512xf32>
    %c48 = arith.constant 48 : index
    %c0_21 = arith.constant 0 : index
    %41 = vector.load %arg9[%c48, %c0_21] : memref<216x512xf32, #tpu.memory_space<vmem>>, vector<8x512xf32>
    tpu.vector_store %arg9[%c48, %c0_21], %40 {strides = array<i32>} : memref<216x512xf32, #tpu.memory_space<vmem>>, vector<8x512xf32>,
    %c56_i32 = arith.constant 56 : i32
    %42 = tpu.dynamic_rotate %6 by %c56_i32 dim 1 : vector<8x512xf32>, i32 -> vector<8x512xf32>
    %c7 = arith.constant 7 : index
    %c0_22 = arith.constant 0 : index
    %43 = vector.load %arg7[%c7, %c0_22] : memref<27x512xf32, #tpu.memory_space<vmem>>, vector<1x512xf32>
    %44 = vector.broadcast %43 : vector<1x512xf32> to vector<8x512xf32>
    %45 = arith.mulf %42, %44 : vector<8x512xf32>
    %c56 = arith.constant 56 : index
    %c0_23 = arith.constant 0 : index
    %46 = vector.load %arg9[%c56, %c0_23] : memref<216x512xf32, #tpu.memory_space<vmem>>, vector<8x512xf32>
    tpu.vector_store %arg9[%c56, %c0_23], %45 {strides = array<i32>} : memref<216x512xf32, #tpu.memory_space<vmem>>, vector<8x512xf32>,
    %c55_i32 = arith.constant 55 : i32
    %47 = tpu.dynamic_rotate %6 by %c55_i32 dim 1 : vector<8x512xf32>, i32 -> vector<8x512xf32>
    %c8_24 = arith.constant 8 : index
    %c0_25 = arith.constant 0 : index
    %48 = vector.load %arg7[%c8_24, %c0_25] : memref<27x512xf32, #tpu.memory_space<vmem>>, vector<1x512xf32>
    %49 = vector.broadcast %48 : vector<1x512xf32> to vector<8x512xf32>
    %50 = arith.mulf %47, %49 : vector<8x512xf32>
    %c64 = arith.constant 64 : index
    %c0_26 = arith.constant 0 : index
    %51 = vector.load %arg9[%c64, %c0_26] : memref<216x512xf32, #tpu.memory_space<vmem>>, vector<8x512xf32>
    tpu.vector_store %arg9[%c64, %c0_26], %50 {strides = array<i32>} : memref<216x512xf32, #tpu.memory_space<vmem>>, vector<8x512xf32>,
    %c9_i32 = arith.constant 9 : i32
    %52 = tpu.dynamic_rotate %6 by %c9_i32 dim 1 : vector<8x512xf32>, i32 -> vector<8x512xf32>
    %c9 = arith.constant 9 : index
    %c0_27 = arith.constant 0 : index
    %53 = vector.load %arg7[%c9, %c0_27] : memref<27x512xf32, #tpu.memory_space<vmem>>, vector<1x512xf32>
    %54 = vector.broadcast %53 : vector<1x512xf32> to vector<8x512xf32>
    %55 = arith.mulf %52, %54 : vector<8x512xf32>
    %c72 = arith.constant 72 : index
    %c0_28 = arith.constant 0 : index
    %56 = vector.load %arg9[%c72, %c0_28] : memref<216x512xf32, #tpu.memory_space<vmem>>, vector<8x512xf32>
    tpu.vector_store %arg9[%c72, %c0_28], %55 {strides = array<i32>} : memref<216x512xf32, #tpu.memory_space<vmem>>, vector<8x512xf32>,
    %c8_i32 = arith.constant 8 : i32
    %57 = tpu.dynamic_rotate %6 by %c8_i32 dim 1 : vector<8x512xf32>, i32 -> vector<8x512xf32>
    %c10 = arith.constant 10 : index
    %c0_29 = arith.constant 0 : index
    %58 = vector.load %arg7[%c10, %c0_29] : memref<27x512xf32, #tpu.memory_space<vmem>>, vector<1x512xf32>
    %59 = vector.broadcast %58 : vector<1x512xf32> to vector<8x512xf32>
    %60 = arith.mulf %57, %59 : vector<8x512xf32>
    %c80 = arith.constant 80 : index
    %c0_30 = arith.constant 0 : index
    %61 = vector.load %arg9[%c80, %c0_30] : memref<216x512xf32, #tpu.memory_space<vmem>>, vector<8x512xf32>
    tpu.vector_store %arg9[%c80, %c0_30], %60 {strides = array<i32>} : memref<216x512xf32, #tpu.memory_space<vmem>>, vector<8x512xf32>,
    %c7_i32 = arith.constant 7 : i32
    %62 = tpu.dynamic_rotate %6 by %c7_i32 dim 1 : vector<8x512xf32>, i32 -> vector<8x512xf32>
    %c11 = arith.constant 11 : index
    %c0_31 = arith.constant 0 : index
    %63 = vector.load %arg7[%c11, %c0_31] : memref<27x512xf32, #tpu.memory_space<vmem>>, vector<1x512xf32>
    %64 = vector.broadcast %63 : vector<1x512xf32> to vector<8x512xf32>
    %65 = arith.mulf %62, %64 : vector<8x512xf32>
    %c88 = arith.constant 88 : index
    %c0_32 = arith.constant 0 : index
    %66 = vector.load %arg9[%c88, %c0_32] : memref<216x512xf32, #tpu.memory_space<vmem>>, vector<8x512xf32>
    tpu.vector_store %arg9[%c88, %c0_32], %65 {strides = array<i32>} : memref<216x512xf32, #tpu.memory_space<vmem>>, vector<8x512xf32>,
    %c1_i32 = arith.constant 1 : i32
    %67 = tpu.dynamic_rotate %6 by %c1_i32 dim 1 : vector<8x512xf32>, i32 -> vector<8x512xf32>
    %c12 = arith.constant 12 : index
    %c0_33 = arith.constant 0 : index
    %68 = vector.load %arg7[%c12, %c0_33] : memref<27x512xf32, #tpu.memory_space<vmem>>, vector<1x512xf32>
    %69 = vector.broadcast %68 : vector<1x512xf32> to vector<8x512xf32>
    %70 = arith.mulf %67, %69 : vector<8x512xf32>
    %c96 = arith.constant 96 : index
    %c0_34 = arith.constant 0 : index
    %71 = vector.load %arg9[%c96, %c0_34] : memref<216x512xf32, #tpu.memory_space<vmem>>, vector<8x512xf32>
    tpu.vector_store %arg9[%c96, %c0_34], %70 {strides = array<i32>} : memref<216x512xf32, #tpu.memory_space<vmem>>, vector<8x512xf32>,
    %c104 = arith.constant 104 : index
    %c0_35 = arith.constant 0 : index
    %72 = vector.load %arg9[%c104, %c0_35] : memref<216x512xf32, #tpu.memory_space<vmem>>, vector<8x512xf32>
    tpu.vector_store %arg9[%c104, %c0_35], %6 {strides = array<i32>} : memref<216x512xf32, #tpu.memory_space<vmem>>, vector<8x512xf32>,
    %c511_i32 = arith.constant 511 : i32
    %73 = tpu.dynamic_rotate %6 by %c511_i32 dim 1 : vector<8x512xf32>, i32 -> vector<8x512xf32>
    %c14 = arith.constant 14 : index
    %c0_36 = arith.constant 0 : index
    %74 = vector.load %arg7[%c14, %c0_36] : memref<27x512xf32, #tpu.memory_space<vmem>>, vector<1x512xf32>
    %75 = vector.broadcast %74 : vector<1x512xf32> to vector<8x512xf32>
    %76 = arith.mulf %73, %75 : vector<8x512xf32>
    %c112 = arith.constant 112 : index
    %c0_37 = arith.constant 0 : index
    %77 = vector.load %arg9[%c112, %c0_37] : memref<216x512xf32, #tpu.memory_space<vmem>>, vector<8x512xf32>
    tpu.vector_store %arg9[%c112, %c0_37], %76 {strides = array<i32>} : memref<216x512xf32, #tpu.memory_space<vmem>>, vector<8x512xf32>,
    %c505_i32 = arith.constant 505 : i32
    %78 = tpu.dynamic_rotate %6 by %c505_i32 dim 1 : vector<8x512xf32>, i32 -> vector<8x512xf32>
    %c15 = arith.constant 15 : index
    %c0_38 = arith.constant 0 : index
    %79 = vector.load %arg7[%c15, %c0_38] : memref<27x512xf32, #tpu.memory_space<vmem>>, vector<1x512xf32>
    %80 = vector.broadcast %79 : vector<1x512xf32> to vector<8x512xf32>
    %81 = arith.mulf %78, %80 : vector<8x512xf32>
    %c120 = arith.constant 120 : index
    %c0_39 = arith.constant 0 : index
    %82 = vector.load %arg9[%c120, %c0_39] : memref<216x512xf32, #tpu.memory_space<vmem>>, vector<8x512xf32>
    tpu.vector_store %arg9[%c120, %c0_39], %81 {strides = array<i32>} : memref<216x512xf32, #tpu.memory_space<vmem>>, vector<8x512xf32>,
    %c504_i32 = arith.constant 504 : i32
    %83 = tpu.dynamic_rotate %6 by %c504_i32 dim 1 : vector<8x512xf32>, i32 -> vector<8x512xf32>
    %c16_40 = arith.constant 16 : index
    %c0_41 = arith.constant 0 : index
    %84 = vector.load %arg7[%c16_40, %c0_41] : memref<27x512xf32, #tpu.memory_space<vmem>>, vector<1x512xf32>
    %85 = vector.broadcast %84 : vector<1x512xf32> to vector<8x512xf32>
    %86 = arith.mulf %83, %85 : vector<8x512xf32>
    %c128 = arith.constant 128 : index
    %c0_42 = arith.constant 0 : index
    %87 = vector.load %arg9[%c128, %c0_42] : memref<216x512xf32, #tpu.memory_space<vmem>>, vector<8x512xf32>
    tpu.vector_store %arg9[%c128, %c0_42], %86 {strides = array<i32>} : memref<216x512xf32, #tpu.memory_space<vmem>>, vector<8x512xf32>,
    %c503_i32 = arith.constant 503 : i32
    %88 = tpu.dynamic_rotate %6 by %c503_i32 dim 1 : vector<8x512xf32>, i32 -> vector<8x512xf32>
    %c17 = arith.constant 17 : index
    %c0_43 = arith.constant 0 : index
    %89 = vector.load %arg7[%c17, %c0_43] : memref<27x512xf32, #tpu.memory_space<vmem>>, vector<1x512xf32>
    %90 = vector.broadcast %89 : vector<1x512xf32> to vector<8x512xf32>
    %91 = arith.mulf %88, %90 : vector<8x512xf32>
    %c136 = arith.constant 136 : index
    %c0_44 = arith.constant 0 : index
    %92 = vector.load %arg9[%c136, %c0_44] : memref<216x512xf32, #tpu.memory_space<vmem>>, vector<8x512xf32>
    tpu.vector_store %arg9[%c136, %c0_44], %91 {strides = array<i32>} : memref<216x512xf32, #tpu.memory_space<vmem>>, vector<8x512xf32>,
    %c457_i32 = arith.constant 457 : i32
    %93 = tpu.dynamic_rotate %6 by %c457_i32 dim 1 : vector<8x512xf32>, i32 -> vector<8x512xf32>
    %c18 = arith.constant 18 : index
    %c0_45 = arith.constant 0 : index
    %94 = vector.load %arg7[%c18, %c0_45] : memref<27x512xf32, #tpu.memory_space<vmem>>, vector<1x512xf32>
    %95 = vector.broadcast %94 : vector<1x512xf32> to vector<8x512xf32>
    %96 = arith.mulf %93, %95 : vector<8x512xf32>
    %c144 = arith.constant 144 : index
    %c0_46 = arith.constant 0 : index
    %97 = vector.load %arg9[%c144, %c0_46] : memref<216x512xf32, #tpu.memory_space<vmem>>, vector<8x512xf32>
    tpu.vector_store %arg9[%c144, %c0_46], %96 {strides = array<i32>} : memref<216x512xf32, #tpu.memory_space<vmem>>, vector<8x512xf32>,
    %c456_i32 = arith.constant 456 : i32
    %98 = tpu.dynamic_rotate %6 by %c456_i32 dim 1 : vector<8x512xf32>, i32 -> vector<8x512xf32>
    %c19 = arith.constant 19 : index
    %c0_47 = arith.constant 0 : index
    %99 = vector.load %arg7[%c19, %c0_47] : memref<27x512xf32, #tpu.memory_space<vmem>>, vector<1x512xf32>
    %100 = vector.broadcast %99 : vector<1x512xf32> to vector<8x512xf32>
    %101 = arith.mulf %98, %100 : vector<8x512xf32>
    %c152 = arith.constant 152 : index
    %c0_48 = arith.constant 0 : index
    %102 = vector.load %arg9[%c152, %c0_48] : memref<216x512xf32, #tpu.memory_space<vmem>>, vector<8x512xf32>
    tpu.vector_store %arg9[%c152, %c0_48], %101 {strides = array<i32>} : memref<216x512xf32, #tpu.memory_space<vmem>>, vector<8x512xf32>,
    %c455_i32 = arith.constant 455 : i32
    %103 = tpu.dynamic_rotate %6 by %c455_i32 dim 1 : vector<8x512xf32>, i32 -> vector<8x512xf32>
    %c20 = arith.constant 20 : index
    %c0_49 = arith.constant 0 : index
    %104 = vector.load %arg7[%c20, %c0_49] : memref<27x512xf32, #tpu.memory_space<vmem>>, vector<1x512xf32>
    %105 = vector.broadcast %104 : vector<1x512xf32> to vector<8x512xf32>
    %106 = arith.mulf %103, %105 : vector<8x512xf32>
    %c160 = arith.constant 160 : index
    %c0_50 = arith.constant 0 : index
    %107 = vector.load %arg9[%c160, %c0_50] : memref<216x512xf32, #tpu.memory_space<vmem>>, vector<8x512xf32>
    tpu.vector_store %arg9[%c160, %c0_50], %106 {strides = array<i32>} : memref<216x512xf32, #tpu.memory_space<vmem>>, vector<8x512xf32>,
    %c449_i32 = arith.constant 449 : i32
    %108 = tpu.dynamic_rotate %6 by %c449_i32 dim 1 : vector<8x512xf32>, i32 -> vector<8x512xf32>
    %c21 = arith.constant 21 : index
    %c0_51 = arith.constant 0 : index
    %109 = vector.load %arg7[%c21, %c0_51] : memref<27x512xf32, #tpu.memory_space<vmem>>, vector<1x512xf32>
    %110 = vector.broadcast %109 : vector<1x512xf32> to vector<8x512xf32>
    %111 = arith.mulf %108, %110 : vector<8x512xf32>
    %c168 = arith.constant 168 : index
    %c0_52 = arith.constant 0 : index
    %112 = vector.load %arg9[%c168, %c0_52] : memref<216x512xf32, #tpu.memory_space<vmem>>, vector<8x512xf32>
    tpu.vector_store %arg9[%c168, %c0_52], %111 {strides = array<i32>} : memref<216x512xf32, #tpu.memory_space<vmem>>, vector<8x512xf32>,
    %c448_i32 = arith.constant 448 : i32
    %113 = tpu.dynamic_rotate %6 by %c448_i32 dim 1 : vector<8x512xf32>, i32 -> vector<8x512xf32>
    %c22 = arith.constant 22 : index
    %c0_53 = arith.constant 0 : index
    %114 = vector.load %arg7[%c22, %c0_53] : memref<27x512xf32, #tpu.memory_space<vmem>>, vector<1x512xf32>
    %115 = vector.broadcast %114 : vector<1x512xf32> to vector<8x512xf32>
    %116 = arith.mulf %113, %115 : vector<8x512xf32>
    %c176 = arith.constant 176 : index
    %c0_54 = arith.constant 0 : index
    %117 = vector.load %arg9[%c176, %c0_54] : memref<216x512xf32, #tpu.memory_space<vmem>>, vector<8x512xf32>
    tpu.vector_store %arg9[%c176, %c0_54], %116 {strides = array<i32>} : memref<216x512xf32, #tpu.memory_space<vmem>>, vector<8x512xf32>,
    %c447_i32 = arith.constant 447 : i32
    %118 = tpu.dynamic_rotate %6 by %c447_i32 dim 1 : vector<8x512xf32>, i32 -> vector<8x512xf32>
    %c23 = arith.constant 23 : index
    %c0_55 = arith.constant 0 : index
    %119 = vector.load %arg7[%c23, %c0_55] : memref<27x512xf32, #tpu.memory_space<vmem>>, vector<1x512xf32>
    %120 = vector.broadcast %119 : vector<1x512xf32> to vector<8x512xf32>
    %121 = arith.mulf %118, %120 : vector<8x512xf32>
    %c184 = arith.constant 184 : index
    %c0_56 = arith.constant 0 : index
    %122 = vector.load %arg9[%c184, %c0_56] : memref<216x512xf32, #tpu.memory_space<vmem>>, vector<8x512xf32>
    tpu.vector_store %arg9[%c184, %c0_56], %121 {strides = array<i32>} : memref<216x512xf32, #tpu.memory_space<vmem>>, vector<8x512xf32>,
    %c441_i32 = arith.constant 441 : i32
    %123 = tpu.dynamic_rotate %6 by %c441_i32 dim 1 : vector<8x512xf32>, i32 -> vector<8x512xf32>
    %c24_57 = arith.constant 24 : index
    %c0_58 = arith.constant 0 : index
    %124 = vector.load %arg7[%c24_57, %c0_58] : memref<27x512xf32, #tpu.memory_space<vmem>>, vector<1x512xf32>
    %125 = vector.broadcast %124 : vector<1x512xf32> to vector<8x512xf32>
    %126 = arith.mulf %123, %125 : vector<8x512xf32>
    %c192 = arith.constant 192 : index
    %c0_59 = arith.constant 0 : index
    %127 = vector.load %arg9[%c192, %c0_59] : memref<216x512xf32, #tpu.memory_space<vmem>>, vector<8x512xf32>
    tpu.vector_store %arg9[%c192, %c0_59], %126 {strides = array<i32>} : memref<216x512xf32, #tpu.memory_space<vmem>>, vector<8x512xf32>,
    %c440_i32 = arith.constant 440 : i32
    %128 = tpu.dynamic_rotate %6 by %c440_i32 dim 1 : vector<8x512xf32>, i32 -> vector<8x512xf32>
    %c25 = arith.constant 25 : index
    %c0_60 = arith.constant 0 : index
    %129 = vector.load %arg7[%c25, %c0_60] : memref<27x512xf32, #tpu.memory_space<vmem>>, vector<1x512xf32>
    %130 = vector.broadcast %129 : vector<1x512xf32> to vector<8x512xf32>
    %131 = arith.mulf %128, %130 : vector<8x512xf32>
    %c200 = arith.constant 200 : index
    %c0_61 = arith.constant 0 : index
    %132 = vector.load %arg9[%c200, %c0_61] : memref<216x512xf32, #tpu.memory_space<vmem>>, vector<8x512xf32>
    tpu.vector_store %arg9[%c200, %c0_61], %131 {strides = array<i32>} : memref<216x512xf32, #tpu.memory_space<vmem>>, vector<8x512xf32>,
    %c439_i32 = arith.constant 439 : i32
    %133 = tpu.dynamic_rotate %6 by %c439_i32 dim 1 : vector<8x512xf32>, i32 -> vector<8x512xf32>
    %c26 = arith.constant 26 : index
    %c0_62 = arith.constant 0 : index
    %134 = vector.load %arg7[%c26, %c0_62] : memref<27x512xf32, #tpu.memory_space<vmem>>, vector<1x512xf32>
    %135 = vector.broadcast %134 : vector<1x512xf32> to vector<8x512xf32>
    %136 = arith.mulf %133, %135 : vector<8x512xf32>
    %c208 = arith.constant 208 : index
    %c0_63 = arith.constant 0 : index
    %137 = vector.load %arg9[%c208, %c0_63] : memref<216x512xf32, #tpu.memory_space<vmem>>, vector<8x512xf32>
    tpu.vector_store %arg9[%c208, %c0_63], %136 {strides = array<i32>} : memref<216x512xf32, #tpu.memory_space<vmem>>, vector<8x512xf32>,
    %c0_64 = arith.constant 0 : index
    %c0_65 = arith.constant 0 : index
    %138 = vector.load %arg4[%c0_64, %c0_65] : memref<8x216xf32, #tpu.memory_space<vmem>>, vector<8x216xf32>
    %c0_66 = arith.constant 0 : index
    %c0_67 = arith.constant 0 : index
    %139 = vector.load %arg9[%c0_66, %c0_67] : memref<216x512xf32, #tpu.memory_space<vmem>>, vector<216x512xf32>
    %cst_68 = arith.constant dense<0.000000e+00> : vector<8x512xf32>
    %140 = tpu.matmul %138, %139, %cst_68 {dimension_numbers = #tpu.dot_dimension_numbers<[1], [0], [0], [1], [0, 0, 1, 1], [], []>} : vector<8x216xf32>, vector<216x512xf32>, vector<8x512xf32> -> vector<8x512xf32>
    %c0_69 = arith.constant 0 : index
    %c0_70 = arith.constant 0 : index
    %141 = vector.load %arg6[%c0_69, %c0_70] : memref<8x8xf32, #tpu.memory_space<vmem>>, vector<8x1xf32>
    %c0_71 = arith.constant 0 : index
    %c1_72 = arith.constant 1 : index
    %142 = vector.load %arg6[%c0_71, %c1_72] : memref<8x8xf32, #tpu.memory_space<vmem>>, vector<8x1xf32>
    %143 = vector.broadcast %141 : vector<8x1xf32> to vector<8x512xf32>
    %144 = arith.mulf %140, %143 : vector<8x512xf32>
    %145 = vector.broadcast %142 : vector<8x1xf32> to vector<8x512xf32>
    %146 = arith.addf %144, %145 : vector<8x512xf32>
    %cst_73 = arith.constant 0.000000e+00 : f32
    %147 = vector.broadcast %cst_73 : f32 to vector<8x512xf32>
    %148 = arith.maximumf %146, %147 : vector<8x512xf32>
    %c73_i32_74 = arith.constant 73 : i32
    %149 = tpu.dynamic_rotate %148 by %c73_i32_74 dim 1 : vector<8x512xf32>, i32 -> vector<8x512xf32>
    %c0_75 = arith.constant 0 : index
    %c0_76 = arith.constant 0 : index
    %150 = vector.load %arg7[%c0_75, %c0_76] : memref<27x512xf32, #tpu.memory_space<vmem>>, vector<1x512xf32>
    %151 = vector.broadcast %150 : vector<1x512xf32> to vector<8x512xf32>
    %152 = arith.mulf %149, %151 : vector<8x512xf32>
    %c0_77 = arith.constant 0 : index
    %c0_78 = arith.constant 0 : index
    %153 = vector.load %arg9[%c0_77, %c0_78] : memref<216x512xf32, #tpu.memory_space<vmem>>, vector<8x512xf32>
    tpu.vector_store %arg9[%c0_77, %c0_78], %152 {strides = array<i32>} : memref<216x512xf32, #tpu.memory_space<vmem>>, vector<8x512xf32>,
    %c72_i32_79 = arith.constant 72 : i32
    %154 = tpu.dynamic_rotate %148 by %c72_i32_79 dim 1 : vector<8x512xf32>, i32 -> vector<8x512xf32>
    %c1_80 = arith.constant 1 : index
    %c0_81 = arith.constant 0 : index
    %155 = vector.load %arg7[%c1_80, %c0_81] : memref<27x512xf32, #tpu.memory_space<vmem>>, vector<1x512xf32>
    %156 = vector.broadcast %155 : vector<1x512xf32> to vector<8x512xf32>
    %157 = arith.mulf %154, %156 : vector<8x512xf32>
    %c8_82 = arith.constant 8 : index
    %c0_83 = arith.constant 0 : index
    %158 = vector.load %arg9[%c8_82, %c0_83] : memref<216x512xf32, #tpu.memory_space<vmem>>, vector<8x512xf32>
    tpu.vector_store %arg9[%c8_82, %c0_83], %157 {strides = array<i32>} : memref<216x512xf32, #tpu.memory_space<vmem>>, vector<8x512xf32>,
    %c71_i32_84 = arith.constant 71 : i32
    %159 = tpu.dynamic_rotate %148 by %c71_i32_84 dim 1 : vector<8x512xf32>, i32 -> vector<8x512xf32>
    %c2_85 = arith.constant 2 : index
    %c0_86 = arith.constant 0 : index
    %160 = vector.load %arg7[%c2_85, %c0_86] : memref<27x512xf32, #tpu.memory_space<vmem>>, vector<1x512xf32>
    %161 = vector.broadcast %160 : vector<1x512xf32> to vector<8x512xf32>
    %162 = arith.mulf %159, %161 : vector<8x512xf32>
    %c16_87 = arith.constant 16 : index
    %c0_88 = arith.constant 0 : index
    %163 = vector.load %arg9[%c16_87, %c0_88] : memref<216x512xf32, #tpu.memory_space<vmem>>, vector<8x512xf32>
    tpu.vector_store %arg9[%c16_87, %c0_88], %162 {strides = array<i32>} : memref<216x512xf32, #tpu.memory_space<vmem>>, vector<8x512xf32>,
    %c65_i32_89 = arith.constant 65 : i32
    %164 = tpu.dynamic_rotate %148 by %c65_i32_89 dim 1 : vector<8x512xf32>, i32 -> vector<8x512xf32>
    %c3_90 = arith.constant 3 : index
    %c0_91 = arith.constant 0 : index
    %165 = vector.load %arg7[%c3_90, %c0_91] : memref<27x512xf32, #tpu.memory_space<vmem>>, vector<1x512xf32>
    %166 = vector.broadcast %165 : vector<1x512xf32> to vector<8x512xf32>
    %167 = arith.mulf %164, %166 : vector<8x512xf32>
    %c24_92 = arith.constant 24 : index
    %c0_93 = arith.constant 0 : index
    %168 = vector.load %arg9[%c24_92, %c0_93] : memref<216x512xf32, #tpu.memory_space<vmem>>, vector<8x512xf32>
    tpu.vector_store %arg9[%c24_92, %c0_93], %167 {strides = array<i32>} : memref<216x512xf32, #tpu.memory_space<vmem>>, vector<8x512xf32>,
    %c64_i32_94 = arith.constant 64 : i32
    %169 = tpu.dynamic_rotate %148 by %c64_i32_94 dim 1 : vector<8x512xf32>, i32 -> vector<8x512xf32>
    %c4_95 = arith.constant 4 : index
    %c0_96 = arith.constant 0 : index
    %170 = vector.load %arg7[%c4_95, %c0_96] : memref<27x512xf32, #tpu.memory_space<vmem>>, vector<1x512xf32>
    %171 = vector.broadcast %170 : vector<1x512xf32> to vector<8x512xf32>
    %172 = arith.mulf %169, %171 : vector<8x512xf32>
    %c32_97 = arith.constant 32 : index
    %c0_98 = arith.constant 0 : index
    %173 = vector.load %arg9[%c32_97, %c0_98] : memref<216x512xf32, #tpu.memory_space<vmem>>, vector<8x512xf32>
    tpu.vector_store %arg9[%c32_97, %c0_98], %172 {strides = array<i32>} : memref<216x512xf32, #tpu.memory_space<vmem>>, vector<8x512xf32>,
    %c63_i32_99 = arith.constant 63 : i32
    %174 = tpu.dynamic_rotate %148 by %c63_i32_99 dim 1 : vector<8x512xf32>, i32 -> vector<8x512xf32>
    %c5_100 = arith.constant 5 : index
    %c0_101 = arith.constant 0 : index
    %175 = vector.load %arg7[%c5_100, %c0_101] : memref<27x512xf32, #tpu.memory_space<vmem>>, vector<1x512xf32>
    %176 = vector.broadcast %175 : vector<1x512xf32> to vector<8x512xf32>
    %177 = arith.mulf %174, %176 : vector<8x512xf32>
    %c40_102 = arith.constant 40 : index
    %c0_103 = arith.constant 0 : index
    %178 = vector.load %arg9[%c40_102, %c0_103] : memref<216x512xf32, #tpu.memory_space<vmem>>, vector<8x512xf32>
    tpu.vector_store %arg9[%c40_102, %c0_103], %177 {strides = array<i32>} : memref<216x512xf32, #tpu.memory_space<vmem>>, vector<8x512xf32>,
    %c57_i32_104 = arith.constant 57 : i32
    %179 = tpu.dynamic_rotate %148 by %c57_i32_104 dim 1 : vector<8x512xf32>, i32 -> vector<8x512xf32>
    %c6_105 = arith.constant 6 : index
    %c0_106 = arith.constant 0 : index
    %180 = vector.load %arg7[%c6_105, %c0_106] : memref<27x512xf32, #tpu.memory_space<vmem>>, vector<1x512xf32>
    %181 = vector.broadcast %180 : vector<1x512xf32> to vector<8x512xf32>
    %182 = arith.mulf %179, %181 : vector<8x512xf32>
    %c48_107 = arith.constant 48 : index
    %c0_108 = arith.constant 0 : index
    %183 = vector.load %arg9[%c48_107, %c0_108] : memref<216x512xf32, #tpu.memory_space<vmem>>, vector<8x512xf32>
    tpu.vector_store %arg9[%c48_107, %c0_108], %182 {strides = array<i32>} : memref<216x512xf32, #tpu.memory_space<vmem>>, vector<8x512xf32>,
    %c56_i32_109 = arith.constant 56 : i32
    %184 = tpu.dynamic_rotate %148 by %c56_i32_109 dim 1 : vector<8x512xf32>, i32 -> vector<8x512xf32>
    %c7_110 = arith.constant 7 : index
    %c0_111 = arith.constant 0 : index
    %185 = vector.load %arg7[%c7_110, %c0_111] : memref<27x512xf32, #tpu.memory_space<vmem>>, vector<1x512xf32>
    %186 = vector.broadcast %185 : vector<1x512xf32> to vector<8x512xf32>
    %187 = arith.mulf %184, %186 : vector<8x512xf32>
    %c56_112 = arith.constant 56 : index
    %c0_113 = arith.constant 0 : index
    %188 = vector.load %arg9[%c56_112, %c0_113] : memref<216x512xf32, #tpu.memory_space<vmem>>, vector<8x512xf32>
    tpu.vector_store %arg9[%c56_112, %c0_113], %187 {strides = array<i32>} : memref<216x512xf32, #tpu.memory_space<vmem>>, vector<8x512xf32>,
    %c55_i32_114 = arith.constant 55 : i32
    %189 = tpu.dynamic_rotate %148 by %c55_i32_114 dim 1 : vector<8x512xf32>, i32 -> vector<8x512xf32>
    %c8_115 = arith.constant 8 : index
    %c0_116 = arith.constant 0 : index
    %190 = vector.load %arg7[%c8_115, %c0_116] : memref<27x512xf32, #tpu.memory_space<vmem>>, vector<1x512xf32>
    %191 = vector.broadcast %190 : vector<1x512xf32> to vector<8x512xf32>
    %192 = arith.mulf %189, %191 : vector<8x512xf32>
    %c64_117 = arith.constant 64 : index
    %c0_118 = arith.constant 0 : index
    %193 = vector.load %arg9[%c64_117, %c0_118] : memref<216x512xf32, #tpu.memory_space<vmem>>, vector<8x512xf32>
    tpu.vector_store %arg9[%c64_117, %c0_118], %192 {strides = array<i32>} : memref<216x512xf32, #tpu.memory_space<vmem>>, vector<8x512xf32>,
    %c9_i32_119 = arith.constant 9 : i32
    %194 = tpu.dynamic_rotate %148 by %c9_i32_119 dim 1 : vector<8x512xf32>, i32 -> vector<8x512xf32>
    %c9_120 = arith.constant 9 : index
    %c0_121 = arith.constant 0 : index
    %195 = vector.load %arg7[%c9_120, %c0_121] : memref<27x512xf32, #tpu.memory_space<vmem>>, vector<1x512xf32>
    %196 = vector.broadcast %195 : vector<1x512xf32> to vector<8x512xf32>
    %197 = arith.mulf %194, %196 : vector<8x512xf32>
    %c72_122 = arith.constant 72 : index
    %c0_123 = arith.constant 0 : index
    %198 = vector.load %arg9[%c72_122, %c0_123] : memref<216x512xf32, #tpu.memory_space<vmem>>, vector<8x512xf32>
    tpu.vector_store %arg9[%c72_122, %c0_123], %197 {strides = array<i32>} : memref<216x512xf32, #tpu.memory_space<vmem>>, vector<8x512xf32>,
    %c8_i32_124 = arith.constant 8 : i32
    %199 = tpu.dynamic_rotate %148 by %c8_i32_124 dim 1 : vector<8x512xf32>, i32 -> vector<8x512xf32>
    %c10_125 = arith.constant 10 : index
    %c0_126 = arith.constant 0 : index
    %200 = vector.load %arg7[%c10_125, %c0_126] : memref<27x512xf32, #tpu.memory_space<vmem>>, vector<1x512xf32>
    %201 = vector.broadcast %200 : vector<1x512xf32> to vector<8x512xf32>
    %202 = arith.mulf %199, %201 : vector<8x512xf32>
    %c80_127 = arith.constant 80 : index
    %c0_128 = arith.constant 0 : index
    %203 = vector.load %arg9[%c80_127, %c0_128] : memref<216x512xf32, #tpu.memory_space<vmem>>, vector<8x512xf32>
    tpu.vector_store %arg9[%c80_127, %c0_128], %202 {strides = array<i32>} : memref<216x512xf32, #tpu.memory_space<vmem>>, vector<8x512xf32>,
    %c7_i32_129 = arith.constant 7 : i32
    %204 = tpu.dynamic_rotate %148 by %c7_i32_129 dim 1 : vector<8x512xf32>, i32 -> vector<8x512xf32>
    %c11_130 = arith.constant 11 : index
    %c0_131 = arith.constant 0 : index
    %205 = vector.load %arg7[%c11_130, %c0_131] : memref<27x512xf32, #tpu.memory_space<vmem>>, vector<1x512xf32>
    %206 = vector.broadcast %205 : vector<1x512xf32> to vector<8x512xf32>
    %207 = arith.mulf %204, %206 : vector<8x512xf32>
    %c88_132 = arith.constant 88 : index
    %c0_133 = arith.constant 0 : index
    %208 = vector.load %arg9[%c88_132, %c0_133] : memref<216x512xf32, #tpu.memory_space<vmem>>, vector<8x512xf32>
    tpu.vector_store %arg9[%c88_132, %c0_133], %207 {strides = array<i32>} : memref<216x512xf32, #tpu.memory_space<vmem>>, vector<8x512xf32>,
    %c1_i32_134 = arith.constant 1 : i32
    %209 = tpu.dynamic_rotate %148 by %c1_i32_134 dim 1 : vector<8x512xf32>, i32 -> vector<8x512xf32>
    %c12_135 = arith.constant 12 : index
    %c0_136 = arith.constant 0 : index
    %210 = vector.load %arg7[%c12_135, %c0_136] : memref<27x512xf32, #tpu.memory_space<vmem>>, vector<1x512xf32>
    %211 = vector.broadcast %210 : vector<1x512xf32> to vector<8x512xf32>
    %212 = arith.mulf %209, %211 : vector<8x512xf32>
    %c96_137 = arith.constant 96 : index
    %c0_138 = arith.constant 0 : index
    %213 = vector.load %arg9[%c96_137, %c0_138] : memref<216x512xf32, #tpu.memory_space<vmem>>, vector<8x512xf32>
    tpu.vector_store %arg9[%c96_137, %c0_138], %212 {strides = array<i32>} : memref<216x512xf32, #tpu.memory_space<vmem>>, vector<8x512xf32>,
    %c104_139 = arith.constant 104 : index
    %c0_140 = arith.constant 0 : index
    %214 = vector.load %arg9[%c104_139, %c0_140] : memref<216x512xf32, #tpu.memory_space<vmem>>, vector<8x512xf32>
    tpu.vector_store %arg9[%c104_139, %c0_140], %148 {strides = array<i32>} : memref<216x512xf32, #tpu.memory_space<vmem>>, vector<8x512xf32>,
    %c511_i32_141 = arith.constant 511 : i32
    %215 = tpu.dynamic_rotate %148 by %c511_i32_141 dim 1 : vector<8x512xf32>, i32 -> vector<8x512xf32>
    %c14_142 = arith.constant 14 : index
    %c0_143 = arith.constant 0 : index
    %216 = vector.load %arg7[%c14_142, %c0_143] : memref<27x512xf32, #tpu.memory_space<vmem>>, vector<1x512xf32>
    %217 = vector.broadcast %216 : vector<1x512xf32> to vector<8x512xf32>
    %218 = arith.mulf %215, %217 : vector<8x512xf32>
    %c112_144 = arith.constant 112 : index
    %c0_145 = arith.constant 0 : index
    %219 = vector.load %arg9[%c112_144, %c0_145] : memref<216x512xf32, #tpu.memory_space<vmem>>, vector<8x512xf32>
    tpu.vector_store %arg9[%c112_144, %c0_145], %218 {strides = array<i32>} : memref<216x512xf32, #tpu.memory_space<vmem>>, vector<8x512xf32>,
    %c505_i32_146 = arith.constant 505 : i32
    %220 = tpu.dynamic_rotate %148 by %c505_i32_146 dim 1 : vector<8x512xf32>, i32 -> vector<8x512xf32>
    %c15_147 = arith.constant 15 : index
    %c0_148 = arith.constant 0 : index
    %221 = vector.load %arg7[%c15_147, %c0_148] : memref<27x512xf32, #tpu.memory_space<vmem>>, vector<1x512xf32>
    %222 = vector.broadcast %221 : vector<1x512xf32> to vector<8x512xf32>
    %223 = arith.mulf %220, %222 : vector<8x512xf32>
    %c120_149 = arith.constant 120 : index
    %c0_150 = arith.constant 0 : index
    %224 = vector.load %arg9[%c120_149, %c0_150] : memref<216x512xf32, #tpu.memory_space<vmem>>, vector<8x512xf32>
    tpu.vector_store %arg9[%c120_149, %c0_150], %223 {strides = array<i32>} : memref<216x512xf32, #tpu.memory_space<vmem>>, vector<8x512xf32>,
    %c504_i32_151 = arith.constant 504 : i32
    %225 = tpu.dynamic_rotate %148 by %c504_i32_151 dim 1 : vector<8x512xf32>, i32 -> vector<8x512xf32>
    %c16_152 = arith.constant 16 : index
    %c0_153 = arith.constant 0 : index
    %226 = vector.load %arg7[%c16_152, %c0_153] : memref<27x512xf32, #tpu.memory_space<vmem>>, vector<1x512xf32>
    %227 = vector.broadcast %226 : vector<1x512xf32> to vector<8x512xf32>
    %228 = arith.mulf %225, %227 : vector<8x512xf32>
    %c128_154 = arith.constant 128 : index
    %c0_155 = arith.constant 0 : index
    %229 = vector.load %arg9[%c128_154, %c0_155] : memref<216x512xf32, #tpu.memory_space<vmem>>, vector<8x512xf32>
    tpu.vector_store %arg9[%c128_154, %c0_155], %228 {strides = array<i32>} : memref<216x512xf32, #tpu.memory_space<vmem>>, vector<8x512xf32>,
    %c503_i32_156 = arith.constant 503 : i32
    %230 = tpu.dynamic_rotate %148 by %c503_i32_156 dim 1 : vector<8x512xf32>, i32 -> vector<8x512xf32>
    %c17_157 = arith.constant 17 : index
    %c0_158 = arith.constant 0 : index
    %231 = vector.load %arg7[%c17_157, %c0_158] : memref<27x512xf32, #tpu.memory_space<vmem>>, vector<1x512xf32>
    %232 = vector.broadcast %231 : vector<1x512xf32> to vector<8x512xf32>
    %233 = arith.mulf %230, %232 : vector<8x512xf32>
    %c136_159 = arith.constant 136 : index
    %c0_160 = arith.constant 0 : index
    %234 = vector.load %arg9[%c136_159, %c0_160] : memref<216x512xf32, #tpu.memory_space<vmem>>, vector<8x512xf32>
    tpu.vector_store %arg9[%c136_159, %c0_160], %233 {strides = array<i32>} : memref<216x512xf32, #tpu.memory_space<vmem>>, vector<8x512xf32>,
    %c457_i32_161 = arith.constant 457 : i32
    %235 = tpu.dynamic_rotate %148 by %c457_i32_161 dim 1 : vector<8x512xf32>, i32 -> vector<8x512xf32>
    %c18_162 = arith.constant 18 : index
    %c0_163 = arith.constant 0 : index
    %236 = vector.load %arg7[%c18_162, %c0_163] : memref<27x512xf32, #tpu.memory_space<vmem>>, vector<1x512xf32>
    %237 = vector.broadcast %236 : vector<1x512xf32> to vector<8x512xf32>
    %238 = arith.mulf %235, %237 : vector<8x512xf32>
    %c144_164 = arith.constant 144 : index
    %c0_165 = arith.constant 0 : index
    %239 = vector.load %arg9[%c144_164, %c0_165] : memref<216x512xf32, #tpu.memory_space<vmem>>, vector<8x512xf32>
    tpu.vector_store %arg9[%c144_164, %c0_165], %238 {strides = array<i32>} : memref<216x512xf32, #tpu.memory_space<vmem>>, vector<8x512xf32>,
    %c456_i32_166 = arith.constant 456 : i32
    %240 = tpu.dynamic_rotate %148 by %c456_i32_166 dim 1 : vector<8x512xf32>, i32 -> vector<8x512xf32>
    %c19_167 = arith.constant 19 : index
    %c0_168 = arith.constant 0 : index
    %241 = vector.load %arg7[%c19_167, %c0_168] : memref<27x512xf32, #tpu.memory_space<vmem>>, vector<1x512xf32>
    %242 = vector.broadcast %241 : vector<1x512xf32> to vector<8x512xf32>
    %243 = arith.mulf %240, %242 : vector<8x512xf32>
    %c152_169 = arith.constant 152 : index
    %c0_170 = arith.constant 0 : index
    %244 = vector.load %arg9[%c152_169, %c0_170] : memref<216x512xf32, #tpu.memory_space<vmem>>, vector<8x512xf32>
    tpu.vector_store %arg9[%c152_169, %c0_170], %243 {strides = array<i32>} : memref<216x512xf32, #tpu.memory_space<vmem>>, vector<8x512xf32>,
    %c455_i32_171 = arith.constant 455 : i32
    %245 = tpu.dynamic_rotate %148 by %c455_i32_171 dim 1 : vector<8x512xf32>, i32 -> vector<8x512xf32>
    %c20_172 = arith.constant 20 : index
    %c0_173 = arith.constant 0 : index
    %246 = vector.load %arg7[%c20_172, %c0_173] : memref<27x512xf32, #tpu.memory_space<vmem>>, vector<1x512xf32>
    %247 = vector.broadcast %246 : vector<1x512xf32> to vector<8x512xf32>
    %248 = arith.mulf %245, %247 : vector<8x512xf32>
    %c160_174 = arith.constant 160 : index
    %c0_175 = arith.constant 0 : index
    %249 = vector.load %arg9[%c160_174, %c0_175] : memref<216x512xf32, #tpu.memory_space<vmem>>, vector<8x512xf32>
    tpu.vector_store %arg9[%c160_174, %c0_175], %248 {strides = array<i32>} : memref<216x512xf32, #tpu.memory_space<vmem>>, vector<8x512xf32>,
    %c449_i32_176 = arith.constant 449 : i32
    %250 = tpu.dynamic_rotate %148 by %c449_i32_176 dim 1 : vector<8x512xf32>, i32 -> vector<8x512xf32>
    %c21_177 = arith.constant 21 : index
    %c0_178 = arith.constant 0 : index
    %251 = vector.load %arg7[%c21_177, %c0_178] : memref<27x512xf32, #tpu.memory_space<vmem>>, vector<1x512xf32>
    %252 = vector.broadcast %251 : vector<1x512xf32> to vector<8x512xf32>
    %253 = arith.mulf %250, %252 : vector<8x512xf32>
    %c168_179 = arith.constant 168 : index
    %c0_180 = arith.constant 0 : index
    %254 = vector.load %arg9[%c168_179, %c0_180] : memref<216x512xf32, #tpu.memory_space<vmem>>, vector<8x512xf32>
    tpu.vector_store %arg9[%c168_179, %c0_180], %253 {strides = array<i32>} : memref<216x512xf32, #tpu.memory_space<vmem>>, vector<8x512xf32>,
    %c448_i32_181 = arith.constant 448 : i32
    %255 = tpu.dynamic_rotate %148 by %c448_i32_181 dim 1 : vector<8x512xf32>, i32 -> vector<8x512xf32>
    %c22_182 = arith.constant 22 : index
    %c0_183 = arith.constant 0 : index
    %256 = vector.load %arg7[%c22_182, %c0_183] : memref<27x512xf32, #tpu.memory_space<vmem>>, vector<1x512xf32>
    %257 = vector.broadcast %256 : vector<1x512xf32> to vector<8x512xf32>
    %258 = arith.mulf %255, %257 : vector<8x512xf32>
    %c176_184 = arith.constant 176 : index
    %c0_185 = arith.constant 0 : index
    %259 = vector.load %arg9[%c176_184, %c0_185] : memref<216x512xf32, #tpu.memory_space<vmem>>, vector<8x512xf32>
    tpu.vector_store %arg9[%c176_184, %c0_185], %258 {strides = array<i32>} : memref<216x512xf32, #tpu.memory_space<vmem>>, vector<8x512xf32>,
    %c447_i32_186 = arith.constant 447 : i32
    %260 = tpu.dynamic_rotate %148 by %c447_i32_186 dim 1 : vector<8x512xf32>, i32 -> vector<8x512xf32>
    %c23_187 = arith.constant 23 : index
    %c0_188 = arith.constant 0 : index
    %261 = vector.load %arg7[%c23_187, %c0_188] : memref<27x512xf32, #tpu.memory_space<vmem>>, vector<1x512xf32>
    %262 = vector.broadcast %261 : vector<1x512xf32> to vector<8x512xf32>
    %263 = arith.mulf %260, %262 : vector<8x512xf32>
    %c184_189 = arith.constant 184 : index
    %c0_190 = arith.constant 0 : index
    %264 = vector.load %arg9[%c184_189, %c0_190] : memref<216x512xf32, #tpu.memory_space<vmem>>, vector<8x512xf32>
    tpu.vector_store %arg9[%c184_189, %c0_190], %263 {strides = array<i32>} : memref<216x512xf32, #tpu.memory_space<vmem>>, vector<8x512xf32>,
    %c441_i32_191 = arith.constant 441 : i32
    %265 = tpu.dynamic_rotate %148 by %c441_i32_191 dim 1 : vector<8x512xf32>, i32 -> vector<8x512xf32>
    %c24_192 = arith.constant 24 : index
    %c0_193 = arith.constant 0 : index
    %266 = vector.load %arg7[%c24_192, %c0_193] : memref<27x512xf32, #tpu.memory_space<vmem>>, vector<1x512xf32>
    %267 = vector.broadcast %266 : vector<1x512xf32> to vector<8x512xf32>
    %268 = arith.mulf %265, %267 : vector<8x512xf32>
    %c192_194 = arith.constant 192 : index
    %c0_195 = arith.constant 0 : index
    %269 = vector.load %arg9[%c192_194, %c0_195] : memref<216x512xf32, #tpu.memory_space<vmem>>, vector<8x512xf32>
    tpu.vector_store %arg9[%c192_194, %c0_195], %268 {strides = array<i32>} : memref<216x512xf32, #tpu.memory_space<vmem>>, vector<8x512xf32>,
    %c440_i32_196 = arith.constant 440 : i32
    %270 = tpu.dynamic_rotate %148 by %c440_i32_196 dim 1 : vector<8x512xf32>, i32 -> vector<8x512xf32>
    %c25_197 = arith.constant 25 : index
    %c0_198 = arith.constant 0 : index
    %271 = vector.load %arg7[%c25_197, %c0_198] : memref<27x512xf32, #tpu.memory_space<vmem>>, vector<1x512xf32>
    %272 = vector.broadcast %271 : vector<1x512xf32> to vector<8x512xf32>
    %273 = arith.mulf %270, %272 : vector<8x512xf32>
    %c200_199 = arith.constant 200 : index
    %c0_200 = arith.constant 0 : index
    %274 = vector.load %arg9[%c200_199, %c0_200] : memref<216x512xf32, #tpu.memory_space<vmem>>, vector<8x512xf32>
    tpu.vector_store %arg9[%c200_199, %c0_200], %273 {strides = array<i32>} : memref<216x512xf32, #tpu.memory_space<vmem>>, vector<8x512xf32>,
    %c439_i32_201 = arith.constant 439 : i32
    %275 = tpu.dynamic_rotate %148 by %c439_i32_201 dim 1 : vector<8x512xf32>, i32 -> vector<8x512xf32>
    %c26_202 = arith.constant 26 : index
    %c0_203 = arith.constant 0 : index
    %276 = vector.load %arg7[%c26_202, %c0_203] : memref<27x512xf32, #tpu.memory_space<vmem>>, vector<1x512xf32>
    %277 = vector.broadcast %276 : vector<1x512xf32> to vector<8x512xf32>
    %278 = arith.mulf %275, %277 : vector<8x512xf32>
    %c208_204 = arith.constant 208 : index
    %c0_205 = arith.constant 0 : index
    %279 = vector.load %arg9[%c208_204, %c0_205] : memref<216x512xf32, #tpu.memory_space<vmem>>, vector<8x512xf32>
    tpu.vector_store %arg9[%c208_204, %c0_205], %278 {strides = array<i32>} : memref<216x512xf32, #tpu.memory_space<vmem>>, vector<8x512xf32>,
    %c0_206 = arith.constant 0 : index
    %c0_207 = arith.constant 0 : index
    %280 = vector.load %arg4[%c0_206, %c0_207] : memref<8x216xf32, #tpu.memory_space<vmem>>, vector<8x216xf32>
    %c0_208 = arith.constant 0 : index
    %c0_209 = arith.constant 0 : index
    %281 = vector.load %arg9[%c0_208, %c0_209] : memref<216x512xf32, #tpu.memory_space<vmem>>, vector<216x512xf32>
    %cst_210 = arith.constant dense<0.000000e+00> : vector<8x512xf32>
    %282 = tpu.matmul %280, %281, %cst_210 {dimension_numbers = #tpu.dot_dimension_numbers<[1], [0], [0], [1], [0, 0, 1, 1], [], []>} : vector<8x216xf32>, vector<216x512xf32>, vector<8x512xf32> -> vector<8x512xf32>
    %c0_211 = arith.constant 0 : index
    %c2_212 = arith.constant 2 : index
    %283 = vector.load %arg6[%c0_211, %c2_212] : memref<8x8xf32, #tpu.memory_space<vmem>>, vector<8x1xf32>
    %c0_213 = arith.constant 0 : index
    %c3_214 = arith.constant 3 : index
    %284 = vector.load %arg6[%c0_213, %c3_214] : memref<8x8xf32, #tpu.memory_space<vmem>>, vector<8x1xf32>
    %285 = vector.broadcast %283 : vector<8x1xf32> to vector<8x512xf32>
    %286 = arith.mulf %282, %285 : vector<8x512xf32>
    %287 = vector.broadcast %284 : vector<8x1xf32> to vector<8x512xf32>
    %288 = arith.addf %286, %287 : vector<8x512xf32>
    %cst_215 = arith.constant 0.000000e+00 : f32
    %289 = vector.broadcast %cst_215 : f32 to vector<8x512xf32>
    %290 = arith.maximumf %288, %289 : vector<8x512xf32>
    %c73_i32_216 = arith.constant 73 : i32
    %291 = tpu.dynamic_rotate %290 by %c73_i32_216 dim 1 : vector<8x512xf32>, i32 -> vector<8x512xf32>
    %c0_217 = arith.constant 0 : index
    %c0_218 = arith.constant 0 : index
    %292 = vector.load %arg7[%c0_217, %c0_218] : memref<27x512xf32, #tpu.memory_space<vmem>>, vector<1x512xf32>
    %293 = vector.broadcast %292 : vector<1x512xf32> to vector<8x512xf32>
    %294 = arith.mulf %291, %293 : vector<8x512xf32>
    %c0_219 = arith.constant 0 : index
    %c0_220 = arith.constant 0 : index
    %295 = vector.load %arg9[%c0_219, %c0_220] : memref<216x512xf32, #tpu.memory_space<vmem>>, vector<8x512xf32>
    tpu.vector_store %arg9[%c0_219, %c0_220], %294 {strides = array<i32>} : memref<216x512xf32, #tpu.memory_space<vmem>>, vector<8x512xf32>,
    %c72_i32_221 = arith.constant 72 : i32
    %296 = tpu.dynamic_rotate %290 by %c72_i32_221 dim 1 : vector<8x512xf32>, i32 -> vector<8x512xf32>
    %c1_222 = arith.constant 1 : index
    %c0_223 = arith.constant 0 : index
    %297 = vector.load %arg7[%c1_222, %c0_223] : memref<27x512xf32, #tpu.memory_space<vmem>>, vector<1x512xf32>
    %298 = vector.broadcast %297 : vector<1x512xf32> to vector<8x512xf32>
    %299 = arith.mulf %296, %298 : vector<8x512xf32>
    %c8_224 = arith.constant 8 : index
    %c0_225 = arith.constant 0 : index
    %300 = vector.load %arg9[%c8_224, %c0_225] : memref<216x512xf32, #tpu.memory_space<vmem>>, vector<8x512xf32>
    tpu.vector_store %arg9[%c8_224, %c0_225], %299 {strides = array<i32>} : memref<216x512xf32, #tpu.memory_space<vmem>>, vector<8x512xf32>,
    %c71_i32_226 = arith.constant 71 : i32
    %301 = tpu.dynamic_rotate %290 by %c71_i32_226 dim 1 : vector<8x512xf32>, i32 -> vector<8x512xf32>
    %c2_227 = arith.constant 2 : index
    %c0_228 = arith.constant 0 : index
    %302 = vector.load %arg7[%c2_227, %c0_228] : memref<27x512xf32, #tpu.memory_space<vmem>>, vector<1x512xf32>
    %303 = vector.broadcast %302 : vector<1x512xf32> to vector<8x512xf32>
    %304 = arith.mulf %301, %303 : vector<8x512xf32>
    %c16_229 = arith.constant 16 : index
    %c0_230 = arith.constant 0 : index
    %305 = vector.load %arg9[%c16_229, %c0_230] : memref<216x512xf32, #tpu.memory_space<vmem>>, vector<8x512xf32>
    tpu.vector_store %arg9[%c16_229, %c0_230], %304 {strides = array<i32>} : memref<216x512xf32, #tpu.memory_space<vmem>>, vector<8x512xf32>,
    %c65_i32_231 = arith.constant 65 : i32
    %306 = tpu.dynamic_rotate %290 by %c65_i32_231 dim 1 : vector<8x512xf32>, i32 -> vector<8x512xf32>
    %c3_232 = arith.constant 3 : index
    %c0_233 = arith.constant 0 : index
    %307 = vector.load %arg7[%c3_232, %c0_233] : memref<27x512xf32, #tpu.memory_space<vmem>>, vector<1x512xf32>
    %308 = vector.broadcast %307 : vector<1x512xf32> to vector<8x512xf32>
    %309 = arith.mulf %306, %308 : vector<8x512xf32>
    %c24_234 = arith.constant 24 : index
    %c0_235 = arith.constant 0 : index
    %310 = vector.load %arg9[%c24_234, %c0_235] : memref<216x512xf32, #tpu.memory_space<vmem>>, vector<8x512xf32>
    tpu.vector_store %arg9[%c24_234, %c0_235], %309 {strides = array<i32>} : memref<216x512xf32, #tpu.memory_space<vmem>>, vector<8x512xf32>,
    %c64_i32_236 = arith.constant 64 : i32
    %311 = tpu.dynamic_rotate %290 by %c64_i32_236 dim 1 : vector<8x512xf32>, i32 -> vector<8x512xf32>
    %c4_237 = arith.constant 4 : index
    %c0_238 = arith.constant 0 : index
    %312 = vector.load %arg7[%c4_237, %c0_238] : memref<27x512xf32, #tpu.memory_space<vmem>>, vector<1x512xf32>
    %313 = vector.broadcast %312 : vector<1x512xf32> to vector<8x512xf32>
    %314 = arith.mulf %311, %313 : vector<8x512xf32>
    %c32_239 = arith.constant 32 : index
    %c0_240 = arith.constant 0 : index
    %315 = vector.load %arg9[%c32_239, %c0_240] : memref<216x512xf32, #tpu.memory_space<vmem>>, vector<8x512xf32>
    tpu.vector_store %arg9[%c32_239, %c0_240], %314 {strides = array<i32>} : memref<216x512xf32, #tpu.memory_space<vmem>>, vector<8x512xf32>,
    %c63_i32_241 = arith.constant 63 : i32
    %316 = tpu.dynamic_rotate %290 by %c63_i32_241 dim 1 : vector<8x512xf32>, i32 -> vector<8x512xf32>
    %c5_242 = arith.constant 5 : index
    %c0_243 = arith.constant 0 : index
    %317 = vector.load %arg7[%c5_242, %c0_243] : memref<27x512xf32, #tpu.memory_space<vmem>>, vector<1x512xf32>
    %318 = vector.broadcast %317 : vector<1x512xf32> to vector<8x512xf32>
    %319 = arith.mulf %316, %318 : vector<8x512xf32>
    %c40_244 = arith.constant 40 : index
    %c0_245 = arith.constant 0 : index
    %320 = vector.load %arg9[%c40_244, %c0_245] : memref<216x512xf32, #tpu.memory_space<vmem>>, vector<8x512xf32>
    tpu.vector_store %arg9[%c40_244, %c0_245], %319 {strides = array<i32>} : memref<216x512xf32, #tpu.memory_space<vmem>>, vector<8x512xf32>,
    %c57_i32_246 = arith.constant 57 : i32
    %321 = tpu.dynamic_rotate %290 by %c57_i32_246 dim 1 : vector<8x512xf32>, i32 -> vector<8x512xf32>
    %c6_247 = arith.constant 6 : index
    %c0_248 = arith.constant 0 : index
    %322 = vector.load %arg7[%c6_247, %c0_248] : memref<27x512xf32, #tpu.memory_space<vmem>>, vector<1x512xf32>
    %323 = vector.broadcast %322 : vector<1x512xf32> to vector<8x512xf32>
    %324 = arith.mulf %321, %323 : vector<8x512xf32>
    %c48_249 = arith.constant 48 : index
    %c0_250 = arith.constant 0 : index
    %325 = vector.load %arg9[%c48_249, %c0_250] : memref<216x512xf32, #tpu.memory_space<vmem>>, vector<8x512xf32>
    tpu.vector_store %arg9[%c48_249, %c0_250], %324 {strides = array<i32>} : memref<216x512xf32, #tpu.memory_space<vmem>>, vector<8x512xf32>,
    %c56_i32_251 = arith.constant 56 : i32
    %326 = tpu.dynamic_rotate %290 by %c56_i32_251 dim 1 : vector<8x512xf32>, i32 -> vector<8x512xf32>
    %c7_252 = arith.constant 7 : index
    %c0_253 = arith.constant 0 : index
    %327 = vector.load %arg7[%c7_252, %c0_253] : memref<27x512xf32, #tpu.memory_space<vmem>>, vector<1x512xf32>
    %328 = vector.broadcast %327 : vector<1x512xf32> to vector<8x512xf32>
    %329 = arith.mulf %326, %328 : vector<8x512xf32>
    %c56_254 = arith.constant 56 : index
    %c0_255 = arith.constant 0 : index
    %330 = vector.load %arg9[%c56_254, %c0_255] : memref<216x512xf32, #tpu.memory_space<vmem>>, vector<8x512xf32>
    tpu.vector_store %arg9[%c56_254, %c0_255], %329 {strides = array<i32>} : memref<216x512xf32, #tpu.memory_space<vmem>>, vector<8x512xf32>,
    %c55_i32_256 = arith.constant 55 : i32
    %331 = tpu.dynamic_rotate %290 by %c55_i32_256 dim 1 : vector<8x512xf32>, i32 -> vector<8x512xf32>
    %c8_257 = arith.constant 8 : index
    %c0_258 = arith.constant 0 : index
    %332 = vector.load %arg7[%c8_257, %c0_258] : memref<27x512xf32, #tpu.memory_space<vmem>>, vector<1x512xf32>
    %333 = vector.broadcast %332 : vector<1x512xf32> to vector<8x512xf32>
    %334 = arith.mulf %331, %333 : vector<8x512xf32>
    %c64_259 = arith.constant 64 : index
    %c0_260 = arith.constant 0 : index
    %335 = vector.load %arg9[%c64_259, %c0_260] : memref<216x512xf32, #tpu.memory_space<vmem>>, vector<8x512xf32>
    tpu.vector_store %arg9[%c64_259, %c0_260], %334 {strides = array<i32>} : memref<216x512xf32, #tpu.memory_space<vmem>>, vector<8x512xf32>,
    %c9_i32_261 = arith.constant 9 : i32
    %336 = tpu.dynamic_rotate %290 by %c9_i32_261 dim 1 : vector<8x512xf32>, i32 -> vector<8x512xf32>
    %c9_262 = arith.constant 9 : index
    %c0_263 = arith.constant 0 : index
    %337 = vector.load %arg7[%c9_262, %c0_263] : memref<27x512xf32, #tpu.memory_space<vmem>>, vector<1x512xf32>
    %338 = vector.broadcast %337 : vector<1x512xf32> to vector<8x512xf32>
    %339 = arith.mulf %336, %338 : vector<8x512xf32>
    %c72_264 = arith.constant 72 : index
    %c0_265 = arith.constant 0 : index
    %340 = vector.load %arg9[%c72_264, %c0_265] : memref<216x512xf32, #tpu.memory_space<vmem>>, vector<8x512xf32>
    tpu.vector_store %arg9[%c72_264, %c0_265], %339 {strides = array<i32>} : memref<216x512xf32, #tpu.memory_space<vmem>>, vector<8x512xf32>,
    %c8_i32_266 = arith.constant 8 : i32
    %341 = tpu.dynamic_rotate %290 by %c8_i32_266 dim 1 : vector<8x512xf32>, i32 -> vector<8x512xf32>
    %c10_267 = arith.constant 10 : index
    %c0_268 = arith.constant 0 : index
    %342 = vector.load %arg7[%c10_267, %c0_268] : memref<27x512xf32, #tpu.memory_space<vmem>>, vector<1x512xf32>
    %343 = vector.broadcast %342 : vector<1x512xf32> to vector<8x512xf32>
    %344 = arith.mulf %341, %343 : vector<8x512xf32>
    %c80_269 = arith.constant 80 : index
    %c0_270 = arith.constant 0 : index
    %345 = vector.load %arg9[%c80_269, %c0_270] : memref<216x512xf32, #tpu.memory_space<vmem>>, vector<8x512xf32>
    tpu.vector_store %arg9[%c80_269, %c0_270], %344 {strides = array<i32>} : memref<216x512xf32, #tpu.memory_space<vmem>>, vector<8x512xf32>,
    %c7_i32_271 = arith.constant 7 : i32
    %346 = tpu.dynamic_rotate %290 by %c7_i32_271 dim 1 : vector<8x512xf32>, i32 -> vector<8x512xf32>
    %c11_272 = arith.constant 11 : index
    %c0_273 = arith.constant 0 : index
    %347 = vector.load %arg7[%c11_272, %c0_273] : memref<27x512xf32, #tpu.memory_space<vmem>>, vector<1x512xf32>
    %348 = vector.broadcast %347 : vector<1x512xf32> to vector<8x512xf32>
    %349 = arith.mulf %346, %348 : vector<8x512xf32>
    %c88_274 = arith.constant 88 : index
    %c0_275 = arith.constant 0 : index
    %350 = vector.load %arg9[%c88_274, %c0_275] : memref<216x512xf32, #tpu.memory_space<vmem>>, vector<8x512xf32>
    tpu.vector_store %arg9[%c88_274, %c0_275], %349 {strides = array<i32>} : memref<216x512xf32, #tpu.memory_space<vmem>>, vector<8x512xf32>,
    %c1_i32_276 = arith.constant 1 : i32
    %351 = tpu.dynamic_rotate %290 by %c1_i32_276 dim 1 : vector<8x512xf32>, i32 -> vector<8x512xf32>
    %c12_277 = arith.constant 12 : index
    %c0_278 = arith.constant 0 : index
    %352 = vector.load %arg7[%c12_277, %c0_278] : memref<27x512xf32, #tpu.memory_space<vmem>>, vector<1x512xf32>
    %353 = vector.broadcast %352 : vector<1x512xf32> to vector<8x512xf32>
    %354 = arith.mulf %351, %353 : vector<8x512xf32>
    %c96_279 = arith.constant 96 : index
    %c0_280 = arith.constant 0 : index
    %355 = vector.load %arg9[%c96_279, %c0_280] : memref<216x512xf32, #tpu.memory_space<vmem>>, vector<8x512xf32>
    tpu.vector_store %arg9[%c96_279, %c0_280], %354 {strides = array<i32>} : memref<216x512xf32, #tpu.memory_space<vmem>>, vector<8x512xf32>,
    %c104_281 = arith.constant 104 : index
    %c0_282 = arith.constant 0 : index
    %356 = vector.load %arg9[%c104_281, %c0_282] : memref<216x512xf32, #tpu.memory_space<vmem>>, vector<8x512xf32>
    tpu.vector_store %arg9[%c104_281, %c0_282], %290 {strides = array<i32>} : memref<216x512xf32, #tpu.memory_space<vmem>>, vector<8x512xf32>,
    %c511_i32_283 = arith.constant 511 : i32
    %357 = tpu.dynamic_rotate %290 by %c511_i32_283 dim 1 : vector<8x512xf32>, i32 -> vector<8x512xf32>
    %c14_284 = arith.constant 14 : index
    %c0_285 = arith.constant 0 : index
    %358 = vector.load %arg7[%c14_284, %c0_285] : memref<27x512xf32, #tpu.memory_space<vmem>>, vector<1x512xf32>
    %359 = vector.broadcast %358 : vector<1x512xf32> to vector<8x512xf32>
    %360 = arith.mulf %357, %359 : vector<8x512xf32>
    %c112_286 = arith.constant 112 : index
    %c0_287 = arith.constant 0 : index
    %361 = vector.load %arg9[%c112_286, %c0_287] : memref<216x512xf32, #tpu.memory_space<vmem>>, vector<8x512xf32>
    tpu.vector_store %arg9[%c112_286, %c0_287], %360 {strides = array<i32>} : memref<216x512xf32, #tpu.memory_space<vmem>>, vector<8x512xf32>,
    %c505_i32_288 = arith.constant 505 : i32
    %362 = tpu.dynamic_rotate %290 by %c505_i32_288 dim 1 : vector<8x512xf32>, i32 -> vector<8x512xf32>
    %c15_289 = arith.constant 15 : index
    %c0_290 = arith.constant 0 : index
    %363 = vector.load %arg7[%c15_289, %c0_290] : memref<27x512xf32, #tpu.memory_space<vmem>>, vector<1x512xf32>
    %364 = vector.broadcast %363 : vector<1x512xf32> to vector<8x512xf32>
    %365 = arith.mulf %362, %364 : vector<8x512xf32>
    %c120_291 = arith.constant 120 : index
    %c0_292 = arith.constant 0 : index
    %366 = vector.load %arg9[%c120_291, %c0_292] : memref<216x512xf32, #tpu.memory_space<vmem>>, vector<8x512xf32>
    tpu.vector_store %arg9[%c120_291, %c0_292], %365 {strides = array<i32>} : memref<216x512xf32, #tpu.memory_space<vmem>>, vector<8x512xf32>,
    %c504_i32_293 = arith.constant 504 : i32
    %367 = tpu.dynamic_rotate %290 by %c504_i32_293 dim 1 : vector<8x512xf32>, i32 -> vector<8x512xf32>
    %c16_294 = arith.constant 16 : index
    %c0_295 = arith.constant 0 : index
    %368 = vector.load %arg7[%c16_294, %c0_295] : memref<27x512xf32, #tpu.memory_space<vmem>>, vector<1x512xf32>
    %369 = vector.broadcast %368 : vector<1x512xf32> to vector<8x512xf32>
    %370 = arith.mulf %367, %369 : vector<8x512xf32>
    %c128_296 = arith.constant 128 : index
    %c0_297 = arith.constant 0 : index
    %371 = vector.load %arg9[%c128_296, %c0_297] : memref<216x512xf32, #tpu.memory_space<vmem>>, vector<8x512xf32>
    tpu.vector_store %arg9[%c128_296, %c0_297], %370 {strides = array<i32>} : memref<216x512xf32, #tpu.memory_space<vmem>>, vector<8x512xf32>,
    %c503_i32_298 = arith.constant 503 : i32
    %372 = tpu.dynamic_rotate %290 by %c503_i32_298 dim 1 : vector<8x512xf32>, i32 -> vector<8x512xf32>
    %c17_299 = arith.constant 17 : index
    %c0_300 = arith.constant 0 : index
    %373 = vector.load %arg7[%c17_299, %c0_300] : memref<27x512xf32, #tpu.memory_space<vmem>>, vector<1x512xf32>
    %374 = vector.broadcast %373 : vector<1x512xf32> to vector<8x512xf32>
    %375 = arith.mulf %372, %374 : vector<8x512xf32>
    %c136_301 = arith.constant 136 : index
    %c0_302 = arith.constant 0 : index
    %376 = vector.load %arg9[%c136_301, %c0_302] : memref<216x512xf32, #tpu.memory_space<vmem>>, vector<8x512xf32>
    tpu.vector_store %arg9[%c136_301, %c0_302], %375 {strides = array<i32>} : memref<216x512xf32, #tpu.memory_space<vmem>>, vector<8x512xf32>,
    %c457_i32_303 = arith.constant 457 : i32
    %377 = tpu.dynamic_rotate %290 by %c457_i32_303 dim 1 : vector<8x512xf32>, i32 -> vector<8x512xf32>
    %c18_304 = arith.constant 18 : index
    %c0_305 = arith.constant 0 : index
    %378 = vector.load %arg7[%c18_304, %c0_305] : memref<27x512xf32, #tpu.memory_space<vmem>>, vector<1x512xf32>
    %379 = vector.broadcast %378 : vector<1x512xf32> to vector<8x512xf32>
    %380 = arith.mulf %377, %379 : vector<8x512xf32>
    %c144_306 = arith.constant 144 : index
    %c0_307 = arith.constant 0 : index
    %381 = vector.load %arg9[%c144_306, %c0_307] : memref<216x512xf32, #tpu.memory_space<vmem>>, vector<8x512xf32>
    tpu.vector_store %arg9[%c144_306, %c0_307], %380 {strides = array<i32>} : memref<216x512xf32, #tpu.memory_space<vmem>>, vector<8x512xf32>,
    %c456_i32_308 = arith.constant 456 : i32
    %382 = tpu.dynamic_rotate %290 by %c456_i32_308 dim 1 : vector<8x512xf32>, i32 -> vector<8x512xf32>
    %c19_309 = arith.constant 19 : index
    %c0_310 = arith.constant 0 : index
    %383 = vector.load %arg7[%c19_309, %c0_310] : memref<27x512xf32, #tpu.memory_space<vmem>>, vector<1x512xf32>
    %384 = vector.broadcast %383 : vector<1x512xf32> to vector<8x512xf32>
    %385 = arith.mulf %382, %384 : vector<8x512xf32>
    %c152_311 = arith.constant 152 : index
    %c0_312 = arith.constant 0 : index
    %386 = vector.load %arg9[%c152_311, %c0_312] : memref<216x512xf32, #tpu.memory_space<vmem>>, vector<8x512xf32>
    tpu.vector_store %arg9[%c152_311, %c0_312], %385 {strides = array<i32>} : memref<216x512xf32, #tpu.memory_space<vmem>>, vector<8x512xf32>,
    %c455_i32_313 = arith.constant 455 : i32
    %387 = tpu.dynamic_rotate %290 by %c455_i32_313 dim 1 : vector<8x512xf32>, i32 -> vector<8x512xf32>
    %c20_314 = arith.constant 20 : index
    %c0_315 = arith.constant 0 : index
    %388 = vector.load %arg7[%c20_314, %c0_315] : memref<27x512xf32, #tpu.memory_space<vmem>>, vector<1x512xf32>
    %389 = vector.broadcast %388 : vector<1x512xf32> to vector<8x512xf32>
    %390 = arith.mulf %387, %389 : vector<8x512xf32>
    %c160_316 = arith.constant 160 : index
    %c0_317 = arith.constant 0 : index
    %391 = vector.load %arg9[%c160_316, %c0_317] : memref<216x512xf32, #tpu.memory_space<vmem>>, vector<8x512xf32>
    tpu.vector_store %arg9[%c160_316, %c0_317], %390 {strides = array<i32>} : memref<216x512xf32, #tpu.memory_space<vmem>>, vector<8x512xf32>,
    %c449_i32_318 = arith.constant 449 : i32
    %392 = tpu.dynamic_rotate %290 by %c449_i32_318 dim 1 : vector<8x512xf32>, i32 -> vector<8x512xf32>
    %c21_319 = arith.constant 21 : index
    %c0_320 = arith.constant 0 : index
    %393 = vector.load %arg7[%c21_319, %c0_320] : memref<27x512xf32, #tpu.memory_space<vmem>>, vector<1x512xf32>
    %394 = vector.broadcast %393 : vector<1x512xf32> to vector<8x512xf32>
    %395 = arith.mulf %392, %394 : vector<8x512xf32>
    %c168_321 = arith.constant 168 : index
    %c0_322 = arith.constant 0 : index
    %396 = vector.load %arg9[%c168_321, %c0_322] : memref<216x512xf32, #tpu.memory_space<vmem>>, vector<8x512xf32>
    tpu.vector_store %arg9[%c168_321, %c0_322], %395 {strides = array<i32>} : memref<216x512xf32, #tpu.memory_space<vmem>>, vector<8x512xf32>,
    %c448_i32_323 = arith.constant 448 : i32
    %397 = tpu.dynamic_rotate %290 by %c448_i32_323 dim 1 : vector<8x512xf32>, i32 -> vector<8x512xf32>
    %c22_324 = arith.constant 22 : index
    %c0_325 = arith.constant 0 : index
    %398 = vector.load %arg7[%c22_324, %c0_325] : memref<27x512xf32, #tpu.memory_space<vmem>>, vector<1x512xf32>
    %399 = vector.broadcast %398 : vector<1x512xf32> to vector<8x512xf32>
    %400 = arith.mulf %397, %399 : vector<8x512xf32>
    %c176_326 = arith.constant 176 : index
    %c0_327 = arith.constant 0 : index
    %401 = vector.load %arg9[%c176_326, %c0_327] : memref<216x512xf32, #tpu.memory_space<vmem>>, vector<8x512xf32>
    tpu.vector_store %arg9[%c176_326, %c0_327], %400 {strides = array<i32>} : memref<216x512xf32, #tpu.memory_space<vmem>>, vector<8x512xf32>,
    %c447_i32_328 = arith.constant 447 : i32
    %402 = tpu.dynamic_rotate %290 by %c447_i32_328 dim 1 : vector<8x512xf32>, i32 -> vector<8x512xf32>
    %c23_329 = arith.constant 23 : index
    %c0_330 = arith.constant 0 : index
    %403 = vector.load %arg7[%c23_329, %c0_330] : memref<27x512xf32, #tpu.memory_space<vmem>>, vector<1x512xf32>
    %404 = vector.broadcast %403 : vector<1x512xf32> to vector<8x512xf32>
    %405 = arith.mulf %402, %404 : vector<8x512xf32>
    %c184_331 = arith.constant 184 : index
    %c0_332 = arith.constant 0 : index
    %406 = vector.load %arg9[%c184_331, %c0_332] : memref<216x512xf32, #tpu.memory_space<vmem>>, vector<8x512xf32>
    tpu.vector_store %arg9[%c184_331, %c0_332], %405 {strides = array<i32>} : memref<216x512xf32, #tpu.memory_space<vmem>>, vector<8x512xf32>,
    %c441_i32_333 = arith.constant 441 : i32
    %407 = tpu.dynamic_rotate %290 by %c441_i32_333 dim 1 : vector<8x512xf32>, i32 -> vector<8x512xf32>
    %c24_334 = arith.constant 24 : index
    %c0_335 = arith.constant 0 : index
    %408 = vector.load %arg7[%c24_334, %c0_335] : memref<27x512xf32, #tpu.memory_space<vmem>>, vector<1x512xf32>
    %409 = vector.broadcast %408 : vector<1x512xf32> to vector<8x512xf32>
    %410 = arith.mulf %407, %409 : vector<8x512xf32>
    %c192_336 = arith.constant 192 : index
    %c0_337 = arith.constant 0 : index
    %411 = vector.load %arg9[%c192_336, %c0_337] : memref<216x512xf32, #tpu.memory_space<vmem>>, vector<8x512xf32>
    tpu.vector_store %arg9[%c192_336, %c0_337], %410 {strides = array<i32>} : memref<216x512xf32, #tpu.memory_space<vmem>>, vector<8x512xf32>,
    %c440_i32_338 = arith.constant 440 : i32
    %412 = tpu.dynamic_rotate %290 by %c440_i32_338 dim 1 : vector<8x512xf32>, i32 -> vector<8x512xf32>
    %c25_339 = arith.constant 25 : index
    %c0_340 = arith.constant 0 : index
    %413 = vector.load %arg7[%c25_339, %c0_340] : memref<27x512xf32, #tpu.memory_space<vmem>>, vector<1x512xf32>
    %414 = vector.broadcast %413 : vector<1x512xf32> to vector<8x512xf32>
    %415 = arith.mulf %412, %414 : vector<8x512xf32>
    %c200_341 = arith.constant 200 : index
    %c0_342 = arith.constant 0 : index
    %416 = vector.load %arg9[%c200_341, %c0_342] : memref<216x512xf32, #tpu.memory_space<vmem>>, vector<8x512xf32>
    tpu.vector_store %arg9[%c200_341, %c0_342], %415 {strides = array<i32>} : memref<216x512xf32, #tpu.memory_space<vmem>>, vector<8x512xf32>,
    %c439_i32_343 = arith.constant 439 : i32
    %417 = tpu.dynamic_rotate %290 by %c439_i32_343 dim 1 : vector<8x512xf32>, i32 -> vector<8x512xf32>
    %c26_344 = arith.constant 26 : index
    %c0_345 = arith.constant 0 : index
    %418 = vector.load %arg7[%c26_344, %c0_345] : memref<27x512xf32, #tpu.memory_space<vmem>>, vector<1x512xf32>
    %419 = vector.broadcast %418 : vector<1x512xf32> to vector<8x512xf32>
    %420 = arith.mulf %417, %419 : vector<8x512xf32>
    %c208_346 = arith.constant 208 : index
    %c0_347 = arith.constant 0 : index
    %421 = vector.load %arg9[%c208_346, %c0_347] : memref<216x512xf32, #tpu.memory_space<vmem>>, vector<8x512xf32>
    tpu.vector_store %arg9[%c208_346, %c0_347], %420 {strides = array<i32>} : memref<216x512xf32, #tpu.memory_space<vmem>>, vector<8x512xf32>,
    %c0_348 = arith.constant 0 : index
    %c0_349 = arith.constant 0 : index
    %422 = vector.load %arg5[%c0_348, %c0_349] : memref<8x216xf32, #tpu.memory_space<vmem>>, vector<8x216xf32>
    %c0_350 = arith.constant 0 : index
    %c0_351 = arith.constant 0 : index
    %423 = vector.load %arg9[%c0_350, %c0_351] : memref<216x512xf32, #tpu.memory_space<vmem>>, vector<216x512xf32>
    %cst_352 = arith.constant dense<0.000000e+00> : vector<8x512xf32>
    %424 = tpu.matmul %422, %423, %cst_352 {dimension_numbers = #tpu.dot_dimension_numbers<[1], [0], [0], [1], [0, 0, 1, 1], [], []>} : vector<8x216xf32>, vector<216x512xf32>, vector<8x512xf32> -> vector<8x512xf32>
    %c0_353 = arith.constant 0 : index
    %c4_354 = arith.constant 4 : index
    %425 = vector.load %arg6[%c0_353, %c4_354] : memref<8x8xf32, #tpu.memory_space<vmem>>, vector<8x1xf32>
    %c0_355 = arith.constant 0 : index
    %c5_356 = arith.constant 5 : index
    %426 = vector.load %arg6[%c0_355, %c5_356] : memref<8x8xf32, #tpu.memory_space<vmem>>, vector<8x1xf32>
    %427 = vector.broadcast %425 : vector<8x1xf32> to vector<8x512xf32>
    %428 = arith.mulf %424, %427 : vector<8x512xf32>
    %429 = vector.broadcast %426 : vector<8x1xf32> to vector<8x512xf32>
    %430 = arith.addf %428, %429 : vector<8x512xf32>
    %cst_357 = arith.constant 0.000000e+00 : f32
    %431 = vector.broadcast %cst_357 : f32 to vector<8x512xf32>
    %432 = arith.maximumf %430, %431 : vector<8x512xf32>
    %c73_i32_358 = arith.constant 73 : i32
    %433 = tpu.dynamic_rotate %432 by %c73_i32_358 dim 1 : vector<8x512xf32>, i32 -> vector<8x512xf32>
    %c0_359 = arith.constant 0 : index
    %c0_360 = arith.constant 0 : index
    %434 = vector.load %arg7[%c0_359, %c0_360] : memref<27x512xf32, #tpu.memory_space<vmem>>, vector<1x512xf32>
    %435 = vector.broadcast %434 : vector<1x512xf32> to vector<8x512xf32>
    %436 = arith.mulf %433, %435 : vector<8x512xf32>
    %c0_361 = arith.constant 0 : index
    %c0_362 = arith.constant 0 : index
    %437 = vector.load %arg9[%c0_361, %c0_362] : memref<216x512xf32, #tpu.memory_space<vmem>>, vector<8x512xf32>
    tpu.vector_store %arg9[%c0_361, %c0_362], %436 {strides = array<i32>} : memref<216x512xf32, #tpu.memory_space<vmem>>, vector<8x512xf32>,
    %c72_i32_363 = arith.constant 72 : i32
    %438 = tpu.dynamic_rotate %432 by %c72_i32_363 dim 1 : vector<8x512xf32>, i32 -> vector<8x512xf32>
    %c1_364 = arith.constant 1 : index
    %c0_365 = arith.constant 0 : index
    %439 = vector.load %arg7[%c1_364, %c0_365] : memref<27x512xf32, #tpu.memory_space<vmem>>, vector<1x512xf32>
    %440 = vector.broadcast %439 : vector<1x512xf32> to vector<8x512xf32>
    %441 = arith.mulf %438, %440 : vector<8x512xf32>
    %c8_366 = arith.constant 8 : index
    %c0_367 = arith.constant 0 : index
    %442 = vector.load %arg9[%c8_366, %c0_367] : memref<216x512xf32, #tpu.memory_space<vmem>>, vector<8x512xf32>
    tpu.vector_store %arg9[%c8_366, %c0_367], %441 {strides = array<i32>} : memref<216x512xf32, #tpu.memory_space<vmem>>, vector<8x512xf32>,
    %c71_i32_368 = arith.constant 71 : i32
    %443 = tpu.dynamic_rotate %432 by %c71_i32_368 dim 1 : vector<8x512xf32>, i32 -> vector<8x512xf32>
    %c2_369 = arith.constant 2 : index
    %c0_370 = arith.constant 0 : index
    %444 = vector.load %arg7[%c2_369, %c0_370] : memref<27x512xf32, #tpu.memory_space<vmem>>, vector<1x512xf32>
    %445 = vector.broadcast %444 : vector<1x512xf32> to vector<8x512xf32>
    %446 = arith.mulf %443, %445 : vector<8x512xf32>
    %c16_371 = arith.constant 16 : index
    %c0_372 = arith.constant 0 : index
    %447 = vector.load %arg9[%c16_371, %c0_372] : memref<216x512xf32, #tpu.memory_space<vmem>>, vector<8x512xf32>
    tpu.vector_store %arg9[%c16_371, %c0_372], %446 {strides = array<i32>} : memref<216x512xf32, #tpu.memory_space<vmem>>, vector<8x512xf32>,
    %c65_i32_373 = arith.constant 65 : i32
    %448 = tpu.dynamic_rotate %432 by %c65_i32_373 dim 1 : vector<8x512xf32>, i32 -> vector<8x512xf32>
    %c3_374 = arith.constant 3 : index
    %c0_375 = arith.constant 0 : index
    %449 = vector.load %arg7[%c3_374, %c0_375] : memref<27x512xf32, #tpu.memory_space<vmem>>, vector<1x512xf32>
    %450 = vector.broadcast %449 : vector<1x512xf32> to vector<8x512xf32>
    %451 = arith.mulf %448, %450 : vector<8x512xf32>
    %c24_376 = arith.constant 24 : index
    %c0_377 = arith.constant 0 : index
    %452 = vector.load %arg9[%c24_376, %c0_377] : memref<216x512xf32, #tpu.memory_space<vmem>>, vector<8x512xf32>
    tpu.vector_store %arg9[%c24_376, %c0_377], %451 {strides = array<i32>} : memref<216x512xf32, #tpu.memory_space<vmem>>, vector<8x512xf32>,
    %c64_i32_378 = arith.constant 64 : i32
    %453 = tpu.dynamic_rotate %432 by %c64_i32_378 dim 1 : vector<8x512xf32>, i32 -> vector<8x512xf32>
    %c4_379 = arith.constant 4 : index
    %c0_380 = arith.constant 0 : index
    %454 = vector.load %arg7[%c4_379, %c0_380] : memref<27x512xf32, #tpu.memory_space<vmem>>, vector<1x512xf32>
    %455 = vector.broadcast %454 : vector<1x512xf32> to vector<8x512xf32>
    %456 = arith.mulf %453, %455 : vector<8x512xf32>
    %c32_381 = arith.constant 32 : index
    %c0_382 = arith.constant 0 : index
    %457 = vector.load %arg9[%c32_381, %c0_382] : memref<216x512xf32, #tpu.memory_space<vmem>>, vector<8x512xf32>
    tpu.vector_store %arg9[%c32_381, %c0_382], %456 {strides = array<i32>} : memref<216x512xf32, #tpu.memory_space<vmem>>, vector<8x512xf32>,
    %c63_i32_383 = arith.constant 63 : i32
    %458 = tpu.dynamic_rotate %432 by %c63_i32_383 dim 1 : vector<8x512xf32>, i32 -> vector<8x512xf32>
    %c5_384 = arith.constant 5 : index
    %c0_385 = arith.constant 0 : index
    %459 = vector.load %arg7[%c5_384, %c0_385] : memref<27x512xf32, #tpu.memory_space<vmem>>, vector<1x512xf32>
    %460 = vector.broadcast %459 : vector<1x512xf32> to vector<8x512xf32>
    %461 = arith.mulf %458, %460 : vector<8x512xf32>
    %c40_386 = arith.constant 40 : index
    %c0_387 = arith.constant 0 : index
    %462 = vector.load %arg9[%c40_386, %c0_387] : memref<216x512xf32, #tpu.memory_space<vmem>>, vector<8x512xf32>
    tpu.vector_store %arg9[%c40_386, %c0_387], %461 {strides = array<i32>} : memref<216x512xf32, #tpu.memory_space<vmem>>, vector<8x512xf32>,
    %c57_i32_388 = arith.constant 57 : i32
    %463 = tpu.dynamic_rotate %432 by %c57_i32_388 dim 1 : vector<8x512xf32>, i32 -> vector<8x512xf32>
    %c6_389 = arith.constant 6 : index
    %c0_390 = arith.constant 0 : index
    %464 = vector.load %arg7[%c6_389, %c0_390] : memref<27x512xf32, #tpu.memory_space<vmem>>, vector<1x512xf32>
    %465 = vector.broadcast %464 : vector<1x512xf32> to vector<8x512xf32>
    %466 = arith.mulf %463, %465 : vector<8x512xf32>
    %c48_391 = arith.constant 48 : index
    %c0_392 = arith.constant 0 : index
    %467 = vector.load %arg9[%c48_391, %c0_392] : memref<216x512xf32, #tpu.memory_space<vmem>>, vector<8x512xf32>
    tpu.vector_store %arg9[%c48_391, %c0_392], %466 {strides = array<i32>} : memref<216x512xf32, #tpu.memory_space<vmem>>, vector<8x512xf32>,
    %c56_i32_393 = arith.constant 56 : i32
    %468 = tpu.dynamic_rotate %432 by %c56_i32_393 dim 1 : vector<8x512xf32>, i32 -> vector<8x512xf32>
    %c7_394 = arith.constant 7 : index
    %c0_395 = arith.constant 0 : index
    %469 = vector.load %arg7[%c7_394, %c0_395] : memref<27x512xf32, #tpu.memory_space<vmem>>, vector<1x512xf32>
    %470 = vector.broadcast %469 : vector<1x512xf32> to vector<8x512xf32>
    %471 = arith.mulf %468, %470 : vector<8x512xf32>
    %c56_396 = arith.constant 56 : index
    %c0_397 = arith.constant 0 : index
    %472 = vector.load %arg9[%c56_396, %c0_397] : memref<216x512xf32, #tpu.memory_space<vmem>>, vector<8x512xf32>
    tpu.vector_store %arg9[%c56_396, %c0_397], %471 {strides = array<i32>} : memref<216x512xf32, #tpu.memory_space<vmem>>, vector<8x512xf32>,
    %c55_i32_398 = arith.constant 55 : i32
    %473 = tpu.dynamic_rotate %432 by %c55_i32_398 dim 1 : vector<8x512xf32>, i32 -> vector<8x512xf32>
    %c8_399 = arith.constant 8 : index
    %c0_400 = arith.constant 0 : index
    %474 = vector.load %arg7[%c8_399, %c0_400] : memref<27x512xf32, #tpu.memory_space<vmem>>, vector<1x512xf32>
    %475 = vector.broadcast %474 : vector<1x512xf32> to vector<8x512xf32>
    %476 = arith.mulf %473, %475 : vector<8x512xf32>
    %c64_401 = arith.constant 64 : index
    %c0_402 = arith.constant 0 : index
    %477 = vector.load %arg9[%c64_401, %c0_402] : memref<216x512xf32, #tpu.memory_space<vmem>>, vector<8x512xf32>
    tpu.vector_store %arg9[%c64_401, %c0_402], %476 {strides = array<i32>} : memref<216x512xf32, #tpu.memory_space<vmem>>, vector<8x512xf32>,
    %c9_i32_403 = arith.constant 9 : i32
    %478 = tpu.dynamic_rotate %432 by %c9_i32_403 dim 1 : vector<8x512xf32>, i32 -> vector<8x512xf32>
    %c9_404 = arith.constant 9 : index
    %c0_405 = arith.constant 0 : index
    %479 = vector.load %arg7[%c9_404, %c0_405] : memref<27x512xf32, #tpu.memory_space<vmem>>, vector<1x512xf32>
    %480 = vector.broadcast %479 : vector<1x512xf32> to vector<8x512xf32>
    %481 = arith.mulf %478, %480 : vector<8x512xf32>
    %c72_406 = arith.constant 72 : index
    %c0_407 = arith.constant 0 : index
    %482 = vector.load %arg9[%c72_406, %c0_407] : memref<216x512xf32, #tpu.memory_space<vmem>>, vector<8x512xf32>
    tpu.vector_store %arg9[%c72_406, %c0_407], %481 {strides = array<i32>} : memref<216x512xf32, #tpu.memory_space<vmem>>, vector<8x512xf32>,
    %c8_i32_408 = arith.constant 8 : i32
    %483 = tpu.dynamic_rotate %432 by %c8_i32_408 dim 1 : vector<8x512xf32>, i32 -> vector<8x512xf32>
    %c10_409 = arith.constant 10 : index
    %c0_410 = arith.constant 0 : index
    %484 = vector.load %arg7[%c10_409, %c0_410] : memref<27x512xf32, #tpu.memory_space<vmem>>, vector<1x512xf32>
    %485 = vector.broadcast %484 : vector<1x512xf32> to vector<8x512xf32>
    %486 = arith.mulf %483, %485 : vector<8x512xf32>
    %c80_411 = arith.constant 80 : index
    %c0_412 = arith.constant 0 : index
    %487 = vector.load %arg9[%c80_411, %c0_412] : memref<216x512xf32, #tpu.memory_space<vmem>>, vector<8x512xf32>
    tpu.vector_store %arg9[%c80_411, %c0_412], %486 {strides = array<i32>} : memref<216x512xf32, #tpu.memory_space<vmem>>, vector<8x512xf32>,
    %c7_i32_413 = arith.constant 7 : i32
    %488 = tpu.dynamic_rotate %432 by %c7_i32_413 dim 1 : vector<8x512xf32>, i32 -> vector<8x512xf32>
    %c11_414 = arith.constant 11 : index
    %c0_415 = arith.constant 0 : index
    %489 = vector.load %arg7[%c11_414, %c0_415] : memref<27x512xf32, #tpu.memory_space<vmem>>, vector<1x512xf32>
    %490 = vector.broadcast %489 : vector<1x512xf32> to vector<8x512xf32>
    %491 = arith.mulf %488, %490 : vector<8x512xf32>
    %c88_416 = arith.constant 88 : index
    %c0_417 = arith.constant 0 : index
    %492 = vector.load %arg9[%c88_416, %c0_417] : memref<216x512xf32, #tpu.memory_space<vmem>>, vector<8x512xf32>
    tpu.vector_store %arg9[%c88_416, %c0_417], %491 {strides = array<i32>} : memref<216x512xf32, #tpu.memory_space<vmem>>, vector<8x512xf32>,
    %c1_i32_418 = arith.constant 1 : i32
    %493 = tpu.dynamic_rotate %432 by %c1_i32_418 dim 1 : vector<8x512xf32>, i32 -> vector<8x512xf32>
    %c12_419 = arith.constant 12 : index
    %c0_420 = arith.constant 0 : index
    %494 = vector.load %arg7[%c12_419, %c0_420] : memref<27x512xf32, #tpu.memory_space<vmem>>, vector<1x512xf32>
    %495 = vector.broadcast %494 : vector<1x512xf32> to vector<8x512xf32>
    %496 = arith.mulf %493, %495 : vector<8x512xf32>
    %c96_421 = arith.constant 96 : index
    %c0_422 = arith.constant 0 : index
    %497 = vector.load %arg9[%c96_421, %c0_422] : memref<216x512xf32, #tpu.memory_space<vmem>>, vector<8x512xf32>
    tpu.vector_store %arg9[%c96_421, %c0_422], %496 {strides = array<i32>} : memref<216x512xf32, #tpu.memory_space<vmem>>, vector<8x512xf32>,
    %c104_423 = arith.constant 104 : index
    %c0_424 = arith.constant 0 : index
    %498 = vector.load %arg9[%c104_423, %c0_424] : memref<216x512xf32, #tpu.memory_space<vmem>>, vector<8x512xf32>
    tpu.vector_store %arg9[%c104_423, %c0_424], %432 {strides = array<i32>} : memref<216x512xf32, #tpu.memory_space<vmem>>, vector<8x512xf32>,
    %c511_i32_425 = arith.constant 511 : i32
    %499 = tpu.dynamic_rotate %432 by %c511_i32_425 dim 1 : vector<8x512xf32>, i32 -> vector<8x512xf32>
    %c14_426 = arith.constant 14 : index
    %c0_427 = arith.constant 0 : index
    %500 = vector.load %arg7[%c14_426, %c0_427] : memref<27x512xf32, #tpu.memory_space<vmem>>, vector<1x512xf32>
    %501 = vector.broadcast %500 : vector<1x512xf32> to vector<8x512xf32>
    %502 = arith.mulf %499, %501 : vector<8x512xf32>
    %c112_428 = arith.constant 112 : index
    %c0_429 = arith.constant 0 : index
    %503 = vector.load %arg9[%c112_428, %c0_429] : memref<216x512xf32, #tpu.memory_space<vmem>>, vector<8x512xf32>
    tpu.vector_store %arg9[%c112_428, %c0_429], %502 {strides = array<i32>} : memref<216x512xf32, #tpu.memory_space<vmem>>, vector<8x512xf32>,
    %c505_i32_430 = arith.constant 505 : i32
    %504 = tpu.dynamic_rotate %432 by %c505_i32_430 dim 1 : vector<8x512xf32>, i32 -> vector<8x512xf32>
    %c15_431 = arith.constant 15 : index
    %c0_432 = arith.constant 0 : index
    %505 = vector.load %arg7[%c15_431, %c0_432] : memref<27x512xf32, #tpu.memory_space<vmem>>, vector<1x512xf32>
    %506 = vector.broadcast %505 : vector<1x512xf32> to vector<8x512xf32>
    %507 = arith.mulf %504, %506 : vector<8x512xf32>
    %c120_433 = arith.constant 120 : index
    %c0_434 = arith.constant 0 : index
    %508 = vector.load %arg9[%c120_433, %c0_434] : memref<216x512xf32, #tpu.memory_space<vmem>>, vector<8x512xf32>
    tpu.vector_store %arg9[%c120_433, %c0_434], %507 {strides = array<i32>} : memref<216x512xf32, #tpu.memory_space<vmem>>, vector<8x512xf32>,
    %c504_i32_435 = arith.constant 504 : i32
    %509 = tpu.dynamic_rotate %432 by %c504_i32_435 dim 1 : vector<8x512xf32>, i32 -> vector<8x512xf32>
    %c16_436 = arith.constant 16 : index
    %c0_437 = arith.constant 0 : index
    %510 = vector.load %arg7[%c16_436, %c0_437] : memref<27x512xf32, #tpu.memory_space<vmem>>, vector<1x512xf32>
    %511 = vector.broadcast %510 : vector<1x512xf32> to vector<8x512xf32>
    %512 = arith.mulf %509, %511 : vector<8x512xf32>
    %c128_438 = arith.constant 128 : index
    %c0_439 = arith.constant 0 : index
    %513 = vector.load %arg9[%c128_438, %c0_439] : memref<216x512xf32, #tpu.memory_space<vmem>>, vector<8x512xf32>
    tpu.vector_store %arg9[%c128_438, %c0_439], %512 {strides = array<i32>} : memref<216x512xf32, #tpu.memory_space<vmem>>, vector<8x512xf32>,
    %c503_i32_440 = arith.constant 503 : i32
    %514 = tpu.dynamic_rotate %432 by %c503_i32_440 dim 1 : vector<8x512xf32>, i32 -> vector<8x512xf32>
    %c17_441 = arith.constant 17 : index
    %c0_442 = arith.constant 0 : index
    %515 = vector.load %arg7[%c17_441, %c0_442] : memref<27x512xf32, #tpu.memory_space<vmem>>, vector<1x512xf32>
    %516 = vector.broadcast %515 : vector<1x512xf32> to vector<8x512xf32>
    %517 = arith.mulf %514, %516 : vector<8x512xf32>
    %c136_443 = arith.constant 136 : index
    %c0_444 = arith.constant 0 : index
    %518 = vector.load %arg9[%c136_443, %c0_444] : memref<216x512xf32, #tpu.memory_space<vmem>>, vector<8x512xf32>
    tpu.vector_store %arg9[%c136_443, %c0_444], %517 {strides = array<i32>} : memref<216x512xf32, #tpu.memory_space<vmem>>, vector<8x512xf32>,
    %c457_i32_445 = arith.constant 457 : i32
    %519 = tpu.dynamic_rotate %432 by %c457_i32_445 dim 1 : vector<8x512xf32>, i32 -> vector<8x512xf32>
    %c18_446 = arith.constant 18 : index
    %c0_447 = arith.constant 0 : index
    %520 = vector.load %arg7[%c18_446, %c0_447] : memref<27x512xf32, #tpu.memory_space<vmem>>, vector<1x512xf32>
    %521 = vector.broadcast %520 : vector<1x512xf32> to vector<8x512xf32>
    %522 = arith.mulf %519, %521 : vector<8x512xf32>
    %c144_448 = arith.constant 144 : index
    %c0_449 = arith.constant 0 : index
    %523 = vector.load %arg9[%c144_448, %c0_449] : memref<216x512xf32, #tpu.memory_space<vmem>>, vector<8x512xf32>
    tpu.vector_store %arg9[%c144_448, %c0_449], %522 {strides = array<i32>} : memref<216x512xf32, #tpu.memory_space<vmem>>, vector<8x512xf32>,
    %c456_i32_450 = arith.constant 456 : i32
    %524 = tpu.dynamic_rotate %432 by %c456_i32_450 dim 1 : vector<8x512xf32>, i32 -> vector<8x512xf32>
    %c19_451 = arith.constant 19 : index
    %c0_452 = arith.constant 0 : index
    %525 = vector.load %arg7[%c19_451, %c0_452] : memref<27x512xf32, #tpu.memory_space<vmem>>, vector<1x512xf32>
    %526 = vector.broadcast %525 : vector<1x512xf32> to vector<8x512xf32>
    %527 = arith.mulf %524, %526 : vector<8x512xf32>
    %c152_453 = arith.constant 152 : index
    %c0_454 = arith.constant 0 : index
    %528 = vector.load %arg9[%c152_453, %c0_454] : memref<216x512xf32, #tpu.memory_space<vmem>>, vector<8x512xf32>
    tpu.vector_store %arg9[%c152_453, %c0_454], %527 {strides = array<i32>} : memref<216x512xf32, #tpu.memory_space<vmem>>, vector<8x512xf32>,
    %c455_i32_455 = arith.constant 455 : i32
    %529 = tpu.dynamic_rotate %432 by %c455_i32_455 dim 1 : vector<8x512xf32>, i32 -> vector<8x512xf32>
    %c20_456 = arith.constant 20 : index
    %c0_457 = arith.constant 0 : index
    %530 = vector.load %arg7[%c20_456, %c0_457] : memref<27x512xf32, #tpu.memory_space<vmem>>, vector<1x512xf32>
    %531 = vector.broadcast %530 : vector<1x512xf32> to vector<8x512xf32>
    %532 = arith.mulf %529, %531 : vector<8x512xf32>
    %c160_458 = arith.constant 160 : index
    %c0_459 = arith.constant 0 : index
    %533 = vector.load %arg9[%c160_458, %c0_459] : memref<216x512xf32, #tpu.memory_space<vmem>>, vector<8x512xf32>
    tpu.vector_store %arg9[%c160_458, %c0_459], %532 {strides = array<i32>} : memref<216x512xf32, #tpu.memory_space<vmem>>, vector<8x512xf32>,
    %c449_i32_460 = arith.constant 449 : i32
    %534 = tpu.dynamic_rotate %432 by %c449_i32_460 dim 1 : vector<8x512xf32>, i32 -> vector<8x512xf32>
    %c21_461 = arith.constant 21 : index
    %c0_462 = arith.constant 0 : index
    %535 = vector.load %arg7[%c21_461, %c0_462] : memref<27x512xf32, #tpu.memory_space<vmem>>, vector<1x512xf32>
    %536 = vector.broadcast %535 : vector<1x512xf32> to vector<8x512xf32>
    %537 = arith.mulf %534, %536 : vector<8x512xf32>
    %c168_463 = arith.constant 168 : index
    %c0_464 = arith.constant 0 : index
    %538 = vector.load %arg9[%c168_463, %c0_464] : memref<216x512xf32, #tpu.memory_space<vmem>>, vector<8x512xf32>
    tpu.vector_store %arg9[%c168_463, %c0_464], %537 {strides = array<i32>} : memref<216x512xf32, #tpu.memory_space<vmem>>, vector<8x512xf32>,
    %c448_i32_465 = arith.constant 448 : i32
    %539 = tpu.dynamic_rotate %432 by %c448_i32_465 dim 1 : vector<8x512xf32>, i32 -> vector<8x512xf32>
    %c22_466 = arith.constant 22 : index
    %c0_467 = arith.constant 0 : index
    %540 = vector.load %arg7[%c22_466, %c0_467] : memref<27x512xf32, #tpu.memory_space<vmem>>, vector<1x512xf32>
    %541 = vector.broadcast %540 : vector<1x512xf32> to vector<8x512xf32>
    %542 = arith.mulf %539, %541 : vector<8x512xf32>
    %c176_468 = arith.constant 176 : index
    %c0_469 = arith.constant 0 : index
    %543 = vector.load %arg9[%c176_468, %c0_469] : memref<216x512xf32, #tpu.memory_space<vmem>>, vector<8x512xf32>
    tpu.vector_store %arg9[%c176_468, %c0_469], %542 {strides = array<i32>} : memref<216x512xf32, #tpu.memory_space<vmem>>, vector<8x512xf32>,
    %c447_i32_470 = arith.constant 447 : i32
    %544 = tpu.dynamic_rotate %432 by %c447_i32_470 dim 1 : vector<8x512xf32>, i32 -> vector<8x512xf32>
    %c23_471 = arith.constant 23 : index
    %c0_472 = arith.constant 0 : index
    %545 = vector.load %arg7[%c23_471, %c0_472] : memref<27x512xf32, #tpu.memory_space<vmem>>, vector<1x512xf32>
    %546 = vector.broadcast %545 : vector<1x512xf32> to vector<8x512xf32>
    %547 = arith.mulf %544, %546 : vector<8x512xf32>
    %c184_473 = arith.constant 184 : index
    %c0_474 = arith.constant 0 : index
    %548 = vector.load %arg9[%c184_473, %c0_474] : memref<216x512xf32, #tpu.memory_space<vmem>>, vector<8x512xf32>
    tpu.vector_store %arg9[%c184_473, %c0_474], %547 {strides = array<i32>} : memref<216x512xf32, #tpu.memory_space<vmem>>, vector<8x512xf32>,
    %c441_i32_475 = arith.constant 441 : i32
    %549 = tpu.dynamic_rotate %432 by %c441_i32_475 dim 1 : vector<8x512xf32>, i32 -> vector<8x512xf32>
    %c24_476 = arith.constant 24 : index
    %c0_477 = arith.constant 0 : index
    %550 = vector.load %arg7[%c24_476, %c0_477] : memref<27x512xf32, #tpu.memory_space<vmem>>, vector<1x512xf32>
    %551 = vector.broadcast %550 : vector<1x512xf32> to vector<8x512xf32>
    %552 = arith.mulf %549, %551 : vector<8x512xf32>
    %c192_478 = arith.constant 192 : index
    %c0_479 = arith.constant 0 : index
    %553 = vector.load %arg9[%c192_478, %c0_479] : memref<216x512xf32, #tpu.memory_space<vmem>>, vector<8x512xf32>
    tpu.vector_store %arg9[%c192_478, %c0_479], %552 {strides = array<i32>} : memref<216x512xf32, #tpu.memory_space<vmem>>, vector<8x512xf32>,
    %c440_i32_480 = arith.constant 440 : i32
    %554 = tpu.dynamic_rotate %432 by %c440_i32_480 dim 1 : vector<8x512xf32>, i32 -> vector<8x512xf32>
    %c25_481 = arith.constant 25 : index
    %c0_482 = arith.constant 0 : index
    %555 = vector.load %arg7[%c25_481, %c0_482] : memref<27x512xf32, #tpu.memory_space<vmem>>, vector<1x512xf32>
    %556 = vector.broadcast %555 : vector<1x512xf32> to vector<8x512xf32>
    %557 = arith.mulf %554, %556 : vector<8x512xf32>
    %c200_483 = arith.constant 200 : index
    %c0_484 = arith.constant 0 : index
    %558 = vector.load %arg9[%c200_483, %c0_484] : memref<216x512xf32, #tpu.memory_space<vmem>>, vector<8x512xf32>
    tpu.vector_store %arg9[%c200_483, %c0_484], %557 {strides = array<i32>} : memref<216x512xf32, #tpu.memory_space<vmem>>, vector<8x512xf32>,
    %c439_i32_485 = arith.constant 439 : i32
    %559 = tpu.dynamic_rotate %432 by %c439_i32_485 dim 1 : vector<8x512xf32>, i32 -> vector<8x512xf32>
    %c26_486 = arith.constant 26 : index
    %c0_487 = arith.constant 0 : index
    %560 = vector.load %arg7[%c26_486, %c0_487] : memref<27x512xf32, #tpu.memory_space<vmem>>, vector<1x512xf32>
    %561 = vector.broadcast %560 : vector<1x512xf32> to vector<8x512xf32>
    %562 = arith.mulf %559, %561 : vector<8x512xf32>
    %c208_488 = arith.constant 208 : index
    %c0_489 = arith.constant 0 : index
    %563 = vector.load %arg9[%c208_488, %c0_489] : memref<216x512xf32, #tpu.memory_space<vmem>>, vector<8x512xf32>
    tpu.vector_store %arg9[%c208_488, %c0_489], %562 {strides = array<i32>} : memref<216x512xf32, #tpu.memory_space<vmem>>, vector<8x512xf32>,
    %c0_490 = arith.constant 0 : index
    %c0_491 = arith.constant 0 : index
    %564 = vector.load %arg5[%c0_490, %c0_491] : memref<8x216xf32, #tpu.memory_space<vmem>>, vector<8x216xf32>
    %c0_492 = arith.constant 0 : index
    %c0_493 = arith.constant 0 : index
    %565 = vector.load %arg9[%c0_492, %c0_493] : memref<216x512xf32, #tpu.memory_space<vmem>>, vector<216x512xf32>
    %cst_494 = arith.constant dense<0.000000e+00> : vector<8x512xf32>
    %566 = tpu.matmul %564, %565, %cst_494 {dimension_numbers = #tpu.dot_dimension_numbers<[1], [0], [0], [1], [0, 0, 1, 1], [], []>} : vector<8x216xf32>, vector<216x512xf32>, vector<8x512xf32> -> vector<8x512xf32>
    %c0_495 = arith.constant 0 : index
    %c6_496 = arith.constant 6 : index
    %567 = vector.load %arg6[%c0_495, %c6_496] : memref<8x8xf32, #tpu.memory_space<vmem>>, vector<8x1xf32>
    %c0_497 = arith.constant 0 : index
    %c7_498 = arith.constant 7 : index
    %568 = vector.load %arg6[%c0_497, %c7_498] : memref<8x8xf32, #tpu.memory_space<vmem>>, vector<8x1xf32>
    %569 = vector.broadcast %567 : vector<8x1xf32> to vector<8x512xf32>
    %570 = arith.mulf %566, %569 : vector<8x512xf32>
    %571 = vector.broadcast %568 : vector<8x1xf32> to vector<8x512xf32>
    %572 = arith.addf %570, %571 : vector<8x512xf32>
    %cst_499 = arith.constant 0.000000e+00 : f32
    %573 = vector.broadcast %cst_499 : f32 to vector<8x512xf32>
    %574 = arith.maximumf %572, %573 : vector<8x512xf32>
    %575 = arith.addf %6, %574 : vector<8x512xf32>
    %576 = vector.extract_strided_slice %575 {offsets = [0, 0], sizes = [4, 512], strides = [1, 1]} : vector<8x512xf32> to vector<4x512xf32>
    %c0_500 = arith.constant 0 : index
    %c0_501 = arith.constant 0 : index
    %c0_502 = arith.constant 0 : index
    %577 = vector.load %arg8[%c0_500, %c0_501, %c0_502] : memref<1x4x512xf32, #tpu.memory_space<vmem>>, vector<1x4x512xf32>
    %578 = vector.shape_cast %577 : vector<1x4x512xf32> to vector<4x512xf32>
    %579 = vector.shape_cast %576 : vector<4x512xf32> to vector<1x4x512xf32>
    tpu.vector_store %arg8[%c0_500, %c0_501, %c0_502], %579 {strides = array<i32>} : memref<1x4x512xf32, #tpu.memory_space<vmem>>, vector<1x4x512xf32>,
    return
  }
  func.func @transform_0(%arg0: i32) -> (i32, i32, i32) {
    %c0_i32 = arith.constant 0 : i32
    %c0_i32_0 = arith.constant 0 : i32
    %c0_i32_1 = arith.constant 0 : i32
    return %arg0, %c0_i32, %c0_i32_0 : i32, i32, i32
  }
  func.func @transform_1(%arg0: i32) -> (i32, i32) {
    %c0_i32 = arith.constant 0 : i32
    %c0_i32_0 = arith.constant 0 : i32
    %c0_i32_1 = arith.constant 0 : i32
    return %c0_i32, %c0_i32_0 : i32, i32
  }
  func.func @transform_2(%arg0: i32) -> (i32, i32) {
    %c0_i32 = arith.constant 0 : i32
    %c0_i32_0 = arith.constant 0 : i32
    %c0_i32_1 = arith.constant 0 : i32
    return %c0_i32, %c0_i32_0 : i32, i32
  }
  func.func @transform_3(%arg0: i32) -> (i32, i32) {
    %c0_i32 = arith.constant 0 : i32
    %c0_i32_0 = arith.constant 0 : i32
    %c0_i32_1 = arith.constant 0 : i32
    return %c0_i32, %c0_i32_0 : i32, i32
  }
  func.func @transform_4(%arg0: i32) -> (i32, i32) {
    %c0_i32 = arith.constant 0 : i32
    %c0_i32_0 = arith.constant 0 : i32
    %c0_i32_1 = arith.constant 0 : i32
    return %c0_i32, %c0_i32_0 : i32, i32
  }
  func.func @transform_5(%arg0: i32) -> (i32, i32) {
    %c0_i32 = arith.constant 0 : i32
    %c0_i32_0 = arith.constant 0 : i32
    %c0_i32_1 = arith.constant 0 : i32
    return %c0_i32, %c0_i32_0 : i32, i32
  }
  func.func @transform_6(%arg0: i32) -> (i32, i32) {
    %c0_i32 = arith.constant 0 : i32
    %c0_i32_0 = arith.constant 0 : i32
    %c0_i32_1 = arith.constant 0 : i32
    return %c0_i32, %c0_i32_0 : i32, i32
  }
  func.func @transform_7(%arg0: i32) -> (i32, i32, i32) {
    %c0_i32 = arith.constant 0 : i32
    %c0_i32_0 = arith.constant 0 : i32
    %c0_i32_1 = arith.constant 0 : i32
    return %arg0, %c0_i32, %c0_i32_0 : i32, i32, i32
  }
}

</mosaic_0001>

<llo_original>
// kernel: _lambda_.1
$region0: #{_lambda_.1}
  #allocation0 [shape = 'u32[]', space=smem, size = 0x4, offset = 0x4, fixed_abs, tag = 'smem constant byte address 0x4 - core index']
  #allocation1 [shape = 'u32[144,128]{1,0:T(1,128)}', space=vmem, size = 0x12000, scoped, tag = 'internal scratch']
  #allocation2 [shape = 'f32[216,512]{1,0:T(8,128)}', space=vmem, size = 0x6c000, scoped, tag = 'scratch operand']
  %s0 = inlined_call_operand.vmem [shape: f32[2,6,512], index: 0, kind: input, shape index: {}]
  %s1 = inlined_call_operand.vmem [shape: f32[8,6], index: 1, kind: input, shape index: {}]
  %s2 = inlined_call_operand.vmem [shape: f32[8,1], index: 2, kind: input, shape index: {}]
  %s3 = inlined_call_operand.vmem [shape: f32[8,216], index: 3, kind: input, shape index: {}]
  %s4 = inlined_call_operand.vmem [shape: f32[8,216], index: 4, kind: input, shape index: {}]
  %s5 = inlined_call_operand.vmem [shape: f32[8,8], index: 5, kind: input, shape index: {}]
  %s6 = inlined_call_operand.vmem [shape: f32[27,512], index: 6, kind: input, shape index: {}]
  %s7 = inlined_call_operand.vmem [shape: f32[2,4,512], index: 7, kind: output, shape index: {}]
  %s8 = sld [smem:[#allocation0]]
  $region61: #{_lambda_.1} parent=0
    _
  %s10 = ssub.s32 1, %s8
  %s11 = scalar_select 0, %s10, %s8
  loop: start=0, step=1, limit=4
  $region2: #{_lambda_.1} parent=0 // loop_pre_header
    _
  $region3: #{_lambda_.1} parent=0 // loop_header
    %s13 = sphi 0, %s17
    %p14 = scmp.ge.s32.totalorder %s13, 4
    %s23 = sphi 0, %s25
    %s26 = sphi 0, %s23
    %s27 = sphi 0, %s26
    %s43 = sphi 0, %s27
    %s47 = sphi 0, %s47
    %s49 = sphi 0, %s47
    %s50 = sphi 0, %s49
    %s64 = sphi 0, %s50
    %s68 = sphi 0, %s68
    %s70 = sphi 0, %s68
    %s71 = sphi 0, %s70
    %s85 = sphi 0, %s71
    %s89 = sphi 0, %s89
    %s91 = sphi 0, %s89
    %s92 = sphi 0, %s91
    %s106 = sphi 0, %s92
    %s110 = sphi 0, %s110
    %s112 = sphi 0, %s110
    %s113 = sphi 0, %s112
    %s127 = sphi 0, %s113
    %s131 = sphi 0, %s131
    %s133 = sphi 0, %s131
    %s134 = sphi 0, %s133
    %s148 = sphi 0, %s134
    %s152 = sphi 0, %s152
    %s154 = sphi 0, %s152
    %s155 = sphi 0, %s154
    %s169 = sphi 0, %s155
    %s175 = sphi 0, %s177
    %s178 = sphi 0, %s175
    %s179 = sphi 0, %s178
    %s195 = sphi 0, %s179
  $region4: #{_lambda_.1} parent=0 // loop_header_branch
    %16 = sbr.rel (%p14) target = $region8
  $region5: #{_lambda_.1} parent=0 // loop_body
    %s18 = ssub.s32 %s13, 1
    %s19 = ssub.s32 %s13, 2
    %s20 = sadd.s32 %s13, 1
    %s21 = ssub.s32 %s13, %s20
    %p22 = scmp.eq.s32.totalorder %s21, 0
    %s24 = sadd.s32 %s23, 1
    %s25 = scalar_select %p22, %s23, %s24
    %p28 = pneg %p22
    %p29 = scmp.eq.s32.totalorder %s13, 1
    %p30 = por %p28, %p29
    %p31 = scmp.ne.s32.totalorder %s23, %s26
    %p32 = scmp.eq.s32.totalorder %s13, 0
    %p33 = por %p31, %p32
    %p34 = scmp.ne.s32.totalorder %s23, %s26
    %p35 = scmp.eq.s32.totalorder %s18, 1
    %p36 = por %p34, %p35
    %p37 = scmp.ne.s32.totalorder %s26, %s27
    %p38 = scmp.eq.s32.totalorder %s18, 0
    %p39 = por %p37, %p38
    %p40 = scmp.ne.s32.totalorder %s26, %s27
    %p41 = scmp.eq.s32.totalorder %s19, 1
    %p42 = por %p40, %p41
    %p44 = scmp.ne.s32.totalorder %s27, %s43
    %p45 = scmp.eq.s32.totalorder %s19, 0
    %p46 = por %p44, %p45
    %s48 = sadd.s32 %s47, 1
    %p51 = scmp.eq.s32.totalorder %s13, 1
    %p52 = scmp.ne.s32.totalorder %s47, %s49
    %p53 = scmp.eq.s32.totalorder %s13, 0
    %p54 = por %p52, %p53
    %p55 = scmp.ne.s32.totalorder %s47, %s49
    %p56 = scmp.eq.s32.totalorder %s18, 1
    %p57 = por %p55, %p56
    %p58 = scmp.ne.s32.totalorder %s49, %s50
    %p59 = scmp.eq.s32.totalorder %s18, 0
    %p60 = por %p58, %p59
    %p61 = scmp.ne.s32.totalorder %s49, %s50
    %p62 = scmp.eq.s32.totalorder %s19, 1
    %p63 = por %p61, %p62
    %p65 = scmp.ne.s32.totalorder %s50, %s64
    %p66 = scmp.eq.s32.totalorder %s19, 0
    %p67 = por %p65, %p66
    %s69 = sadd.s32 %s68, 1
    %p72 = scmp.eq.s32.totalorder %s13, 1
    %p73 = scmp.ne.s32.totalorder %s68, %s70
    %p74 = scmp.eq.s32.totalorder %s13, 0
    %p75 = por %p73, %p74
    %p76 = scmp.ne.s32.totalorder %s68, %s70
    %p77 = scmp.eq.s32.totalorder %s18, 1
    %p78 = por %p76, %p77
    %p79 = scmp.ne.s32.totalorder %s70, %s71
    %p80 = scmp.eq.s32.totalorder %s18, 0
    %p81 = por %p79, %p80
    %p82 = scmp.ne.s32.totalorder %s70, %s71
    %p83 = scmp.eq.s32.totalorder %s19, 1
    %p84 = por %p82, %p83
    %p86 = scmp.ne.s32.totalorder %s71, %s85
    %p87 = scmp.eq.s32.totalorder %s19, 0
    %p88 = por %p86, %p87
    %s90 = sadd.s32 %s89, 1
    %p93 = scmp.eq.s32.totalorder %s13, 1
    %p94 = scmp.ne.s32.totalorder %s89, %s91
    %p95 = scmp.eq.s32.totalorder %s13, 0
    %p96 = por %p94, %p95
    %p97 = scmp.ne.s32.totalorder %s89, %s91
    %p98 = scmp.eq.s32.totalorder %s18, 1
    %p99 = por %p97, %p98
    %p100 = scmp.ne.s32.totalorder %s91, %s92
    %p101 = scmp.eq.s32.totalorder %s18, 0
    %p102 = por %p100, %p101
    %p103 = scmp.ne.s32.totalorder %s91, %s92
    %p104 = scmp.eq.s32.totalorder %s19, 1
    %p105 = por %p103, %p104
    %p107 = scmp.ne.s32.totalorder %s92, %s106
    %p108 = scmp.eq.s32.totalorder %s19, 0
    %p109 = por %p107, %p108
    %s111 = sadd.s32 %s110, 1
    %p114 = scmp.eq.s32.totalorder %s13, 1
    %p115 = scmp.ne.s32.totalorder %s110, %s112
    %p116 = scmp.eq.s32.totalorder %s13, 0
    %p117 = por %p115, %p116
    %p118 = scmp.ne.s32.totalorder %s110, %s112
    %p119 = scmp.eq.s32.totalorder %s18, 1
    %p120 = por %p118, %p119
    %p121 = scmp.ne.s32.totalorder %s112, %s113
    %p122 = scmp.eq.s32.totalorder %s18, 0
    %p123 = por %p121, %p122
    %p124 = scmp.ne.s32.totalorder %s112, %s113
    %p125 = scmp.eq.s32.totalorder %s19, 1
    %p126 = por %p124, %p125
    %p128 = scmp.ne.s32.totalorder %s113, %s127
    %p129 = scmp.eq.s32.totalorder %s19, 0
    %p130 = por %p128, %p129
    %s132 = sadd.s32 %s131, 1
    %p135 = scmp.eq.s32.totalorder %s13, 1
    %p136 = scmp.ne.s32.totalorder %s131, %s133
    %p137 = scmp.eq.s32.totalorder %s13, 0
    %p138 = por %p136, %p137
    %p139 = scmp.ne.s32.totalorder %s131, %s133
    %p140 = scmp.eq.s32.totalorder %s18, 1
    %p141 = por %p139, %p140
    %p142 = scmp.ne.s32.totalorder %s133, %s134
    %p143 = scmp.eq.s32.totalorder %s18, 0
    %p144 = por %p142, %p143
    %p145 = scmp.ne.s32.totalorder %s133, %s134
    %p146 = scmp.eq.s32.totalorder %s19, 1
    %p147 = por %p145, %p146
    %p149 = scmp.ne.s32.totalorder %s134, %s148
    %p150 = scmp.eq.s32.totalorder %s19, 0
    %p151 = por %p149, %p150
    %s153 = sadd.s32 %s152, 1
    %p156 = scmp.eq.s32.totalorder %s13, 1
    %p157 = scmp.ne.s32.totalorder %s152, %s154
    %p158 = scmp.eq.s32.totalorder %s13, 0
    %p159 = por %p157, %p158
    %p160 = scmp.ne.s32.totalorder %s152, %s154
    %p161 = scmp.eq.s32.totalorder %s18, 1
    %p162 = por %p160, %p161
    %p163 = scmp.ne.s32.totalorder %s154, %s155
    %p164 = scmp.eq.s32.totalorder %s18, 0
    %p165 = por %p163, %p164
    %p166 = scmp.ne.s32.totalorder %s154, %s155
    %p167 = scmp.eq.s32.totalorder %s19, 1
    %p168 = por %p166, %p167
    %p170 = scmp.ne.s32.totalorder %s155, %s169
    %p171 = scmp.eq.s32.totalorder %s19, 0
    %p172 = por %p170, %p171
    %s173 = ssub.s32 %s13, %s20
    %p174 = scmp.eq.s32.totalorder %s173, 0
    %s176 = sadd.s32 %s175, 1
    %s177 = scalar_select %p174, %s175, %s176
    %p180 = pneg %p174
    %p181 = scmp.eq.s32.totalorder %s13, 1
    %p182 = por %p180, %p181
    %p183 = scmp.ne.s32.totalorder %s175, %s178
    %p184 = scmp.eq.s32.totalorder %s13, 0
    %p185 = por %p183, %p184
    %p186 = scmp.ne.s32.totalorder %s175, %s178
    %p187 = scmp.eq.s32.totalorder %s18, 1
    %p188 = por %p186, %p187
    %p189 = scmp.ne.s32.totalorder %s178, %s179
    %p190 = scmp.eq.s32.totalorder %s18, 0
    %p191 = por %p189, %p190
    %p192 = scmp.ne.s32.totalorder %s178, %s179
    %p193 = scmp.eq.s32.totalorder %s19, 1
    %p194 = por %p192, %p193
    %p196 = scmp.ne.s32.totalorder %s179, %s195
    %p197 = scmp.eq.s32.totalorder %s19, 0
    %p198 = por %p196, %p197
    %p199 = scmp.le.s32.totalorder 1, %s13
    %p200 = scmp.lt.s32.totalorder %s13, 3
    %p201 = pnand %p199, %p200
    %p202 = pneg %p201
    // Predicated region
    $region9: #{_lambda_.1} parent=5 // pred_check
      _
    $region10: #{_lambda_.1} parent=5 // pred_check_branch
      %204 = sbr.rel (%p201) target = $region12
    $region11: #{_lambda_.1} parent=5 // pred_region
      %s205 = ssub.s32 %s13, 1
      // Predicated region
      $region13: #{_lambda_.1} parent=11 // pred_check
        %p206 = pneg %p60
      $region14: #{_lambda_.1} parent=11 // pred_check_branch
        %208 = sbr.rel (%p206) target = $region16
      $region15: #{_lambda_.1} parent=11 // pred_region
        _
      $region16: #{_lambda_.1} parent=11 // pred_fallthru
        _
      // Predicated region
      $region17: #{_lambda_.1} parent=11 // pred_check
        %p209 = pneg %p81
      $region18: #{_lambda_.1} parent=11 // pred_check_branch
        %211 = sbr.rel (%p209) target = $region20
      $region19: #{_lambda_.1} parent=11 // pred_region
        _
      $region20: #{_lambda_.1} parent=11 // pred_fallthru
        _
      // Predicated region
      $region21: #{_lambda_.1} parent=11 // pred_check
        %p212 = pneg %p102
      $region22: #{_lambda_.1} parent=11 // pred_check_branch
        %214 = sbr.rel (%p212) target = $region24
      $region23: #{_lambda_.1} parent=11 // pred_region
        _
      $region24: #{_lambda_.1} parent=11 // pred_fallthru
        _
      // Predicated region
      $region25: #{_lambda_.1} parent=11 // pred_check
        %p215 = pneg %p123
      $region26: #{_lambda_.1} parent=11 // pred_check_branch
        %217 = sbr.rel (%p215) target = $region28
      $region27: #{_lambda_.1} parent=11 // pred_region
        _
      $region28: #{_lambda_.1} parent=11 // pred_fallthru
        _
      // Predicated region
      $region29: #{_lambda_.1} parent=11 // pred_check
        %p218 = pneg %p144
      $region30: #{_lambda_.1} parent=11 // pred_check_branch
        %220 = sbr.rel (%p218) target = $region32
      $region31: #{_lambda_.1} parent=11 // pred_region
        _
      $region32: #{_lambda_.1} parent=11 // pred_fallthru
        _
      // Predicated region
      $region33: #{_lambda_.1} parent=11 // pred_check
        %p221 = pneg %p165
      $region34: #{_lambda_.1} parent=11 // pred_check_branch
        %223 = sbr.rel (%p221) target = $region36
      $region35: #{_lambda_.1} parent=11 // pred_region
        _
      $region36: #{_lambda_.1} parent=11 // pred_fallthru
        _
    $region12: #{_lambda_.1} parent=5 // pred_fallthru
      _
    %p224 = scmp.lt.s32.totalorder %s13, 2
    // Predicated region
    $region37: #{_lambda_.1} parent=5 // pred_check
      %p225 = pneg %p224
    $region38: #{_lambda_.1} parent=5 // pred_check_branch
      %227 = sbr.rel (%p225) target = $region40
    $region39: #{_lambda_.1} parent=5 // pred_region
      // Predicated region
      $region41: #{_lambda_.1} parent=39 // pred_check
        %p228 = pneg %p33
      $region42: #{_lambda_.1} parent=39 // pred_check_branch
        %230 = sbr.rel (%p228) target = $region44
      $region43: #{_lambda_.1} parent=39 // pred_region
        %p231 = scmp.lt.s32.totalorder %s13, 1
        %s232 = scalar_select %p231, %s13, 1
        %s233 = smul.addr %s232, 4
        %s234 = smul.addr %s233, 8
        %s235 = scalar_lea.vmem %s0, %s234
      $region44: #{_lambda_.1} parent=39 // pred_fallthru
        _
    $region40: #{_lambda_.1} parent=5 // pred_fallthru
      _
    %p236 = scmp.le.s32.totalorder 1, %s13
    %p237 = scmp.lt.s32.totalorder %s13, 3
    %p238 = pnand %p236, %p237
    %p239 = pneg %p238
    // Predicated region
    $region45: #{_lambda_.1} parent=5 // pred_check
      _
    $region46: #{_lambda_.1} parent=5 // pred_check_branch
      %241 = sbr.rel (%p238) target = $region48
    $region47: #{_lambda_.1} parent=5 // pred_region
      %s242 = ssub.s32 %s13, 1
      %p243 = scmp.lt.s32.totalorder %s18, 1
      %s244 = scalar_select %p243, %s18, 1
      %s245 = smul.addr %s244, 4
      %s246 = smul.addr %s245, 8
      %s247 = scalar_lea.vmem %s0, %s246
      %p248 = pneg %p39
      %p249 = pneg %p36
      %p250 = pneg %p60
      %p251 = pneg %p57
      %p252 = pneg %p81
      %p253 = pneg %p78
      %p254 = pneg %p102
      %p255 = pneg %p99
      %p256 = pneg %p123
      %p257 = pneg %p120
      %p258 = pneg %p144
      %p259 = pneg %p141
      %p260 = pneg %p165
      %p261 = pneg %p162
      %p262 = pneg %p191
      %p263 = pneg %p188
      %p264 = scmp.lt.s32.totalorder %s18, 1
      %s265 = scalar_select %p264, %s18, 1
      %s266 = smul.addr %s265, 4
      %s267 = smul.addr %s266, 4
      %s268 = scalar_lea.vmem %s7, %s267
      %p269 = scmp.lt.s32.totalorder %s18, 1
      %s270 = scalar_select %p269, %s18, 1
      %s271 = smul.addr %s270, 4
      %s272 = smul.addr %s271, 8
      %s273 = scalar_lea.vmem %s0, %s272
      %p274 = scmp.lt.s32.totalorder %s18, 1
      %s275 = scalar_select %p274, %s18, 1
      %s276 = smul.addr %s275, 4
      %s277 = smul.addr %s276, 4
      %s278 = scalar_lea.vmem %s7, %s277
      %v279 = vld [vmem:[%s1] sm:$0xff]
      %v280 = vld [vmem:[%s273] sm:$0x3f]
      %v281 = vld [vmem:[%s273 + $0x8] sm:$0x3f]
      %v282 = vld [vmem:[%s273 + $0x10] sm:$0x3f]
      %v283 = vld [vmem:[%s273 + $0x18] sm:$0x3f]
      %v284 = vld [vmem:[%s2] sm:$0xff]
      %286 = vset.pattern.permute.xlu0 0
      %287 = vperm.xlu0 %286, %v284
      %v288 = vpop.permute.xlu0 %287
      %vm290 = vcmask 48128
      %v292 = vsel %vm290, %v279, 0
      %vm294 = vcmask 1045504
      %v296 = vsel %vm294, %v280, 0
      %v299 = vsel %vm294, %v281, 0
      %v302 = vsel %vm294, %v282, 0
      %v305 = vsel %vm294, %v283, 0
      %307 = vmatprep.subr.mxu0 0.0
      %308 = vmatpush1.msra.mxu0 0.0
      %309 = vmatprep.subr.mxu0 0.0
      %310 = vmatpush1.msra.mxu0 0.0
      %311 = vmatprep.subr.mxu0 0.0
      %312 = vmatpush1.msra.mxu0 0.0
      %313 = vmatprep.subr.mxu0 0.0
      %314 = vmatpush1.msra.mxu0 0.0
      %315 = vmatprep.subr.mxu0 0.0
      %316 = vmatpush1.msra.mxu0 0.0
      %317 = vmatprep.subr.mxu0 0.0
      %318 = vmatpush1.msra.mxu0 0.0
      %319 = vmatprep.subr.mxu0 0.0
      %320 = vmatpush1.msra.mxu0 0.0
      %321 = vmatprep.subr.mxu0 0.0
      %322 = vmatpush1.msra.mxu0 0.0
      %323 = vmatprep.subr.mxu0 0.0
      %324 = vmatpush1.msra.mxu0 0.0
      %325 = vmatprep.subr.mxu0 0.0
      %326 = vmatpush1.msra.mxu0 0.0
      %327 = vmatprep.subr.mxu0 0.0
      %328 = vmatpush1.msra.mxu0 0.0
      %329 = vmatprep.subr.mxu0 0.0
      %330 = vmatpush1.msra.mxu0 0.0
      %331 = vmatprep.subr.mxu0 0.0
      %332 = vmatpush1.msra.mxu0 0.0
      %333 = vmatprep.subr.mxu0 0.0
      %334 = vmatpush1.msra.mxu0 0.0
      %335 = vmatprep.subr.mxu0 0.0
      %336 = vmatpush1.msra.mxu0 0.0
      %337 = vmatprep.subr.mxu0 %v299
      %338 = vmatpush1.msra.mxu0 %v296
      %339 = vmatprep.subr.mxu0 0.0
      %340 = vmatpush2.msra.mxu0 0.0
      %341 = vmatprep.subr.mxu0 0.0
      %342 = vmatpush2.msra.mxu0 0.0
      %343 = vmatprep.subr.mxu0 0.0
      %344 = vmatpush2.msra.mxu0 0.0
      %345 = vmatprep.subr.mxu0 0.0
      %346 = vmatpush2.msra.mxu0 0.0
      %347 = vmatprep.subr.mxu0 0.0
      %348 = vmatpush2.msra.mxu0 0.0
      %349 = vmatprep.subr.mxu0 0.0
      %350 = vmatpush2.msra.mxu0 0.0
      %351 = vmatprep.subr.mxu0 0.0
      %352 = vmatpush2.msra.mxu0 0.0
      %353 = vmatprep.subr.mxu0 0.0
      %354 = vmatpush2.msra.mxu0 0.0
      %355 = vmatprep.subr.mxu0 0.0
      %356 = vmatpush2.msra.mxu0 0.0
      %357 = vmatprep.subr.mxu0 0.0
      %358 = vmatpush2.msra.mxu0 0.0
      %359 = vmatprep.subr.mxu0 0.0
      %360 = vmatpush2.msra.mxu0 0.0
      %361 = vmatprep.subr.mxu0 0.0
      %362 = vmatpush2.msra.mxu0 0.0
      %363 = vmatprep.subr.mxu0 0.0
      %364 = vmatpush2.msra.mxu0 0.0
      %365 = vmatprep.subr.mxu0 0.0
      %366 = vmatpush2.msra.mxu0 0.0
      %367 = vmatprep.subr.mxu0 0.0
      %368 = vmatpush2.msra.mxu0 0.0
      %369 = vmatprep.subr.mxu0 0.0
      %370 = vmatpush2.msra.mxu0 0.0
      %371 = vmatprep.mubr.f32.mxu0 0.0
      %372 = vmatmul.mubr.f32.gmra.mxu0 %v292
      %v373 = vpop.f32.mrf.mxu0
      %v374 = vadd.f32 %v288, %v373
      %v375 = vpop.f32.mrf.mxu0
      %v376 = vadd.f32 %v288, %v375
      %377 = vdwg.mxu0
      %378 = vmatprep.subr.mxu0 0.0
      %379 = vmatpush1.msra.mxu0 0.0
      %380 = vmatprep.subr.mxu0 0.0
      %381 = vmatpush1.msra.mxu0 0.0
      %382 = vmatprep.subr.mxu0 0.0
      %383 = vmatpush1.msra.mxu0 0.0
      %384 = vmatprep.subr.mxu0 0.0
      %385 = vmatpush1.msra.mxu0 0.0
      %386 = vmatprep.subr.mxu0 0.0
      %387 = vmatpush1.msra.mxu0 0.0
      %388 = vmatprep.subr.mxu0 0.0
      %389 = vmatpush1.msra.mxu0 0.0
      %390 = vmatprep.subr.mxu0 0.0
      %391 = vmatpush1.msra.mxu0 0.0
      %392 = vmatprep.subr.mxu0 0.0
      %393 = vmatpush1.msra.mxu0 0.0
      %394 = vmatprep.subr.mxu0 0.0
      %395 = vmatpush1.msra.mxu0 0.0
      %396 = vmatprep.subr.mxu0 0.0
      %397 = vmatpush1.msra.mxu0 0.0
      %398 = vmatprep.subr.mxu0 0.0
      %399 = vmatpush1.msra.mxu0 0.0
      %400 = vmatprep.subr.mxu0 0.0
      %401 = vmatpush1.msra.mxu0 0.0
      %402 = vmatprep.subr.mxu0 0.0
      %403 = vmatpush1.msra.mxu0 0.0
      %404 = vmatprep.subr.mxu0 0.0
      %405 = vmatpush1.msra.mxu0 0.0
      %406 = vmatprep.subr.mxu0 0.0
      %407 = vmatpush1.msra.mxu0 0.0
      %408 = vmatprep.subr.mxu0 %v305
      %409 = vmatpush1.msra.mxu0 %v302
      %410 = vmatprep.subr.mxu0 0.0
      %411 = vmatpush2.msra.mxu0 0.0
      %412 = vmatprep.subr.mxu0 0.0
      %413 = vmatpush2.msra.mxu0 0.0
      %414 = vmatprep.subr.mxu0 0.0
      %415 = vmatpush2.msra.mxu0 0.0
      %416 = vmatprep.subr.mxu0 0.0
      %417 = vmatpush2.msra.mxu0 0.0
      %418 = vmatprep.subr.mxu0 0.0
      %419 = vmatpush2.msra.mxu0 0.0
      %420 = vmatprep.subr.mxu0 0.0
      %421 = vmatpush2.msra.mxu0 0.0
      %422 = vmatprep.subr.mxu0 0.0
      %423 = vmatpush2.msra.mxu0 0.0
      %424 = vmatprep.subr.mxu0 0.0
      %425 = vmatpush2.msra.mxu0 0.0
      %426 = vmatprep.subr.mxu0 0.0
      %427 = vmatpush2.msra.mxu0 0.0
      %428 = vmatprep.subr.mxu0 0.0
      %429 = vmatpush2.msra.mxu0 0.0
      %430 = vmatprep.subr.mxu0 0.0
      %431 = vmatpush2.msra.mxu0 0.0
      %432 = vmatprep.subr.mxu0 0.0
      %433 = vmatpush2.msra.mxu0 0.0
      %434 = vmatprep.subr.mxu0 0.0
      %435 = vmatpush2.msra.mxu0 0.0
      %436 = vmatprep.subr.mxu0 0.0
      %437 = vmatpush2.msra.mxu0 0.0
      %438 = vmatprep.subr.mxu0 0.0
      %439 = vmatpush2.msra.mxu0 0.0
      %440 = vmatprep.subr.mxu0 0.0
      %441 = vmatpush2.msra.mxu0 0.0
      %442 = vmatprep.mubr.f32.mxu0 0.0
      %443 = vmatmul.mubr.f32.gmra.mxu0 %v292
      %v444 = vpop.f32.mrf.mxu0
      %v445 = vadd.f32 %v288, %v444
      %v446 = vpop.f32.mrf.mxu0
      %v447 = vadd.f32 %v288, %v446
      %448 = vdwg.mxu0
      %449 = vrot.lane.b32.xlu0 %v374, 73
      %v450 = vpop.permute.xlu0 %449
      %451 = vrot.lane.b32.xlu0 %v376, 73
      %v452 = vpop.permute.xlu0 %451
      %453 = vrot.lane.b32.xlu0 %v445, 73
      %v454 = vpop.permute.xlu0 %453
      %455 = vrot.lane.b32.xlu0 %v447, 73
      %v456 = vpop.permute.xlu0 %455
      %v457 = vlaneseq
      %v458 = vand.u32 %v457, 127
      %vm459 = vcmp.lt.s32.totalorder %v458, 73
      %v460 = vsel %vm459, %v454, %v456
      %v461 = vsel %vm459, %v452, %v454
      %v462 = vsel %vm459, %v450, %v452
      %v463 = vsel %vm459, %v456, %v450
      %v464 = vld [vmem:[%s6] ss:$8 sm:$0xf]
      %v466 = vlaneseq
      %v467 = vshrl.u32 %v466, 7
      %v468 = vsub.s32 0, %v467
      %v469 = vrot.slane %v464, %v468
      %v470 = vlaneseq
      %v471 = vshrl.u32 %v470, 7
      %v472 = vsub.s32 1, %v471
      %v473 = vrot.slane %v464, %v472
      %v474 = vlaneseq
      %v475 = vshrl.u32 %v474, 7
      %v476 = vsub.s32 2, %v475
      %v477 = vrot.slane %v464, %v476
      %v478 = vlaneseq
      %v479 = vshrl.u32 %v478, 7
      %v480 = vsub.s32 3, %v479
      %v481 = vrot.slane %v464, %v480
      %v486 = vmul.f32 %v463, %v469
      %v487 = vmul.f32 %v462, %v473
      %v488 = vmul.f32 %v461, %v477
      %v489 = vmul.f32 %v460, %v481
      %490 = vst [vmem:[#allocation2] sm:$0xff] %v486
      %491 = vst [vmem:[#allocation2 + $0x8] sm:$0xff] %v487
      %492 = vst [vmem:[#allocation2 + $0x10] sm:$0xff] %v488
      %493 = vst [vmem:[#allocation2 + $0x18] sm:$0xff] %v489
      %494 = vrot.lane.b32.xlu0 %v374, 72
      %v495 = vpop.permute.xlu0 %494
      %496 = vrot.lane.b32.xlu0 %v376, 72
      %v497 = vpop.permute.xlu0 %496
      %498 = vrot.lane.b32.xlu0 %v445, 72
      %v499 = vpop.permute.xlu0 %498
      %500 = vrot.lane.b32.xlu0 %v447, 72
      %v501 = vpop.permute.xlu0 %500
      %vm502 = vcmp.lt.s32.totalorder %v458, 72
      %v503 = vsel %vm502, %v499, %v501
      %v504 = vsel %vm502, %v497, %v499
      %v505 = vsel %vm502, %v495, %v497
      %v506 = vsel %vm502, %v501, %v495
      %s507 = scalar_lea.vmem %s6, 1
      %v508 = vld [vmem:[%s507] ss:$8 sm:$0xf]
      %v510 = vlaneseq
      %v511 = vshrl.u32 %v510, 7
      %v512 = vsub.s32 0, %v511
      %v513 = vrot.slane %v508, %v512
      %v514 = vlaneseq
      %v515 = vshrl.u32 %v514, 7
      %v516 = vsub.s32 1, %v515
      %v517 = vrot.slane %v508, %v516
      %v518 = vlaneseq
      %v519 = vshrl.u32 %v518, 7
      %v520 = vsub.s32 2, %v519
      %v521 = vrot.slane %v508, %v520
      %v522 = vlaneseq
      %v523 = vshrl.u32 %v522, 7
      %v524 = vsub.s32 3, %v523
      %v525 = vrot.slane %v508, %v524
      %v530 = vmul.f32 %v506, %v513
      %v531 = vmul.f32 %v505, %v517
      %v532 = vmul.f32 %v504, %v521
      %v533 = vmul.f32 %v503, %v525
      %534 = vst [vmem:[#allocation2 + $0x20] sm:$0xff] %v530
      %535 = vst [vmem:[#allocation2 + $0x28] sm:$0xff] %v531
      %536 = vst [vmem:[#allocation2 + $0x30] sm:$0xff] %v532
      %537 = vst [vmem:[#allocation2 + $0x38] sm:$0xff] %v533
      %538 = vrot.lane.b32.xlu0 %v374, 71
      %v539 = vpop.permute.xlu0 %538
      %540 = vrot.lane.b32.xlu0 %v376, 71
      %v541 = vpop.permute.xlu0 %540
      %542 = vrot.lane.b32.xlu0 %v445, 71
      %v543 = vpop.permute.xlu0 %542
      %544 = vrot.lane.b32.xlu0 %v447, 71
      %v545 = vpop.permute.xlu0 %544
      %vm546 = vcmp.lt.s32.totalorder %v458, 71
      %v547 = vsel %vm546, %v543, %v545
      %v548 = vsel %vm546, %v541, %v543
      %v549 = vsel %vm546, %v539, %v541
      %v550 = vsel %vm546, %v545, %v539
      %s551 = scalar_lea.vmem %s6, 2
      %v552 = vld [vmem:[%s551] ss:$8 sm:$0xf]
      %v554 = vlaneseq
      %v555 = vshrl.u32 %v554, 7
      %v556 = vsub.s32 0, %v555
      %v557 = vrot.slane %v552, %v556
      %v558 = vlaneseq
      %v559 = vshrl.u32 %v558, 7
      %v560 = vsub.s32 1, %v559
      %v561 = vrot.slane %v552, %v560
      %v562 = vlaneseq
      %v563 = vshrl.u32 %v562, 7
      %v564 = vsub.s32 2, %v563
      %v565 = vrot.slane %v552, %v564
      %v566 = vlaneseq
      %v567 = vshrl.u32 %v566, 7
      %v568 = vsub.s32 3, %v567
      %v569 = vrot.slane %v552, %v568
      %v574 = vmul.f32 %v550, %v557
      %v575 = vmul.f32 %v549, %v561
      %v576 = vmul.f32 %v548, %v565
      %v577 = vmul.f32 %v547, %v569
      %578 = vst [vmem:[#allocation2 + $0x40] sm:$0xff] %v574
      %579 = vst [vmem:[#allocation2 + $0x48] sm:$0xff] %v575
      %580 = vst [vmem:[#allocation2 + $0x50] sm:$0xff] %v576
      %581 = vst [vmem:[#allocation2 + $0x58] sm:$0xff] %v577
      %582 = vrot.lane.b32.xlu0 %v374, 65
      %v583 = vpop.permute.xlu0 %582
      %584 = vrot.lane.b32.xlu0 %v376, 65
      %v585 = vpop.permute.xlu0 %584
      %586 = vrot.lane.b32.xlu0 %v445, 65
      %v587 = vpop.permute.xlu0 %586
      %588 = vrot.lane.b32.xlu0 %v447, 65
      %v589 = vpop.permute.xlu0 %588
      %vm590 = vcmp.lt.s32.totalorder %v458, 65
      %v591 = vsel %vm590, %v587, %v589
      %v592 = vsel %vm590, %v585, %v587
      %v593 = vsel %vm590, %v583, %v585
      %v594 = vsel %vm590, %v589, %v583
      %s595 = scalar_lea.vmem %s6, 3
      %v596 = vld [vmem:[%s595] ss:$8 sm:$0xf]
      %v598 = vlaneseq
      %v599 = vshrl.u32 %v598, 7
      %v600 = vsub.s32 0, %v599
      %v601 = vrot.slane %v596, %v600
      %v602 = vlaneseq
      %v603 = vshrl.u32 %v602, 7
      %v604 = vsub.s32 1, %v603
      %v605 = vrot.slane %v596, %v604
      %v606 = vlaneseq
      %v607 = vshrl.u32 %v606, 7
      %v608 = vsub.s32 2, %v607
      %v609 = vrot.slane %v596, %v608
      %v610 = vlaneseq
      %v611 = vshrl.u32 %v610, 7
      %v612 = vsub.s32 3, %v611
      %v613 = vrot.slane %v596, %v612
      %v618 = vmul.f32 %v594, %v601
      %v619 = vmul.f32 %v593, %v605
      %v620 = vmul.f32 %v592, %v609
      %v621 = vmul.f32 %v591, %v613
      %622 = vst [vmem:[#allocation2 + $0x60] sm:$0xff] %v618
      %623 = vst [vmem:[#allocation2 + $0x68] sm:$0xff] %v619
      %624 = vst [vmem:[#allocation2 + $0x70] sm:$0xff] %v620
      %625 = vst [vmem:[#allocation2 + $0x78] sm:$0xff] %v621
      %626 = vrot.lane.b32.xlu0 %v374, 64
      %v627 = vpop.permute.xlu0 %626
      %628 = vrot.lane.b32.xlu0 %v376, 64
      %v629 = vpop.permute.xlu0 %628
      %630 = vrot.lane.b32.xlu0 %v445, 64
      %v631 = vpop.permute.xlu0 %630
      %632 = vrot.lane.b32.xlu0 %v447, 64
      %v633 = vpop.permute.xlu0 %632
      %vm634 = vcmp.lt.s32.totalorder %v458, 64
      %v635 = vsel %vm634, %v631, %v633
      %v636 = vsel %vm634, %v629, %v631
      %v637 = vsel %vm634, %v627, %v629
      %v638 = vsel %vm634, %v633, %v627
      %s639 = scalar_lea.vmem %s6, 4
      %v640 = vld [vmem:[%s639] ss:$8 sm:$0xf]
      %v642 = vlaneseq
      %v643 = vshrl.u32 %v642, 7
      %v644 = vsub.s32 0, %v643
      %v645 = vrot.slane %v640, %v644
      %v646 = vlaneseq
      %v647 = vshrl.u32 %v646, 7
      %v648 = vsub.s32 1, %v647
      %v649 = vrot.slane %v640, %v648
      %v650 = vlaneseq
      %v651 = vshrl.u32 %v650, 7
      %v652 = vsub.s32 2, %v651
      %v653 = vrot.slane %v640, %v652
      %v654 = vlaneseq
      %v655 = vshrl.u32 %v654, 7
      %v656 = vsub.s32 3, %v655
      %v657 = vrot.slane %v640, %v656
      %v662 = vmul.f32 %v638, %v645
      %v663 = vmul.f32 %v637, %v649
      %v664 = vmul.f32 %v636, %v653
      %v665 = vmul.f32 %v635, %v657
      %666 = vst [vmem:[#allocation2 + $0x80] sm:$0xff] %v662
      %667 = vst [vmem:[#allocation2 + $0x88] sm:$0xff] %v663
      %668 = vst [vmem:[#allocation2 + $0x90] sm:$0xff] %v664
      %669 = vst [vmem:[#allocation2 + $0x98] sm:$0xff] %v665
      %670 = vrot.lane.b32.xlu0 %v374, 63
      %v671 = vpop.permute.xlu0 %670
      %672 = vrot.lane.b32.xlu0 %v376, 63
      %v673 = vpop.permute.xlu0 %672
      %674 = vrot.lane.b32.xlu0 %v445, 63
      %v675 = vpop.permute.xlu0 %674
      %676 = vrot.lane.b32.xlu0 %v447, 63
      %v677 = vpop.permute.xlu0 %676
      %vm678 = vcmp.lt.s32.totalorder %v458, 63
      %v679 = vsel %vm678, %v675, %v677
      %v680 = vsel %vm678, %v673, %v675
      %v681 = vsel %vm678, %v671, %v673
      %v682 = vsel %vm678, %v677, %v671
      %s683 = scalar_lea.vmem %s6, 5
      %v684 = vld [vmem:[%s683] ss:$8 sm:$0xf]
      %v686 = vlaneseq
      %v687 = vshrl.u32 %v686, 7
      %v688 = vsub.s32 0, %v687
      %v689 = vrot.slane %v684, %v688
      %v690 = vlaneseq
      %v691 = vshrl.u32 %v690, 7
      %v692 = vsub.s32 1, %v691
      %v693 = vrot.slane %v684, %v692
      %v694 = vlaneseq
      %v695 = vshrl.u32 %v694, 7
      %v696 = vsub.s32 2, %v695
      %v697 = vrot.slane %v684, %v696
      %v698 = vlaneseq
      %v699 = vshrl.u32 %v698, 7
      %v700 = vsub.s32 3, %v699
      %v701 = vrot.slane %v684, %v700
      %v706 = vmul.f32 %v682, %v689
      %v707 = vmul.f32 %v681, %v693
      %v708 = vmul.f32 %v680, %v697
      %v709 = vmul.f32 %v679, %v701
      %710 = vst [vmem:[#allocation2 + $0xa0] sm:$0xff] %v706
      %711 = vst [vmem:[#allocation2 + $0xa8] sm:$0xff] %v707
      %712 = vst [vmem:[#allocation2 + $0xb0] sm:$0xff] %v708
      %713 = vst [vmem:[#allocation2 + $0xb8] sm:$0xff] %v709
      %714 = vrot.lane.b32.xlu0 %v374, 57
      %v715 = vpop.permute.xlu0 %714
      %716 = vrot.lane.b32.xlu0 %v376, 57
      %v717 = vpop.permute.xlu0 %716
      %718 = vrot.lane.b32.xlu0 %v445, 57
      %v719 = vpop.permute.xlu0 %718
      %720 = vrot.lane.b32.xlu0 %v447, 57
      %v721 = vpop.permute.xlu0 %720
      %vm722 = vcmp.lt.s32.totalorder %v458, 57
      %v723 = vsel %vm722, %v719, %v721
      %v724 = vsel %vm722, %v717, %v719
      %v725 = vsel %vm722, %v715, %v717
      %v726 = vsel %vm722, %v721, %v715
      %s727 = scalar_lea.vmem %s6, 6
      %v728 = vld [vmem:[%s727] ss:$8 sm:$0xf]
      %v730 = vlaneseq
      %v731 = vshrl.u32 %v730, 7
      %v732 = vsub.s32 0, %v731
      %v733 = vrot.slane %v728, %v732
      %v734 = vlaneseq
      %v735 = vshrl.u32 %v734, 7
      %v736 = vsub.s32 1, %v735
      %v737 = vrot.slane %v728, %v736
      %v738 = vlaneseq
      %v739 = vshrl.u32 %v738, 7
      %v740 = vsub.s32 2, %v739
      %v741 = vrot.slane %v728, %v740
      %v742 = vlaneseq
      %v743 = vshrl.u32 %v742, 7
      %v744 = vsub.s32 3, %v743
      %v745 = vrot.slane %v728, %v744
      %v750 = vmul.f32 %v726, %v733
      %v751 = vmul.f32 %v725, %v737
      %v752 = vmul.f32 %v724, %v741
      %v753 = vmul.f32 %v723, %v745
      %754 = vst [vmem:[#allocation2 + $0xc0] sm:$0xff] %v750
      %755 = vst [vmem:[#allocation2 + $0xc8] sm:$0xff] %v751
      %756 = vst [vmem:[#allocation2 + $0xd0] sm:$0xff] %v752
      %757 = vst [vmem:[#allocation2 + $0xd8] sm:$0xff] %v753
      %758 = vrot.lane.b32.xlu0 %v374, 56
      %v759 = vpop.permute.xlu0 %758
      %760 = vrot.lane.b32.xlu0 %v376, 56
      %v761 = vpop.permute.xlu0 %760
      %762 = vrot.lane.b32.xlu0 %v445, 56
      %v763 = vpop.permute.xlu0 %762
      %764 = vrot.lane.b32.xlu0 %v447, 56
      %v765 = vpop.permute.xlu0 %764
      %vm766 = vcmp.lt.s32.totalorder %v458, 56
      %v767 = vsel %vm766, %v763, %v765
      %v768 = vsel %vm766, %v761, %v763
      %v769 = vsel %vm766, %v759, %v761
      %v770 = vsel %vm766, %v765, %v759
      %s771 = scalar_lea.vmem %s6, 7
      %v772 = vld [vmem:[%s771] ss:$8 sm:$0xf]
      %v774 = vlaneseq
      %v775 = vshrl.u32 %v774, 7
      %v776 = vsub.s32 0, %v775
      %v777 = vrot.slane %v772, %v776
      %v778 = vlaneseq
      %v779 = vshrl.u32 %v778, 7
      %v780 = vsub.s32 1, %v779
      %v781 = vrot.slane %v772, %v780
      %v782 = vlaneseq
      %v783 = vshrl.u32 %v782, 7
      %v784 = vsub.s32 2, %v783
      %v785 = vrot.slane %v772, %v784
      %v786 = vlaneseq
      %v787 = vshrl.u32 %v786, 7
      %v788 = vsub.s32 3, %v787
      %v789 = vrot.slane %v772, %v788
      %v794 = vmul.f32 %v770, %v777
      %v795 = vmul.f32 %v769, %v781
      %v796 = vmul.f32 %v768, %v785
      %v797 = vmul.f32 %v767, %v789
      %798 = vst [vmem:[#allocation2 + $0xe0] sm:$0xff] %v794
      %799 = vst [vmem:[#allocation2 + $0xe8] sm:$0xff] %v795
      %800 = vst [vmem:[#allocation2 + $0xf0] sm:$0xff] %v796
      %801 = vst [vmem:[#allocation2 + $0xf8] sm:$0xff] %v797
      %802 = vrot.lane.b32.xlu0 %v374, 55
      %v803 = vpop.permute.xlu0 %802
      %804 = vrot.lane.b32.xlu0 %v376, 55
      %v805 = vpop.permute.xlu0 %804
      %806 = vrot.lane.b32.xlu0 %v445, 55
      %v807 = vpop.permute.xlu0 %806
      %808 = vrot.lane.b32.xlu0 %v447, 55
      %v809 = vpop.permute.xlu0 %808
      %vm810 = vcmp.lt.s32.totalorder %v458, 55
      %v811 = vsel %vm810, %v807, %v809
      %v812 = vsel %vm810, %v805, %v807
      %v813 = vsel %vm810, %v803, %v805
      %v814 = vsel %vm810, %v809, %v803
      %s815 = scalar_lea.vmem %s6, 32
      %v816 = vld [vmem:[%s815] ss:$8 sm:$0xf]
      %v818 = vlaneseq
      %v819 = vshrl.u32 %v818, 7
      %v820 = vsub.s32 0, %v819
      %v821 = vrot.slane %v816, %v820
      %v822 = vlaneseq
      %v823 = vshrl.u32 %v822, 7
      %v824 = vsub.s32 1, %v823
      %v825 = vrot.slane %v816, %v824
      %v826 = vlaneseq
      %v827 = vshrl.u32 %v826, 7
      %v828 = vsub.s32 2, %v827
      %v829 = vrot.slane %v816, %v828
      %v830 = vlaneseq
      %v831 = vshrl.u32 %v830, 7
      %v832 = vsub.s32 3, %v831
      %v833 = vrot.slane %v816, %v832
      %v838 = vmul.f32 %v814, %v821
      %v839 = vmul.f32 %v813, %v825
      %v840 = vmul.f32 %v812, %v829
      %v841 = vmul.f32 %v811, %v833
      %842 = vst [vmem:[#allocation2 + $0x100] sm:$0xff] %v838
      %843 = vst [vmem:[#allocation2 + $0x108] sm:$0xff] %v839
      %844 = vst [vmem:[#allocation2 + $0x110] sm:$0xff] %v840
      %845 = vst [vmem:[#allocation2 + $0x118] sm:$0xff] %v841
      %846 = vrot.lane.b32.xlu0 %v374, 9
      %v847 = vpop.permute.xlu0 %846
      %848 = vrot.lane.b32.xlu0 %v376, 9
      %v849 = vpop.permute.xlu0 %848
      %850 = vrot.lane.b32.xlu0 %v445, 9
      %v851 = vpop.permute.xlu0 %850
      %852 = vrot.lane.b32.xlu0 %v447, 9
      %v853 = vpop.permute.xlu0 %852
      %vm854 = vcmp.lt.s32.totalorder %v458, 9
      %v855 = vsel %vm854, %v851, %v853
      %v856 = vsel %vm854, %v849, %v851
      %v857 = vsel %vm854, %v847, %v849
      %v858 = vsel %vm854, %v853, %v847
      %s859 = scalar_lea.vmem %s6, 33
      %v860 = vld [vmem:[%s859] ss:$8 sm:$0xf]
      %v862 = vlaneseq
      %v863 = vshrl.u32 %v862, 7
      %v864 = vsub.s32 0, %v863
      %v865 = vrot.slane %v860, %v864
      %v866 = vlaneseq
      %v867 = vshrl.u32 %v866, 7
      %v868 = vsub.s32 1, %v867
      %v869 = vrot.slane %v860, %v868
      %v870 = vlaneseq
      %v871 = vshrl.u32 %v870, 7
      %v872 = vsub.s32 2, %v871
      %v873 = vrot.slane %v860, %v872
      %v874 = vlaneseq
      %v875 = vshrl.u32 %v874, 7
      %v876 = vsub.s32 3, %v875
      %v877 = vrot.slane %v860, %v876
      %v882 = vmul.f32 %v858, %v865
      %v883 = vmul.f32 %v857, %v869
      %v884 = vmul.f32 %v856, %v873
      %v885 = vmul.f32 %v855, %v877
      %886 = vst [vmem:[#allocation2 + $0x120] sm:$0xff] %v882
      %887 = vst [vmem:[#allocation2 + $0x128] sm:$0xff] %v883
      %888 = vst [vmem:[#allocation2 + $0x130] sm:$0xff] %v884
      %889 = vst [vmem:[#allocation2 + $0x138] sm:$0xff] %v885
      %890 = vrot.lane.b32.xlu0 %v374, 8
      %v891 = vpop.permute.xlu0 %890
      %892 = vrot.lane.b32.xlu0 %v376, 8
      %v893 = vpop.permute.xlu0 %892
      %894 = vrot.lane.b32.xlu0 %v445, 8
      %v895 = vpop.permute.xlu0 %894
      %896 = vrot.lane.b32.xlu0 %v447, 8
      %v897 = vpop.permute.xlu0 %896
      %vm898 = vcmp.lt.s32.totalorder %v458, 8
      %v899 = vsel %vm898, %v895, %v897
      %v900 = vsel %vm898, %v893, %v895
      %v901 = vsel %vm898, %v891, %v893
      %v902 = vsel %vm898, %v897, %v891
      %s903 = scalar_lea.vmem %s6, 34
      %v904 = vld [vmem:[%s903] ss:$8 sm:$0xf]
      %v906 = vlaneseq
      %v907 = vshrl.u32 %v906, 7
      %v908 = vsub.s32 0, %v907
      %v909 = vrot.slane %v904, %v908
      %v910 = vlaneseq
      %v911 = vshrl.u32 %v910, 7
      %v912 = vsub.s32 1, %v911
      %v913 = vrot.slane %v904, %v912
      %v914 = vlaneseq
      %v915 = vshrl.u32 %v914, 7
      %v916 = vsub.s32 2, %v915
      %v917 = vrot.slane %v904, %v916
      %v918 = vlaneseq
      %v919 = vshrl.u32 %v918, 7
      %v920 = vsub.s32 3, %v919
      %v921 = vrot.slane %v904, %v920
      %v926 = vmul.f32 %v902, %v909
      %v927 = vmul.f32 %v901, %v913
      %v928 = vmul.f32 %v900, %v917
      %v929 = vmul.f32 %v899, %v921
      %930 = vst [vmem:[#allocation2 + $0x140] sm:$0xff] %v926
      %931 = vst [vmem:[#allocation2 + $0x148] sm:$0xff] %v927
      %932 = vst [vmem:[#allocation2 + $0x150] sm:$0xff] %v928
      %933 = vst [vmem:[#allocation2 + $0x158] sm:$0xff] %v929
      %934 = vrot.lane.b32.xlu0 %v374, 7
      %v935 = vpop.permute.xlu0 %934
      %936 = vrot.lane.b32.xlu0 %v376, 7
      %v937 = vpop.permute.xlu0 %936
      %938 = vrot.lane.b32.xlu0 %v445, 7
      %v939 = vpop.permute.xlu0 %938
      %940 = vrot.lane.b32.xlu0 %v447, 7
      %v941 = vpop.permute.xlu0 %940
      %vm942 = vcmp.lt.s32.totalorder %v458, 7
      %v943 = vsel %vm942, %v939, %v941
      %v944 = vsel %vm942, %v937, %v939
      %v945 = vsel %vm942, %v935, %v937
      %v946 = vsel %vm942, %v941, %v935
      %s947 = scalar_lea.vmem %s6, 35
      %v948 = vld [vmem:[%s947] ss:$8 sm:$0xf]
      %v950 = vlaneseq
      %v951 = vshrl.u32 %v950, 7
      %v952 = vsub.s32 0, %v951
      %v953 = vrot.slane %v948, %v952
      %v954 = vlaneseq
      %v955 = vshrl.u32 %v954, 7
      %v956 = vsub.s32 1, %v955
      %v957 = vrot.slane %v948, %v956
      %v958 = vlaneseq
      %v959 = vshrl.u32 %v958, 7
      %v960 = vsub.s32 2, %v959
      %v961 = vrot.slane %v948, %v960
      %v962 = vlaneseq
      %v963 = vshrl.u32 %v962, 7
      %v964 = vsub.s32 3, %v963
      %v965 = vrot.slane %v948, %v964
      %v970 = vmul.f32 %v946, %v953
      %v971 = vmul.f32 %v945, %v957
      %v972 = vmul.f32 %v944, %v961
      %v973 = vmul.f32 %v943, %v965
      %974 = vst [vmem:[#allocation2 + $0x160] sm:$0xff] %v970
      %975 = vst [vmem:[#allocation2 + $0x168] sm:$0xff] %v971
      %976 = vst [vmem:[#allocation2 + $0x170] sm:$0xff] %v972
      %977 = vst [vmem:[#allocation2 + $0x178] sm:$0xff] %v973
      %978 = vrot.lane.b32.xlu0 %v374, 1
      %v979 = vpop.permute.xlu0 %978
      %980 = vrot.lane.b32.xlu0 %v376, 1
      %v981 = vpop.permute.xlu0 %980
      %982 = vrot.lane.b32.xlu0 %v445, 1
      %v983 = vpop.permute.xlu0 %982
      %984 = vrot.lane.b32.xlu0 %v447, 1
      %v985 = vpop.permute.xlu0 %984
      %vm986 = vcmp.lt.s32.totalorder %v458, 1
      %v987 = vsel %vm986, %v983, %v985
      %v988 = vsel %vm986, %v981, %v983
      %v989 = vsel %vm986, %v979, %v981
      %v990 = vsel %vm986, %v985, %v979
      %s991 = scalar_lea.vmem %s6, 36
      %v992 = vld [vmem:[%s991] ss:$8 sm:$0xf]
      %v994 = vlaneseq
      %v995 = vshrl.u32 %v994, 7
      %v996 = vsub.s32 0, %v995
      %v997 = vrot.slane %v992, %v996
      %v998 = vlaneseq
      %v999 = vshrl.u32 %v998, 7
      %v1000 = vsub.s32 1, %v999
      %v1001 = vrot.slane %v992, %v1000
      %v1002 = vlaneseq
      %v1003 = vshrl.u32 %v1002, 7
      %v1004 = vsub.s32 2, %v1003
      %v1005 = vrot.slane %v992, %v1004
      %v1006 = vlaneseq
      %v1007 = vshrl.u32 %v1006, 7
      %v1008 = vsub.s32 3, %v1007
      %v1009 = vrot.slane %v992, %v1008
      %v1014 = vmul.f32 %v990, %v997
      %v1015 = vmul.f32 %v989, %v1001
      %v1016 = vmul.f32 %v988, %v1005
      %v1017 = vmul.f32 %v987, %v1009
      %1018 = vst [vmem:[#allocation2 + $0x180] sm:$0xff] %v1014
      %1019 = vst [vmem:[#allocation2 + $0x188] sm:$0xff] %v1015
      %1020 = vst [vmem:[#allocation2 + $0x190] sm:$0xff] %v1016
      %1021 = vst [vmem:[#allocation2 + $0x198] sm:$0xff] %v1017
      %1022 = vst [vmem:[#allocation2 + $0x1a0] sm:$0xff] %v374
      %1023 = vst [vmem:[#allocation2 + $0x1a8] sm:$0xff] %v376
      %1024 = vst [vmem:[#allocation2 + $0x1b0] sm:$0xff] %v445
      %1025 = vst [vmem:[#allocation2 + $0x1b8] sm:$0xff] %v447
      %1026 = vrot.lane.b32.xlu0 %v374, 127
      %v1027 = vpop.permute.xlu0 %1026
      %1028 = vrot.lane.b32.xlu0 %v376, 127
      %v1029 = vpop.permute.xlu0 %1028
      %1030 = vrot.lane.b32.xlu0 %v445, 127
      %v1031 = vpop.permute.xlu0 %1030
      %1032 = vrot.lane.b32.xlu0 %v447, 127
      %v1033 = vpop.permute.xlu0 %1032
      %vm1034 = vcmp.lt.s32.totalorder %v458, 127
      %v1035 = vsel %vm1034, %v1031, %v1033
      %v1036 = vsel %vm1034, %v1029, %v1031
      %v1037 = vsel %vm1034, %v1027, %v1029
      %v1038 = vsel %vm1034, %v1033, %v1027
      %s1039 = scalar_lea.vmem %s6, 38
      %v1040 = vld [vmem:[%s1039] ss:$8 sm:$0xf]
      %v1042 = vlaneseq
      %v1043 = vshrl.u32 %v1042, 7
      %v1044 = vsub.s32 0, %v1043
      %v1045 = vrot.slane %v1040, %v1044
      %v1046 = vlaneseq
      %v1047 = vshrl.u32 %v1046, 7
      %v1048 = vsub.s32 1, %v1047
      %v1049 = vrot.slane %v1040, %v1048
      %v1050 = vlaneseq
      %v1051 = vshrl.u32 %v1050, 7
      %v1052 = vsub.s32 2, %v1051
      %v1053 = vrot.slane %v1040, %v1052
      %v1054 = vlaneseq
      %v1055 = vshrl.u32 %v1054, 7
      %v1056 = vsub.s32 3, %v1055
      %v1057 = vrot.slane %v1040, %v1056
      %v1062 = vmul.f32 %v1037, %v1045
      %v1063 = vmul.f32 %v1036, %v1049
      %v1064 = vmul.f32 %v1035, %v1053
      %v1065 = vmul.f32 %v1038, %v1057
      %1066 = vst [vmem:[#allocation2 + $0x1c0] sm:$0xff] %v1062
      %1067 = vst [vmem:[#allocation2 + $0x1c8] sm:$0xff] %v1063
      %1068 = vst [vmem:[#allocation2 + $0x1d0] sm:$0xff] %v1064
      %1069 = vst [vmem:[#allocation2 + $0x1d8] sm:$0xff] %v1065
      %1070 = vrot.lane.b32.xlu0 %v374, 121
      %v1071 = vpop.permute.xlu0 %1070
      %1072 = vrot.lane.b32.xlu0 %v376, 121
      %v1073 = vpop.permute.xlu0 %1072
      %1074 = vrot.lane.b32.xlu0 %v445, 121
      %v1075 = vpop.permute.xlu0 %1074
      %1076 = vrot.lane.b32.xlu0 %v447, 121
      %v1077 = vpop.permute.xlu0 %1076
      %vm1078 = vcmp.lt.s32.totalorder %v458, 121
      %v1079 = vsel %vm1078, %v1075, %v1077
      %v1080 = vsel %vm1078, %v1073, %v1075
      %v1081 = vsel %vm1078, %v1071, %v1073
      %v1082 = vsel %vm1078, %v1077, %v1071
      %s1083 = scalar_lea.vmem %s6, 39
      %v1084 = vld [vmem:[%s1083] ss:$8 sm:$0xf]
      %v1086 = vlaneseq
      %v1087 = vshrl.u32 %v1086, 7
      %v1088 = vsub.s32 0, %v1087
      %v1089 = vrot.slane %v1084, %v1088
      %v1090 = vlaneseq
      %v1091 = vshrl.u32 %v1090, 7
      %v1092 = vsub.s32 1, %v1091
      %v1093 = vrot.slane %v1084, %v1092
      %v1094 = vlaneseq
      %v1095 = vshrl.u32 %v1094, 7
      %v1096 = vsub.s32 2, %v1095
      %v1097 = vrot.slane %v1084, %v1096
      %v1098 = vlaneseq
      %v1099 = vshrl.u32 %v1098, 7
      %v1100 = vsub.s32 3, %v1099
      %v1101 = vrot.slane %v1084, %v1100
      %v1106 = vmul.f32 %v1081, %v1089
      %v1107 = vmul.f32 %v1080, %v1093
      %v1108 = vmul.f32 %v1079, %v1097
      %v1109 = vmul.f32 %v1082, %v1101
      %1110 = vst [vmem:[#allocation2 + $0x1e0] sm:$0xff] %v1106
      %1111 = vst [vmem:[#allocation2 + $0x1e8] sm:$0xff] %v1107
      %1112 = vst [vmem:[#allocation2 + $0x1f0] sm:$0xff] %v1108
      %1113 = vst [vmem:[#allocation2 + $0x1f8] sm:$0xff] %v1109
      %1114 = vrot.lane.b32.xlu0 %v374, 120
      %v1115 = vpop.permute.xlu0 %1114
      %1116 = vrot.lane.b32.xlu0 %v376, 120
      %v1117 = vpop.permute.xlu0 %1116
      %1118 = vrot.lane.b32.xlu0 %v445, 120
      %v1119 = vpop.permute.xlu0 %1118
      %1120 = vrot.lane.b32.xlu0 %v447, 120
      %v1121 = vpop.permute.xlu0 %1120
      %vm1122 = vcmp.lt.s32.totalorder %v458, 120
      %v1123 = vsel %vm1122, %v1119, %v1121
      %v1124 = vsel %vm1122, %v1117, %v1119
      %v1125 = vsel %vm1122, %v1115, %v1117
      %v1126 = vsel %vm1122, %v1121, %v1115
      %s1127 = scalar_lea.vmem %s6, 64
      %v1128 = vld [vmem:[%s1127] ss:$8 sm:$0xf]
      %v1130 = vlaneseq
      %v1131 = vshrl.u32 %v1130, 7
      %v1132 = vsub.s32 0, %v1131
      %v1133 = vrot.slane %v1128, %v1132
      %v1134 = vlaneseq
      %v1135 = vshrl.u32 %v1134, 7
      %v1136 = vsub.s32 1, %v1135
      %v1137 = vrot.slane %v1128, %v1136
      %v1138 = vlaneseq
      %v1139 = vshrl.u32 %v1138, 7
      %v1140 = vsub.s32 2, %v1139
      %v1141 = vrot.slane %v1128, %v1140
      %v1142 = vlaneseq
      %v1143 = vshrl.u32 %v1142, 7
      %v1144 = vsub.s32 3, %v1143
      %v1145 = vrot.slane %v1128, %v1144
      %v1150 = vmul.f32 %v1125, %v1133
      %v1151 = vmul.f32 %v1124, %v1137
      %v1152 = vmul.f32 %v1123, %v1141
      %v1153 = vmul.f32 %v1126, %v1145
      %1154 = vst [vmem:[#allocation2 + $0x200] sm:$0xff] %v1150
      %1155 = vst [vmem:[#allocation2 + $0x208] sm:$0xff] %v1151
      %1156 = vst [vmem:[#allocation2 + $0x210] sm:$0xff] %v1152
      %1157 = vst [vmem:[#allocation2 + $0x218] sm:$0xff] %v1153
      %1158 = vrot.lane.b32.xlu0 %v374, 119
      %v1159 = vpop.permute.xlu0 %1158
      %1160 = vrot.lane.b32.xlu0 %v376, 119
      %v1161 = vpop.permute.xlu0 %1160
      %1162 = vrot.lane.b32.xlu0 %v445, 119
      %v1163 = vpop.permute.xlu0 %1162
      %1164 = vrot.lane.b32.xlu0 %v447, 119
      %v1165 = vpop.permute.xlu0 %1164
      %vm1166 = vcmp.lt.s32.totalorder %v458, 119
      %v1167 = vsel %vm1166, %v1163, %v1165
      %v1168 = vsel %vm1166, %v1161, %v1163
      %v1169 = vsel %vm1166, %v1159, %v1161
      %v1170 = vsel %vm1166, %v1165, %v1159
      %s1171 = scalar_lea.vmem %s6, 65
      %v1172 = vld [vmem:[%s1171] ss:$8 sm:$0xf]
      %v1174 = vlaneseq
      %v1175 = vshrl.u32 %v1174, 7
      %v1176 = vsub.s32 0, %v1175
      %v1177 = vrot.slane %v1172, %v1176
      %v1178 = vlaneseq
      %v1179 = vshrl.u32 %v1178, 7
      %v1180 = vsub.s32 1, %v1179
      %v1181 = vrot.slane %v1172, %v1180
      %v1182 = vlaneseq
      %v1183 = vshrl.u32 %v1182, 7
      %v1184 = vsub.s32 2, %v1183
      %v1185 = vrot.slane %v1172, %v1184
      %v1186 = vlaneseq
      %v1187 = vshrl.u32 %v1186, 7
      %v1188 = vsub.s32 3, %v1187
      %v1189 = vrot.slane %v1172, %v1188
      %v1194 = vmul.f32 %v1169, %v1177
      %v1195 = vmul.f32 %v1168, %v1181
      %v1196 = vmul.f32 %v1167, %v1185
      %v1197 = vmul.f32 %v1170, %v1189
      %1198 = vst [vmem:[#allocation2 + $0x220] sm:$0xff] %v1194
      %1199 = vst [vmem:[#allocation2 + $0x228] sm:$0xff] %v1195
      %1200 = vst [vmem:[#allocation2 + $0x230] sm:$0xff] %v1196
      %1201 = vst [vmem:[#allocation2 + $0x238] sm:$0xff] %v1197
      %s1202 = scalar_lea.vmem %s6, 66
      %v1203 = vld [vmem:[%s1202] ss:$8 sm:$0xf]
      %v1205 = vlaneseq
      %v1206 = vshrl.u32 %v1205, 7
      %v1207 = vsub.s32 0, %v1206
      %v1208 = vrot.slane %v1203, %v1207
      %v1209 = vlaneseq
      %v1210 = vshrl.u32 %v1209, 7
      %v1211 = vsub.s32 1, %v1210
      %v1212 = vrot.slane %v1203, %v1211
      %v1213 = vlaneseq
      %v1214 = vshrl.u32 %v1213, 7
      %v1215 = vsub.s32 2, %v1214
      %v1216 = vrot.slane %v1203, %v1215
      %v1217 = vlaneseq
      %v1218 = vshrl.u32 %v1217, 7
      %v1219 = vsub.s32 3, %v1218
      %v1220 = vrot.slane %v1203, %v1219
      %v1225 = vmul.f32 %v462, %v1208
      %v1226 = vmul.f32 %v461, %v1212
      %v1227 = vmul.f32 %v460, %v1216
      %v1228 = vmul.f32 %v463, %v1220
      %1229 = vst [vmem:[#allocation2 + $0x240] sm:$0xff] %v1225
      %1230 = vst [vmem:[#allocation2 + $0x248] sm:$0xff] %v1226
      %1231 = vst [vmem:[#allocation2 + $0x250] sm:$0xff] %v1227
      %1232 = vst [vmem:[#allocation2 + $0x258] sm:$0xff] %v1228
      %s1233 = scalar_lea.vmem %s6, 67
      %v1234 = vld [vmem:[%s1233] ss:$8 sm:$0xf]
      %v1236 = vlaneseq
      %v1237 = vshrl.u32 %v1236, 7
      %v1238 = vsub.s32 0, %v1237
      %v1239 = vrot.slane %v1234, %v1238
      %v1240 = vlaneseq
      %v1241 = vshrl.u32 %v1240, 7
      %v1242 = vsub.s32 1, %v1241
      %v1243 = vrot.slane %v1234, %v1242
      %v1244 = vlaneseq
      %v1245 = vshrl.u32 %v1244, 7
      %v1246 = vsub.s32 2, %v1245
      %v1247 = vrot.slane %v1234, %v1246
      %v1248 = vlaneseq
      %v1249 = vshrl.u32 %v1248, 7
      %v1250 = vsub.s32 3, %v1249
      %v1251 = vrot.slane %v1234, %v1250
      %v1256 = vmul.f32 %v505, %v1239
      %v1257 = vmul.f32 %v504, %v1243
      %v1258 = vmul.f32 %v503, %v1247
      %v1259 = vmul.f32 %v506, %v1251
      %1260 = vst [vmem:[#allocation2 + $0x260] sm:$0xff] %v1256
      %1261 = vst [vmem:[#allocation2 + $0x268] sm:$0xff] %v1257
      %1262 = vst [vmem:[#allocation2 + $0x270] sm:$0xff] %v1258
      %1263 = vst [vmem:[#allocation2 + $0x278] sm:$0xff] %v1259
      %s1264 = scalar_lea.vmem %s6, 68
      %v1265 = vld [vmem:[%s1264] ss:$8 sm:$0xf]
      %v1267 = vlaneseq
      %v1268 = vshrl.u32 %v1267, 7
      %v1269 = vsub.s32 0, %v1268
      %v1270 = vrot.slane %v1265, %v1269
      %v1271 = vlaneseq
      %v1272 = vshrl.u32 %v1271, 7
      %v1273 = vsub.s32 1, %v1272
      %v1274 = vrot.slane %v1265, %v1273
      %v1275 = vlaneseq
      %v1276 = vshrl.u32 %v1275, 7
      %v1277 = vsub.s32 2, %v1276
      %v1278 = vrot.slane %v1265, %v1277
      %v1279 = vlaneseq
      %v1280 = vshrl.u32 %v1279, 7
      %v1281 = vsub.s32 3, %v1280
      %v1282 = vrot.slane %v1265, %v1281
      %v1287 = vmul.f32 %v549, %v1270
      %v1288 = vmul.f32 %v548, %v1274
      %v1289 = vmul.f32 %v547, %v1278
      %v1290 = vmul.f32 %v550, %v1282
      %1291 = vst [vmem:[#allocation2 + $0x280] sm:$0xff] %v1287
      %1292 = vst [vmem:[#allocation2 + $0x288] sm:$0xff] %v1288
      %1293 = vst [vmem:[#allocation2 + $0x290] sm:$0xff] %v1289
      %1294 = vst [vmem:[#allocation2 + $0x298] sm:$0xff] %v1290
      %s1295 = scalar_lea.vmem %s6, 69
      %v1296 = vld [vmem:[%s1295] ss:$8 sm:$0xf]
      %v1298 = vlaneseq
      %v1299 = vshrl.u32 %v1298, 7
      %v1300 = vsub.s32 0, %v1299
      %v1301 = vrot.slane %v1296, %v1300
      %v1302 = vlaneseq
      %v1303 = vshrl.u32 %v1302, 7
      %v1304 = vsub.s32 1, %v1303
      %v1305 = vrot.slane %v1296, %v1304
      %v1306 = vlaneseq
      %v1307 = vshrl.u32 %v1306, 7
      %v1308 = vsub.s32 2, %v1307
      %v1309 = vrot.slane %v1296, %v1308
      %v1310 = vlaneseq
      %v1311 = vshrl.u32 %v1310, 7
      %v1312 = vsub.s32 3, %v1311
      %v1313 = vrot.slane %v1296, %v1312
      %v1318 = vmul.f32 %v593, %v1301
      %v1319 = vmul.f32 %v592, %v1305
      %v1320 = vmul.f32 %v591, %v1309
      %v1321 = vmul.f32 %v594, %v1313
      %1322 = vst [vmem:[#allocation2 + $0x2a0] sm:$0xff] %v1318
      %1323 = vst [vmem:[#allocation2 + $0x2a8] sm:$0xff] %v1319
      %1324 = vst [vmem:[#allocation2 + $0x2b0] sm:$0xff] %v1320
      %1325 = vst [vmem:[#allocation2 + $0x2b8] sm:$0xff] %v1321
      %s1326 = scalar_lea.vmem %s6, 70
      %v1327 = vld [vmem:[%s1326] ss:$8 sm:$0xf]
      %v1329 = vlaneseq
      %v1330 = vshrl.u32 %v1329, 7
      %v1331 = vsub.s32 0, %v1330
      %v1332 = vrot.slane %v1327, %v1331
      %v1333 = vlaneseq
      %v1334 = vshrl.u32 %v1333, 7
      %v1335 = vsub.s32 1, %v1334
      %v1336 = vrot.slane %v1327, %v1335
      %v1337 = vlaneseq
      %v1338 = vshrl.u32 %v1337, 7
      %v1339 = vsub.s32 2, %v1338
      %v1340 = vrot.slane %v1327, %v1339
      %v1341 = vlaneseq
      %v1342 = vshrl.u32 %v1341, 7
      %v1343 = vsub.s32 3, %v1342
      %v1344 = vrot.slane %v1327, %v1343
      %v1349 = vmul.f32 %v637, %v1332
      %v1350 = vmul.f32 %v636, %v1336
      %v1351 = vmul.f32 %v635, %v1340
      %v1352 = vmul.f32 %v638, %v1344
      %1353 = vst [vmem:[#allocation2 + $0x2c0] sm:$0xff] %v1349
      %1354 = vst [vmem:[#allocation2 + $0x2c8] sm:$0xff] %v1350
      %1355 = vst [vmem:[#allocation2 + $0x2d0] sm:$0xff] %v1351
      %1356 = vst [vmem:[#allocation2 + $0x2d8] sm:$0xff] %v1352
      %s1357 = scalar_lea.vmem %s6, 71
      %v1358 = vld [vmem:[%s1357] ss:$8 sm:$0xf]
      %v1360 = vlaneseq
      %v1361 = vshrl.u32 %v1360, 7
      %v1362 = vsub.s32 0, %v1361
      %v1363 = vrot.slane %v1358, %v1362
      %v1364 = vlaneseq
      %v1365 = vshrl.u32 %v1364, 7
      %v1366 = vsub.s32 1, %v1365
      %v1367 = vrot.slane %v1358, %v1366
      %v1368 = vlaneseq
      %v1369 = vshrl.u32 %v1368, 7
      %v1370 = vsub.s32 2, %v1369
      %v1371 = vrot.slane %v1358, %v1370
      %v1372 = vlaneseq
      %v1373 = vshrl.u32 %v1372, 7
      %v1374 = vsub.s32 3, %v1373
      %v1375 = vrot.slane %v1358, %v1374
      %v1380 = vmul.f32 %v681, %v1363
      %v1381 = vmul.f32 %v680, %v1367
      %v1382 = vmul.f32 %v679, %v1371
      %v1383 = vmul.f32 %v682, %v1375
      %1384 = vst [vmem:[#allocation2 + $0x2e0] sm:$0xff] %v1380
      %1385 = vst [vmem:[#allocation2 + $0x2e8] sm:$0xff] %v1381
      %1386 = vst [vmem:[#allocation2 + $0x2f0] sm:$0xff] %v1382
      %1387 = vst [vmem:[#allocation2 + $0x2f8] sm:$0xff] %v1383
      %s1388 = scalar_lea.vmem %s6, 96
      %v1389 = vld [vmem:[%s1388] ss:$8 sm:$0xf]
      %v1391 = vlaneseq
      %v1392 = vshrl.u32 %v1391, 7
      %v1393 = vsub.s32 0, %v1392
      %v1394 = vrot.slane %v1389, %v1393
      %v1395 = vlaneseq
      %v1396 = vshrl.u32 %v1395, 7
      %v1397 = vsub.s32 1, %v1396
      %v1398 = vrot.slane %v1389, %v1397
      %v1399 = vlaneseq
      %v1400 = vshrl.u32 %v1399, 7
      %v1401 = vsub.s32 2, %v1400
      %v1402 = vrot.slane %v1389, %v1401
      %v1403 = vlaneseq
      %v1404 = vshrl.u32 %v1403, 7
      %v1405 = vsub.s32 3, %v1404
      %v1406 = vrot.slane %v1389, %v1405
      %v1411 = vmul.f32 %v725, %v1394
      %v1412 = vmul.f32 %v724, %v1398
      %v1413 = vmul.f32 %v723, %v1402
      %v1414 = vmul.f32 %v726, %v1406
      %1415 = vst [vmem:[#allocation2 + $0x300] sm:$0xff] %v1411
      %1416 = vst [vmem:[#allocation2 + $0x308] sm:$0xff] %v1412
      %1417 = vst [vmem:[#allocation2 + $0x310] sm:$0xff] %v1413
      %1418 = vst [vmem:[#allocation2 + $0x318] sm:$0xff] %v1414
      %s1419 = scalar_lea.vmem %s6, 97
      %v1420 = vld [vmem:[%s1419] ss:$8 sm:$0xf]
      %v1422 = vlaneseq
      %v1423 = vshrl.u32 %v1422, 7
      %v1424 = vsub.s32 0, %v1423
      %v1425 = vrot.slane %v1420, %v1424
      %v1426 = vlaneseq
      %v1427 = vshrl.u32 %v1426, 7
      %v1428 = vsub.s32 1, %v1427
      %v1429 = vrot.slane %v1420, %v1428
      %v1430 = vlaneseq
      %v1431 = vshrl.u32 %v1430, 7
      %v1432 = vsub.s32 2, %v1431
      %v1433 = vrot.slane %v1420, %v1432
      %v1434 = vlaneseq
      %v1435 = vshrl.u32 %v1434, 7
      %v1436 = vsub.s32 3, %v1435
      %v1437 = vrot.slane %v1420, %v1436
      %v1442 = vmul.f32 %v769, %v1425
      %v1443 = vmul.f32 %v768, %v1429
      %v1444 = vmul.f32 %v767, %v1433
      %v1445 = vmul.f32 %v770, %v1437
      %1446 = vst [vmem:[#allocation2 + $0x320] sm:$0xff] %v1442
      %1447 = vst [vmem:[#allocation2 + $0x328] sm:$0xff] %v1443
      %1448 = vst [vmem:[#allocation2 + $0x330] sm:$0xff] %v1444
      %1449 = vst [vmem:[#allocation2 + $0x338] sm:$0xff] %v1445
      %s1450 = scalar_lea.vmem %s6, 98
      %v1451 = vld [vmem:[%s1450] ss:$8 sm:$0xf]
      %v1453 = vlaneseq
      %v1454 = vshrl.u32 %v1453, 7
      %v1455 = vsub.s32 0, %v1454
      %v1456 = vrot.slane %v1451, %v1455
      %v1457 = vlaneseq
      %v1458 = vshrl.u32 %v1457, 7
      %v1459 = vsub.s32 1, %v1458
      %v1460 = vrot.slane %v1451, %v1459
      %v1461 = vlaneseq
      %v1462 = vshrl.u32 %v1461, 7
      %v1463 = vsub.s32 2, %v1462
      %v1464 = vrot.slane %v1451, %v1463
      %v1465 = vlaneseq
      %v1466 = vshrl.u32 %v1465, 7
      %v1467 = vsub.s32 3, %v1466
      %v1468 = vrot.slane %v1451, %v1467
      %v1473 = vmul.f32 %v813, %v1456
      %v1474 = vmul.f32 %v812, %v1460
      %v1475 = vmul.f32 %v811, %v1464
      %v1476 = vmul.f32 %v814, %v1468
      %1477 = vst [vmem:[#allocation2 + $0x340] sm:$0xff] %v1473
      %1478 = vst [vmem:[#allocation2 + $0x348] sm:$0xff] %v1474
      %1479 = vst [vmem:[#allocation2 + $0x350] sm:$0xff] %v1475
      %1480 = vst [vmem:[#allocation2 + $0x358] sm:$0xff] %v1476
      %v1481 = vld [vmem:[%s3] sm:$0xff]
      %v1482 = vld [vmem:[%s3 + $0x8] sm:$0xff]
      %v1483 = vld [vmem:[#allocation2] sm:$0xff]
      %v1484 = vld [vmem:[#allocation2 + $0x8] sm:$0xff]
      %v1485 = vld [vmem:[#allocation2 + $0x10] sm:$0xff]
      %v1486 = vld [vmem:[#allocation2 + $0x18] sm:$0xff]
      %v1487 = vld [vmem:[#allocation2 + $0x20] sm:$0xff]
      %v1488 = vld [vmem:[#allocation2 + $0x28] sm:$0xff]
      %v1489 = vld [vmem:[#allocation2 + $0x30] sm:$0xff]
      %v1490 = vld [vmem:[#allocation2 + $0x38] sm:$0xff]
      %v1491 = vld [vmem:[#allocation2 + $0x40] sm:$0xff]
      %v1492 = vld [vmem:[#allocation2 + $0x48] sm:$0xff]
      %v1493 = vld [vmem:[#allocation2 + $0x50] sm:$0xff]
      %v1494 = vld [vmem:[#allocation2 + $0x58] sm:$0xff]
      %v1495 = vld [vmem:[#allocation2 + $0x60] sm:$0xff]
      %v1496 = vld [vmem:[#allocation2 + $0x68] sm:$0xff]
      %v1497 = vld [vmem:[#allocation2 + $0x70] sm:$0xff]
      %v1498 = vld [vmem:[#allocation2 + $0x78] sm:$0xff]
      %v1499 = vld [vmem:[#allocation2 + $0x80] sm:$0xff]
      %v1500 = vld [vmem:[#allocation2 + $0x88] sm:$0xff]
      %v1501 = vld [vmem:[#allocation2 + $0x90] sm:$0xff]
      %v1502 = vld [vmem:[#allocation2 + $0x98] sm:$0xff]
      %v1503 = vld [vmem:[#allocation2 + $0xa0] sm:$0xff]
      %v1504 = vld [vmem:[#allocation2 + $0xa8] sm:$0xff]
      %v1505 = vld [vmem:[#allocation2 + $0xb0] sm:$0xff]
      %v1506 = vld [vmem:[#allocation2 + $0xb8] sm:$0xff]
      %v1507 = vld [vmem:[#allocation2 + $0xc0] sm:$0xff]
      %v1508 = vld [vmem:[#allocation2 + $0xc8] sm:$0xff]
      %v1509 = vld [vmem:[#allocation2 + $0xd0] sm:$0xff]
      %v1510 = vld [vmem:[#allocation2 + $0xd8] sm:$0xff]
      %v1511 = vld [vmem:[#allocation2 + $0xe0] sm:$0xff]
      %v1512 = vld [vmem:[#allocation2 + $0xe8] sm:$0xff]
      %v1513 = vld [vmem:[#allocation2 + $0xf0] sm:$0xff]
      %v1514 = vld [vmem:[#allocation2 + $0xf8] sm:$0xff]
      %v1515 = vld [vmem:[#allocation2 + $0x100] sm:$0xff]
      %v1516 = vld [vmem:[#allocation2 + $0x108] sm:$0xff]
      %v1517 = vld [vmem:[#allocation2 + $0x110] sm:$0xff]
      %v1518 = vld [vmem:[#allocation2 + $0x118] sm:$0xff]
      %v1519 = vld [vmem:[#allocation2 + $0x120] sm:$0xff]
      %v1520 = vld [vmem:[#allocation2 + $0x128] sm:$0xff]
      %v1521 = vld [vmem:[#allocation2 + $0x130] sm:$0xff]
      %v1522 = vld [vmem:[#allocation2 + $0x138] sm:$0xff]
      %v1523 = vld [vmem:[#allocation2 + $0x140] sm:$0xff]
      %v1524 = vld [vmem:[#allocation2 + $0x148] sm:$0xff]
      %v1525 = vld [vmem:[#allocation2 + $0x150] sm:$0xff]
      %v1526 = vld [vmem:[#allocation2 + $0x158] sm:$0xff]
      %v1527 = vld [vmem:[#allocation2 + $0x160] sm:$0xff]
      %v1528 = vld [vmem:[#allocation2 + $0x168] sm:$0xff]
      %v1529 = vld [vmem:[#allocation2 + $0x170] sm:$0xff]
      %v1530 = vld [vmem:[#allocation2 + $0x178] sm:$0xff]
      %v1531 = vld [vmem:[#allocation2 + $0x180] sm:$0xff]
      %v1532 = vld [vmem:[#allocation2 + $0x188] sm:$0xff]
      %v1533 = vld [vmem:[#allocation2 + $0x190] sm:$0xff]
      %v1534 = vld [vmem:[#allocation2 + $0x198] sm:$0xff]
      %v1535 = vld [vmem:[#allocation2 + $0x1a0] sm:$0xff]
      %v1536 = vld [vmem:[#allocation2 + $0x1a8] sm:$0xff]
      %v1537 = vld [vmem:[#allocation2 + $0x1b0] sm:$0xff]
      %v1538 = vld [vmem:[#allocation2 + $0x1b8] sm:$0xff]
      %v1539 = vld [vmem:[#allocation2 + $0x1c0] sm:$0xff]
      %v1540 = vld [vmem:[#allocation2 + $0x1c8] sm:$0xff]
      %v1541 = vld [vmem:[#allocation2 + $0x1d0] sm:$0xff]
      %v1542 = vld [vmem:[#allocation2 + $0x1d8] sm:$0xff]
      %v1543 = vld [vmem:[#allocation2 + $0x1e0] sm:$0xff]
      %v1544 = vld [vmem:[#allocation2 + $0x1e8] sm:$0xff]
      %v1545 = vld [vmem:[#allocation2 + $0x1f0] sm:$0xff]
      %v1546 = vld [vmem:[#allocation2 + $0x1f8] sm:$0xff]
      %v1547 = vld [vmem:[#allocation2 + $0x200] sm:$0xff]
      %v1548 = vld [vmem:[#allocation2 + $0x208] sm:$0xff]
      %v1549 = vld [vmem:[#allocation2 + $0x210] sm:$0xff]
      %v1550 = vld [vmem:[#allocation2 + $0x218] sm:$0xff]
      %v1551 = vld [vmem:[#allocation2 + $0x220] sm:$0xff]
      %v1552 = vld [vmem:[#allocation2 + $0x228] sm:$0xff]
      %v1553 = vld [vmem:[#allocation2 + $0x230] sm:$0xff]
      %v1554 = vld [vmem:[#allocation2 + $0x238] sm:$0xff]
      %v1555 = vld [vmem:[#allocation2 + $0x240] sm:$0xff]
      %v1556 = vld [vmem:[#allocation2 + $0x248] sm:$0xff]
      %v1557 = vld [vmem:[#allocation2 + $0x250] sm:$0xff]
      %v1558 = vld [vmem:[#allocation2 + $0x258] sm:$0xff]
      %v1559 = vld [vmem:[#allocation2 + $0x260] sm:$0xff]
      %v1560 = vld [vmem:[#allocation2 + $0x268] sm:$0xff]
      %v1561 = vld [vmem:[#allocation2 + $0x270] sm:$0xff]
      %v1562 = vld [vmem:[#allocation2 + $0x278] sm:$0xff]
      %v1563 = vld [vmem:[#allocation2 + $0x280] sm:$0xff]
      %v1564 = vld [vmem:[#allocation2 + $0x288] sm:$0xff]
      %v1565 = vld [vmem:[#allocation2 + $0x290] sm:$0xff]
      %v1566 = vld [vmem:[#allocation2 + $0x298] sm:$0xff]
      %v1567 = vld [vmem:[#allocation2 + $0x2a0] sm:$0xff]
      %v1568 = vld [vmem:[#allocation2 + $0x2a8] sm:$0xff]
      %v1569 = vld [vmem:[#allocation2 + $0x2b0] sm:$0xff]
      %v1570 = vld [vmem:[#allocation2 + $0x2b8] sm:$0xff]
      %v1571 = vld [vmem:[#allocation2 + $0x2c0] sm:$0xff]
      %v1572 = vld [vmem:[#allocation2 + $0x2c8] sm:$0xff]
      %v1573 = vld [vmem:[#allocation2 + $0x2d0] sm:$0xff]
      %v1574 = vld [vmem:[#allocation2 + $0x2d8] sm:$0xff]
      %v1575 = vld [vmem:[#allocation2 + $0x2e0] sm:$0xff]
      %v1576 = vld [vmem:[#allocation2 + $0x2e8] sm:$0xff]
      %v1577 = vld [vmem:[#allocation2 + $0x2f0] sm:$0xff]
      %v1578 = vld [vmem:[#allocation2 + $0x2f8] sm:$0xff]
      %v1579 = vld [vmem:[#allocation2 + $0x300] sm:$0xff]
      %v1580 = vld [vmem:[#allocation2 + $0x308] sm:$0xff]
      %v1581 = vld [vmem:[#allocation2 + $0x310] sm:$0xff]
      %v1582 = vld [vmem:[#allocation2 + $0x318] sm:$0xff]
      %v1583 = vld [vmem:[#allocation2 + $0x320] sm:$0xff]
      %v1584 = vld [vmem:[#allocation2 + $0x328] sm:$0xff]
      %v1585 = vld [vmem:[#allocation2 + $0x330] sm:$0xff]
      %v1586 = vld [vmem:[#allocation2 + $0x338] sm:$0xff]
      %v1587 = vld [vmem:[#allocation2 + $0x340] sm:$0xff]
      %v1588 = vld [vmem:[#allocation2 + $0x348] sm:$0xff]
      %v1589 = vld [vmem:[#allocation2 + $0x350] sm:$0xff]
      %v1590 = vld [vmem:[#allocation2 + $0x358] sm:$0xff]
      %vm1591 = vcmask 719872
      %v1593 = vsel %vm1591, %v1482, 0
      %1595 = vmatprep.subr.mxu0 %v1544
      %1596 = vmatpush1.msra.mxu0 %v1543
      %1597 = vmatprep.subr.mxu0 %v1540
      %1598 = vmatpush1.msra.mxu0 %v1539
      %1599 = vmatprep.subr.mxu0 %v1536
      %1600 = vmatpush1.msra.mxu0 %v1535
      %1601 = vmatprep.subr.mxu0 %v1532
      %1602 = vmatpush1.msra.mxu0 %v1531
      %1603 = vmatprep.subr.mxu0 %v1528
      %1604 = vmatpush1.msra.mxu0 %v1527
      %1605 = vmatprep.subr.mxu0 %v1524
      %1606 = vmatpush1.msra.mxu0 %v1523
      %1607 = vmatprep.subr.mxu0 %v1520
      %1608 = vmatpush1.msra.mxu0 %v1519
      %1609 = vmatprep.subr.mxu0 %v1516
      %1610 = vmatpush1.msra.mxu0 %v1515
      %1611 = vmatprep.subr.mxu0 %v1512
      %1612 = vmatpush1.msra.mxu0 %v1511
      %1613 = vmatprep.subr.mxu0 %v1508
      %1614 = vmatpush1.msra.mxu0 %v1507
      %1615 = vmatprep.subr.mxu0 %v1504
      %1616 = vmatpush1.msra.mxu0 %v1503
      %1617 = vmatprep.subr.mxu0 %v1500
      %1618 = vmatpush1.msra.mxu0 %v1499
      %1619 = vmatprep.subr.mxu0 %v1496
      %1620 = vmatpush1.msra.mxu0 %v1495
      %1621 = vmatprep.subr.mxu0 %v1492
      %1622 = vmatpush1.msra.mxu0 %v1491
      %1623 = vmatprep.subr.mxu0 %v1488
      %1624 = vmatpush1.msra.mxu0 %v1487
      %1625 = vmatprep.subr.mxu0 %v1484
      %1626 = vmatpush1.msra.mxu0 %v1483
      %1627 = vmatprep.subr.mxu0 0.0
      %1628 = vmatpush2.msra.mxu0 0.0
      %1629 = vmatprep.subr.mxu0 0.0
      %1630 = vmatpush2.msra.mxu0 0.0
      %1631 = vmatprep.subr.mxu0 0.0
      %1632 = vmatpush2.msra.mxu0 0.0
      %1633 = vmatprep.subr.mxu0 0.0
      %1634 = vmatpush2.msra.mxu0 0.0
      %1635 = vmatprep.subr.mxu0 0.0
      %1636 = vmatpush2.msra.mxu0 0.0
      %1637 = vmatprep.subr.mxu0 %v1588
      %1638 = vmatpush2.msra.mxu0 %v1587
      %1639 = vmatprep.subr.mxu0 %v1584
      %1640 = vmatpush2.msra.mxu0 %v1583
      %1641 = vmatprep.subr.mxu0 %v1580
      %1642 = vmatpush2.msra.mxu0 %v1579
      %1643 = vmatprep.subr.mxu0 %v1576
      %1644 = vmatpush2.msra.mxu0 %v1575
      %1645 = vmatprep.subr.mxu0 %v1572
      %1646 = vmatpush2.msra.mxu0 %v1571
      %1647 = vmatprep.subr.mxu0 %v1568
      %1648 = vmatpush2.msra.mxu0 %v1567
      %1649 = vmatprep.subr.mxu0 %v1564
      %1650 = vmatpush2.msra.mxu0 %v1563
      %1651 = vmatprep.subr.mxu0 %v1560
      %1652 = vmatpush2.msra.mxu0 %v1559
      %1653 = vmatprep.subr.mxu0 %v1556
      %1654 = vmatpush2.msra.mxu0 %v1555
      %1655 = vmatprep.subr.mxu0 %v1552
      %1656 = vmatpush2.msra.mxu0 %v1551
      %1657 = vmatprep.subr.mxu0 %v1548
      %1658 = vmatpush2.msra.mxu0 %v1547
      %1659 = vmatprep.mubr.f32.mxu0 %v1593
      %1660 = vmatmul.mubr.f32.gmra.mxu0 %v1481
      %v1661 = vpop.f32.mrf.mxu0
      %v1662 = vadd.f32 0.0, %v1661
      %v1663 = vpop.f32.mrf.mxu0
      %v1664 = vadd.f32 0.0, %v1663
      %1665 = vdwg.mxu0
      %1666 = vmatprep.subr.mxu0 %v1546
      %1667 = vmatpush1.msra.mxu0 %v1545
      %1668 = vmatprep.subr.mxu0 %v1542
      %1669 = vmatpush1.msra.mxu0 %v1541
      %1670 = vmatprep.subr.mxu0 %v1538
      %1671 = vmatpush1.msra.mxu0 %v1537
      %1672 = vmatprep.subr.mxu0 %v1534
      %1673 = vmatpush1.msra.mxu0 %v1533
      %1674 = vmatprep.subr.mxu0 %v1530
      %1675 = vmatpush1.msra.mxu0 %v1529
      %1676 = vmatprep.subr.mxu0 %v1526
      %1677 = vmatpush1.msra.mxu0 %v1525
      %1678 = vmatprep.subr.mxu0 %v1522
      %1679 = vmatpush1.msra.mxu0 %v1521
      %1680 = vmatprep.subr.mxu0 %v1518
      %1681 = vmatpush1.msra.mxu0 %v1517
      %1682 = vmatprep.subr.mxu0 %v1514
      %1683 = vmatpush1.msra.mxu0 %v1513
      %1684 = vmatprep.subr.mxu0 %v1510
      %1685 = vmatpush1.msra.mxu0 %v1509
      %1686 = vmatprep.subr.mxu0 %v1506
      %1687 = vmatpush1.msra.mxu0 %v1505
      %1688 = vmatprep.subr.mxu0 %v1502
      %1689 = vmatpush1.msra.mxu0 %v1501
      %1690 = vmatprep.subr.mxu0 %v1498
      %1691 = vmatpush1.msra.mxu0 %v1497
      %1692 = vmatprep.subr.mxu0 %v1494
      %1693 = vmatpush1.msra.mxu0 %v1493
      %1694 = vmatprep.subr.mxu0 %v1490
      %1695 = vmatpush1.msra.mxu0 %v1489
      %1696 = vmatprep.subr.mxu0 %v1486
      %1697 = vmatpush1.msra.mxu0 %v1485
      %1698 = vmatprep.subr.mxu0 0.0
      %1699 = vmatpush2.msra.mxu0 0.0
      %1700 = vmatprep.subr.mxu0 0.0
      %1701 = vmatpush2.msra.mxu0 0.0
      %1702 = vmatprep.subr.mxu0 0.0
      %1703 = vmatpush2.msra.mxu0 0.0
      %1704 = vmatprep.subr.mxu0 0.0
      %1705 = vmatpush2.msra.mxu0 0.0
      %1706 = vmatprep.subr.mxu0 0.0
      %1707 = vmatpush2.msra.mxu0 0.0
      %1708 = vmatprep.subr.mxu0 %v1590
      %1709 = vmatpush2.msra.mxu0 %v1589
      %1710 = vmatprep.subr.mxu0 %v1586
      %1711 = vmatpush2.msra.mxu0 %v1585
      %1712 = vmatprep.subr.mxu0 %v1582
      %1713 = vmatpush2.msra.mxu0 %v1581
      %1714 = vmatprep.subr.mxu0 %v1578
      %1715 = vmatpush2.msra.mxu0 %v1577
      %1716 = vmatprep.subr.mxu0 %v1574
      %1717 = vmatpush2.msra.mxu0 %v1573
      %1718 = vmatprep.subr.mxu0 %v1570
      %1719 = vmatpush2.msra.mxu0 %v1569
      %1720 = vmatprep.subr.mxu0 %v1566
      %1721 = vmatpush2.msra.mxu0 %v1565
      %1722 = vmatprep.subr.mxu0 %v1562
      %1723 = vmatpush2.msra.mxu0 %v1561
      %1724 = vmatprep.subr.mxu0 %v1558
      %1725 = vmatpush2.msra.mxu0 %v1557
      %1726 = vmatprep.subr.mxu0 %v1554
      %1727 = vmatpush2.msra.mxu0 %v1553
      %1728 = vmatprep.subr.mxu0 %v1550
      %1729 = vmatpush2.msra.mxu0 %v1549
      %1730 = vmatprep.mubr.f32.mxu0 %v1593
      %1731 = vmatmul.mubr.f32.gmra.mxu0 %v1481
      %v1732 = vpop.f32.mrf.mxu0
      %v1733 = vadd.f32 0.0, %v1732
      %v1734 = vpop.f32.mrf.mxu0
      %v1735 = vadd.f32 0.0, %v1734
      %1736 = vdwg.mxu0
      %v1737 = vld [vmem:[%s5] sm:$0xff]
      %1739 = vset.pattern.permute.xlu0 0
      %1740 = vperm.xlu0 %1739, %v1737
      %v1741 = vpop.permute.xlu0 %1740
      %v1743 = vmul.f32 %v1662, %v1741
      %v1744 = vmul.f32 %v1664, %v1741
      %v1745 = vmul.f32 %v1733, %v1741
      %v1746 = vmul.f32 %v1735, %v1741
      %1747 = vset.pattern.permute.xlu0 1
      %1748 = vperm.xlu0 %1747, %v1737
      %v1749 = vpop.permute.xlu0 %1748
      %v1751 = vadd.f32 %v1743, %v1749
      %v1752 = vadd.f32 %v1744, %v1749
      %v1753 = vadd.f32 %v1745, %v1749
      %v1754 = vadd.f32 %v1746, %v1749
      %v1755 = vmax.f32 %v1751, 0.0
      %v1756 = vmax.f32 %v1752, 0.0
      %v1757 = vmax.f32 %v1753, 0.0
      %v1758 = vmax.f32 %v1754, 0.0
      %1759 = vrot.lane.b32.xlu0 %v1755, 73
      %v1760 = vpop.permute.xlu0 %1759
      %1761 = vrot.lane.b32.xlu0 %v1756, 73
      %v1762 = vpop.permute.xlu0 %1761
      %1763 = vrot.lane.b32.xlu0 %v1757, 73
      %v1764 = vpop.permute.xlu0 %1763
      %1765 = vrot.lane.b32.xlu0 %v1758, 73
      %v1766 = vpop.permute.xlu0 %1765
      %v1767 = vsel %vm459, %v1764, %v1766
      %v1768 = vsel %vm459, %v1762, %v1764
      %v1769 = vsel %vm459, %v1760, %v1762
      %v1770 = vsel %vm459, %v1766, %v1760
      %v1771 = vld [vmem:[%s6] ss:$8 sm:$0xf]
      %v1773 = vlaneseq
      %v1774 = vshrl.u32 %v1773, 7
      %v1775 = vsub.s32 0, %v1774
      %v1776 = vrot.slane %v1771, %v1775
      %v1777 = vlaneseq
      %v1778 = vshrl.u32 %v1777, 7
      %v1779 = vsub.s32 1, %v1778
      %v1780 = vrot.slane %v1771, %v1779
      %v1781 = vlaneseq
      %v1782 = vshrl.u32 %v1781, 7
      %v1783 = vsub.s32 2, %v1782
      %v1784 = vrot.slane %v1771, %v1783
      %v1785 = vlaneseq
      %v1786 = vshrl.u32 %v1785, 7
      %v1787 = vsub.s32 3, %v1786
      %v1788 = vrot.slane %v1771, %v1787
      %v1793 = vmul.f32 %v1770, %v1776
      %v1794 = vmul.f32 %v1769, %v1780
      %v1795 = vmul.f32 %v1768, %v1784
      %v1796 = vmul.f32 %v1767, %v1788
      %1797 = vst [vmem:[#allocation2] sm:$0xff] %v1793
      %1798 = vst [vmem:[#allocation2 + $0x8] sm:$0xff] %v1794
      %1799 = vst [vmem:[#allocation2 + $0x10] sm:$0xff] %v1795
      %1800 = vst [vmem:[#allocation2 + $0x18] sm:$0xff] %v1796
      %1801 = vrot.lane.b32.xlu0 %v1755, 72
      %v1802 = vpop.permute.xlu0 %1801
      %1803 = vrot.lane.b32.xlu0 %v1756, 72
      %v1804 = vpop.permute.xlu0 %1803
      %1805 = vrot.lane.b32.xlu0 %v1757, 72
      %v1806 = vpop.permute.xlu0 %1805
      %1807 = vrot.lane.b32.xlu0 %v1758, 72
      %v1808 = vpop.permute.xlu0 %1807
      %v1809 = vsel %vm502, %v1806, %v1808
      %v1810 = vsel %vm502, %v1804, %v1806
      %v1811 = vsel %vm502, %v1802, %v1804
      %v1812 = vsel %vm502, %v1808, %v1802
      %v1813 = vld [vmem:[%s507] ss:$8 sm:$0xf]
      %v1815 = vlaneseq
      %v1816 = vshrl.u32 %v1815, 7
      %v1817 = vsub.s32 0, %v1816
      %v1818 = vrot.slane %v1813, %v1817
      %v1819 = vlaneseq
      %v1820 = vshrl.u32 %v1819, 7
      %v1821 = vsub.s32 1, %v1820
      %v1822 = vrot.slane %v1813, %v1821
      %v1823 = vlaneseq
      %v1824 = vshrl.u32 %v1823, 7
      %v1825 = vsub.s32 2, %v1824
      %v1826 = vrot.slane %v1813, %v1825
      %v1827 = vlaneseq
      %v1828 = vshrl.u32 %v1827, 7
      %v1829 = vsub.s32 3, %v1828
      %v1830 = vrot.slane %v1813, %v1829
      %v1835 = vmul.f32 %v1812, %v1818
      %v1836 = vmul.f32 %v1811, %v1822
      %v1837 = vmul.f32 %v1810, %v1826
      %v1838 = vmul.f32 %v1809, %v1830
      %1839 = vst [vmem:[#allocation2 + $0x20] sm:$0xff] %v1835
      %1840 = vst [vmem:[#allocation2 + $0x28] sm:$0xff] %v1836
      %1841 = vst [vmem:[#allocation2 + $0x30] sm:$0xff] %v1837
      %1842 = vst [vmem:[#allocation2 + $0x38] sm:$0xff] %v1838
      %1843 = vrot.lane.b32.xlu0 %v1755, 71
      %v1844 = vpop.permute.xlu0 %1843
      %1845 = vrot.lane.b32.xlu0 %v1756, 71
      %v1846 = vpop.permute.xlu0 %1845
      %1847 = vrot.lane.b32.xlu0 %v1757, 71
      %v1848 = vpop.permute.xlu0 %1847
      %1849 = vrot.lane.b32.xlu0 %v1758, 71
      %v1850 = vpop.permute.xlu0 %1849
      %v1851 = vsel %vm546, %v1848, %v1850
      %v1852 = vsel %vm546, %v1846, %v1848
      %v1853 = vsel %vm546, %v1844, %v1846
      %v1854 = vsel %vm546, %v1850, %v1844
      %v1855 = vld [vmem:[%s551] ss:$8 sm:$0xf]
      %v1857 = vlaneseq
      %v1858 = vshrl.u32 %v1857, 7
      %v1859 = vsub.s32 0, %v1858
      %v1860 = vrot.slane %v1855, %v1859
      %v1861 = vlaneseq
      %v1862 = vshrl.u32 %v1861, 7
      %v1863 = vsub.s32 1, %v1862
      %v1864 = vrot.slane %v1855, %v1863
      %v1865 = vlaneseq
      %v1866 = vshrl.u32 %v1865, 7
      %v1867 = vsub.s32 2, %v1866
      %v1868 = vrot.slane %v1855, %v1867
      %v1869 = vlaneseq
      %v1870 = vshrl.u32 %v1869, 7
      %v1871 = vsub.s32 3, %v1870
      %v1872 = vrot.slane %v1855, %v1871
      %v1877 = vmul.f32 %v1854, %v1860
      %v1878 = vmul.f32 %v1853, %v1864
      %v1879 = vmul.f32 %v1852, %v1868
      %v1880 = vmul.f32 %v1851, %v1872
      %1881 = vst [vmem:[#allocation2 + $0x40] sm:$0xff] %v1877
      %1882 = vst [vmem:[#allocation2 + $0x48] sm:$0xff] %v1878
      %1883 = vst [vmem:[#allocation2 + $0x50] sm:$0xff] %v1879
      %1884 = vst [vmem:[#allocation2 + $0x58] sm:$0xff] %v1880
      %1885 = vrot.lane.b32.xlu0 %v1755, 65
      %v1886 = vpop.permute.xlu0 %1885
      %1887 = vrot.lane.b32.xlu0 %v1756, 65
      %v1888 = vpop.permute.xlu0 %1887
      %1889 = vrot.lane.b32.xlu0 %v1757, 65
      %v1890 = vpop.permute.xlu0 %1889
      %1891 = vrot.lane.b32.xlu0 %v1758, 65
      %v1892 = vpop.permute.xlu0 %1891
      %v1893 = vsel %vm590, %v1890, %v1892
      %v1894 = vsel %vm590, %v1888, %v1890
      %v1895 = vsel %vm590, %v1886, %v1888
      %v1896 = vsel %vm590, %v1892, %v1886
      %v1897 = vld [vmem:[%s595] ss:$8 sm:$0xf]
      %v1899 = vlaneseq
      %v1900 = vshrl.u32 %v1899, 7
      %v1901 = vsub.s32 0, %v1900
      %v1902 = vrot.slane %v1897, %v1901
      %v1903 = vlaneseq
      %v1904 = vshrl.u32 %v1903, 7
      %v1905 = vsub.s32 1, %v1904
      %v1906 = vrot.slane %v1897, %v1905
      %v1907 = vlaneseq
      %v1908 = vshrl.u32 %v1907, 7
      %v1909 = vsub.s32 2, %v1908
      %v1910 = vrot.slane %v1897, %v1909
      %v1911 = vlaneseq
      %v1912 = vshrl.u32 %v1911, 7
      %v1913 = vsub.s32 3, %v1912
      %v1914 = vrot.slane %v1897, %v1913
      %v1919 = vmul.f32 %v1896, %v1902
      %v1920 = vmul.f32 %v1895, %v1906
      %v1921 = vmul.f32 %v1894, %v1910
      %v1922 = vmul.f32 %v1893, %v1914
      %1923 = vst [vmem:[#allocation2 + $0x60] sm:$0xff] %v1919
      %1924 = vst [vmem:[#allocation2 + $0x68] sm:$0xff] %v1920
      %1925 = vst [vmem:[#allocation2 + $0x70] sm:$0xff] %v1921
      %1926 = vst [vmem:[#allocation2 + $0x78] sm:$0xff] %v1922
      %1927 = vrot.lane.b32.xlu0 %v1755, 64
      %v1928 = vpop.permute.xlu0 %1927
      %1929 = vrot.lane.b32.xlu0 %v1756, 64
      %v1930 = vpop.permute.xlu0 %1929
      %1931 = vrot.lane.b32.xlu0 %v1757, 64
      %v1932 = vpop.permute.xlu0 %1931
      %1933 = vrot.lane.b32.xlu0 %v1758, 64
      %v1934 = vpop.permute.xlu0 %1933
      %v1935 = vsel %vm634, %v1932, %v1934
      %v1936 = vsel %vm634, %v1930, %v1932
      %v1937 = vsel %vm634, %v1928, %v1930
      %v1938 = vsel %vm634, %v1934, %v1928
      %v1939 = vld [vmem:[%s639] ss:$8 sm:$0xf]
      %v1941 = vlaneseq
      %v1942 = vshrl.u32 %v1941, 7
      %v1943 = vsub.s32 0, %v1942
      %v1944 = vrot.slane %v1939, %v1943
      %v1945 = vlaneseq
      %v1946 = vshrl.u32 %v1945, 7
      %v1947 = vsub.s32 1, %v1946
      %v1948 = vrot.slane %v1939, %v1947
      %v1949 = vlaneseq
      %v1950 = vshrl.u32 %v1949, 7
      %v1951 = vsub.s32 2, %v1950
      %v1952 = vrot.slane %v1939, %v1951
      %v1953 = vlaneseq
      %v1954 = vshrl.u32 %v1953, 7
      %v1955 = vsub.s32 3, %v1954
      %v1956 = vrot.slane %v1939, %v1955
      %v1961 = vmul.f32 %v1938, %v1944
      %v1962 = vmul.f32 %v1937, %v1948
      %v1963 = vmul.f32 %v1936, %v1952
      %v1964 = vmul.f32 %v1935, %v1956
      %1965 = vst [vmem:[#allocation2 + $0x80] sm:$0xff] %v1961
      %1966 = vst [vmem:[#allocation2 + $0x88] sm:$0xff] %v1962
      %1967 = vst [vmem:[#allocation2 + $0x90] sm:$0xff] %v1963
      %1968 = vst [vmem:[#allocation2 + $0x98] sm:$0xff] %v1964
      %1969 = vrot.lane.b32.xlu0 %v1755, 63
      %v1970 = vpop.permute.xlu0 %1969
      %1971 = vrot.lane.b32.xlu0 %v1756, 63
      %v1972 = vpop.permute.xlu0 %1971
      %1973 = vrot.lane.b32.xlu0 %v1757, 63
      %v1974 = vpop.permute.xlu0 %1973
      %1975 = vrot.lane.b32.xlu0 %v1758, 63
      %v1976 = vpop.permute.xlu0 %1975
      %v1977 = vsel %vm678, %v1974, %v1976
      %v1978 = vsel %vm678, %v1972, %v1974
      %v1979 = vsel %vm678, %v1970, %v1972
      %v1980 = vsel %vm678, %v1976, %v1970
      %v1981 = vld [vmem:[%s683] ss:$8 sm:$0xf]
      %v1983 = vlaneseq
      %v1984 = vshrl.u32 %v1983, 7
      %v1985 = vsub.s32 0, %v1984
      %v1986 = vrot.slane %v1981, %v1985
      %v1987 = vlaneseq
      %v1988 = vshrl.u32 %v1987, 7
      %v1989 = vsub.s32 1, %v1988
      %v1990 = vrot.slane %v1981, %v1989
      %v1991 = vlaneseq
      %v1992 = vshrl.u32 %v1991, 7
      %v1993 = vsub.s32 2, %v1992
      %v1994 = vrot.slane %v1981, %v1993
      %v1995 = vlaneseq
      %v1996 = vshrl.u32 %v1995, 7
      %v1997 = vsub.s32 3, %v1996
      %v1998 = vrot.slane %v1981, %v1997
      %v2003 = vmul.f32 %v1980, %v1986
      %v2004 = vmul.f32 %v1979, %v1990
      %v2005 = vmul.f32 %v1978, %v1994
      %v2006 = vmul.f32 %v1977, %v1998
      %2007 = vst [vmem:[#allocation2 + $0xa0] sm:$0xff] %v2003
      %2008 = vst [vmem:[#allocation2 + $0xa8] sm:$0xff] %v2004
      %2009 = vst [vmem:[#allocation2 + $0xb0] sm:$0xff] %v2005
      %2010 = vst [vmem:[#allocation2 + $0xb8] sm:$0xff] %v2006
      %2011 = vrot.lane.b32.xlu0 %v1755, 57
      %v2012 = vpop.permute.xlu0 %2011
      %2013 = vrot.lane.b32.xlu0 %v1756, 57
      %v2014 = vpop.permute.xlu0 %2013
      %2015 = vrot.lane.b32.xlu0 %v1757, 57
      %v2016 = vpop.permute.xlu0 %2015
      %2017 = vrot.lane.b32.xlu0 %v1758, 57
      %v2018 = vpop.permute.xlu0 %2017
      %v2019 = vsel %vm722, %v2016, %v2018
      %v2020 = vsel %vm722, %v2014, %v2016
      %v2021 = vsel %vm722, %v2012, %v2014
      %v2022 = vsel %vm722, %v2018, %v2012
      %v2023 = vld [vmem:[%s727] ss:$8 sm:$0xf]
      %v2025 = vlaneseq
      %v2026 = vshrl.u32 %v2025, 7
      %v2027 = vsub.s32 0, %v2026
      %v2028 = vrot.slane %v2023, %v2027
      %v2029 = vlaneseq
      %v2030 = vshrl.u32 %v2029, 7
      %v2031 = vsub.s32 1, %v2030
      %v2032 = vrot.slane %v2023, %v2031
      %v2033 = vlaneseq
      %v2034 = vshrl.u32 %v2033, 7
      %v2035 = vsub.s32 2, %v2034
      %v2036 = vrot.slane %v2023, %v2035
      %v2037 = vlaneseq
      %v2038 = vshrl.u32 %v2037, 7
      %v2039 = vsub.s32 3, %v2038
      %v2040 = vrot.slane %v2023, %v2039
      %v2045 = vmul.f32 %v2022, %v2028
      %v2046 = vmul.f32 %v2021, %v2032
      %v2047 = vmul.f32 %v2020, %v2036
      %v2048 = vmul.f32 %v2019, %v2040
      %2049 = vst [vmem:[#allocation2 + $0xc0] sm:$0xff] %v2045
      %2050 = vst [vmem:[#allocation2 + $0xc8] sm:$0xff] %v2046
      %2051 = vst [vmem:[#allocation2 + $0xd0] sm:$0xff] %v2047
      %2052 = vst [vmem:[#allocation2 + $0xd8] sm:$0xff] %v2048
      %2053 = vrot.lane.b32.xlu0 %v1755, 56
      %v2054 = vpop.permute.xlu0 %2053
      %2055 = vrot.lane.b32.xlu0 %v1756, 56
      %v2056 = vpop.permute.xlu0 %2055
      %2057 = vrot.lane.b32.xlu0 %v1757, 56
      %v2058 = vpop.permute.xlu0 %2057
      %2059 = vrot.lane.b32.xlu0 %v1758, 56
      %v2060 = vpop.permute.xlu0 %2059
      %v2061 = vsel %vm766, %v2058, %v2060
      %v2062 = vsel %vm766, %v2056, %v2058
      %v2063 = vsel %vm766, %v2054, %v2056
      %v2064 = vsel %vm766, %v2060, %v2054
      %v2065 = vld [vmem:[%s771] ss:$8 sm:$0xf]
      %v2067 = vlaneseq
      %v2068 = vshrl.u32 %v2067, 7
      %v2069 = vsub.s32 0, %v2068
      %v2070 = vrot.slane %v2065, %v2069
      %v2071 = vlaneseq
      %v2072 = vshrl.u32 %v2071, 7
      %v2073 = vsub.s32 1, %v2072
      %v2074 = vrot.slane %v2065, %v2073
      %v2075 = vlaneseq
      %v2076 = vshrl.u32 %v2075, 7
      %v2077 = vsub.s32 2, %v2076
      %v2078 = vrot.slane %v2065, %v2077
      %v2079 = vlaneseq
      %v2080 = vshrl.u32 %v2079, 7
      %v2081 = vsub.s32 3, %v2080
      %v2082 = vrot.slane %v2065, %v2081
      %v2087 = vmul.f32 %v2064, %v2070
      %v2088 = vmul.f32 %v2063, %v2074
      %v2089 = vmul.f32 %v2062, %v2078
      %v2090 = vmul.f32 %v2061, %v2082
      %2091 = vst [vmem:[#allocation2 + $0xe0] sm:$0xff] %v2087
      %2092 = vst [vmem:[#allocation2 + $0xe8] sm:$0xff] %v2088
      %2093 = vst [vmem:[#allocation2 + $0xf0] sm:$0xff] %v2089
      %2094 = vst [vmem:[#allocation2 + $0xf8] sm:$0xff] %v2090
      %2095 = vrot.lane.b32.xlu0 %v1755, 55
      %v2096 = vpop.permute.xlu0 %2095
      %2097 = vrot.lane.b32.xlu0 %v1756, 55
      %v2098 = vpop.permute.xlu0 %2097
      %2099 = vrot.lane.b32.xlu0 %v1757, 55
      %v2100 = vpop.permute.xlu0 %2099
      %2101 = vrot.lane.b32.xlu0 %v1758, 55
      %v2102 = vpop.permute.xlu0 %2101
      %v2103 = vsel %vm810, %v2100, %v2102
      %v2104 = vsel %vm810, %v2098, %v2100
      %v2105 = vsel %vm810, %v2096, %v2098
      %v2106 = vsel %vm810, %v2102, %v2096
      %v2107 = vld [vmem:[%s815] ss:$8 sm:$0xf]
      %v2109 = vlaneseq
      %v2110 = vshrl.u32 %v2109, 7
      %v2111 = vsub.s32 0, %v2110
      %v2112 = vrot.slane %v2107, %v2111
      %v2113 = vlaneseq
      %v2114 = vshrl.u32 %v2113, 7
      %v2115 = vsub.s32 1, %v2114
      %v2116 = vrot.slane %v2107, %v2115
      %v2117 = vlaneseq
      %v2118 = vshrl.u32 %v2117, 7
      %v2119 = vsub.s32 2, %v2118
      %v2120 = vrot.slane %v2107, %v2119
      %v2121 = vlaneseq
      %v2122 = vshrl.u32 %v2121, 7
      %v2123 = vsub.s32 3, %v2122
      %v2124 = vrot.slane %v2107, %v2123
      %v2129 = vmul.f32 %v2106, %v2112
      %v2130 = vmul.f32 %v2105, %v2116
      %v2131 = vmul.f32 %v2104, %v2120
      %v2132 = vmul.f32 %v2103, %v2124
      %2133 = vst [vmem:[#allocation2 + $0x100] sm:$0xff] %v2129
      %2134 = vst [vmem:[#allocation2 + $0x108] sm:$0xff] %v2130
      %2135 = vst [vmem:[#allocation2 + $0x110] sm:$0xff] %v2131
      %2136 = vst [vmem:[#allocation2 + $0x118] sm:$0xff] %v2132
      %2137 = vrot.lane.b32.xlu0 %v1755, 9
      %v2138 = vpop.permute.xlu0 %2137
      %2139 = vrot.lane.b32.xlu0 %v1756, 9
      %v2140 = vpop.permute.xlu0 %2139
      %2141 = vrot.lane.b32.xlu0 %v1757, 9
      %v2142 = vpop.permute.xlu0 %2141
      %2143 = vrot.lane.b32.xlu0 %v1758, 9
      %v2144 = vpop.permute.xlu0 %2143
      %v2145 = vsel %vm854, %v2142, %v2144
      %v2146 = vsel %vm854, %v2140, %v2142
      %v2147 = vsel %vm854, %v2138, %v2140
      %v2148 = vsel %vm854, %v2144, %v2138
      %v2149 = vld [vmem:[%s859] ss:$8 sm:$0xf]
      %v2151 = vlaneseq
      %v2152 = vshrl.u32 %v2151, 7
      %v2153 = vsub.s32 0, %v2152
      %v2154 = vrot.slane %v2149, %v2153
      %v2155 = vlaneseq
      %v2156 = vshrl.u32 %v2155, 7
      %v2157 = vsub.s32 1, %v2156
      %v2158 = vrot.slane %v2149, %v2157
      %v2159 = vlaneseq
      %v2160 = vshrl.u32 %v2159, 7
      %v2161 = vsub.s32 2, %v2160
      %v2162 = vrot.slane %v2149, %v2161
      %v2163 = vlaneseq
      %v2164 = vshrl.u32 %v2163, 7
      %v2165 = vsub.s32 3, %v2164
      %v2166 = vrot.slane %v2149, %v2165
      %v2171 = vmul.f32 %v2148, %v2154
      %v2172 = vmul.f32 %v2147, %v2158
      %v2173 = vmul.f32 %v2146, %v2162
      %v2174 = vmul.f32 %v2145, %v2166
      %2175 = vst [vmem:[#allocation2 + $0x120] sm:$0xff] %v2171
      %2176 = vst [vmem:[#allocation2 + $0x128] sm:$0xff] %v2172
      %2177 = vst [vmem:[#allocation2 + $0x130] sm:$0xff] %v2173
      %2178 = vst [vmem:[#allocation2 + $0x138] sm:$0xff] %v2174
      %2179 = vrot.lane.b32.xlu0 %v1755, 8
      %v2180 = vpop.permute.xlu0 %2179
      %2181 = vrot.lane.b32.xlu0 %v1756, 8
      %v2182 = vpop.permute.xlu0 %2181
      %2183 = vrot.lane.b32.xlu0 %v1757, 8
      %v2184 = vpop.permute.xlu0 %2183
      %2185 = vrot.lane.b32.xlu0 %v1758, 8
      %v2186 = vpop.permute.xlu0 %2185
      %v2187 = vsel %vm898, %v2184, %v2186
      %v2188 = vsel %vm898, %v2182, %v2184
      %v2189 = vsel %vm898, %v2180, %v2182
      %v2190 = vsel %vm898, %v2186, %v2180
      %v2191 = vld [vmem:[%s903] ss:$8 sm:$0xf]
      %v2193 = vlaneseq
      %v2194 = vshrl.u32 %v2193, 7
      %v2195 = vsub.s32 0, %v2194
      %v2196 = vrot.slane %v2191, %v2195
      %v2197 = vlaneseq
      %v2198 = vshrl.u32 %v2197, 7
      %v2199 = vsub.s32 1, %v2198
      %v2200 = vrot.slane %v2191, %v2199
      %v2201 = vlaneseq
      %v2202 = vshrl.u32 %v2201, 7
      %v2203 = vsub.s32 2, %v2202
      %v2204 = vrot.slane %v2191, %v2203
      %v2205 = vlaneseq
      %v2206 = vshrl.u32 %v2205, 7
      %v2207 = vsub.s32 3, %v2206
      %v2208 = vrot.slane %v2191, %v2207
      %v2213 = vmul.f32 %v2190, %v2196
      %v2214 = vmul.f32 %v2189, %v2200
      %v2215 = vmul.f32 %v2188, %v2204
      %v2216 = vmul.f32 %v2187, %v2208
      %2217 = vst [vmem:[#allocation2 + $0x140] sm:$0xff] %v2213
      %2218 = vst [vmem:[#allocation2 + $0x148] sm:$0xff] %v2214
      %2219 = vst [vmem:[#allocation2 + $0x150] sm:$0xff] %v2215
      %2220 = vst [vmem:[#allocation2 + $0x158] sm:$0xff] %v2216
      %2221 = vrot.lane.b32.xlu0 %v1755, 7
      %v2222 = vpop.permute.xlu0 %2221
      %2223 = vrot.lane.b32.xlu0 %v1756, 7
      %v2224 = vpop.permute.xlu0 %2223
      %2225 = vrot.lane.b32.xlu0 %v1757, 7
      %v2226 = vpop.permute.xlu0 %2225
      %2227 = vrot.lane.b32.xlu0 %v1758, 7
      %v2228 = vpop.permute.xlu0 %2227
      %v2229 = vsel %vm942, %v2226, %v2228
      %v2230 = vsel %vm942, %v2224, %v2226
      %v2231 = vsel %vm942, %v2222, %v2224
      %v2232 = vsel %vm942, %v2228, %v2222
      %v2233 = vld [vmem:[%s947] ss:$8 sm:$0xf]
      %v2235 = vlaneseq
      %v2236 = vshrl.u32 %v2235, 7
      %v2237 = vsub.s32 0, %v2236
      %v2238 = vrot.slane %v2233, %v2237
      %v2239 = vlaneseq
      %v2240 = vshrl.u32 %v2239, 7
      %v2241 = vsub.s32 1, %v2240
      %v2242 = vrot.slane %v2233, %v2241
      %v2243 = vlaneseq
      %v2244 = vshrl.u32 %v2243, 7
      %v2245 = vsub.s32 2, %v2244
      %v2246 = vrot.slane %v2233, %v2245
      %v2247 = vlaneseq
      %v2248 = vshrl.u32 %v2247, 7
      %v2249 = vsub.s32 3, %v2248
      %v2250 = vrot.slane %v2233, %v2249
      %v2255 = vmul.f32 %v2232, %v2238
      %v2256 = vmul.f32 %v2231, %v2242
      %v2257 = vmul.f32 %v2230, %v2246
      %v2258 = vmul.f32 %v2229, %v2250
      %2259 = vst [vmem:[#allocation2 + $0x160] sm:$0xff] %v2255
      %2260 = vst [vmem:[#allocation2 + $0x168] sm:$0xff] %v2256
      %2261 = vst [vmem:[#allocation2 + $0x170] sm:$0xff] %v2257
      %2262 = vst [vmem:[#allocation2 + $0x178] sm:$0xff] %v2258
      %2263 = vrot.lane.b32.xlu0 %v1755, 1
      %v2264 = vpop.permute.xlu0 %2263
      %2265 = vrot.lane.b32.xlu0 %v1756, 1
      %v2266 = vpop.permute.xlu0 %2265
      %2267 = vrot.lane.b32.xlu0 %v1757, 1
      %v2268 = vpop.permute.xlu0 %2267
      %2269 = vrot.lane.b32.xlu0 %v1758, 1
      %v2270 = vpop.permute.xlu0 %2269
      %v2271 = vsel %vm986, %v2268, %v2270
      %v2272 = vsel %vm986, %v2266, %v2268
      %v2273 = vsel %vm986, %v2264, %v2266
      %v2274 = vsel %vm986, %v2270, %v2264
      %v2275 = vld [vmem:[%s991] ss:$8 sm:$0xf]
      %v2277 = vlaneseq
      %v2278 = vshrl.u32 %v2277, 7
      %v2279 = vsub.s32 0, %v2278
      %v2280 = vrot.slane %v2275, %v2279
      %v2281 = vlaneseq
      %v2282 = vshrl.u32 %v2281, 7
      %v2283 = vsub.s32 1, %v2282
      %v2284 = vrot.slane %v2275, %v2283
      %v2285 = vlaneseq
      %v2286 = vshrl.u32 %v2285, 7
      %v2287 = vsub.s32 2, %v2286
      %v2288 = vrot.slane %v2275, %v2287
      %v2289 = vlaneseq
      %v2290 = vshrl.u32 %v2289, 7
      %v2291 = vsub.s32 3, %v2290
      %v2292 = vrot.slane %v2275, %v2291
      %v2297 = vmul.f32 %v2274, %v2280
      %v2298 = vmul.f32 %v2273, %v2284
      %v2299 = vmul.f32 %v2272, %v2288
      %v2300 = vmul.f32 %v2271, %v2292
      %2301 = vst [vmem:[#allocation2 + $0x180] sm:$0xff] %v2297
      %2302 = vst [vmem:[#allocation2 + $0x188] sm:$0xff] %v2298
      %2303 = vst [vmem:[#allocation2 + $0x190] sm:$0xff] %v2299
      %2304 = vst [vmem:[#allocation2 + $0x198] sm:$0xff] %v2300
      %2305 = vst [vmem:[#allocation2 + $0x1a0] sm:$0xff] %v1755
      %2306 = vst [vmem:[#allocation2 + $0x1a8] sm:$0xff] %v1756
      %2307 = vst [vmem:[#allocation2 + $0x1b0] sm:$0xff] %v1757
      %2308 = vst [vmem:[#allocation2 + $0x1b8] sm:$0xff] %v1758
      %2309 = vrot.lane.b32.xlu0 %v1755, 127
      %v2310 = vpop.permute.xlu0 %2309
      %2311 = vrot.lane.b32.xlu0 %v1756, 127
      %v2312 = vpop.permute.xlu0 %2311
      %2313 = vrot.lane.b32.xlu0 %v1757, 127
      %v2314 = vpop.permute.xlu0 %2313
      %2315 = vrot.lane.b32.xlu0 %v1758, 127
      %v2316 = vpop.permute.xlu0 %2315
      %v2317 = vsel %vm1034, %v2314, %v2316
      %v2318 = vsel %vm1034, %v2312, %v2314
      %v2319 = vsel %vm1034, %v2310, %v2312
      %v2320 = vsel %vm1034, %v2316, %v2310
      %v2321 = vld [vmem:[%s1039] ss:$8 sm:$0xf]
      %v2323 = vlaneseq
      %v2324 = vshrl.u32 %v2323, 7
      %v2325 = vsub.s32 0, %v2324
      %v2326 = vrot.slane %v2321, %v2325
      %v2327 = vlaneseq
      %v2328 = vshrl.u32 %v2327, 7
      %v2329 = vsub.s32 1, %v2328
      %v2330 = vrot.slane %v2321, %v2329
      %v2331 = vlaneseq
      %v2332 = vshrl.u32 %v2331, 7
      %v2333 = vsub.s32 2, %v2332
      %v2334 = vrot.slane %v2321, %v2333
      %v2335 = vlaneseq
      %v2336 = vshrl.u32 %v2335, 7
      %v2337 = vsub.s32 3, %v2336
      %v2338 = vrot.slane %v2321, %v2337
      %v2343 = vmul.f32 %v2319, %v2326
      %v2344 = vmul.f32 %v2318, %v2330
      %v2345 = vmul.f32 %v2317, %v2334
      %v2346 = vmul.f32 %v2320, %v2338
      %2347 = vst [vmem:[#allocation2 + $0x1c0] sm:$0xff] %v2343
      %2348 = vst [vmem:[#allocation2 + $0x1c8] sm:$0xff] %v2344
      %2349 = vst [vmem:[#allocation2 + $0x1d0] sm:$0xff] %v2345
      %2350 = vst [vmem:[#allocation2 + $0x1d8] sm:$0xff] %v2346
      %2351 = vrot.lane.b32.xlu0 %v1755, 121
      %v2352 = vpop.permute.xlu0 %2351
      %2353 = vrot.lane.b32.xlu0 %v1756, 121
      %v2354 = vpop.permute.xlu0 %2353
      %2355 = vrot.lane.b32.xlu0 %v1757, 121
      %v2356 = vpop.permute.xlu0 %2355
      %2357 = vrot.lane.b32.xlu0 %v1758, 121
      %v2358 = vpop.permute.xlu0 %2357
      %v2359 = vsel %vm1078, %v2356, %v2358
      %v2360 = vsel %vm1078, %v2354, %v2356
      %v2361 = vsel %vm1078, %v2352, %v2354
      %v2362 = vsel %vm1078, %v2358, %v2352
      %v2363 = vld [vmem:[%s1083] ss:$8 sm:$0xf]
      %v2365 = vlaneseq
      %v2366 = vshrl.u32 %v2365, 7
      %v2367 = vsub.s32 0, %v2366
      %v2368 = vrot.slane %v2363, %v2367
      %v2369 = vlaneseq
      %v2370 = vshrl.u32 %v2369, 7
      %v2371 = vsub.s32 1, %v2370
      %v2372 = vrot.slane %v2363, %v2371
      %v2373 = vlaneseq
      %v2374 = vshrl.u32 %v2373, 7
      %v2375 = vsub.s32 2, %v2374
      %v2376 = vrot.slane %v2363, %v2375
      %v2377 = vlaneseq
      %v2378 = vshrl.u32 %v2377, 7
      %v2379 = vsub.s32 3, %v2378
      %v2380 = vrot.slane %v2363, %v2379
      %v2385 = vmul.f32 %v2361, %v2368
      %v2386 = vmul.f32 %v2360, %v2372
      %v2387 = vmul.f32 %v2359, %v2376
      %v2388 = vmul.f32 %v2362, %v2380
      %2389 = vst [vmem:[#allocation2 + $0x1e0] sm:$0xff] %v2385
      %2390 = vst [vmem:[#allocation2 + $0x1e8] sm:$0xff] %v2386
      %2391 = vst [vmem:[#allocation2 + $0x1f0] sm:$0xff] %v2387
      %2392 = vst [vmem:[#allocation2 + $0x1f8] sm:$0xff] %v2388
      %2393 = vrot.lane.b32.xlu0 %v1755, 120
      %v2394 = vpop.permute.xlu0 %2393
      %2395 = vrot.lane.b32.xlu0 %v1756, 120
      %v2396 = vpop.permute.xlu0 %2395
      %2397 = vrot.lane.b32.xlu0 %v1757, 120
      %v2398 = vpop.permute.xlu0 %2397
      %2399 = vrot.lane.b32.xlu0 %v1758, 120
      %v2400 = vpop.permute.xlu0 %2399
      %v2401 = vsel %vm1122, %v2398, %v2400
      %v2402 = vsel %vm1122, %v2396, %v2398
      %v2403 = vsel %vm1122, %v2394, %v2396
      %v2404 = vsel %vm1122, %v2400, %v2394
      %v2405 = vld [vmem:[%s1127] ss:$8 sm:$0xf]
      %v2407 = vlaneseq
      %v2408 = vshrl.u32 %v2407, 7
      %v2409 = vsub.s32 0, %v2408
      %v2410 = vrot.slane %v2405, %v2409
      %v2411 = vlaneseq
      %v2412 = vshrl.u32 %v2411, 7
      %v2413 = vsub.s32 1, %v2412
      %v2414 = vrot.slane %v2405, %v2413
      %v2415 = vlaneseq
      %v2416 = vshrl.u32 %v2415, 7
      %v2417 = vsub.s32 2, %v2416
      %v2418 = vrot.slane %v2405, %v2417
      %v2419 = vlaneseq
      %v2420 = vshrl.u32 %v2419, 7
      %v2421 = vsub.s32 3, %v2420
      %v2422 = vrot.slane %v2405, %v2421
      %v2427 = vmul.f32 %v2403, %v2410
      %v2428 = vmul.f32 %v2402, %v2414
      %v2429 = vmul.f32 %v2401, %v2418
      %v2430 = vmul.f32 %v2404, %v2422
      %2431 = vst [vmem:[#allocation2 + $0x200] sm:$0xff] %v2427
      %2432 = vst [vmem:[#allocation2 + $0x208] sm:$0xff] %v2428
      %2433 = vst [vmem:[#allocation2 + $0x210] sm:$0xff] %v2429
      %2434 = vst [vmem:[#allocation2 + $0x218] sm:$0xff] %v2430
      %2435 = vrot.lane.b32.xlu0 %v1755, 119
      %v2436 = vpop.permute.xlu0 %2435
      %2437 = vrot.lane.b32.xlu0 %v1756, 119
      %v2438 = vpop.permute.xlu0 %2437
      %2439 = vrot.lane.b32.xlu0 %v1757, 119
      %v2440 = vpop.permute.xlu0 %2439
      %2441 = vrot.lane.b32.xlu0 %v1758, 119
      %v2442 = vpop.permute.xlu0 %2441
      %v2443 = vsel %vm1166, %v2440, %v2442
      %v2444 = vsel %vm1166, %v2438, %v2440
      %v2445 = vsel %vm1166, %v2436, %v2438
      %v2446 = vsel %vm1166, %v2442, %v2436
      %v2447 = vld [vmem:[%s1171] ss:$8 sm:$0xf]
      %v2449 = vlaneseq
      %v2450 = vshrl.u32 %v2449, 7
      %v2451 = vsub.s32 0, %v2450
      %v2452 = vrot.slane %v2447, %v2451
      %v2453 = vlaneseq
      %v2454 = vshrl.u32 %v2453, 7
      %v2455 = vsub.s32 1, %v2454
      %v2456 = vrot.slane %v2447, %v2455
      %v2457 = vlaneseq
      %v2458 = vshrl.u32 %v2457, 7
      %v2459 = vsub.s32 2, %v2458
      %v2460 = vrot.slane %v2447, %v2459
      %v2461 = vlaneseq
      %v2462 = vshrl.u32 %v2461, 7
      %v2463 = vsub.s32 3, %v2462
      %v2464 = vrot.slane %v2447, %v2463
      %v2469 = vmul.f32 %v2445, %v2452
      %v2470 = vmul.f32 %v2444, %v2456
      %v2471 = vmul.f32 %v2443, %v2460
      %v2472 = vmul.f32 %v2446, %v2464
      %2473 = vst [vmem:[#allocation2 + $0x220] sm:$0xff] %v2469
      %2474 = vst [vmem:[#allocation2 + $0x228] sm:$0xff] %v2470
      %2475 = vst [vmem:[#allocation2 + $0x230] sm:$0xff] %v2471
      %2476 = vst [vmem:[#allocation2 + $0x238] sm:$0xff] %v2472
      %v2477 = vld [vmem:[%s1202] ss:$8 sm:$0xf]
      %v2479 = vlaneseq
      %v2480 = vshrl.u32 %v2479, 7
      %v2481 = vsub.s32 0, %v2480
      %v2482 = vrot.slane %v2477, %v2481
      %v2483 = vlaneseq
      %v2484 = vshrl.u32 %v2483, 7
      %v2485 = vsub.s32 1, %v2484
      %v2486 = vrot.slane %v2477, %v2485
      %v2487 = vlaneseq
      %v2488 = vshrl.u32 %v2487, 7
      %v2489 = vsub.s32 2, %v2488
      %v2490 = vrot.slane %v2477, %v2489
      %v2491 = vlaneseq
      %v2492 = vshrl.u32 %v2491, 7
      %v2493 = vsub.s32 3, %v2492
      %v2494 = vrot.slane %v2477, %v2493
      %v2499 = vmul.f32 %v1769, %v2482
      %v2500 = vmul.f32 %v1768, %v2486
      %v2501 = vmul.f32 %v1767, %v2490
      %v2502 = vmul.f32 %v1770, %v2494
      %2503 = vst [vmem:[#allocation2 + $0x240] sm:$0xff] %v2499
      %2504 = vst [vmem:[#allocation2 + $0x248] sm:$0xff] %v2500
      %2505 = vst [vmem:[#allocation2 + $0x250] sm:$0xff] %v2501
      %2506 = vst [vmem:[#allocation2 + $0x258] sm:$0xff] %v2502
      %v2507 = vld [vmem:[%s1233] ss:$8 sm:$0xf]
      %v2509 = vlaneseq
      %v2510 = vshrl.u32 %v2509, 7
      %v2511 = vsub.s32 0, %v2510
      %v2512 = vrot.slane %v2507, %v2511
      %v2513 = vlaneseq
      %v2514 = vshrl.u32 %v2513, 7
      %v2515 = vsub.s32 1, %v2514
      %v2516 = vrot.slane %v2507, %v2515
      %v2517 = vlaneseq
      %v2518 = vshrl.u32 %v2517, 7
      %v2519 = vsub.s32 2, %v2518
      %v2520 = vrot.slane %v2507, %v2519
      %v2521 = vlaneseq
      %v2522 = vshrl.u32 %v2521, 7
      %v2523 = vsub.s32 3, %v2522
      %v2524 = vrot.slane %v2507, %v2523
      %v2529 = vmul.f32 %v1811, %v2512
      %v2530 = vmul.f32 %v1810, %v2516
      %v2531 = vmul.f32 %v1809, %v2520
      %v2532 = vmul.f32 %v1812, %v2524
      %2533 = vst [vmem:[#allocation2 + $0x260] sm:$0xff] %v2529
      %2534 = vst [vmem:[#allocation2 + $0x268] sm:$0xff] %v2530
      %2535 = vst [vmem:[#allocation2 + $0x270] sm:$0xff] %v2531
      %2536 = vst [vmem:[#allocation2 + $0x278] sm:$0xff] %v2532
      %v2537 = vld [vmem:[%s1264] ss:$8 sm:$0xf]
      %v2539 = vlaneseq
      %v2540 = vshrl.u32 %v2539, 7
      %v2541 = vsub.s32 0, %v2540
      %v2542 = vrot.slane %v2537, %v2541
      %v2543 = vlaneseq
      %v2544 = vshrl.u32 %v2543, 7
      %v2545 = vsub.s32 1, %v2544
      %v2546 = vrot.slane %v2537, %v2545
      %v2547 = vlaneseq
      %v2548 = vshrl.u32 %v2547, 7
      %v2549 = vsub.s32 2, %v2548
      %v2550 = vrot.slane %v2537, %v2549
      %v2551 = vlaneseq
      %v2552 = vshrl.u32 %v2551, 7
      %v2553 = vsub.s32 3, %v2552
      %v2554 = vrot.slane %v2537, %v2553
      %v2559 = vmul.f32 %v1853, %v2542
      %v2560 = vmul.f32 %v1852, %v2546
      %v2561 = vmul.f32 %v1851, %v2550
      %v2562 = vmul.f32 %v1854, %v2554
      %2563 = vst [vmem:[#allocation2 + $0x280] sm:$0xff] %v2559
      %2564 = vst [vmem:[#allocation2 + $0x288] sm:$0xff] %v2560
      %2565 = vst [vmem:[#allocation2 + $0x290] sm:$0xff] %v2561
      %2566 = vst [vmem:[#allocation2 + $0x298] sm:$0xff] %v2562
      %v2567 = vld [vmem:[%s1295] ss:$8 sm:$0xf]
      %v2569 = vlaneseq
      %v2570 = vshrl.u32 %v2569, 7
      %v2571 = vsub.s32 0, %v2570
      %v2572 = vrot.slane %v2567, %v2571
      %v2573 = vlaneseq
      %v2574 = vshrl.u32 %v2573, 7
      %v2575 = vsub.s32 1, %v2574
      %v2576 = vrot.slane %v2567, %v2575
      %v2577 = vlaneseq
      %v2578 = vshrl.u32 %v2577, 7
      %v2579 = vsub.s32 2, %v2578
      %v2580 = vrot.slane %v2567, %v2579
      %v2581 = vlaneseq
      %v2582 = vshrl.u32 %v2581, 7
      %v2583 = vsub.s32 3, %v2582
      %v2584 = vrot.slane %v2567, %v2583
      %v2589 = vmul.f32 %v1895, %v2572
      %v2590 = vmul.f32 %v1894, %v2576
      %v2591 = vmul.f32 %v1893, %v2580
      %v2592 = vmul.f32 %v1896, %v2584
      %2593 = vst [vmem:[#allocation2 + $0x2a0] sm:$0xff] %v2589
      %2594 = vst [vmem:[#allocation2 + $0x2a8] sm:$0xff] %v2590
      %2595 = vst [vmem:[#allocation2 + $0x2b0] sm:$0xff] %v2591
      %2596 = vst [vmem:[#allocation2 + $0x2b8] sm:$0xff] %v2592
      %v2597 = vld [vmem:[%s1326] ss:$8 sm:$0xf]
      %v2599 = vlaneseq
      %v2600 = vshrl.u32 %v2599, 7
      %v2601 = vsub.s32 0, %v2600
      %v2602 = vrot.slane %v2597, %v2601
      %v2603 = vlaneseq
      %v2604 = vshrl.u32 %v2603, 7
      %v2605 = vsub.s32 1, %v2604
      %v2606 = vrot.slane %v2597, %v2605
      %v2607 = vlaneseq
      %v2608 = vshrl.u32 %v2607, 7
      %v2609 = vsub.s32 2, %v2608
      %v2610 = vrot.slane %v2597, %v2609
      %v2611 = vlaneseq
      %v2612 = vshrl.u32 %v2611, 7
      %v2613 = vsub.s32 3, %v2612
      %v2614 = vrot.slane %v2597, %v2613
      %v2619 = vmul.f32 %v1937, %v2602
      %v2620 = vmul.f32 %v1936, %v2606
      %v2621 = vmul.f32 %v1935, %v2610
      %v2622 = vmul.f32 %v1938, %v2614
      %2623 = vst [vmem:[#allocation2 + $0x2c0] sm:$0xff] %v2619
      %2624 = vst [vmem:[#allocation2 + $0x2c8] sm:$0xff] %v2620
      %2625 = vst [vmem:[#allocation2 + $0x2d0] sm:$0xff] %v2621
      %2626 = vst [vmem:[#allocation2 + $0x2d8] sm:$0xff] %v2622
      %v2627 = vld [vmem:[%s1357] ss:$8 sm:$0xf]
      %v2629 = vlaneseq
      %v2630 = vshrl.u32 %v2629, 7
      %v2631 = vsub.s32 0, %v2630
      %v2632 = vrot.slane %v2627, %v2631
      %v2633 = vlaneseq
      %v2634 = vshrl.u32 %v2633, 7
      %v2635 = vsub.s32 1, %v2634
      %v2636 = vrot.slane %v2627, %v2635
      %v2637 = vlaneseq
      %v2638 = vshrl.u32 %v2637, 7
      %v2639 = vsub.s32 2, %v2638
      %v2640 = vrot.slane %v2627, %v2639
      %v2641 = vlaneseq
      %v2642 = vshrl.u32 %v2641, 7
      %v2643 = vsub.s32 3, %v2642
      %v2644 = vrot.slane %v2627, %v2643
      %v2649 = vmul.f32 %v1979, %v2632
      %v2650 = vmul.f32 %v1978, %v2636
      %v2651 = vmul.f32 %v1977, %v2640
      %v2652 = vmul.f32 %v1980, %v2644
      %2653 = vst [vmem:[#allocation2 + $0x2e0] sm:$0xff] %v2649
      %2654 = vst [vmem:[#allocation2 + $0x2e8] sm:$0xff] %v2650
      %2655 = vst [vmem:[#allocation2 + $0x2f0] sm:$0xff] %v2651
      %2656 = vst [vmem:[#allocation2 + $0x2f8] sm:$0xff] %v2652
      %v2657 = vld [vmem:[%s1388] ss:$8 sm:$0xf]
      %v2659 = vlaneseq
      %v2660 = vshrl.u32 %v2659, 7
      %v2661 = vsub.s32 0, %v2660
      %v2662 = vrot.slane %v2657, %v2661
      %v2663 = vlaneseq
      %v2664 = vshrl.u32 %v2663, 7
      %v2665 = vsub.s32 1, %v2664
      %v2666 = vrot.slane %v2657, %v2665
      %v2667 = vlaneseq
      %v2668 = vshrl.u32 %v2667, 7
      %v2669 = vsub.s32 2, %v2668
      %v2670 = vrot.slane %v2657, %v2669
      %v2671 = vlaneseq
      %v2672 = vshrl.u32 %v2671, 7
      %v2673 = vsub.s32 3, %v2672
      %v2674 = vrot.slane %v2657, %v2673
      %v2679 = vmul.f32 %v2021, %v2662
      %v2680 = vmul.f32 %v2020, %v2666
      %v2681 = vmul.f32 %v2019, %v2670
      %v2682 = vmul.f32 %v2022, %v2674
      %2683 = vst [vmem:[#allocation2 + $0x300] sm:$0xff] %v2679
      %2684 = vst [vmem:[#allocation2 + $0x308] sm:$0xff] %v2680
      %2685 = vst [vmem:[#allocation2 + $0x310] sm:$0xff] %v2681
      %2686 = vst [vmem:[#allocation2 + $0x318] sm:$0xff] %v2682
      %v2687 = vld [vmem:[%s1419] ss:$8 sm:$0xf]
      %v2689 = vlaneseq
      %v2690 = vshrl.u32 %v2689, 7
      %v2691 = vsub.s32 0, %v2690
      %v2692 = vrot.slane %v2687, %v2691
      %v2693 = vlaneseq
      %v2694 = vshrl.u32 %v2693, 7
      %v2695 = vsub.s32 1, %v2694
      %v2696 = vrot.slane %v2687, %v2695
      %v2697 = vlaneseq
      %v2698 = vshrl.u32 %v2697, 7
      %v2699 = vsub.s32 2, %v2698
      %v2700 = vrot.slane %v2687, %v2699
      %v2701 = vlaneseq
      %v2702 = vshrl.u32 %v2701, 7
      %v2703 = vsub.s32 3, %v2702
      %v2704 = vrot.slane %v2687, %v2703
      %v2709 = vmul.f32 %v2063, %v2692
      %v2710 = vmul.f32 %v2062, %v2696
      %v2711 = vmul.f32 %v2061, %v2700
      %v2712 = vmul.f32 %v2064, %v2704
      %2713 = vst [vmem:[#allocation2 + $0x320] sm:$0xff] %v2709
      %2714 = vst [vmem:[#allocation2 + $0x328] sm:$0xff] %v2710
      %2715 = vst [vmem:[#allocation2 + $0x330] sm:$0xff] %v2711
      %2716 = vst [vmem:[#allocation2 + $0x338] sm:$0xff] %v2712
      %v2717 = vld [vmem:[%s1450] ss:$8 sm:$0xf]
      %v2719 = vlaneseq
      %v2720 = vshrl.u32 %v2719, 7
      %v2721 = vsub.s32 0, %v2720
      %v2722 = vrot.slane %v2717, %v2721
      %v2723 = vlaneseq
      %v2724 = vshrl.u32 %v2723, 7
      %v2725 = vsub.s32 1, %v2724
      %v2726 = vrot.slane %v2717, %v2725
      %v2727 = vlaneseq
      %v2728 = vshrl.u32 %v2727, 7
      %v2729 = vsub.s32 2, %v2728
      %v2730 = vrot.slane %v2717, %v2729
      %v2731 = vlaneseq
      %v2732 = vshrl.u32 %v2731, 7
      %v2733 = vsub.s32 3, %v2732
      %v2734 = vrot.slane %v2717, %v2733
      %v2739 = vmul.f32 %v2105, %v2722
      %v2740 = vmul.f32 %v2104, %v2726
      %v2741 = vmul.f32 %v2103, %v2730
      %v2742 = vmul.f32 %v2106, %v2734
      %2743 = vst [vmem:[#allocation2 + $0x340] sm:$0xff] %v2739
      %2744 = vst [vmem:[#allocation2 + $0x348] sm:$0xff] %v2740
      %2745 = vst [vmem:[#allocation2 + $0x350] sm:$0xff] %v2741
      %2746 = vst [vmem:[#allocation2 + $0x358] sm:$0xff] %v2742
      %v2747 = vld [vmem:[%s3] sm:$0xff]
      %v2748 = vld [vmem:[%s3 + $0x8] sm:$0xff]
      %v2749 = vld [vmem:[#allocation2] sm:$0xff]
      %v2750 = vld [vmem:[#allocation2 + $0x8] sm:$0xff]
      %v2751 = vld [vmem:[#allocation2 + $0x10] sm:$0xff]
      %v2752 = vld [vmem:[#allocation2 + $0x18] sm:$0xff]
      %v2753 = vld [vmem:[#allocation2 + $0x20] sm:$0xff]
      %v2754 = vld [vmem:[#allocation2 + $0x28] sm:$0xff]
      %v2755 = vld [vmem:[#allocation2 + $0x30] sm:$0xff]
      %v2756 = vld [vmem:[#allocation2 + $0x38] sm:$0xff]
      %v2757 = vld [vmem:[#allocation2 + $0x40] sm:$0xff]
      %v2758 = vld [vmem:[#allocation2 + $0x48] sm:$0xff]
      %v2759 = vld [vmem:[#allocation2 + $0x50] sm:$0xff]
      %v2760 = vld [vmem:[#allocation2 + $0x58] sm:$0xff]
      %v2761 = vld [vmem:[#allocation2 + $0x60] sm:$0xff]
      %v2762 = vld [vmem:[#allocation2 + $0x68] sm:$0xff]
      %v2763 = vld [vmem:[#allocation2 + $0x70] sm:$0xff]
      %v2764 = vld [vmem:[#allocation2 + $0x78] sm:$0xff]
      %v2765 = vld [vmem:[#allocation2 + $0x80] sm:$0xff]
      %v2766 = vld [vmem:[#allocation2 + $0x88] sm:$0xff]
      %v2767 = vld [vmem:[#allocation2 + $0x90] sm:$0xff]
      %v2768 = vld [vmem:[#allocation2 + $0x98] sm:$0xff]
      %v2769 = vld [vmem:[#allocation2 + $0xa0] sm:$0xff]
      %v2770 = vld [vmem:[#allocation2 + $0xa8] sm:$0xff]
      %v2771 = vld [vmem:[#allocation2 + $0xb0] sm:$0xff]
      %v2772 = vld [vmem:[#allocation2 + $0xb8] sm:$0xff]
      %v2773 = vld [vmem:[#allocation2 + $0xc0] sm:$0xff]
      %v2774 = vld [vmem:[#allocation2 + $0xc8] sm:$0xff]
      %v2775 = vld [vmem:[#allocation2 + $0xd0] sm:$0xff]
      %v2776 = vld [vmem:[#allocation2 + $0xd8] sm:$0xff]
      %v2777 = vld [vmem:[#allocation2 + $0xe0] sm:$0xff]
      %v2778 = vld [vmem:[#allocation2 + $0xe8] sm:$0xff]
      %v2779 = vld [vmem:[#allocation2 + $0xf0] sm:$0xff]
      %v2780 = vld [vmem:[#allocation2 + $0xf8] sm:$0xff]
      %v2781 = vld [vmem:[#allocation2 + $0x100] sm:$0xff]
      %v2782 = vld [vmem:[#allocation2 + $0x108] sm:$0xff]
      %v2783 = vld [vmem:[#allocation2 + $0x110] sm:$0xff]
      %v2784 = vld [vmem:[#allocation2 + $0x118] sm:$0xff]
      %v2785 = vld [vmem:[#allocation2 + $0x120] sm:$0xff]
      %v2786 = vld [vmem:[#allocation2 + $0x128] sm:$0xff]
      %v2787 = vld [vmem:[#allocation2 + $0x130] sm:$0xff]
      %v2788 = vld [vmem:[#allocation2 + $0x138] sm:$0xff]
      %v2789 = vld [vmem:[#allocation2 + $0x140] sm:$0xff]
      %v2790 = vld [vmem:[#allocation2 + $0x148] sm:$0xff]
      %v2791 = vld [vmem:[#allocation2 + $0x150] sm:$0xff]
      %v2792 = vld [vmem:[#allocation2 + $0x158] sm:$0xff]
      %v2793 = vld [vmem:[#allocation2 + $0x160] sm:$0xff]
      %v2794 = vld [vmem:[#allocation2 + $0x168] sm:$0xff]
      %v2795 = vld [vmem:[#allocation2 + $0x170] sm:$0xff]
      %v2796 = vld [vmem:[#allocation2 + $0x178] sm:$0xff]
      %v2797 = vld [vmem:[#allocation2 + $0x180] sm:$0xff]
      %v2798 = vld [vmem:[#allocation2 + $0x188] sm:$0xff]
      %v2799 = vld [vmem:[#allocation2 + $0x190] sm:$0xff]
      %v2800 = vld [vmem:[#allocation2 + $0x198] sm:$0xff]
      %v2801 = vld [vmem:[#allocation2 + $0x1a0] sm:$0xff]
      %v2802 = vld [vmem:[#allocation2 + $0x1a8] sm:$0xff]
      %v2803 = vld [vmem:[#allocation2 + $0x1b0] sm:$0xff]
      %v2804 = vld [vmem:[#allocation2 + $0x1b8] sm:$0xff]
      %v2805 = vld [vmem:[#allocation2 + $0x1c0] sm:$0xff]
      %v2806 = vld [vmem:[#allocation2 + $0x1c8] sm:$0xff]
      %v2807 = vld [vmem:[#allocation2 + $0x1d0] sm:$0xff]
      %v2808 = vld [vmem:[#allocation2 + $0x1d8] sm:$0xff]
      %v2809 = vld [vmem:[#allocation2 + $0x1e0] sm:$0xff]
      %v2810 = vld [vmem:[#allocation2 + $0x1e8] sm:$0xff]
      %v2811 = vld [vmem:[#allocation2 + $0x1f0] sm:$0xff]
      %v2812 = vld [vmem:[#allocation2 + $0x1f8] sm:$0xff]
      %v2813 = vld [vmem:[#allocation2 + $0x200] sm:$0xff]
      %v2814 = vld [vmem:[#allocation2 + $0x208] sm:$0xff]
      %v2815 = vld [vmem:[#allocation2 + $0x210] sm:$0xff]
      %v2816 = vld [vmem:[#allocation2 + $0x218] sm:$0xff]
      %v2817 = vld [vmem:[#allocation2 + $0x220] sm:$0xff]
      %v2818 = vld [vmem:[#allocation2 + $0x228] sm:$0xff]
      %v2819 = vld [vmem:[#allocation2 + $0x230] sm:$0xff]
      %v2820 = vld [vmem:[#allocation2 + $0x238] sm:$0xff]
      %v2821 = vld [vmem:[#allocation2 + $0x240] sm:$0xff]
      %v2822 = vld [vmem:[#allocation2 + $0x248] sm:$0xff]
      %v2823 = vld [vmem:[#allocation2 + $0x250] sm:$0xff]
      %v2824 = vld [vmem:[#allocation2 + $0x258] sm:$0xff]
      %v2825 = vld [vmem:[#allocation2 + $0x260] sm:$0xff]
      %v2826 = vld [vmem:[#allocation2 + $0x268] sm:$0xff]
      %v2827 = vld [vmem:[#allocation2 + $0x270] sm:$0xff]
      %v2828 = vld [vmem:[#allocation2 + $0x278] sm:$0xff]
      %v2829 = vld [vmem:[#allocation2 + $0x280] sm:$0xff]
      %v2830 = vld [vmem:[#allocation2 + $0x288] sm:$0xff]
      %v2831 = vld [vmem:[#allocation2 + $0x290] sm:$0xff]
      %v2832 = vld [vmem:[#allocation2 + $0x298] sm:$0xff]
      %v2833 = vld [vmem:[#allocation2 + $0x2a0] sm:$0xff]
      %v2834 = vld [vmem:[#allocation2 + $0x2a8] sm:$0xff]
      %v2835 = vld [vmem:[#allocation2 + $0x2b0] sm:$0xff]
      %v2836 = vld [vmem:[#allocation2 + $0x2b8] sm:$0xff]
      %v2837 = vld [vmem:[#allocation2 + $0x2c0] sm:$0xff]
      %v2838 = vld [vmem:[#allocation2 + $0x2c8] sm:$0xff]
      %v2839 = vld [vmem:[#allocation2 + $0x2d0] sm:$0xff]
      %v2840 = vld [vmem:[#allocation2 + $0x2d8] sm:$0xff]
      %v2841 = vld [vmem:[#allocation2 + $0x2e0] sm:$0xff]
      %v2842 = vld [vmem:[#allocation2 + $0x2e8] sm:$0xff]
      %v2843 = vld [vmem:[#allocation2 + $0x2f0] sm:$0xff]
      %v2844 = vld [vmem:[#allocation2 + $0x2f8] sm:$0xff]
      %v2845 = vld [vmem:[#allocation2 + $0x300] sm:$0xff]
      %v2846 = vld [vmem:[#allocation2 + $0x308] sm:$0xff]
      %v2847 = vld [vmem:[#allocation2 + $0x310] sm:$0xff]
      %v2848 = vld [vmem:[#allocation2 + $0x318] sm:$0xff]
      %v2849 = vld [vmem:[#allocation2 + $0x320] sm:$0xff]
      %v2850 = vld [vmem:[#allocation2 + $0x328] sm:$0xff]
      %v2851 = vld [vmem:[#allocation2 + $0x330] sm:$0xff]
      %v2852 = vld [vmem:[#allocation2 + $0x338] sm:$0xff]
      %v2853 = vld [vmem:[#allocation2 + $0x340] sm:$0xff]
      %v2854 = vld [vmem:[#allocation2 + $0x348] sm:$0xff]
      %v2855 = vld [vmem:[#allocation2 + $0x350] sm:$0xff]
      %v2856 = vld [vmem:[#allocation2 + $0x358] sm:$0xff]
      %v2858 = vsel %vm1591, %v2748, 0
      %2860 = vmatprep.subr.mxu0 %v2810
      %2861 = vmatpush1.msra.mxu0 %v2809
      %2862 = vmatprep.subr.mxu0 %v2806
      %2863 = vmatpush1.msra.mxu0 %v2805
      %2864 = vmatprep.subr.mxu0 %v2802
      %2865 = vmatpush1.msra.mxu0 %v2801
      %2866 = vmatprep.subr.mxu0 %v2798
      %2867 = vmatpush1.msra.mxu0 %v2797
      %2868 = vmatprep.subr.mxu0 %v2794
      %2869 = vmatpush1.msra.mxu0 %v2793
      %2870 = vmatprep.subr.mxu0 %v2790
      %2871 = vmatpush1.msra.mxu0 %v2789
      %2872 = vmatprep.subr.mxu0 %v2786
      %2873 = vmatpush1.msra.mxu0 %v2785
      %2874 = vmatprep.subr.mxu0 %v2782
      %2875 = vmatpush1.msra.mxu0 %v2781
      %2876 = vmatprep.subr.mxu0 %v2778
      %2877 = vmatpush1.msra.mxu0 %v2777
      %2878 = vmatprep.subr.mxu0 %v2774
      %2879 = vmatpush1.msra.mxu0 %v2773
      %2880 = vmatprep.subr.mxu0 %v2770
      %2881 = vmatpush1.msra.mxu0 %v2769
      %2882 = vmatprep.subr.mxu0 %v2766
      %2883 = vmatpush1.msra.mxu0 %v2765
      %2884 = vmatprep.subr.mxu0 %v2762
      %2885 = vmatpush1.msra.mxu0 %v2761
      %2886 = vmatprep.subr.mxu0 %v2758
      %2887 = vmatpush1.msra.mxu0 %v2757
      %2888 = vmatprep.subr.mxu0 %v2754
      %2889 = vmatpush1.msra.mxu0 %v2753
      %2890 = vmatprep.subr.mxu0 %v2750
      %2891 = vmatpush1.msra.mxu0 %v2749
      %2892 = vmatprep.subr.mxu0 0.0
      %2893 = vmatpush2.msra.mxu0 0.0
      %2894 = vmatprep.subr.mxu0 0.0
      %2895 = vmatpush2.msra.mxu0 0.0
      %2896 = vmatprep.subr.mxu0 0.0
      %2897 = vmatpush2.msra.mxu0 0.0
      %2898 = vmatprep.subr.mxu0 0.0
      %2899 = vmatpush2.msra.mxu0 0.0
      %2900 = vmatprep.subr.mxu0 0.0
      %2901 = vmatpush2.msra.mxu0 0.0
      %2902 = vmatprep.subr.mxu0 %v2854
      %2903 = vmatpush2.msra.mxu0 %v2853
      %2904 = vmatprep.subr.mxu0 %v2850
      %2905 = vmatpush2.msra.mxu0 %v2849
      %2906 = vmatprep.subr.mxu0 %v2846
      %2907 = vmatpush2.msra.mxu0 %v2845
      %2908 = vmatprep.subr.mxu0 %v2842
      %2909 = vmatpush2.msra.mxu0 %v2841
      %2910 = vmatprep.subr.mxu0 %v2838
      %2911 = vmatpush2.msra.mxu0 %v2837
      %2912 = vmatprep.subr.mxu0 %v2834
      %2913 = vmatpush2.msra.mxu0 %v2833
      %2914 = vmatprep.subr.mxu0 %v2830
      %2915 = vmatpush2.msra.mxu0 %v2829
      %2916 = vmatprep.subr.mxu0 %v2826
      %2917 = vmatpush2.msra.mxu0 %v2825
      %2918 = vmatprep.subr.mxu0 %v2822
      %2919 = vmatpush2.msra.mxu0 %v2821
      %2920 = vmatprep.subr.mxu0 %v2818
      %2921 = vmatpush2.msra.mxu0 %v2817
      %2922 = vmatprep.subr.mxu0 %v2814
      %2923 = vmatpush2.msra.mxu0 %v2813
      %2924 = vmatprep.mubr.f32.mxu0 %v2858
      %2925 = vmatmul.mubr.f32.gmra.mxu0 %v2747
      %v2926 = vpop.f32.mrf.mxu0
      %v2927 = vadd.f32 0.0, %v2926
      %v2928 = vpop.f32.mrf.mxu0
      %v2929 = vadd.f32 0.0, %v2928
      %2930 = vdwg.mxu0
      %2931 = vmatprep.subr.mxu0 %v2812
      %2932 = vmatpush1.msra.mxu0 %v2811
      %2933 = vmatprep.subr.mxu0 %v2808
      %2934 = vmatpush1.msra.mxu0 %v2807
      %2935 = vmatprep.subr.mxu0 %v2804
      %2936 = vmatpush1.msra.mxu0 %v2803
      %2937 = vmatprep.subr.mxu0 %v2800
      %2938 = vmatpush1.msra.mxu0 %v2799
      %2939 = vmatprep.subr.mxu0 %v2796
      %2940 = vmatpush1.msra.mxu0 %v2795
      %2941 = vmatprep.subr.mxu0 %v2792
      %2942 = vmatpush1.msra.mxu0 %v2791
      %2943 = vmatprep.subr.mxu0 %v2788
      %2944 = vmatpush1.msra.mxu0 %v2787
      %2945 = vmatprep.subr.mxu0 %v2784
      %2946 = vmatpush1.msra.mxu0 %v2783
      %2947 = vmatprep.subr.mxu0 %v2780
      %2948 = vmatpush1.msra.mxu0 %v2779
      %2949 = vmatprep.subr.mxu0 %v2776
      %2950 = vmatpush1.msra.mxu0 %v2775
      %2951 = vmatprep.subr.mxu0 %v2772
      %2952 = vmatpush1.msra.mxu0 %v2771
      %2953 = vmatprep.subr.mxu0 %v2768
      %2954 = vmatpush1.msra.mxu0 %v2767
      %2955 = vmatprep.subr.mxu0 %v2764
      %2956 = vmatpush1.msra.mxu0 %v2763
      %2957 = vmatprep.subr.mxu0 %v2760
      %2958 = vmatpush1.msra.mxu0 %v2759
      %2959 = vmatprep.subr.mxu0 %v2756
      %2960 = vmatpush1.msra.mxu0 %v2755
      %2961 = vmatprep.subr.mxu0 %v2752
      %2962 = vmatpush1.msra.mxu0 %v2751
      %2963 = vmatprep.subr.mxu0 0.0
      %2964 = vmatpush2.msra.mxu0 0.0
      %2965 = vmatprep.subr.mxu0 0.0
      %2966 = vmatpush2.msra.mxu0 0.0
      %2967 = vmatprep.subr.mxu0 0.0
      %2968 = vmatpush2.msra.mxu0 0.0
      %2969 = vmatprep.subr.mxu0 0.0
      %2970 = vmatpush2.msra.mxu0 0.0
      %2971 = vmatprep.subr.mxu0 0.0
      %2972 = vmatpush2.msra.mxu0 0.0
      %2973 = vmatprep.subr.mxu0 %v2856
      %2974 = vmatpush2.msra.mxu0 %v2855
      %2975 = vmatprep.subr.mxu0 %v2852
      %2976 = vmatpush2.msra.mxu0 %v2851
      %2977 = vmatprep.subr.mxu0 %v2848
      %2978 = vmatpush2.msra.mxu0 %v2847
      %2979 = vmatprep.subr.mxu0 %v2844
      %2980 = vmatpush2.msra.mxu0 %v2843
      %2981 = vmatprep.subr.mxu0 %v2840
      %2982 = vmatpush2.msra.mxu0 %v2839
      %2983 = vmatprep.subr.mxu0 %v2836
      %2984 = vmatpush2.msra.mxu0 %v2835
      %2985 = vmatprep.subr.mxu0 %v2832
      %2986 = vmatpush2.msra.mxu0 %v2831
      %2987 = vmatprep.subr.mxu0 %v2828
      %2988 = vmatpush2.msra.mxu0 %v2827
      %2989 = vmatprep.subr.mxu0 %v2824
      %2990 = vmatpush2.msra.mxu0 %v2823
      %2991 = vmatprep.subr.mxu0 %v2820
      %2992 = vmatpush2.msra.mxu0 %v2819
      %2993 = vmatprep.subr.mxu0 %v2816
      %2994 = vmatpush2.msra.mxu0 %v2815
      %2995 = vmatprep.mubr.f32.mxu0 %v2858
      %2996 = vmatmul.mubr.f32.gmra.mxu0 %v2747
      %v2997 = vpop.f32.mrf.mxu0
      %v2998 = vadd.f32 0.0, %v2997
      %v2999 = vpop.f32.mrf.mxu0
      %v3000 = vadd.f32 0.0, %v2999
      %3001 = vdwg.mxu0
      %v3002 = vld [vmem:[%s5] sm:$0xff]
      %3004 = vset.pattern.permute.xlu0 2
      %3005 = vperm.xlu0 %3004, %v3002
      %v3006 = vpop.permute.xlu0 %3005
      %v3008 = vmul.f32 %v2927, %v3006
      %v3009 = vmul.f32 %v2929, %v3006
      %v3010 = vmul.f32 %v2998, %v3006
      %v3011 = vmul.f32 %v3000, %v3006
      %3012 = vset.pattern.permute.xlu0 3
      %3013 = vperm.xlu0 %3012, %v3002
      %v3014 = vpop.permute.xlu0 %3013
      %v3016 = vadd.f32 %v3008, %v3014
      %v3017 = vadd.f32 %v3009, %v3014
      %v3018 = vadd.f32 %v3010, %v3014
      %v3019 = vadd.f32 %v3011, %v3014
      %v3020 = vmax.f32 %v3016, 0.0
      %v3021 = vmax.f32 %v3017, 0.0
      %v3022 = vmax.f32 %v3018, 0.0
      %v3023 = vmax.f32 %v3019, 0.0
      %3024 = vrot.lane.b32.xlu0 %v3020, 73
      %v3025 = vpop.permute.xlu0 %3024
      %3026 = vrot.lane.b32.xlu0 %v3021, 73
      %v3027 = vpop.permute.xlu0 %3026
      %3028 = vrot.lane.b32.xlu0 %v3022, 73
      %v3029 = vpop.permute.xlu0 %3028
      %3030 = vrot.lane.b32.xlu0 %v3023, 73
      %v3031 = vpop.permute.xlu0 %3030
      %v3032 = vsel %vm459, %v3029, %v3031
      %v3033 = vsel %vm459, %v3027, %v3029
      %v3034 = vsel %vm459, %v3025, %v3027
      %v3035 = vsel %vm459, %v3031, %v3025
      %v3036 = vld [vmem:[%s6] ss:$8 sm:$0xf]
      %v3038 = vlaneseq
      %v3039 = vshrl.u32 %v3038, 7
      %v3040 = vsub.s32 0, %v3039
      %v3041 = vrot.slane %v3036, %v3040
      %v3042 = vlaneseq
      %v3043 = vshrl.u32 %v3042, 7
      %v3044 = vsub.s32 1, %v3043
      %v3045 = vrot.slane %v3036, %v3044
      %v3046 = vlaneseq
      %v3047 = vshrl.u32 %v3046, 7
      %v3048 = vsub.s32 2, %v3047
      %v3049 = vrot.slane %v3036, %v3048
      %v3050 = vlaneseq
      %v3051 = vshrl.u32 %v3050, 7
      %v3052 = vsub.s32 3, %v3051
      %v3053 = vrot.slane %v3036, %v3052
      %v3058 = vmul.f32 %v3035, %v3041
      %v3059 = vmul.f32 %v3034, %v3045
      %v3060 = vmul.f32 %v3033, %v3049
      %v3061 = vmul.f32 %v3032, %v3053
      %3062 = vst [vmem:[#allocation2] sm:$0xff] %v3058
      %3063 = vst [vmem:[#allocation2 + $0x8] sm:$0xff] %v3059
      %3064 = vst [vmem:[#allocation2 + $0x10] sm:$0xff] %v3060
      %3065 = vst [vmem:[#allocation2 + $0x18] sm:$0xff] %v3061
      %3066 = vrot.lane.b32.xlu0 %v3020, 72
      %v3067 = vpop.permute.xlu0 %3066
      %3068 = vrot.lane.b32.xlu0 %v3021, 72
      %v3069 = vpop.permute.xlu0 %3068
      %3070 = vrot.lane.b32.xlu0 %v3022, 72
      %v3071 = vpop.permute.xlu0 %3070
      %3072 = vrot.lane.b32.xlu0 %v3023, 72
      %v3073 = vpop.permute.xlu0 %3072
      %v3074 = vsel %vm502, %v3071, %v3073
      %v3075 = vsel %vm502, %v3069, %v3071
      %v3076 = vsel %vm502, %v3067, %v3069
      %v3077 = vsel %vm502, %v3073, %v3067
      %v3078 = vld [vmem:[%s507] ss:$8 sm:$0xf]
      %v3080 = vlaneseq
      %v3081 = vshrl.u32 %v3080, 7
      %v3082 = vsub.s32 0, %v3081
      %v3083 = vrot.slane %v3078, %v3082
      %v3084 = vlaneseq
      %v3085 = vshrl.u32 %v3084, 7
      %v3086 = vsub.s32 1, %v3085
      %v3087 = vrot.slane %v3078, %v3086
      %v3088 = vlaneseq
      %v3089 = vshrl.u32 %v3088, 7
      %v3090 = vsub.s32 2, %v3089
      %v3091 = vrot.slane %v3078, %v3090
      %v3092 = vlaneseq
      %v3093 = vshrl.u32 %v3092, 7
      %v3094 = vsub.s32 3, %v3093
      %v3095 = vrot.slane %v3078, %v3094
      %v3100 = vmul.f32 %v3077, %v3083
      %v3101 = vmul.f32 %v3076, %v3087
      %v3102 = vmul.f32 %v3075, %v3091
      %v3103 = vmul.f32 %v3074, %v3095
      %3104 = vst [vmem:[#allocation2 + $0x20] sm:$0xff] %v3100
      %3105 = vst [vmem:[#allocation2 + $0x28] sm:$0xff] %v3101
      %3106 = vst [vmem:[#allocation2 + $0x30] sm:$0xff] %v3102
      %3107 = vst [vmem:[#allocation2 + $0x38] sm:$0xff] %v3103
      %3108 = vrot.lane.b32.xlu0 %v3020, 71
      %v3109 = vpop.permute.xlu0 %3108
      %3110 = vrot.lane.b32.xlu0 %v3021, 71
      %v3111 = vpop.permute.xlu0 %3110
      %3112 = vrot.lane.b32.xlu0 %v3022, 71
      %v3113 = vpop.permute.xlu0 %3112
      %3114 = vrot.lane.b32.xlu0 %v3023, 71
      %v3115 = vpop.permute.xlu0 %3114
      %v3116 = vsel %vm546, %v3113, %v3115
      %v3117 = vsel %vm546, %v3111, %v3113
      %v3118 = vsel %vm546, %v3109, %v3111
      %v3119 = vsel %vm546, %v3115, %v3109
      %v3120 = vld [vmem:[%s551] ss:$8 sm:$0xf]
      %v3122 = vlaneseq
      %v3123 = vshrl.u32 %v3122, 7
      %v3124 = vsub.s32 0, %v3123
      %v3125 = vrot.slane %v3120, %v3124
      %v3126 = vlaneseq
      %v3127 = vshrl.u32 %v3126, 7
      %v3128 = vsub.s32 1, %v3127
      %v3129 = vrot.slane %v3120, %v3128
      %v3130 = vlaneseq
      %v3131 = vshrl.u32 %v3130, 7
      %v3132 = vsub.s32 2, %v3131
      %v3133 = vrot.slane %v3120, %v3132
      %v3134 = vlaneseq
      %v3135 = vshrl.u32 %v3134, 7
      %v3136 = vsub.s32 3, %v3135
      %v3137 = vrot.slane %v3120, %v3136
      %v3142 = vmul.f32 %v3119, %v3125
      %v3143 = vmul.f32 %v3118, %v3129
      %v3144 = vmul.f32 %v3117, %v3133
      %v3145 = vmul.f32 %v3116, %v3137
      %3146 = vst [vmem:[#allocation2 + $0x40] sm:$0xff] %v3142
      %3147 = vst [vmem:[#allocation2 + $0x48] sm:$0xff] %v3143
      %3148 = vst [vmem:[#allocation2 + $0x50] sm:$0xff] %v3144
      %3149 = vst [vmem:[#allocation2 + $0x58] sm:$0xff] %v3145
      %3150 = vrot.lane.b32.xlu0 %v3020, 65
      %v3151 = vpop.permute.xlu0 %3150
      %3152 = vrot.lane.b32.xlu0 %v3021, 65
      %v3153 = vpop.permute.xlu0 %3152
      %3154 = vrot.lane.b32.xlu0 %v3022, 65
      %v3155 = vpop.permute.xlu0 %3154
      %3156 = vrot.lane.b32.xlu0 %v3023, 65
      %v3157 = vpop.permute.xlu0 %3156
      %v3158 = vsel %vm590, %v3155, %v3157
      %v3159 = vsel %vm590, %v3153, %v3155
      %v3160 = vsel %vm590, %v3151, %v3153
      %v3161 = vsel %vm590, %v3157, %v3151
      %v3162 = vld [vmem:[%s595] ss:$8 sm:$0xf]
      %v3164 = vlaneseq
      %v3165 = vshrl.u32 %v3164, 7
      %v3166 = vsub.s32 0, %v3165
      %v3167 = vrot.slane %v3162, %v3166
      %v3168 = vlaneseq
      %v3169 = vshrl.u32 %v3168, 7
      %v3170 = vsub.s32 1, %v3169
      %v3171 = vrot.slane %v3162, %v3170
      %v3172 = vlaneseq
      %v3173 = vshrl.u32 %v3172, 7
      %v3174 = vsub.s32 2, %v3173
      %v3175 = vrot.slane %v3162, %v3174
      %v3176 = vlaneseq
      %v3177 = vshrl.u32 %v3176, 7
      %v3178 = vsub.s32 3, %v3177
      %v3179 = vrot.slane %v3162, %v3178
      %v3184 = vmul.f32 %v3161, %v3167
      %v3185 = vmul.f32 %v3160, %v3171
      %v3186 = vmul.f32 %v3159, %v3175
      %v3187 = vmul.f32 %v3158, %v3179
      %3188 = vst [vmem:[#allocation2 + $0x60] sm:$0xff] %v3184
      %3189 = vst [vmem:[#allocation2 + $0x68] sm:$0xff] %v3185
      %3190 = vst [vmem:[#allocation2 + $0x70] sm:$0xff] %v3186
      %3191 = vst [vmem:[#allocation2 + $0x78] sm:$0xff] %v3187
      %3192 = vrot.lane.b32.xlu0 %v3020, 64
      %v3193 = vpop.permute.xlu0 %3192
      %3194 = vrot.lane.b32.xlu0 %v3021, 64
      %v3195 = vpop.permute.xlu0 %3194
      %3196 = vrot.lane.b32.xlu0 %v3022, 64
      %v3197 = vpop.permute.xlu0 %3196
      %3198 = vrot.lane.b32.xlu0 %v3023, 64
      %v3199 = vpop.permute.xlu0 %3198
      %v3200 = vsel %vm634, %v3197, %v3199
      %v3201 = vsel %vm634, %v3195, %v3197
      %v3202 = vsel %vm634, %v3193, %v3195
      %v3203 = vsel %vm634, %v3199, %v3193
      %v3204 = vld [vmem:[%s639] ss:$8 sm:$0xf]
      %v3206 = vlaneseq
      %v3207 = vshrl.u32 %v3206, 7
      %v3208 = vsub.s32 0, %v3207
      %v3209 = vrot.slane %v3204, %v3208
      %v3210 = vlaneseq
      %v3211 = vshrl.u32 %v3210, 7
      %v3212 = vsub.s32 1, %v3211
      %v3213 = vrot.slane %v3204, %v3212
      %v3214 = vlaneseq
      %v3215 = vshrl.u32 %v3214, 7
      %v3216 = vsub.s32 2, %v3215
      %v3217 = vrot.slane %v3204, %v3216
      %v3218 = vlaneseq
      %v3219 = vshrl.u32 %v3218, 7
      %v3220 = vsub.s32 3, %v3219
      %v3221 = vrot.slane %v3204, %v3220
      %v3226 = vmul.f32 %v3203, %v3209
      %v3227 = vmul.f32 %v3202, %v3213
      %v3228 = vmul.f32 %v3201, %v3217
      %v3229 = vmul.f32 %v3200, %v3221
      %3230 = vst [vmem:[#allocation2 + $0x80] sm:$0xff] %v3226
      %3231 = vst [vmem:[#allocation2 + $0x88] sm:$0xff] %v3227
      %3232 = vst [vmem:[#allocation2 + $0x90] sm:$0xff] %v3228
      %3233 = vst [vmem:[#allocation2 + $0x98] sm:$0xff] %v3229
      %3234 = vrot.lane.b32.xlu0 %v3020, 63
      %v3235 = vpop.permute.xlu0 %3234
      %3236 = vrot.lane.b32.xlu0 %v3021, 63
      %v3237 = vpop.permute.xlu0 %3236
      %3238 = vrot.lane.b32.xlu0 %v3022, 63
      %v3239 = vpop.permute.xlu0 %3238
      %3240 = vrot.lane.b32.xlu0 %v3023, 63
      %v3241 = vpop.permute.xlu0 %3240
      %v3242 = vsel %vm678, %v3239, %v3241
      %v3243 = vsel %vm678, %v3237, %v3239
      %v3244 = vsel %vm678, %v3235, %v3237
      %v3245 = vsel %vm678, %v3241, %v3235
      %v3246 = vld [vmem:[%s683] ss:$8 sm:$0xf]
      %v3248 = vlaneseq
      %v3249 = vshrl.u32 %v3248, 7
      %v3250 = vsub.s32 0, %v3249
      %v3251 = vrot.slane %v3246, %v3250
      %v3252 = vlaneseq
      %v3253 = vshrl.u32 %v3252, 7
      %v3254 = vsub.s32 1, %v3253
      %v3255 = vrot.slane %v3246, %v3254
      %v3256 = vlaneseq
      %v3257 = vshrl.u32 %v3256, 7
      %v3258 = vsub.s32 2, %v3257
      %v3259 = vrot.slane %v3246, %v3258
      %v3260 = vlaneseq
      %v3261 = vshrl.u32 %v3260, 7
      %v3262 = vsub.s32 3, %v3261
      %v3263 = vrot.slane %v3246, %v3262
      %v3268 = vmul.f32 %v3245, %v3251
      %v3269 = vmul.f32 %v3244, %v3255
      %v3270 = vmul.f32 %v3243, %v3259
      %v3271 = vmul.f32 %v3242, %v3263
      %3272 = vst [vmem:[#allocation2 + $0xa0] sm:$0xff] %v3268
      %3273 = vst [vmem:[#allocation2 + $0xa8] sm:$0xff] %v3269
      %3274 = vst [vmem:[#allocation2 + $0xb0] sm:$0xff] %v3270
      %3275 = vst [vmem:[#allocation2 + $0xb8] sm:$0xff] %v3271
      %3276 = vrot.lane.b32.xlu0 %v3020, 57
      %v3277 = vpop.permute.xlu0 %3276
      %3278 = vrot.lane.b32.xlu0 %v3021, 57
      %v3279 = vpop.permute.xlu0 %3278
      %3280 = vrot.lane.b32.xlu0 %v3022, 57
      %v3281 = vpop.permute.xlu0 %3280
      %3282 = vrot.lane.b32.xlu0 %v3023, 57
      %v3283 = vpop.permute.xlu0 %3282
      %v3284 = vsel %vm722, %v3281, %v3283
      %v3285 = vsel %vm722, %v3279, %v3281
      %v3286 = vsel %vm722, %v3277, %v3279
      %v3287 = vsel %vm722, %v3283, %v3277
      %v3288 = vld [vmem:[%s727] ss:$8 sm:$0xf]
      %v3290 = vlaneseq
      %v3291 = vshrl.u32 %v3290, 7
      %v3292 = vsub.s32 0, %v3291
      %v3293 = vrot.slane %v3288, %v3292
      %v3294 = vlaneseq
      %v3295 = vshrl.u32 %v3294, 7
      %v3296 = vsub.s32 1, %v3295
      %v3297 = vrot.slane %v3288, %v3296
      %v3298 = vlaneseq
      %v3299 = vshrl.u32 %v3298, 7
      %v3300 = vsub.s32 2, %v3299
      %v3301 = vrot.slane %v3288, %v3300
      %v3302 = vlaneseq
      %v3303 = vshrl.u32 %v3302, 7
      %v3304 = vsub.s32 3, %v3303
      %v3305 = vrot.slane %v3288, %v3304
      %v3310 = vmul.f32 %v3287, %v3293
      %v3311 = vmul.f32 %v3286, %v3297
      %v3312 = vmul.f32 %v3285, %v3301
      %v3313 = vmul.f32 %v3284, %v3305
      %3314 = vst [vmem:[#allocation2 + $0xc0] sm:$0xff] %v3310
      %3315 = vst [vmem:[#allocation2 + $0xc8] sm:$0xff] %v3311
      %3316 = vst [vmem:[#allocation2 + $0xd0] sm:$0xff] %v3312
      %3317 = vst [vmem:[#allocation2 + $0xd8] sm:$0xff] %v3313
      %3318 = vrot.lane.b32.xlu0 %v3020, 56
      %v3319 = vpop.permute.xlu0 %3318
      %3320 = vrot.lane.b32.xlu0 %v3021, 56
      %v3321 = vpop.permute.xlu0 %3320
      %3322 = vrot.lane.b32.xlu0 %v3022, 56
      %v3323 = vpop.permute.xlu0 %3322
      %3324 = vrot.lane.b32.xlu0 %v3023, 56
      %v3325 = vpop.permute.xlu0 %3324
      %v3326 = vsel %vm766, %v3323, %v3325
      %v3327 = vsel %vm766, %v3321, %v3323
      %v3328 = vsel %vm766, %v3319, %v3321
      %v3329 = vsel %vm766, %v3325, %v3319
      %v3330 = vld [vmem:[%s771] ss:$8 sm:$0xf]
      %v3332 = vlaneseq
      %v3333 = vshrl.u32 %v3332, 7
      %v3334 = vsub.s32 0, %v3333
      %v3335 = vrot.slane %v3330, %v3334
      %v3336 = vlaneseq
      %v3337 = vshrl.u32 %v3336, 7
      %v3338 = vsub.s32 1, %v3337
      %v3339 = vrot.slane %v3330, %v3338
      %v3340 = vlaneseq
      %v3341 = vshrl.u32 %v3340, 7
      %v3342 = vsub.s32 2, %v3341
      %v3343 = vrot.slane %v3330, %v3342
      %v3344 = vlaneseq
      %v3345 = vshrl.u32 %v3344, 7
      %v3346 = vsub.s32 3, %v3345
      %v3347 = vrot.slane %v3330, %v3346
      %v3352 = vmul.f32 %v3329, %v3335
      %v3353 = vmul.f32 %v3328, %v3339
      %v3354 = vmul.f32 %v3327, %v3343
      %v3355 = vmul.f32 %v3326, %v3347
      %3356 = vst [vmem:[#allocation2 + $0xe0] sm:$0xff] %v3352
      %3357 = vst [vmem:[#allocation2 + $0xe8] sm:$0xff] %v3353
      %3358 = vst [vmem:[#allocation2 + $0xf0] sm:$0xff] %v3354
      %3359 = vst [vmem:[#allocation2 + $0xf8] sm:$0xff] %v3355
      %3360 = vrot.lane.b32.xlu0 %v3020, 55
      %v3361 = vpop.permute.xlu0 %3360
      %3362 = vrot.lane.b32.xlu0 %v3021, 55
      %v3363 = vpop.permute.xlu0 %3362
      %3364 = vrot.lane.b32.xlu0 %v3022, 55
      %v3365 = vpop.permute.xlu0 %3364
      %3366 = vrot.lane.b32.xlu0 %v3023, 55
      %v3367 = vpop.permute.xlu0 %3366
      %v3368 = vsel %vm810, %v3365, %v3367
      %v3369 = vsel %vm810, %v3363, %v3365
      %v3370 = vsel %vm810, %v3361, %v3363
      %v3371 = vsel %vm810, %v3367, %v3361
      %v3372 = vld [vmem:[%s815] ss:$8 sm:$0xf]
      %v3374 = vlaneseq
      %v3375 = vshrl.u32 %v3374, 7
      %v3376 = vsub.s32 0, %v3375
      %v3377 = vrot.slane %v3372, %v3376
      %v3378 = vlaneseq
      %v3379 = vshrl.u32 %v3378, 7
      %v3380 = vsub.s32 1, %v3379
      %v3381 = vrot.slane %v3372, %v3380
      %v3382 = vlaneseq
      %v3383 = vshrl.u32 %v3382, 7
      %v3384 = vsub.s32 2, %v3383
      %v3385 = vrot.slane %v3372, %v3384
      %v3386 = vlaneseq
      %v3387 = vshrl.u32 %v3386, 7
      %v3388 = vsub.s32 3, %v3387
      %v3389 = vrot.slane %v3372, %v3388
      %v3394 = vmul.f32 %v3371, %v3377
      %v3395 = vmul.f32 %v3370, %v3381
      %v3396 = vmul.f32 %v3369, %v3385
      %v3397 = vmul.f32 %v3368, %v3389
      %3398 = vst [vmem:[#allocation2 + $0x100] sm:$0xff] %v3394
      %3399 = vst [vmem:[#allocation2 + $0x108] sm:$0xff] %v3395
      %3400 = vst [vmem:[#allocation2 + $0x110] sm:$0xff] %v3396
      %3401 = vst [vmem:[#allocation2 + $0x118] sm:$0xff] %v3397
      %3402 = vrot.lane.b32.xlu0 %v3020, 9
      %v3403 = vpop.permute.xlu0 %3402
      %3404 = vrot.lane.b32.xlu0 %v3021, 9
      %v3405 = vpop.permute.xlu0 %3404
      %3406 = vrot.lane.b32.xlu0 %v3022, 9
      %v3407 = vpop.permute.xlu0 %3406
      %3408 = vrot.lane.b32.xlu0 %v3023, 9
      %v3409 = vpop.permute.xlu0 %3408
      %v3410 = vsel %vm854, %v3407, %v3409
      %v3411 = vsel %vm854, %v3405, %v3407
      %v3412 = vsel %vm854, %v3403, %v3405
      %v3413 = vsel %vm854, %v3409, %v3403
      %v3414 = vld [vmem:[%s859] ss:$8 sm:$0xf]
      %v3416 = vlaneseq
      %v3417 = vshrl.u32 %v3416, 7
      %v3418 = vsub.s32 0, %v3417
      %v3419 = vrot.slane %v3414, %v3418
      %v3420 = vlaneseq
      %v3421 = vshrl.u32 %v3420, 7
      %v3422 = vsub.s32 1, %v3421
      %v3423 = vrot.slane %v3414, %v3422
      %v3424 = vlaneseq
      %v3425 = vshrl.u32 %v3424, 7
      %v3426 = vsub.s32 2, %v3425
      %v3427 = vrot.slane %v3414, %v3426
      %v3428 = vlaneseq
      %v3429 = vshrl.u32 %v3428, 7
      %v3430 = vsub.s32 3, %v3429
      %v3431 = vrot.slane %v3414, %v3430
      %v3436 = vmul.f32 %v3413, %v3419
      %v3437 = vmul.f32 %v3412, %v3423
      %v3438 = vmul.f32 %v3411, %v3427
      %v3439 = vmul.f32 %v3410, %v3431
      %3440 = vst [vmem:[#allocation2 + $0x120] sm:$0xff] %v3436
      %3441 = vst [vmem:[#allocation2 + $0x128] sm:$0xff] %v3437
      %3442 = vst [vmem:[#allocation2 + $0x130] sm:$0xff] %v3438
      %3443 = vst [vmem:[#allocation2 + $0x138] sm:$0xff] %v3439
      %3444 = vrot.lane.b32.xlu0 %v3020, 8
      %v3445 = vpop.permute.xlu0 %3444
      %3446 = vrot.lane.b32.xlu0 %v3021, 8
      %v3447 = vpop.permute.xlu0 %3446
      %3448 = vrot.lane.b32.xlu0 %v3022, 8
      %v3449 = vpop.permute.xlu0 %3448
      %3450 = vrot.lane.b32.xlu0 %v3023, 8
      %v3451 = vpop.permute.xlu0 %3450
      %v3452 = vsel %vm898, %v3449, %v3451
      %v3453 = vsel %vm898, %v3447, %v3449
      %v3454 = vsel %vm898, %v3445, %v3447
      %v3455 = vsel %vm898, %v3451, %v3445
      %v3456 = vld [vmem:[%s903] ss:$8 sm:$0xf]
      %v3458 = vlaneseq
      %v3459 = vshrl.u32 %v3458, 7
      %v3460 = vsub.s32 0, %v3459
      %v3461 = vrot.slane %v3456, %v3460
      %v3462 = vlaneseq
      %v3463 = vshrl.u32 %v3462, 7
      %v3464 = vsub.s32 1, %v3463
      %v3465 = vrot.slane %v3456, %v3464
      %v3466 = vlaneseq
      %v3467 = vshrl.u32 %v3466, 7
      %v3468 = vsub.s32 2, %v3467
      %v3469 = vrot.slane %v3456, %v3468
      %v3470 = vlaneseq
      %v3471 = vshrl.u32 %v3470, 7
      %v3472 = vsub.s32 3, %v3471
      %v3473 = vrot.slane %v3456, %v3472
      %v3478 = vmul.f32 %v3455, %v3461
      %v3479 = vmul.f32 %v3454, %v3465
      %v3480 = vmul.f32 %v3453, %v3469
      %v3481 = vmul.f32 %v3452, %v3473
      %3482 = vst [vmem:[#allocation2 + $0x140] sm:$0xff] %v3478
      %3483 = vst [vmem:[#allocation2 + $0x148] sm:$0xff] %v3479
      %3484 = vst [vmem:[#allocation2 + $0x150] sm:$0xff] %v3480
      %3485 = vst [vmem:[#allocation2 + $0x158] sm:$0xff] %v3481
      %3486 = vrot.lane.b32.xlu0 %v3020, 7
      %v3487 = vpop.permute.xlu0 %3486
      %3488 = vrot.lane.b32.xlu0 %v3021, 7
      %v3489 = vpop.permute.xlu0 %3488
      %3490 = vrot.lane.b32.xlu0 %v3022, 7
      %v3491 = vpop.permute.xlu0 %3490
      %3492 = vrot.lane.b32.xlu0 %v3023, 7
      %v3493 = vpop.permute.xlu0 %3492
      %v3494 = vsel %vm942, %v3491, %v3493
      %v3495 = vsel %vm942, %v3489, %v3491
      %v3496 = vsel %vm942, %v3487, %v3489
      %v3497 = vsel %vm942, %v3493, %v3487
      %v3498 = vld [vmem:[%s947] ss:$8 sm:$0xf]
      %v3500 = vlaneseq
      %v3501 = vshrl.u32 %v3500, 7
      %v3502 = vsub.s32 0, %v3501
      %v3503 = vrot.slane %v3498, %v3502
      %v3504 = vlaneseq
      %v3505 = vshrl.u32 %v3504, 7
      %v3506 = vsub.s32 1, %v3505
      %v3507 = vrot.slane %v3498, %v3506
      %v3508 = vlaneseq
      %v3509 = vshrl.u32 %v3508, 7
      %v3510 = vsub.s32 2, %v3509
      %v3511 = vrot.slane %v3498, %v3510
      %v3512 = vlaneseq
      %v3513 = vshrl.u32 %v3512, 7
      %v3514 = vsub.s32 3, %v3513
      %v3515 = vrot.slane %v3498, %v3514
      %v3520 = vmul.f32 %v3497, %v3503
      %v3521 = vmul.f32 %v3496, %v3507
      %v3522 = vmul.f32 %v3495, %v3511
      %v3523 = vmul.f32 %v3494, %v3515
      %3524 = vst [vmem:[#allocation2 + $0x160] sm:$0xff] %v3520
      %3525 = vst [vmem:[#allocation2 + $0x168] sm:$0xff] %v3521
      %3526 = vst [vmem:[#allocation2 + $0x170] sm:$0xff] %v3522
      %3527 = vst [vmem:[#allocation2 + $0x178] sm:$0xff] %v3523
      %3528 = vrot.lane.b32.xlu0 %v3020, 1
      %v3529 = vpop.permute.xlu0 %3528
      %3530 = vrot.lane.b32.xlu0 %v3021, 1
      %v3531 = vpop.permute.xlu0 %3530
      %3532 = vrot.lane.b32.xlu0 %v3022, 1
      %v3533 = vpop.permute.xlu0 %3532
      %3534 = vrot.lane.b32.xlu0 %v3023, 1
      %v3535 = vpop.permute.xlu0 %3534
      %v3536 = vsel %vm986, %v3533, %v3535
      %v3537 = vsel %vm986, %v3531, %v3533
      %v3538 = vsel %vm986, %v3529, %v3531
      %v3539 = vsel %vm986, %v3535, %v3529
      %v3540 = vld [vmem:[%s991] ss:$8 sm:$0xf]
      %v3542 = vlaneseq
      %v3543 = vshrl.u32 %v3542, 7
      %v3544 = vsub.s32 0, %v3543
      %v3545 = vrot.slane %v3540, %v3544
      %v3546 = vlaneseq
      %v3547 = vshrl.u32 %v3546, 7
      %v3548 = vsub.s32 1, %v3547
      %v3549 = vrot.slane %v3540, %v3548
      %v3550 = vlaneseq
      %v3551 = vshrl.u32 %v3550, 7
      %v3552 = vsub.s32 2, %v3551
      %v3553 = vrot.slane %v3540, %v3552
      %v3554 = vlaneseq
      %v3555 = vshrl.u32 %v3554, 7
      %v3556 = vsub.s32 3, %v3555
      %v3557 = vrot.slane %v3540, %v3556
      %v3562 = vmul.f32 %v3539, %v3545
      %v3563 = vmul.f32 %v3538, %v3549
      %v3564 = vmul.f32 %v3537, %v3553
      %v3565 = vmul.f32 %v3536, %v3557
      %3566 = vst [vmem:[#allocation2 + $0x180] sm:$0xff] %v3562
      %3567 = vst [vmem:[#allocation2 + $0x188] sm:$0xff] %v3563
      %3568 = vst [vmem:[#allocation2 + $0x190] sm:$0xff] %v3564
      %3569 = vst [vmem:[#allocation2 + $0x198] sm:$0xff] %v3565
      %3570 = vst [vmem:[#allocation2 + $0x1a0] sm:$0xff] %v3020
      %3571 = vst [vmem:[#allocation2 + $0x1a8] sm:$0xff] %v3021
      %3572 = vst [vmem:[#allocation2 + $0x1b0] sm:$0xff] %v3022
      %3573 = vst [vmem:[#allocation2 + $0x1b8] sm:$0xff] %v3023
      %3574 = vrot.lane.b32.xlu0 %v3020, 127
      %v3575 = vpop.permute.xlu0 %3574
      %3576 = vrot.lane.b32.xlu0 %v3021, 127
      %v3577 = vpop.permute.xlu0 %3576
      %3578 = vrot.lane.b32.xlu0 %v3022, 127
      %v3579 = vpop.permute.xlu0 %3578
      %3580 = vrot.lane.b32.xlu0 %v3023, 127
      %v3581 = vpop.permute.xlu0 %3580
      %v3582 = vsel %vm1034, %v3579, %v3581
      %v3583 = vsel %vm1034, %v3577, %v3579
      %v3584 = vsel %vm1034, %v3575, %v3577
      %v3585 = vsel %vm1034, %v3581, %v3575
      %v3586 = vld [vmem:[%s1039] ss:$8 sm:$0xf]
      %v3588 = vlaneseq
      %v3589 = vshrl.u32 %v3588, 7
      %v3590 = vsub.s32 0, %v3589
      %v3591 = vrot.slane %v3586, %v3590
      %v3592 = vlaneseq
      %v3593 = vshrl.u32 %v3592, 7
      %v3594 = vsub.s32 1, %v3593
      %v3595 = vrot.slane %v3586, %v3594
      %v3596 = vlaneseq
      %v3597 = vshrl.u32 %v3596, 7
      %v3598 = vsub.s32 2, %v3597
      %v3599 = vrot.slane %v3586, %v3598
      %v3600 = vlaneseq
      %v3601 = vshrl.u32 %v3600, 7
      %v3602 = vsub.s32 3, %v3601
      %v3603 = vrot.slane %v3586, %v3602
      %v3608 = vmul.f32 %v3584, %v3591
      %v3609 = vmul.f32 %v3583, %v3595
      %v3610 = vmul.f32 %v3582, %v3599
      %v3611 = vmul.f32 %v3585, %v3603
      %3612 = vst [vmem:[#allocation2 + $0x1c0] sm:$0xff] %v3608
      %3613 = vst [vmem:[#allocation2 + $0x1c8] sm:$0xff] %v3609
      %3614 = vst [vmem:[#allocation2 + $0x1d0] sm:$0xff] %v3610
      %3615 = vst [vmem:[#allocation2 + $0x1d8] sm:$0xff] %v3611
      %3616 = vrot.lane.b32.xlu0 %v3020, 121
      %v3617 = vpop.permute.xlu0 %3616
      %3618 = vrot.lane.b32.xlu0 %v3021, 121
      %v3619 = vpop.permute.xlu0 %3618
      %3620 = vrot.lane.b32.xlu0 %v3022, 121
      %v3621 = vpop.permute.xlu0 %3620
      %3622 = vrot.lane.b32.xlu0 %v3023, 121
      %v3623 = vpop.permute.xlu0 %3622
      %v3624 = vsel %vm1078, %v3621, %v3623
      %v3625 = vsel %vm1078, %v3619, %v3621
      %v3626 = vsel %vm1078, %v3617, %v3619
      %v3627 = vsel %vm1078, %v3623, %v3617
      %v3628 = vld [vmem:[%s1083] ss:$8 sm:$0xf]
      %v3630 = vlaneseq
      %v3631 = vshrl.u32 %v3630, 7
      %v3632 = vsub.s32 0, %v3631
      %v3633 = vrot.slane %v3628, %v3632
      %v3634 = vlaneseq
      %v3635 = vshrl.u32 %v3634, 7
      %v3636 = vsub.s32 1, %v3635
      %v3637 = vrot.slane %v3628, %v3636
      %v3638 = vlaneseq
      %v3639 = vshrl.u32 %v3638, 7
      %v3640 = vsub.s32 2, %v3639
      %v3641 = vrot.slane %v3628, %v3640
      %v3642 = vlaneseq
      %v3643 = vshrl.u32 %v3642, 7
      %v3644 = vsub.s32 3, %v3643
      %v3645 = vrot.slane %v3628, %v3644
      %v3650 = vmul.f32 %v3626, %v3633
      %v3651 = vmul.f32 %v3625, %v3637
      %v3652 = vmul.f32 %v3624, %v3641
      %v3653 = vmul.f32 %v3627, %v3645
      %3654 = vst [vmem:[#allocation2 + $0x1e0] sm:$0xff] %v3650
      %3655 = vst [vmem:[#allocation2 + $0x1e8] sm:$0xff] %v3651
      %3656 = vst [vmem:[#allocation2 + $0x1f0] sm:$0xff] %v3652
      %3657 = vst [vmem:[#allocation2 + $0x1f8] sm:$0xff] %v3653
      %3658 = vrot.lane.b32.xlu0 %v3020, 120
      %v3659 = vpop.permute.xlu0 %3658
      %3660 = vrot.lane.b32.xlu0 %v3021, 120
      %v3661 = vpop.permute.xlu0 %3660
      %3662 = vrot.lane.b32.xlu0 %v3022, 120
      %v3663 = vpop.permute.xlu0 %3662
      %3664 = vrot.lane.b32.xlu0 %v3023, 120
      %v3665 = vpop.permute.xlu0 %3664
      %v3666 = vsel %vm1122, %v3663, %v3665
      %v3667 = vsel %vm1122, %v3661, %v3663
      %v3668 = vsel %vm1122, %v3659, %v3661
      %v3669 = vsel %vm1122, %v3665, %v3659
      %v3670 = vld [vmem:[%s1127] ss:$8 sm:$0xf]
      %v3672 = vlaneseq
      %v3673 = vshrl.u32 %v3672, 7
      %v3674 = vsub.s32 0, %v3673
      %v3675 = vrot.slane %v3670, %v3674
      %v3676 = vlaneseq
      %v3677 = vshrl.u32 %v3676, 7
      %v3678 = vsub.s32 1, %v3677
      %v3679 = vrot.slane %v3670, %v3678
      %v3680 = vlaneseq
      %v3681 = vshrl.u32 %v3680, 7
      %v3682 = vsub.s32 2, %v3681
      %v3683 = vrot.slane %v3670, %v3682
      %v3684 = vlaneseq
      %v3685 = vshrl.u32 %v3684, 7
      %v3686 = vsub.s32 3, %v3685
      %v3687 = vrot.slane %v3670, %v3686
      %v3692 = vmul.f32 %v3668, %v3675
      %v3693 = vmul.f32 %v3667, %v3679
      %v3694 = vmul.f32 %v3666, %v3683
      %v3695 = vmul.f32 %v3669, %v3687
      %3696 = vst [vmem:[#allocation2 + $0x200] sm:$0xff] %v3692
      %3697 = vst [vmem:[#allocation2 + $0x208] sm:$0xff] %v3693
      %3698 = vst [vmem:[#allocation2 + $0x210] sm:$0xff] %v3694
      %3699 = vst [vmem:[#allocation2 + $0x218] sm:$0xff] %v3695
      %3700 = vrot.lane.b32.xlu0 %v3020, 119
      %v3701 = vpop.permute.xlu0 %3700
      %3702 = vrot.lane.b32.xlu0 %v3021, 119
      %v3703 = vpop.permute.xlu0 %3702
      %3704 = vrot.lane.b32.xlu0 %v3022, 119
      %v3705 = vpop.permute.xlu0 %3704
      %3706 = vrot.lane.b32.xlu0 %v3023, 119
      %v3707 = vpop.permute.xlu0 %3706
      %v3708 = vsel %vm1166, %v3705, %v3707
      %v3709 = vsel %vm1166, %v3703, %v3705
      %v3710 = vsel %vm1166, %v3701, %v3703
      %v3711 = vsel %vm1166, %v3707, %v3701
      %v3712 = vld [vmem:[%s1171] ss:$8 sm:$0xf]
      %v3714 = vlaneseq
      %v3715 = vshrl.u32 %v3714, 7
      %v3716 = vsub.s32 0, %v3715
      %v3717 = vrot.slane %v3712, %v3716
      %v3718 = vlaneseq
      %v3719 = vshrl.u32 %v3718, 7
      %v3720 = vsub.s32 1, %v3719
      %v3721 = vrot.slane %v3712, %v3720
      %v3722 = vlaneseq
      %v3723 = vshrl.u32 %v3722, 7
      %v3724 = vsub.s32 2, %v3723
      %v3725 = vrot.slane %v3712, %v3724
      %v3726 = vlaneseq
      %v3727 = vshrl.u32 %v3726, 7
      %v3728 = vsub.s32 3, %v3727
      %v3729 = vrot.slane %v3712, %v3728
      %v3734 = vmul.f32 %v3710, %v3717
      %v3735 = vmul.f32 %v3709, %v3721
      %v3736 = vmul.f32 %v3708, %v3725
      %v3737 = vmul.f32 %v3711, %v3729
      %3738 = vst [vmem:[#allocation2 + $0x220] sm:$0xff] %v3734
      %3739 = vst [vmem:[#allocation2 + $0x228] sm:$0xff] %v3735
      %3740 = vst [vmem:[#allocation2 + $0x230] sm:$0xff] %v3736
      %3741 = vst [vmem:[#allocation2 + $0x238] sm:$0xff] %v3737
      %v3742 = vld [vmem:[%s1202] ss:$8 sm:$0xf]
      %v3744 = vlaneseq
      %v3745 = vshrl.u32 %v3744, 7
      %v3746 = vsub.s32 0, %v3745
      %v3747 = vrot.slane %v3742, %v3746
      %v3748 = vlaneseq
      %v3749 = vshrl.u32 %v3748, 7
      %v3750 = vsub.s32 1, %v3749
      %v3751 = vrot.slane %v3742, %v3750
      %v3752 = vlaneseq
      %v3753 = vshrl.u32 %v3752, 7
      %v3754 = vsub.s32 2, %v3753
      %v3755 = vrot.slane %v3742, %v3754
      %v3756 = vlaneseq
      %v3757 = vshrl.u32 %v3756, 7
      %v3758 = vsub.s32 3, %v3757
      %v3759 = vrot.slane %v3742, %v3758
      %v3764 = vmul.f32 %v3034, %v3747
      %v3765 = vmul.f32 %v3033, %v3751
      %v3766 = vmul.f32 %v3032, %v3755
      %v3767 = vmul.f32 %v3035, %v3759
      %3768 = vst [vmem:[#allocation2 + $0x240] sm:$0xff] %v3764
      %3769 = vst [vmem:[#allocation2 + $0x248] sm:$0xff] %v3765
      %3770 = vst [vmem:[#allocation2 + $0x250] sm:$0xff] %v3766
      %3771 = vst [vmem:[#allocation2 + $0x258] sm:$0xff] %v3767
      %v3772 = vld [vmem:[%s1233] ss:$8 sm:$0xf]
      %v3774 = vlaneseq
      %v3775 = vshrl.u32 %v3774, 7
      %v3776 = vsub.s32 0, %v3775
      %v3777 = vrot.slane %v3772, %v3776
      %v3778 = vlaneseq
      %v3779 = vshrl.u32 %v3778, 7
      %v3780 = vsub.s32 1, %v3779
      %v3781 = vrot.slane %v3772, %v3780
      %v3782 = vlaneseq
      %v3783 = vshrl.u32 %v3782, 7
      %v3784 = vsub.s32 2, %v3783
      %v3785 = vrot.slane %v3772, %v3784
      %v3786 = vlaneseq
      %v3787 = vshrl.u32 %v3786, 7
      %v3788 = vsub.s32 3, %v3787
      %v3789 = vrot.slane %v3772, %v3788
      %v3794 = vmul.f32 %v3076, %v3777
      %v3795 = vmul.f32 %v3075, %v3781
      %v3796 = vmul.f32 %v3074, %v3785
      %v3797 = vmul.f32 %v3077, %v3789
      %3798 = vst [vmem:[#allocation2 + $0x260] sm:$0xff] %v3794
      %3799 = vst [vmem:[#allocation2 + $0x268] sm:$0xff] %v3795
      %3800 = vst [vmem:[#allocation2 + $0x270] sm:$0xff] %v3796
      %3801 = vst [vmem:[#allocation2 + $0x278] sm:$0xff] %v3797
      %v3802 = vld [vmem:[%s1264] ss:$8 sm:$0xf]
      %v3804 = vlaneseq
      %v3805 = vshrl.u32 %v3804, 7
      %v3806 = vsub.s32 0, %v3805
      %v3807 = vrot.slane %v3802, %v3806
      %v3808 = vlaneseq
      %v3809 = vshrl.u32 %v3808, 7
      %v3810 = vsub.s32 1, %v3809
      %v3811 = vrot.slane %v3802, %v3810
      %v3812 = vlaneseq
      %v3813 = vshrl.u32 %v3812, 7
      %v3814 = vsub.s32 2, %v3813
      %v3815 = vrot.slane %v3802, %v3814
      %v3816 = vlaneseq
      %v3817 = vshrl.u32 %v3816, 7
      %v3818 = vsub.s32 3, %v3817
      %v3819 = vrot.slane %v3802, %v3818
      %v3824 = vmul.f32 %v3118, %v3807
      %v3825 = vmul.f32 %v3117, %v3811
      %v3826 = vmul.f32 %v3116, %v3815
      %v3827 = vmul.f32 %v3119, %v3819
      %3828 = vst [vmem:[#allocation2 + $0x280] sm:$0xff] %v3824
      %3829 = vst [vmem:[#allocation2 + $0x288] sm:$0xff] %v3825
      %3830 = vst [vmem:[#allocation2 + $0x290] sm:$0xff] %v3826
      %3831 = vst [vmem:[#allocation2 + $0x298] sm:$0xff] %v3827
      %v3832 = vld [vmem:[%s1295] ss:$8 sm:$0xf]
      %v3834 = vlaneseq
      %v3835 = vshrl.u32 %v3834, 7
      %v3836 = vsub.s32 0, %v3835
      %v3837 = vrot.slane %v3832, %v3836
      %v3838 = vlaneseq
      %v3839 = vshrl.u32 %v3838, 7
      %v3840 = vsub.s32 1, %v3839
      %v3841 = vrot.slane %v3832, %v3840
      %v3842 = vlaneseq
      %v3843 = vshrl.u32 %v3842, 7
      %v3844 = vsub.s32 2, %v3843
      %v3845 = vrot.slane %v3832, %v3844
      %v3846 = vlaneseq
      %v3847 = vshrl.u32 %v3846, 7
      %v3848 = vsub.s32 3, %v3847
      %v3849 = vrot.slane %v3832, %v3848
      %v3854 = vmul.f32 %v3160, %v3837
      %v3855 = vmul.f32 %v3159, %v3841
      %v3856 = vmul.f32 %v3158, %v3845
      %v3857 = vmul.f32 %v3161, %v3849
      %3858 = vst [vmem:[#allocation2 + $0x2a0] sm:$0xff] %v3854
      %3859 = vst [vmem:[#allocation2 + $0x2a8] sm:$0xff] %v3855
      %3860 = vst [vmem:[#allocation2 + $0x2b0] sm:$0xff] %v3856
      %3861 = vst [vmem:[#allocation2 + $0x2b8] sm:$0xff] %v3857
      %v3862 = vld [vmem:[%s1326] ss:$8 sm:$0xf]
      %v3864 = vlaneseq
      %v3865 = vshrl.u32 %v3864, 7
      %v3866 = vsub.s32 0, %v3865
      %v3867 = vrot.slane %v3862, %v3866
      %v3868 = vlaneseq
      %v3869 = vshrl.u32 %v3868, 7
      %v3870 = vsub.s32 1, %v3869
      %v3871 = vrot.slane %v3862, %v3870
      %v3872 = vlaneseq
      %v3873 = vshrl.u32 %v3872, 7
      %v3874 = vsub.s32 2, %v3873
      %v3875 = vrot.slane %v3862, %v3874
      %v3876 = vlaneseq
      %v3877 = vshrl.u32 %v3876, 7
      %v3878 = vsub.s32 3, %v3877
      %v3879 = vrot.slane %v3862, %v3878
      %v3884 = vmul.f32 %v3202, %v3867
      %v3885 = vmul.f32 %v3201, %v3871
      %v3886 = vmul.f32 %v3200, %v3875
      %v3887 = vmul.f32 %v3203, %v3879
      %3888 = vst [vmem:[#allocation2 + $0x2c0] sm:$0xff] %v3884
      %3889 = vst [vmem:[#allocation2 + $0x2c8] sm:$0xff] %v3885
      %3890 = vst [vmem:[#allocation2 + $0x2d0] sm:$0xff] %v3886
      %3891 = vst [vmem:[#allocation2 + $0x2d8] sm:$0xff] %v3887
      %v3892 = vld [vmem:[%s1357] ss:$8 sm:$0xf]
      %v3894 = vlaneseq
      %v3895 = vshrl.u32 %v3894, 7
      %v3896 = vsub.s32 0, %v3895
      %v3897 = vrot.slane %v3892, %v3896
      %v3898 = vlaneseq
      %v3899 = vshrl.u32 %v3898, 7
      %v3900 = vsub.s32 1, %v3899
      %v3901 = vrot.slane %v3892, %v3900
      %v3902 = vlaneseq
      %v3903 = vshrl.u32 %v3902, 7
      %v3904 = vsub.s32 2, %v3903
      %v3905 = vrot.slane %v3892, %v3904
      %v3906 = vlaneseq
      %v3907 = vshrl.u32 %v3906, 7
      %v3908 = vsub.s32 3, %v3907
      %v3909 = vrot.slane %v3892, %v3908
      %v3914 = vmul.f32 %v3244, %v3897
      %v3915 = vmul.f32 %v3243, %v3901
      %v3916 = vmul.f32 %v3242, %v3905
      %v3917 = vmul.f32 %v3245, %v3909
      %3918 = vst [vmem:[#allocation2 + $0x2e0] sm:$0xff] %v3914
      %3919 = vst [vmem:[#allocation2 + $0x2e8] sm:$0xff] %v3915
      %3920 = vst [vmem:[#allocation2 + $0x2f0] sm:$0xff] %v3916
      %3921 = vst [vmem:[#allocation2 + $0x2f8] sm:$0xff] %v3917
      %v3922 = vld [vmem:[%s1388] ss:$8 sm:$0xf]
      %v3924 = vlaneseq
      %v3925 = vshrl.u32 %v3924, 7
      %v3926 = vsub.s32 0, %v3925
      %v3927 = vrot.slane %v3922, %v3926
      %v3928 = vlaneseq
      %v3929 = vshrl.u32 %v3928, 7
      %v3930 = vsub.s32 1, %v3929
      %v3931 = vrot.slane %v3922, %v3930
      %v3932 = vlaneseq
      %v3933 = vshrl.u32 %v3932, 7
      %v3934 = vsub.s32 2, %v3933
      %v3935 = vrot.slane %v3922, %v3934
      %v3936 = vlaneseq
      %v3937 = vshrl.u32 %v3936, 7
      %v3938 = vsub.s32 3, %v3937
      %v3939 = vrot.slane %v3922, %v3938
      %v3944 = vmul.f32 %v3286, %v3927
      %v3945 = vmul.f32 %v3285, %v3931
      %v3946 = vmul.f32 %v3284, %v3935
      %v3947 = vmul.f32 %v3287, %v3939
      %3948 = vst [vmem:[#allocation2 + $0x300] sm:$0xff] %v3944
      %3949 = vst [vmem:[#allocation2 + $0x308] sm:$0xff] %v3945
      %3950 = vst [vmem:[#allocation2 + $0x310] sm:$0xff] %v3946
      %3951 = vst [vmem:[#allocation2 + $0x318] sm:$0xff] %v3947
      %v3952 = vld [vmem:[%s1419] ss:$8 sm:$0xf]
      %v3954 = vlaneseq
      %v3955 = vshrl.u32 %v3954, 7
      %v3956 = vsub.s32 0, %v3955
      %v3957 = vrot.slane %v3952, %v3956
      %v3958 = vlaneseq
      %v3959 = vshrl.u32 %v3958, 7
      %v3960 = vsub.s32 1, %v3959
      %v3961 = vrot.slane %v3952, %v3960
      %v3962 = vlaneseq
      %v3963 = vshrl.u32 %v3962, 7
      %v3964 = vsub.s32 2, %v3963
      %v3965 = vrot.slane %v3952, %v3964
      %v3966 = vlaneseq
      %v3967 = vshrl.u32 %v3966, 7
      %v3968 = vsub.s32 3, %v3967
      %v3969 = vrot.slane %v3952, %v3968
      %v3974 = vmul.f32 %v3328, %v3957
      %v3975 = vmul.f32 %v3327, %v3961
      %v3976 = vmul.f32 %v3326, %v3965
      %v3977 = vmul.f32 %v3329, %v3969
      %3978 = vst [vmem:[#allocation2 + $0x320] sm:$0xff] %v3974
      %3979 = vst [vmem:[#allocation2 + $0x328] sm:$0xff] %v3975
      %3980 = vst [vmem:[#allocation2 + $0x330] sm:$0xff] %v3976
      %3981 = vst [vmem:[#allocation2 + $0x338] sm:$0xff] %v3977
      %v3982 = vld [vmem:[%s1450] ss:$8 sm:$0xf]
      %v3984 = vlaneseq
      %v3985 = vshrl.u32 %v3984, 7
      %v3986 = vsub.s32 0, %v3985
      %v3987 = vrot.slane %v3982, %v3986
      %v3988 = vlaneseq
      %v3989 = vshrl.u32 %v3988, 7
      %v3990 = vsub.s32 1, %v3989
      %v3991 = vrot.slane %v3982, %v3990
      %v3992 = vlaneseq
      %v3993 = vshrl.u32 %v3992, 7
      %v3994 = vsub.s32 2, %v3993
      %v3995 = vrot.slane %v3982, %v3994
      %v3996 = vlaneseq
      %v3997 = vshrl.u32 %v3996, 7
      %v3998 = vsub.s32 3, %v3997
      %v3999 = vrot.slane %v3982, %v3998
      %v4004 = vmul.f32 %v3370, %v3987
      %v4005 = vmul.f32 %v3369, %v3991
      %v4006 = vmul.f32 %v3368, %v3995
      %v4007 = vmul.f32 %v3371, %v3999
      %4008 = vst [vmem:[#allocation2 + $0x340] sm:$0xff] %v4004
      %4009 = vst [vmem:[#allocation2 + $0x348] sm:$0xff] %v4005
      %4010 = vst [vmem:[#allocation2 + $0x350] sm:$0xff] %v4006
      %4011 = vst [vmem:[#allocation2 + $0x358] sm:$0xff] %v4007
      %v4012 = vld [vmem:[%s4] sm:$0xff]
      %v4013 = vld [vmem:[%s4 + $0x8] sm:$0xff]
      %v4014 = vld [vmem:[#allocation2] sm:$0xff]
      %v4015 = vld [vmem:[#allocation2 + $0x8] sm:$0xff]
      %v4016 = vld [vmem:[#allocation2 + $0x10] sm:$0xff]
      %v4017 = vld [vmem:[#allocation2 + $0x18] sm:$0xff]
      %v4018 = vld [vmem:[#allocation2 + $0x20] sm:$0xff]
      %v4019 = vld [vmem:[#allocation2 + $0x28] sm:$0xff]
      %v4020 = vld [vmem:[#allocation2 + $0x30] sm:$0xff]
      %v4021 = vld [vmem:[#allocation2 + $0x38] sm:$0xff]
      %v4022 = vld [vmem:[#allocation2 + $0x40] sm:$0xff]
      %v4023 = vld [vmem:[#allocation2 + $0x48] sm:$0xff]
      %v4024 = vld [vmem:[#allocation2 + $0x50] sm:$0xff]
      %v4025 = vld [vmem:[#allocation2 + $0x58] sm:$0xff]
      %v4026 = vld [vmem:[#allocation2 + $0x60] sm:$0xff]
      %v4027 = vld [vmem:[#allocation2 + $0x68] sm:$0xff]
      %v4028 = vld [vmem:[#allocation2 + $0x70] sm:$0xff]
      %v4029 = vld [vmem:[#allocation2 + $0x78] sm:$0xff]
      %v4030 = vld [vmem:[#allocation2 + $0x80] sm:$0xff]
      %v4031 = vld [vmem:[#allocation2 + $0x88] sm:$0xff]
      %v4032 = vld [vmem:[#allocation2 + $0x90] sm:$0xff]
      %v4033 = vld [vmem:[#allocation2 + $0x98] sm:$0xff]
      %v4034 = vld [vmem:[#allocation2 + $0xa0] sm:$0xff]
      %v4035 = vld [vmem:[#allocation2 + $0xa8] sm:$0xff]
      %v4036 = vld [vmem:[#allocation2 + $0xb0] sm:$0xff]
      %v4037 = vld [vmem:[#allocation2 + $0xb8] sm:$0xff]
      %v4038 = vld [vmem:[#allocation2 + $0xc0] sm:$0xff]
      %v4039 = vld [vmem:[#allocation2 + $0xc8] sm:$0xff]
      %v4040 = vld [vmem:[#allocation2 + $0xd0] sm:$0xff]
      %v4041 = vld [vmem:[#allocation2 + $0xd8] sm:$0xff]
      %v4042 = vld [vmem:[#allocation2 + $0xe0] sm:$0xff]
      %v4043 = vld [vmem:[#allocation2 + $0xe8] sm:$0xff]
      %v4044 = vld [vmem:[#allocation2 + $0xf0] sm:$0xff]
      %v4045 = vld [vmem:[#allocation2 + $0xf8] sm:$0xff]
      %v4046 = vld [vmem:[#allocation2 + $0x100] sm:$0xff]
      %v4047 = vld [vmem:[#allocation2 + $0x108] sm:$0xff]
      %v4048 = vld [vmem:[#allocation2 + $0x110] sm:$0xff]
      %v4049 = vld [vmem:[#allocation2 + $0x118] sm:$0xff]
      %v4050 = vld [vmem:[#allocation2 + $0x120] sm:$0xff]
      %v4051 = vld [vmem:[#allocation2 + $0x128] sm:$0xff]
      %v4052 = vld [vmem:[#allocation2 + $0x130] sm:$0xff]
      %v4053 = vld [vmem:[#allocation2 + $0x138] sm:$0xff]
      %v4054 = vld [vmem:[#allocation2 + $0x140] sm:$0xff]
      %v4055 = vld [vmem:[#allocation2 + $0x148] sm:$0xff]
      %v4056 = vld [vmem:[#allocation2 + $0x150] sm:$0xff]
      %v4057 = vld [vmem:[#allocation2 + $0x158] sm:$0xff]
      %v4058 = vld [vmem:[#allocation2 + $0x160] sm:$0xff]
      %v4059 = vld [vmem:[#allocation2 + $0x168] sm:$0xff]
      %v4060 = vld [vmem:[#allocation2 + $0x170] sm:$0xff]
      %v4061 = vld [vmem:[#allocation2 + $0x178] sm:$0xff]
      %v4062 = vld [vmem:[#allocation2 + $0x180] sm:$0xff]
      %v4063 = vld [vmem:[#allocation2 + $0x188] sm:$0xff]
      %v4064 = vld [vmem:[#allocation2 + $0x190] sm:$0xff]
      %v4065 = vld [vmem:[#allocation2 + $0x198] sm:$0xff]
      %v4066 = vld [vmem:[#allocation2 + $0x1a0] sm:$0xff]
      %v4067 = vld [vmem:[#allocation2 + $0x1a8] sm:$0xff]
      %v4068 = vld [vmem:[#allocation2 + $0x1b0] sm:$0xff]
      %v4069 = vld [vmem:[#allocation2 + $0x1b8] sm:$0xff]
      %v4070 = vld [vmem:[#allocation2 + $0x1c0] sm:$0xff]
      %v4071 = vld [vmem:[#allocation2 + $0x1c8] sm:$0xff]
      %v4072 = vld [vmem:[#allocation2 + $0x1d0] sm:$0xff]
      %v4073 = vld [vmem:[#allocation2 + $0x1d8] sm:$0xff]
      %v4074 = vld [vmem:[#allocation2 + $0x1e0] sm:$0xff]
      %v4075 = vld [vmem:[#allocation2 + $0x1e8] sm:$0xff]
      %v4076 = vld [vmem:[#allocation2 + $0x1f0] sm:$0xff]
      %v4077 = vld [vmem:[#allocation2 + $0x1f8] sm:$0xff]
      %v4078 = vld [vmem:[#allocation2 + $0x200] sm:$0xff]
      %v4079 = vld [vmem:[#allocation2 + $0x208] sm:$0xff]
      %v4080 = vld [vmem:[#allocation2 + $0x210] sm:$0xff]
      %v4081 = vld [vmem:[#allocation2 + $0x218] sm:$0xff]
      %v4082 = vld [vmem:[#allocation2 + $0x220] sm:$0xff]
      %v4083 = vld [vmem:[#allocation2 + $0x228] sm:$0xff]
      %v4084 = vld [vmem:[#allocation2 + $0x230] sm:$0xff]
      %v4085 = vld [vmem:[#allocation2 + $0x238] sm:$0xff]
      %v4086 = vld [vmem:[#allocation2 + $0x240] sm:$0xff]
      %v4087 = vld [vmem:[#allocation2 + $0x248] sm:$0xff]
      %v4088 = vld [vmem:[#allocation2 + $0x250] sm:$0xff]
      %v4089 = vld [vmem:[#allocation2 + $0x258] sm:$0xff]
      %v4090 = vld [vmem:[#allocation2 + $0x260] sm:$0xff]
      %v4091 = vld [vmem:[#allocation2 + $0x268] sm:$0xff]
      %v4092 = vld [vmem:[#allocation2 + $0x270] sm:$0xff]
      %v4093 = vld [vmem:[#allocation2 + $0x278] sm:$0xff]
      %v4094 = vld [vmem:[#allocation2 + $0x280] sm:$0xff]
      %v4095 = vld [vmem:[#allocation2 + $0x288] sm:$0xff]
      %v4096 = vld [vmem:[#allocation2 + $0x290] sm:$0xff]
      %v4097 = vld [vmem:[#allocation2 + $0x298] sm:$0xff]
      %v4098 = vld [vmem:[#allocation2 + $0x2a0] sm:$0xff]
      %v4099 = vld [vmem:[#allocation2 + $0x2a8] sm:$0xff]
      %v4100 = vld [vmem:[#allocation2 + $0x2b0] sm:$0xff]
      %v4101 = vld [vmem:[#allocation2 + $0x2b8] sm:$0xff]
      %v4102 = vld [vmem:[#allocation2 + $0x2c0] sm:$0xff]
      %v4103 = vld [vmem:[#allocation2 + $0x2c8] sm:$0xff]
      %v4104 = vld [vmem:[#allocation2 + $0x2d0] sm:$0xff]
      %v4105 = vld [vmem:[#allocation2 + $0x2d8] sm:$0xff]
      %v4106 = vld [vmem:[#allocation2 + $0x2e0] sm:$0xff]
      %v4107 = vld [vmem:[#allocation2 + $0x2e8] sm:$0xff]
      %v4108 = vld [vmem:[#allocation2 + $0x2f0] sm:$0xff]
      %v4109 = vld [vmem:[#allocation2 + $0x2f8] sm:$0xff]
      %v4110 = vld [vmem:[#allocation2 + $0x300] sm:$0xff]
      %v4111 = vld [vmem:[#allocation2 + $0x308] sm:$0xff]
      %v4112 = vld [vmem:[#allocation2 + $0x310] sm:$0xff]
      %v4113 = vld [vmem:[#allocation2 + $0x318] sm:$0xff]
      %v4114 = vld [vmem:[#allocation2 + $0x320] sm:$0xff]
      %v4115 = vld [vmem:[#allocation2 + $0x328] sm:$0xff]
      %v4116 = vld [vmem:[#allocation2 + $0x330] sm:$0xff]
      %v4117 = vld [vmem:[#allocation2 + $0x338] sm:$0xff]
      %v4118 = vld [vmem:[#allocation2 + $0x340] sm:$0xff]
      %v4119 = vld [vmem:[#allocation2 + $0x348] sm:$0xff]
      %v4120 = vld [vmem:[#allocation2 + $0x350] sm:$0xff]
      %v4121 = vld [vmem:[#allocation2 + $0x358] sm:$0xff]
      %v4123 = vsel %vm1591, %v4013, 0
      %4125 = vmatprep.subr.mxu0 %v4075
      %4126 = vmatpush1.msra.mxu0 %v4074
      %4127 = vmatprep.subr.mxu0 %v4071
      %4128 = vmatpush1.msra.mxu0 %v4070
      %4129 = vmatprep.subr.mxu0 %v4067
      %4130 = vmatpush1.msra.mxu0 %v4066
      %4131 = vmatprep.subr.mxu0 %v4063
      %4132 = vmatpush1.msra.mxu0 %v4062
      %4133 = vmatprep.subr.mxu0 %v4059
      %4134 = vmatpush1.msra.mxu0 %v4058
      %4135 = vmatprep.subr.mxu0 %v4055
      %4136 = vmatpush1.msra.mxu0 %v4054
      %4137 = vmatprep.subr.mxu0 %v4051
      %4138 = vmatpush1.msra.mxu0 %v4050
      %4139 = vmatprep.subr.mxu0 %v4047
      %4140 = vmatpush1.msra.mxu0 %v4046
      %4141 = vmatprep.subr.mxu0 %v4043
      %4142 = vmatpush1.msra.mxu0 %v4042
      %4143 = vmatprep.subr.mxu0 %v4039
      %4144 = vmatpush1.msra.mxu0 %v4038
      %4145 = vmatprep.subr.mxu0 %v4035
      %4146 = vmatpush1.msra.mxu0 %v4034
      %4147 = vmatprep.subr.mxu0 %v4031
      %4148 = vmatpush1.msra.mxu0 %v4030
      %4149 = vmatprep.subr.mxu0 %v4027
      %4150 = vmatpush1.msra.mxu0 %v4026
      %4151 = vmatprep.subr.mxu0 %v4023
      %4152 = vmatpush1.msra.mxu0 %v4022
      %4153 = vmatprep.subr.mxu0 %v4019
      %4154 = vmatpush1.msra.mxu0 %v4018
      %4155 = vmatprep.subr.mxu0 %v4015
      %4156 = vmatpush1.msra.mxu0 %v4014
      %4157 = vmatprep.subr.mxu0 0.0
      %4158 = vmatpush2.msra.mxu0 0.0
      %4159 = vmatprep.subr.mxu0 0.0
      %4160 = vmatpush2.msra.mxu0 0.0
      %4161 = vmatprep.subr.mxu0 0.0
      %4162 = vmatpush2.msra.mxu0 0.0
      %4163 = vmatprep.subr.mxu0 0.0
      %4164 = vmatpush2.msra.mxu0 0.0
      %4165 = vmatprep.subr.mxu0 0.0
      %4166 = vmatpush2.msra.mxu0 0.0
      %4167 = vmatprep.subr.mxu0 %v4119
      %4168 = vmatpush2.msra.mxu0 %v4118
      %4169 = vmatprep.subr.mxu0 %v4115
      %4170 = vmatpush2.msra.mxu0 %v4114
      %4171 = vmatprep.subr.mxu0 %v4111
      %4172 = vmatpush2.msra.mxu0 %v4110
      %4173 = vmatprep.subr.mxu0 %v4107
      %4174 = vmatpush2.msra.mxu0 %v4106
      %4175 = vmatprep.subr.mxu0 %v4103
      %4176 = vmatpush2.msra.mxu0 %v4102
      %4177 = vmatprep.subr.mxu0 %v4099
      %4178 = vmatpush2.msra.mxu0 %v4098
      %4179 = vmatprep.subr.mxu0 %v4095
      %4180 = vmatpush2.msra.mxu0 %v4094
      %4181 = vmatprep.subr.mxu0 %v4091
      %4182 = vmatpush2.msra.mxu0 %v4090
      %4183 = vmatprep.subr.mxu0 %v4087
      %4184 = vmatpush2.msra.mxu0 %v4086
      %4185 = vmatprep.subr.mxu0 %v4083
      %4186 = vmatpush2.msra.mxu0 %v4082
      %4187 = vmatprep.subr.mxu0 %v4079
      %4188 = vmatpush2.msra.mxu0 %v4078
      %4189 = vmatprep.mubr.f32.mxu0 %v4123
      %4190 = vmatmul.mubr.f32.gmra.mxu0 %v4012
      %v4191 = vpop.f32.mrf.mxu0
      %v4192 = vadd.f32 0.0, %v4191
      %v4193 = vpop.f32.mrf.mxu0
      %v4194 = vadd.f32 0.0, %v4193
      %4195 = vdwg.mxu0
      %4196 = vmatprep.subr.mxu0 %v4077
      %4197 = vmatpush1.msra.mxu0 %v4076
      %4198 = vmatprep.subr.mxu0 %v4073
      %4199 = vmatpush1.msra.mxu0 %v4072
      %4200 = vmatprep.subr.mxu0 %v4069
      %4201 = vmatpush1.msra.mxu0 %v4068
      %4202 = vmatprep.subr.mxu0 %v4065
      %4203 = vmatpush1.msra.mxu0 %v4064
      %4204 = vmatprep.subr.mxu0 %v4061
      %4205 = vmatpush1.msra.mxu0 %v4060
      %4206 = vmatprep.subr.mxu0 %v4057
      %4207 = vmatpush1.msra.mxu0 %v4056
      %4208 = vmatprep.subr.mxu0 %v4053
      %4209 = vmatpush1.msra.mxu0 %v4052
      %4210 = vmatprep.subr.mxu0 %v4049
      %4211 = vmatpush1.msra.mxu0 %v4048
      %4212 = vmatprep.subr.mxu0 %v4045
      %4213 = vmatpush1.msra.mxu0 %v4044
      %4214 = vmatprep.subr.mxu0 %v4041
      %4215 = vmatpush1.msra.mxu0 %v4040
      %4216 = vmatprep.subr.mxu0 %v4037
      %4217 = vmatpush1.msra.mxu0 %v4036
      %4218 = vmatprep.subr.mxu0 %v4033
      %4219 = vmatpush1.msra.mxu0 %v4032
      %4220 = vmatprep.subr.mxu0 %v4029
      %4221 = vmatpush1.msra.mxu0 %v4028
      %4222 = vmatprep.subr.mxu0 %v4025
      %4223 = vmatpush1.msra.mxu0 %v4024
      %4224 = vmatprep.subr.mxu0 %v4021
      %4225 = vmatpush1.msra.mxu0 %v4020
      %4226 = vmatprep.subr.mxu0 %v4017
      %4227 = vmatpush1.msra.mxu0 %v4016
      %4228 = vmatprep.subr.mxu0 0.0
      %4229 = vmatpush2.msra.mxu0 0.0
      %4230 = vmatprep.subr.mxu0 0.0
      %4231 = vmatpush2.msra.mxu0 0.0
      %4232 = vmatprep.subr.mxu0 0.0
      %4233 = vmatpush2.msra.mxu0 0.0
      %4234 = vmatprep.subr.mxu0 0.0
      %4235 = vmatpush2.msra.mxu0 0.0
      %4236 = vmatprep.subr.mxu0 0.0
      %4237 = vmatpush2.msra.mxu0 0.0
      %4238 = vmatprep.subr.mxu0 %v4121
      %4239 = vmatpush2.msra.mxu0 %v4120
      %4240 = vmatprep.subr.mxu0 %v4117
      %4241 = vmatpush2.msra.mxu0 %v4116
      %4242 = vmatprep.subr.mxu0 %v4113
      %4243 = vmatpush2.msra.mxu0 %v4112
      %4244 = vmatprep.subr.mxu0 %v4109
      %4245 = vmatpush2.msra.mxu0 %v4108
      %4246 = vmatprep.subr.mxu0 %v4105
      %4247 = vmatpush2.msra.mxu0 %v4104
      %4248 = vmatprep.subr.mxu0 %v4101
      %4249 = vmatpush2.msra.mxu0 %v4100
      %4250 = vmatprep.subr.mxu0 %v4097
      %4251 = vmatpush2.msra.mxu0 %v4096
      %4252 = vmatprep.subr.mxu0 %v4093
      %4253 = vmatpush2.msra.mxu0 %v4092
      %4254 = vmatprep.subr.mxu0 %v4089
      %4255 = vmatpush2.msra.mxu0 %v4088
      %4256 = vmatprep.subr.mxu0 %v4085
      %4257 = vmatpush2.msra.mxu0 %v4084
      %4258 = vmatprep.subr.mxu0 %v4081
      %4259 = vmatpush2.msra.mxu0 %v4080
      %4260 = vmatprep.mubr.f32.mxu0 %v4123
      %4261 = vmatmul.mubr.f32.gmra.mxu0 %v4012
      %v4262 = vpop.f32.mrf.mxu0
      %v4263 = vadd.f32 0.0, %v4262
      %v4264 = vpop.f32.mrf.mxu0
      %v4265 = vadd.f32 0.0, %v4264
      %4266 = vdwg.mxu0
      %v4267 = vld [vmem:[%s5] sm:$0xff]
      %4269 = vset.pattern.permute.xlu0 4
      %4270 = vperm.xlu0 %4269, %v4267
      %v4271 = vpop.permute.xlu0 %4270
      %v4273 = vmul.f32 %v4192, %v4271
      %v4274 = vmul.f32 %v4194, %v4271
      %v4275 = vmul.f32 %v4263, %v4271
      %v4276 = vmul.f32 %v4265, %v4271
      %4277 = vset.pattern.permute.xlu0 5
      %4278 = vperm.xlu0 %4277, %v4267
      %v4279 = vpop.permute.xlu0 %4278
      %v4281 = vadd.f32 %v4273, %v4279
      %v4282 = vadd.f32 %v4274, %v4279
      %v4283 = vadd.f32 %v4275, %v4279
      %v4284 = vadd.f32 %v4276, %v4279
      %v4285 = vmax.f32 %v4281, 0.0
      %v4286 = vmax.f32 %v4282, 0.0
      %v4287 = vmax.f32 %v4283, 0.0
      %v4288 = vmax.f32 %v4284, 0.0
      %4289 = vrot.lane.b32.xlu0 %v4285, 73
      %v4290 = vpop.permute.xlu0 %4289
      %4291 = vrot.lane.b32.xlu0 %v4286, 73
      %v4292 = vpop.permute.xlu0 %4291
      %4293 = vrot.lane.b32.xlu0 %v4287, 73
      %v4294 = vpop.permute.xlu0 %4293
      %4295 = vrot.lane.b32.xlu0 %v4288, 73
      %v4296 = vpop.permute.xlu0 %4295
      %v4297 = vsel %vm459, %v4294, %v4296
      %v4298 = vsel %vm459, %v4292, %v4294
      %v4299 = vsel %vm459, %v4290, %v4292
      %v4300 = vsel %vm459, %v4296, %v4290
      %v4301 = vld [vmem:[%s6] ss:$8 sm:$0xf]
      %v4303 = vlaneseq
      %v4304 = vshrl.u32 %v4303, 7
      %v4305 = vsub.s32 0, %v4304
      %v4306 = vrot.slane %v4301, %v4305
      %v4307 = vlaneseq
      %v4308 = vshrl.u32 %v4307, 7
      %v4309 = vsub.s32 1, %v4308
      %v4310 = vrot.slane %v4301, %v4309
      %v4311 = vlaneseq
      %v4312 = vshrl.u32 %v4311, 7
      %v4313 = vsub.s32 2, %v4312
      %v4314 = vrot.slane %v4301, %v4313
      %v4315 = vlaneseq
      %v4316 = vshrl.u32 %v4315, 7
      %v4317 = vsub.s32 3, %v4316
      %v4318 = vrot.slane %v4301, %v4317
      %v4323 = vmul.f32 %v4300, %v4306
      %v4324 = vmul.f32 %v4299, %v4310
      %v4325 = vmul.f32 %v4298, %v4314
      %v4326 = vmul.f32 %v4297, %v4318
      %4327 = vst [vmem:[#allocation2] sm:$0xff] %v4323
      %4328 = vst [vmem:[#allocation2 + $0x8] sm:$0xff] %v4324
      %4329 = vst [vmem:[#allocation2 + $0x10] sm:$0xff] %v4325
      %4330 = vst [vmem:[#allocation2 + $0x18] sm:$0xff] %v4326
      %4331 = vrot.lane.b32.xlu0 %v4285, 72
      %v4332 = vpop.permute.xlu0 %4331
      %4333 = vrot.lane.b32.xlu0 %v4286, 72
      %v4334 = vpop.permute.xlu0 %4333
      %4335 = vrot.lane.b32.xlu0 %v4287, 72
      %v4336 = vpop.permute.xlu0 %4335
      %4337 = vrot.lane.b32.xlu0 %v4288, 72
      %v4338 = vpop.permute.xlu0 %4337
      %v4339 = vsel %vm502, %v4336, %v4338
      %v4340 = vsel %vm502, %v4334, %v4336
      %v4341 = vsel %vm502, %v4332, %v4334
      %v4342 = vsel %vm502, %v4338, %v4332
      %v4343 = vld [vmem:[%s507] ss:$8 sm:$0xf]
      %v4345 = vlaneseq
      %v4346 = vshrl.u32 %v4345, 7
      %v4347 = vsub.s32 0, %v4346
      %v4348 = vrot.slane %v4343, %v4347
      %v4349 = vlaneseq
      %v4350 = vshrl.u32 %v4349, 7
      %v4351 = vsub.s32 1, %v4350
      %v4352 = vrot.slane %v4343, %v4351
      %v4353 = vlaneseq
      %v4354 = vshrl.u32 %v4353, 7
      %v4355 = vsub.s32 2, %v4354
      %v4356 = vrot.slane %v4343, %v4355
      %v4357 = vlaneseq
      %v4358 = vshrl.u32 %v4357, 7
      %v4359 = vsub.s32 3, %v4358
      %v4360 = vrot.slane %v4343, %v4359
      %v4365 = vmul.f32 %v4342, %v4348
      %v4366 = vmul.f32 %v4341, %v4352
      %v4367 = vmul.f32 %v4340, %v4356
      %v4368 = vmul.f32 %v4339, %v4360
      %4369 = vst [vmem:[#allocation2 + $0x20] sm:$0xff] %v4365
      %4370 = vst [vmem:[#allocation2 + $0x28] sm:$0xff] %v4366
      %4371 = vst [vmem:[#allocation2 + $0x30] sm:$0xff] %v4367
      %4372 = vst [vmem:[#allocation2 + $0x38] sm:$0xff] %v4368
      %4373 = vrot.lane.b32.xlu0 %v4285, 71
      %v4374 = vpop.permute.xlu0 %4373
      %4375 = vrot.lane.b32.xlu0 %v4286, 71
      %v4376 = vpop.permute.xlu0 %4375
      %4377 = vrot.lane.b32.xlu0 %v4287, 71
      %v4378 = vpop.permute.xlu0 %4377
      %4379 = vrot.lane.b32.xlu0 %v4288, 71
      %v4380 = vpop.permute.xlu0 %4379
      %v4381 = vsel %vm546, %v4378, %v4380
      %v4382 = vsel %vm546, %v4376, %v4378
      %v4383 = vsel %vm546, %v4374, %v4376
      %v4384 = vsel %vm546, %v4380, %v4374
      %v4385 = vld [vmem:[%s551] ss:$8 sm:$0xf]
      %v4387 = vlaneseq
      %v4388 = vshrl.u32 %v4387, 7
      %v4389 = vsub.s32 0, %v4388
      %v4390 = vrot.slane %v4385, %v4389
      %v4391 = vlaneseq
      %v4392 = vshrl.u32 %v4391, 7
      %v4393 = vsub.s32 1, %v4392
      %v4394 = vrot.slane %v4385, %v4393
      %v4395 = vlaneseq
      %v4396 = vshrl.u32 %v4395, 7
      %v4397 = vsub.s32 2, %v4396
      %v4398 = vrot.slane %v4385, %v4397
      %v4399 = vlaneseq
      %v4400 = vshrl.u32 %v4399, 7
      %v4401 = vsub.s32 3, %v4400
      %v4402 = vrot.slane %v4385, %v4401
      %v4407 = vmul.f32 %v4384, %v4390
      %v4408 = vmul.f32 %v4383, %v4394
      %v4409 = vmul.f32 %v4382, %v4398
      %v4410 = vmul.f32 %v4381, %v4402
      %4411 = vst [vmem:[#allocation2 + $0x40] sm:$0xff] %v4407
      %4412 = vst [vmem:[#allocation2 + $0x48] sm:$0xff] %v4408
      %4413 = vst [vmem:[#allocation2 + $0x50] sm:$0xff] %v4409
      %4414 = vst [vmem:[#allocation2 + $0x58] sm:$0xff] %v4410
      %4415 = vrot.lane.b32.xlu0 %v4285, 65
      %v4416 = vpop.permute.xlu0 %4415
      %4417 = vrot.lane.b32.xlu0 %v4286, 65
      %v4418 = vpop.permute.xlu0 %4417
      %4419 = vrot.lane.b32.xlu0 %v4287, 65
      %v4420 = vpop.permute.xlu0 %4419
      %4421 = vrot.lane.b32.xlu0 %v4288, 65
      %v4422 = vpop.permute.xlu0 %4421
      %v4423 = vsel %vm590, %v4420, %v4422
      %v4424 = vsel %vm590, %v4418, %v4420
      %v4425 = vsel %vm590, %v4416, %v4418
      %v4426 = vsel %vm590, %v4422, %v4416
      %v4427 = vld [vmem:[%s595] ss:$8 sm:$0xf]
      %v4429 = vlaneseq
      %v4430 = vshrl.u32 %v4429, 7
      %v4431 = vsub.s32 0, %v4430
      %v4432 = vrot.slane %v4427, %v4431
      %v4433 = vlaneseq
      %v4434 = vshrl.u32 %v4433, 7
      %v4435 = vsub.s32 1, %v4434
      %v4436 = vrot.slane %v4427, %v4435
      %v4437 = vlaneseq
      %v4438 = vshrl.u32 %v4437, 7
      %v4439 = vsub.s32 2, %v4438
      %v4440 = vrot.slane %v4427, %v4439
      %v4441 = vlaneseq
      %v4442 = vshrl.u32 %v4441, 7
      %v4443 = vsub.s32 3, %v4442
      %v4444 = vrot.slane %v4427, %v4443
      %v4449 = vmul.f32 %v4426, %v4432
      %v4450 = vmul.f32 %v4425, %v4436
      %v4451 = vmul.f32 %v4424, %v4440
      %v4452 = vmul.f32 %v4423, %v4444
      %4453 = vst [vmem:[#allocation2 + $0x60] sm:$0xff] %v4449
      %4454 = vst [vmem:[#allocation2 + $0x68] sm:$0xff] %v4450
      %4455 = vst [vmem:[#allocation2 + $0x70] sm:$0xff] %v4451
      %4456 = vst [vmem:[#allocation2 + $0x78] sm:$0xff] %v4452
      %4457 = vrot.lane.b32.xlu0 %v4285, 64
      %v4458 = vpop.permute.xlu0 %4457
      %4459 = vrot.lane.b32.xlu0 %v4286, 64
      %v4460 = vpop.permute.xlu0 %4459
      %4461 = vrot.lane.b32.xlu0 %v4287, 64
      %v4462 = vpop.permute.xlu0 %4461
      %4463 = vrot.lane.b32.xlu0 %v4288, 64
      %v4464 = vpop.permute.xlu0 %4463
      %v4465 = vsel %vm634, %v4462, %v4464
      %v4466 = vsel %vm634, %v4460, %v4462
      %v4467 = vsel %vm634, %v4458, %v4460
      %v4468 = vsel %vm634, %v4464, %v4458
      %v4469 = vld [vmem:[%s639] ss:$8 sm:$0xf]
      %v4471 = vlaneseq
      %v4472 = vshrl.u32 %v4471, 7
      %v4473 = vsub.s32 0, %v4472
      %v4474 = vrot.slane %v4469, %v4473
      %v4475 = vlaneseq
      %v4476 = vshrl.u32 %v4475, 7
      %v4477 = vsub.s32 1, %v4476
      %v4478 = vrot.slane %v4469, %v4477
      %v4479 = vlaneseq
      %v4480 = vshrl.u32 %v4479, 7
      %v4481 = vsub.s32 2, %v4480
      %v4482 = vrot.slane %v4469, %v4481
      %v4483 = vlaneseq
      %v4484 = vshrl.u32 %v4483, 7
      %v4485 = vsub.s32 3, %v4484
      %v4486 = vrot.slane %v4469, %v4485
      %v4491 = vmul.f32 %v4468, %v4474
      %v4492 = vmul.f32 %v4467, %v4478
      %v4493 = vmul.f32 %v4466, %v4482
      %v4494 = vmul.f32 %v4465, %v4486
      %4495 = vst [vmem:[#allocation2 + $0x80] sm:$0xff] %v4491
      %4496 = vst [vmem:[#allocation2 + $0x88] sm:$0xff] %v4492
      %4497 = vst [vmem:[#allocation2 + $0x90] sm:$0xff] %v4493
      %4498 = vst [vmem:[#allocation2 + $0x98] sm:$0xff] %v4494
      %4499 = vrot.lane.b32.xlu0 %v4285, 63
      %v4500 = vpop.permute.xlu0 %4499
      %4501 = vrot.lane.b32.xlu0 %v4286, 63
      %v4502 = vpop.permute.xlu0 %4501
      %4503 = vrot.lane.b32.xlu0 %v4287, 63
      %v4504 = vpop.permute.xlu0 %4503
      %4505 = vrot.lane.b32.xlu0 %v4288, 63
      %v4506 = vpop.permute.xlu0 %4505
      %v4507 = vsel %vm678, %v4504, %v4506
      %v4508 = vsel %vm678, %v4502, %v4504
      %v4509 = vsel %vm678, %v4500, %v4502
      %v4510 = vsel %vm678, %v4506, %v4500
      %v4511 = vld [vmem:[%s683] ss:$8 sm:$0xf]
      %v4513 = vlaneseq
      %v4514 = vshrl.u32 %v4513, 7
      %v4515 = vsub.s32 0, %v4514
      %v4516 = vrot.slane %v4511, %v4515
      %v4517 = vlaneseq
      %v4518 = vshrl.u32 %v4517, 7
      %v4519 = vsub.s32 1, %v4518
      %v4520 = vrot.slane %v4511, %v4519
      %v4521 = vlaneseq
      %v4522 = vshrl.u32 %v4521, 7
      %v4523 = vsub.s32 2, %v4522
      %v4524 = vrot.slane %v4511, %v4523
      %v4525 = vlaneseq
      %v4526 = vshrl.u32 %v4525, 7
      %v4527 = vsub.s32 3, %v4526
      %v4528 = vrot.slane %v4511, %v4527
      %v4533 = vmul.f32 %v4510, %v4516
      %v4534 = vmul.f32 %v4509, %v4520
      %v4535 = vmul.f32 %v4508, %v4524
      %v4536 = vmul.f32 %v4507, %v4528
      %4537 = vst [vmem:[#allocation2 + $0xa0] sm:$0xff] %v4533
      %4538 = vst [vmem:[#allocation2 + $0xa8] sm:$0xff] %v4534
      %4539 = vst [vmem:[#allocation2 + $0xb0] sm:$0xff] %v4535
      %4540 = vst [vmem:[#allocation2 + $0xb8] sm:$0xff] %v4536
      %4541 = vrot.lane.b32.xlu0 %v4285, 57
      %v4542 = vpop.permute.xlu0 %4541
      %4543 = vrot.lane.b32.xlu0 %v4286, 57
      %v4544 = vpop.permute.xlu0 %4543
      %4545 = vrot.lane.b32.xlu0 %v4287, 57
      %v4546 = vpop.permute.xlu0 %4545
      %4547 = vrot.lane.b32.xlu0 %v4288, 57
      %v4548 = vpop.permute.xlu0 %4547
      %v4549 = vsel %vm722, %v4546, %v4548
      %v4550 = vsel %vm722, %v4544, %v4546
      %v4551 = vsel %vm722, %v4542, %v4544
      %v4552 = vsel %vm722, %v4548, %v4542
      %v4553 = vld [vmem:[%s727] ss:$8 sm:$0xf]
      %v4555 = vlaneseq
      %v4556 = vshrl.u32 %v4555, 7
      %v4557 = vsub.s32 0, %v4556
      %v4558 = vrot.slane %v4553, %v4557
      %v4559 = vlaneseq
      %v4560 = vshrl.u32 %v4559, 7
      %v4561 = vsub.s32 1, %v4560
      %v4562 = vrot.slane %v4553, %v4561
      %v4563 = vlaneseq
      %v4564 = vshrl.u32 %v4563, 7
      %v4565 = vsub.s32 2, %v4564
      %v4566 = vrot.slane %v4553, %v4565
      %v4567 = vlaneseq
      %v4568 = vshrl.u32 %v4567, 7
      %v4569 = vsub.s32 3, %v4568
      %v4570 = vrot.slane %v4553, %v4569
      %v4575 = vmul.f32 %v4552, %v4558
      %v4576 = vmul.f32 %v4551, %v4562
      %v4577 = vmul.f32 %v4550, %v4566
      %v4578 = vmul.f32 %v4549, %v4570
      %4579 = vst [vmem:[#allocation2 + $0xc0] sm:$0xff] %v4575
      %4580 = vst [vmem:[#allocation2 + $0xc8] sm:$0xff] %v4576
      %4581 = vst [vmem:[#allocation2 + $0xd0] sm:$0xff] %v4577
      %4582 = vst [vmem:[#allocation2 + $0xd8] sm:$0xff] %v4578
      %4583 = vrot.lane.b32.xlu0 %v4285, 56
      %v4584 = vpop.permute.xlu0 %4583
      %4585 = vrot.lane.b32.xlu0 %v4286, 56
      %v4586 = vpop.permute.xlu0 %4585
      %4587 = vrot.lane.b32.xlu0 %v4287, 56
      %v4588 = vpop.permute.xlu0 %4587
      %4589 = vrot.lane.b32.xlu0 %v4288, 56
      %v4590 = vpop.permute.xlu0 %4589
      %v4591 = vsel %vm766, %v4588, %v4590
      %v4592 = vsel %vm766, %v4586, %v4588
      %v4593 = vsel %vm766, %v4584, %v4586
      %v4594 = vsel %vm766, %v4590, %v4584
      %v4595 = vld [vmem:[%s771] ss:$8 sm:$0xf]
      %v4597 = vlaneseq
      %v4598 = vshrl.u32 %v4597, 7
      %v4599 = vsub.s32 0, %v4598
      %v4600 = vrot.slane %v4595, %v4599
      %v4601 = vlaneseq
      %v4602 = vshrl.u32 %v4601, 7
      %v4603 = vsub.s32 1, %v4602
      %v4604 = vrot.slane %v4595, %v4603
      %v4605 = vlaneseq
      %v4606 = vshrl.u32 %v4605, 7
      %v4607 = vsub.s32 2, %v4606
      %v4608 = vrot.slane %v4595, %v4607
      %v4609 = vlaneseq
      %v4610 = vshrl.u32 %v4609, 7
      %v4611 = vsub.s32 3, %v4610
      %v4612 = vrot.slane %v4595, %v4611
      %v4617 = vmul.f32 %v4594, %v4600
      %v4618 = vmul.f32 %v4593, %v4604
      %v4619 = vmul.f32 %v4592, %v4608
      %v4620 = vmul.f32 %v4591, %v4612
      %4621 = vst [vmem:[#allocation2 + $0xe0] sm:$0xff] %v4617
      %4622 = vst [vmem:[#allocation2 + $0xe8] sm:$0xff] %v4618
      %4623 = vst [vmem:[#allocation2 + $0xf0] sm:$0xff] %v4619
      %4624 = vst [vmem:[#allocation2 + $0xf8] sm:$0xff] %v4620
      %4625 = vrot.lane.b32.xlu0 %v4285, 55
      %v4626 = vpop.permute.xlu0 %4625
      %4627 = vrot.lane.b32.xlu0 %v4286, 55
      %v4628 = vpop.permute.xlu0 %4627
      %4629 = vrot.lane.b32.xlu0 %v4287, 55
      %v4630 = vpop.permute.xlu0 %4629
      %4631 = vrot.lane.b32.xlu0 %v4288, 55
      %v4632 = vpop.permute.xlu0 %4631
      %v4633 = vsel %vm810, %v4630, %v4632
      %v4634 = vsel %vm810, %v4628, %v4630
      %v4635 = vsel %vm810, %v4626, %v4628
      %v4636 = vsel %vm810, %v4632, %v4626
      %v4637 = vld [vmem:[%s815] ss:$8 sm:$0xf]
      %v4639 = vlaneseq
      %v4640 = vshrl.u32 %v4639, 7
      %v4641 = vsub.s32 0, %v4640
      %v4642 = vrot.slane %v4637, %v4641
      %v4643 = vlaneseq
      %v4644 = vshrl.u32 %v4643, 7
      %v4645 = vsub.s32 1, %v4644
      %v4646 = vrot.slane %v4637, %v4645
      %v4647 = vlaneseq
      %v4648 = vshrl.u32 %v4647, 7
      %v4649 = vsub.s32 2, %v4648
      %v4650 = vrot.slane %v4637, %v4649
      %v4651 = vlaneseq
      %v4652 = vshrl.u32 %v4651, 7
      %v4653 = vsub.s32 3, %v4652
      %v4654 = vrot.slane %v4637, %v4653
      %v4659 = vmul.f32 %v4636, %v4642
      %v4660 = vmul.f32 %v4635, %v4646
      %v4661 = vmul.f32 %v4634, %v4650
      %v4662 = vmul.f32 %v4633, %v4654
      %4663 = vst [vmem:[#allocation2 + $0x100] sm:$0xff] %v4659
      %4664 = vst [vmem:[#allocation2 + $0x108] sm:$0xff] %v4660
      %4665 = vst [vmem:[#allocation2 + $0x110] sm:$0xff] %v4661
      %4666 = vst [vmem:[#allocation2 + $0x118] sm:$0xff] %v4662
      %4667 = vrot.lane.b32.xlu0 %v4285, 9
      %v4668 = vpop.permute.xlu0 %4667
      %4669 = vrot.lane.b32.xlu0 %v4286, 9
      %v4670 = vpop.permute.xlu0 %4669
      %4671 = vrot.lane.b32.xlu0 %v4287, 9
      %v4672 = vpop.permute.xlu0 %4671
      %4673 = vrot.lane.b32.xlu0 %v4288, 9
      %v4674 = vpop.permute.xlu0 %4673
      %v4675 = vsel %vm854, %v4672, %v4674
      %v4676 = vsel %vm854, %v4670, %v4672
      %v4677 = vsel %vm854, %v4668, %v4670
      %v4678 = vsel %vm854, %v4674, %v4668
      %v4679 = vld [vmem:[%s859] ss:$8 sm:$0xf]
      %v4681 = vlaneseq
      %v4682 = vshrl.u32 %v4681, 7
      %v4683 = vsub.s32 0, %v4682
      %v4684 = vrot.slane %v4679, %v4683
      %v4685 = vlaneseq
      %v4686 = vshrl.u32 %v4685, 7
      %v4687 = vsub.s32 1, %v4686
      %v4688 = vrot.slane %v4679, %v4687
      %v4689 = vlaneseq
      %v4690 = vshrl.u32 %v4689, 7
      %v4691 = vsub.s32 2, %v4690
      %v4692 = vrot.slane %v4679, %v4691
      %v4693 = vlaneseq
      %v4694 = vshrl.u32 %v4693, 7
      %v4695 = vsub.s32 3, %v4694
      %v4696 = vrot.slane %v4679, %v4695
      %v4701 = vmul.f32 %v4678, %v4684
      %v4702 = vmul.f32 %v4677, %v4688
      %v4703 = vmul.f32 %v4676, %v4692
      %v4704 = vmul.f32 %v4675, %v4696
      %4705 = vst [vmem:[#allocation2 + $0x120] sm:$0xff] %v4701
      %4706 = vst [vmem:[#allocation2 + $0x128] sm:$0xff] %v4702
      %4707 = vst [vmem:[#allocation2 + $0x130] sm:$0xff] %v4703
      %4708 = vst [vmem:[#allocation2 + $0x138] sm:$0xff] %v4704
      %4709 = vrot.lane.b32.xlu0 %v4285, 8
      %v4710 = vpop.permute.xlu0 %4709
      %4711 = vrot.lane.b32.xlu0 %v4286, 8
      %v4712 = vpop.permute.xlu0 %4711
      %4713 = vrot.lane.b32.xlu0 %v4287, 8
      %v4714 = vpop.permute.xlu0 %4713
      %4715 = vrot.lane.b32.xlu0 %v4288, 8
      %v4716 = vpop.permute.xlu0 %4715
      %v4717 = vsel %vm898, %v4714, %v4716
      %v4718 = vsel %vm898, %v4712, %v4714
      %v4719 = vsel %vm898, %v4710, %v4712
      %v4720 = vsel %vm898, %v4716, %v4710
      %v4721 = vld [vmem:[%s903] ss:$8 sm:$0xf]
      %v4723 = vlaneseq
      %v4724 = vshrl.u32 %v4723, 7
      %v4725 = vsub.s32 0, %v4724
      %v4726 = vrot.slane %v4721, %v4725
      %v4727 = vlaneseq
      %v4728 = vshrl.u32 %v4727, 7
      %v4729 = vsub.s32 1, %v4728
      %v4730 = vrot.slane %v4721, %v4729
      %v4731 = vlaneseq
      %v4732 = vshrl.u32 %v4731, 7
      %v4733 = vsub.s32 2, %v4732
      %v4734 = vrot.slane %v4721, %v4733
      %v4735 = vlaneseq
      %v4736 = vshrl.u32 %v4735, 7
      %v4737 = vsub.s32 3, %v4736
      %v4738 = vrot.slane %v4721, %v4737
      %v4743 = vmul.f32 %v4720, %v4726
      %v4744 = vmul.f32 %v4719, %v4730
      %v4745 = vmul.f32 %v4718, %v4734
      %v4746 = vmul.f32 %v4717, %v4738
      %4747 = vst [vmem:[#allocation2 + $0x140] sm:$0xff] %v4743
      %4748 = vst [vmem:[#allocation2 + $0x148] sm:$0xff] %v4744
      %4749 = vst [vmem:[#allocation2 + $0x150] sm:$0xff] %v4745
      %4750 = vst [vmem:[#allocation2 + $0x158] sm:$0xff] %v4746
      %4751 = vrot.lane.b32.xlu0 %v4285, 7
      %v4752 = vpop.permute.xlu0 %4751
      %4753 = vrot.lane.b32.xlu0 %v4286, 7
      %v4754 = vpop.permute.xlu0 %4753
      %4755 = vrot.lane.b32.xlu0 %v4287, 7
      %v4756 = vpop.permute.xlu0 %4755
      %4757 = vrot.lane.b32.xlu0 %v4288, 7
      %v4758 = vpop.permute.xlu0 %4757
      %v4759 = vsel %vm942, %v4756, %v4758
      %v4760 = vsel %vm942, %v4754, %v4756
      %v4761 = vsel %vm942, %v4752, %v4754
      %v4762 = vsel %vm942, %v4758, %v4752
      %v4763 = vld [vmem:[%s947] ss:$8 sm:$0xf]
      %v4765 = vlaneseq
      %v4766 = vshrl.u32 %v4765, 7
      %v4767 = vsub.s32 0, %v4766
      %v4768 = vrot.slane %v4763, %v4767
      %v4769 = vlaneseq
      %v4770 = vshrl.u32 %v4769, 7
      %v4771 = vsub.s32 1, %v4770
      %v4772 = vrot.slane %v4763, %v4771
      %v4773 = vlaneseq
      %v4774 = vshrl.u32 %v4773, 7
      %v4775 = vsub.s32 2, %v4774
      %v4776 = vrot.slane %v4763, %v4775
      %v4777 = vlaneseq
      %v4778 = vshrl.u32 %v4777, 7
      %v4779 = vsub.s32 3, %v4778
      %v4780 = vrot.slane %v4763, %v4779
      %v4785 = vmul.f32 %v4762, %v4768
      %v4786 = vmul.f32 %v4761, %v4772
      %v4787 = vmul.f32 %v4760, %v4776
      %v4788 = vmul.f32 %v4759, %v4780
      %4789 = vst [vmem:[#allocation2 + $0x160] sm:$0xff] %v4785
      %4790 = vst [vmem:[#allocation2 + $0x168] sm:$0xff] %v4786
      %4791 = vst [vmem:[#allocation2 + $0x170] sm:$0xff] %v4787
      %4792 = vst [vmem:[#allocation2 + $0x178] sm:$0xff] %v4788
      %4793 = vrot.lane.b32.xlu0 %v4285, 1
      %v4794 = vpop.permute.xlu0 %4793
      %4795 = vrot.lane.b32.xlu0 %v4286, 1
      %v4796 = vpop.permute.xlu0 %4795
      %4797 = vrot.lane.b32.xlu0 %v4287, 1
      %v4798 = vpop.permute.xlu0 %4797
      %4799 = vrot.lane.b32.xlu0 %v4288, 1
      %v4800 = vpop.permute.xlu0 %4799
      %v4801 = vsel %vm986, %v4798, %v4800
      %v4802 = vsel %vm986, %v4796, %v4798
      %v4803 = vsel %vm986, %v4794, %v4796
      %v4804 = vsel %vm986, %v4800, %v4794
      %v4805 = vld [vmem:[%s991] ss:$8 sm:$0xf]
      %v4807 = vlaneseq
      %v4808 = vshrl.u32 %v4807, 7
      %v4809 = vsub.s32 0, %v4808
      %v4810 = vrot.slane %v4805, %v4809
      %v4811 = vlaneseq
      %v4812 = vshrl.u32 %v4811, 7
      %v4813 = vsub.s32 1, %v4812
      %v4814 = vrot.slane %v4805, %v4813
      %v4815 = vlaneseq
      %v4816 = vshrl.u32 %v4815, 7
      %v4817 = vsub.s32 2, %v4816
      %v4818 = vrot.slane %v4805, %v4817
      %v4819 = vlaneseq
      %v4820 = vshrl.u32 %v4819, 7
      %v4821 = vsub.s32 3, %v4820
      %v4822 = vrot.slane %v4805, %v4821
      %v4827 = vmul.f32 %v4804, %v4810
      %v4828 = vmul.f32 %v4803, %v4814
      %v4829 = vmul.f32 %v4802, %v4818
      %v4830 = vmul.f32 %v4801, %v4822
      %4831 = vst [vmem:[#allocation2 + $0x180] sm:$0xff] %v4827
      %4832 = vst [vmem:[#allocation2 + $0x188] sm:$0xff] %v4828
      %4833 = vst [vmem:[#allocation2 + $0x190] sm:$0xff] %v4829
      %4834 = vst [vmem:[#allocation2 + $0x198] sm:$0xff] %v4830
      %4835 = vst [vmem:[#allocation2 + $0x1a0] sm:$0xff] %v4285
      %4836 = vst [vmem:[#allocation2 + $0x1a8] sm:$0xff] %v4286
      %4837 = vst [vmem:[#allocation2 + $0x1b0] sm:$0xff] %v4287
      %4838 = vst [vmem:[#allocation2 + $0x1b8] sm:$0xff] %v4288
      %4839 = vrot.lane.b32.xlu0 %v4285, 127
      %v4840 = vpop.permute.xlu0 %4839
      %4841 = vrot.lane.b32.xlu0 %v4286, 127
      %v4842 = vpop.permute.xlu0 %4841
      %4843 = vrot.lane.b32.xlu0 %v4287, 127
      %v4844 = vpop.permute.xlu0 %4843
      %4845 = vrot.lane.b32.xlu0 %v4288, 127
      %v4846 = vpop.permute.xlu0 %4845
      %v4847 = vsel %vm1034, %v4844, %v4846
      %v4848 = vsel %vm1034, %v4842, %v4844
      %v4849 = vsel %vm1034, %v4840, %v4842
      %v4850 = vsel %vm1034, %v4846, %v4840
      %v4851 = vld [vmem:[%s1039] ss:$8 sm:$0xf]
      %v4853 = vlaneseq
      %v4854 = vshrl.u32 %v4853, 7
      %v4855 = vsub.s32 0, %v4854
      %v4856 = vrot.slane %v4851, %v4855
      %v4857 = vlaneseq
      %v4858 = vshrl.u32 %v4857, 7
      %v4859 = vsub.s32 1, %v4858
      %v4860 = vrot.slane %v4851, %v4859
      %v4861 = vlaneseq
      %v4862 = vshrl.u32 %v4861, 7
      %v4863 = vsub.s32 2, %v4862
      %v4864 = vrot.slane %v4851, %v4863
      %v4865 = vlaneseq
      %v4866 = vshrl.u32 %v4865, 7
      %v4867 = vsub.s32 3, %v4866
      %v4868 = vrot.slane %v4851, %v4867
      %v4873 = vmul.f32 %v4849, %v4856
      %v4874 = vmul.f32 %v4848, %v4860
      %v4875 = vmul.f32 %v4847, %v4864
      %v4876 = vmul.f32 %v4850, %v4868
      %4877 = vst [vmem:[#allocation2 + $0x1c0] sm:$0xff] %v4873
      %4878 = vst [vmem:[#allocation2 + $0x1c8] sm:$0xff] %v4874
      %4879 = vst [vmem:[#allocation2 + $0x1d0] sm:$0xff] %v4875
      %4880 = vst [vmem:[#allocation2 + $0x1d8] sm:$0xff] %v4876
      %4881 = vrot.lane.b32.xlu0 %v4285, 121
      %v4882 = vpop.permute.xlu0 %4881
      %4883 = vrot.lane.b32.xlu0 %v4286, 121
      %v4884 = vpop.permute.xlu0 %4883
      %4885 = vrot.lane.b32.xlu0 %v4287, 121
      %v4886 = vpop.permute.xlu0 %4885
      %4887 = vrot.lane.b32.xlu0 %v4288, 121
      %v4888 = vpop.permute.xlu0 %4887
      %v4889 = vsel %vm1078, %v4886, %v4888
      %v4890 = vsel %vm1078, %v4884, %v4886
      %v4891 = vsel %vm1078, %v4882, %v4884
      %v4892 = vsel %vm1078, %v4888, %v4882
      %v4893 = vld [vmem:[%s1083] ss:$8 sm:$0xf]
      %v4895 = vlaneseq
      %v4896 = vshrl.u32 %v4895, 7
      %v4897 = vsub.s32 0, %v4896
      %v4898 = vrot.slane %v4893, %v4897
      %v4899 = vlaneseq
      %v4900 = vshrl.u32 %v4899, 7
      %v4901 = vsub.s32 1, %v4900
      %v4902 = vrot.slane %v4893, %v4901
      %v4903 = vlaneseq
      %v4904 = vshrl.u32 %v4903, 7
      %v4905 = vsub.s32 2, %v4904
      %v4906 = vrot.slane %v4893, %v4905
      %v4907 = vlaneseq
      %v4908 = vshrl.u32 %v4907, 7
      %v4909 = vsub.s32 3, %v4908
      %v4910 = vrot.slane %v4893, %v4909
      %v4915 = vmul.f32 %v4891, %v4898
      %v4916 = vmul.f32 %v4890, %v4902
      %v4917 = vmul.f32 %v4889, %v4906
      %v4918 = vmul.f32 %v4892, %v4910
      %4919 = vst [vmem:[#allocation2 + $0x1e0] sm:$0xff] %v4915
      %4920 = vst [vmem:[#allocation2 + $0x1e8] sm:$0xff] %v4916
      %4921 = vst [vmem:[#allocation2 + $0x1f0] sm:$0xff] %v4917
      %4922 = vst [vmem:[#allocation2 + $0x1f8] sm:$0xff] %v4918
      %4923 = vrot.lane.b32.xlu0 %v4285, 120
      %v4924 = vpop.permute.xlu0 %4923
      %4925 = vrot.lane.b32.xlu0 %v4286, 120
      %v4926 = vpop.permute.xlu0 %4925
      %4927 = vrot.lane.b32.xlu0 %v4287, 120
      %v4928 = vpop.permute.xlu0 %4927
      %4929 = vrot.lane.b32.xlu0 %v4288, 120
      %v4930 = vpop.permute.xlu0 %4929
      %v4931 = vsel %vm1122, %v4928, %v4930
      %v4932 = vsel %vm1122, %v4926, %v4928
      %v4933 = vsel %vm1122, %v4924, %v4926
      %v4934 = vsel %vm1122, %v4930, %v4924
      %v4935 = vld [vmem:[%s1127] ss:$8 sm:$0xf]
      %v4937 = vlaneseq
      %v4938 = vshrl.u32 %v4937, 7
      %v4939 = vsub.s32 0, %v4938
      %v4940 = vrot.slane %v4935, %v4939
      %v4941 = vlaneseq
      %v4942 = vshrl.u32 %v4941, 7
      %v4943 = vsub.s32 1, %v4942
      %v4944 = vrot.slane %v4935, %v4943
      %v4945 = vlaneseq
      %v4946 = vshrl.u32 %v4945, 7
      %v4947 = vsub.s32 2, %v4946
      %v4948 = vrot.slane %v4935, %v4947
      %v4949 = vlaneseq
      %v4950 = vshrl.u32 %v4949, 7
      %v4951 = vsub.s32 3, %v4950
      %v4952 = vrot.slane %v4935, %v4951
      %v4957 = vmul.f32 %v4933, %v4940
      %v4958 = vmul.f32 %v4932, %v4944
      %v4959 = vmul.f32 %v4931, %v4948
      %v4960 = vmul.f32 %v4934, %v4952
      %4961 = vst [vmem:[#allocation2 + $0x200] sm:$0xff] %v4957
      %4962 = vst [vmem:[#allocation2 + $0x208] sm:$0xff] %v4958
      %4963 = vst [vmem:[#allocation2 + $0x210] sm:$0xff] %v4959
      %4964 = vst [vmem:[#allocation2 + $0x218] sm:$0xff] %v4960
      %4965 = vrot.lane.b32.xlu0 %v4285, 119
      %v4966 = vpop.permute.xlu0 %4965
      %4967 = vrot.lane.b32.xlu0 %v4286, 119
      %v4968 = vpop.permute.xlu0 %4967
      %4969 = vrot.lane.b32.xlu0 %v4287, 119
      %v4970 = vpop.permute.xlu0 %4969
      %4971 = vrot.lane.b32.xlu0 %v4288, 119
      %v4972 = vpop.permute.xlu0 %4971
      %v4973 = vsel %vm1166, %v4970, %v4972
      %v4974 = vsel %vm1166, %v4968, %v4970
      %v4975 = vsel %vm1166, %v4966, %v4968
      %v4976 = vsel %vm1166, %v4972, %v4966
      %v4977 = vld [vmem:[%s1171] ss:$8 sm:$0xf]
      %v4979 = vlaneseq
      %v4980 = vshrl.u32 %v4979, 7
      %v4981 = vsub.s32 0, %v4980
      %v4982 = vrot.slane %v4977, %v4981
      %v4983 = vlaneseq
      %v4984 = vshrl.u32 %v4983, 7
      %v4985 = vsub.s32 1, %v4984
      %v4986 = vrot.slane %v4977, %v4985
      %v4987 = vlaneseq
      %v4988 = vshrl.u32 %v4987, 7
      %v4989 = vsub.s32 2, %v4988
      %v4990 = vrot.slane %v4977, %v4989
      %v4991 = vlaneseq
      %v4992 = vshrl.u32 %v4991, 7
      %v4993 = vsub.s32 3, %v4992
      %v4994 = vrot.slane %v4977, %v4993
      %v4999 = vmul.f32 %v4975, %v4982
      %v5000 = vmul.f32 %v4974, %v4986
      %v5001 = vmul.f32 %v4973, %v4990
      %v5002 = vmul.f32 %v4976, %v4994
      %5003 = vst [vmem:[#allocation2 + $0x220] sm:$0xff] %v4999
      %5004 = vst [vmem:[#allocation2 + $0x228] sm:$0xff] %v5000
      %5005 = vst [vmem:[#allocation2 + $0x230] sm:$0xff] %v5001
      %5006 = vst [vmem:[#allocation2 + $0x238] sm:$0xff] %v5002
      %v5007 = vld [vmem:[%s1202] ss:$8 sm:$0xf]
      %v5009 = vlaneseq
      %v5010 = vshrl.u32 %v5009, 7
      %v5011 = vsub.s32 0, %v5010
      %v5012 = vrot.slane %v5007, %v5011
      %v5013 = vlaneseq
      %v5014 = vshrl.u32 %v5013, 7
      %v5015 = vsub.s32 1, %v5014
      %v5016 = vrot.slane %v5007, %v5015
      %v5017 = vlaneseq
      %v5018 = vshrl.u32 %v5017, 7
      %v5019 = vsub.s32 2, %v5018
      %v5020 = vrot.slane %v5007, %v5019
      %v5021 = vlaneseq
      %v5022 = vshrl.u32 %v5021, 7
      %v5023 = vsub.s32 3, %v5022
      %v5024 = vrot.slane %v5007, %v5023
      %v5029 = vmul.f32 %v4299, %v5012
      %v5030 = vmul.f32 %v4298, %v5016
      %v5031 = vmul.f32 %v4297, %v5020
      %v5032 = vmul.f32 %v4300, %v5024
      %5033 = vst [vmem:[#allocation2 + $0x240] sm:$0xff] %v5029
      %5034 = vst [vmem:[#allocation2 + $0x248] sm:$0xff] %v5030
      %5035 = vst [vmem:[#allocation2 + $0x250] sm:$0xff] %v5031
      %5036 = vst [vmem:[#allocation2 + $0x258] sm:$0xff] %v5032
      %v5037 = vld [vmem:[%s1233] ss:$8 sm:$0xf]
      %v5039 = vlaneseq
      %v5040 = vshrl.u32 %v5039, 7
      %v5041 = vsub.s32 0, %v5040
      %v5042 = vrot.slane %v5037, %v5041
      %v5043 = vlaneseq
      %v5044 = vshrl.u32 %v5043, 7
      %v5045 = vsub.s32 1, %v5044
      %v5046 = vrot.slane %v5037, %v5045
      %v5047 = vlaneseq
      %v5048 = vshrl.u32 %v5047, 7
      %v5049 = vsub.s32 2, %v5048
      %v5050 = vrot.slane %v5037, %v5049
      %v5051 = vlaneseq
      %v5052 = vshrl.u32 %v5051, 7
      %v5053 = vsub.s32 3, %v5052
      %v5054 = vrot.slane %v5037, %v5053
      %v5059 = vmul.f32 %v4341, %v5042
      %v5060 = vmul.f32 %v4340, %v5046
      %v5061 = vmul.f32 %v4339, %v5050
      %v5062 = vmul.f32 %v4342, %v5054
      %5063 = vst [vmem:[#allocation2 + $0x260] sm:$0xff] %v5059
      %5064 = vst [vmem:[#allocation2 + $0x268] sm:$0xff] %v5060
      %5065 = vst [vmem:[#allocation2 + $0x270] sm:$0xff] %v5061
      %5066 = vst [vmem:[#allocation2 + $0x278] sm:$0xff] %v5062
      %v5067 = vld [vmem:[%s1264] ss:$8 sm:$0xf]
      %v5069 = vlaneseq
      %v5070 = vshrl.u32 %v5069, 7
      %v5071 = vsub.s32 0, %v5070
      %v5072 = vrot.slane %v5067, %v5071
      %v5073 = vlaneseq
      %v5074 = vshrl.u32 %v5073, 7
      %v5075 = vsub.s32 1, %v5074
      %v5076 = vrot.slane %v5067, %v5075
      %v5077 = vlaneseq
      %v5078 = vshrl.u32 %v5077, 7
      %v5079 = vsub.s32 2, %v5078
      %v5080 = vrot.slane %v5067, %v5079
      %v5081 = vlaneseq
      %v5082 = vshrl.u32 %v5081, 7
      %v5083 = vsub.s32 3, %v5082
      %v5084 = vrot.slane %v5067, %v5083
      %v5089 = vmul.f32 %v4383, %v5072
      %v5090 = vmul.f32 %v4382, %v5076
      %v5091 = vmul.f32 %v4381, %v5080
      %v5092 = vmul.f32 %v4384, %v5084
      %5093 = vst [vmem:[#allocation2 + $0x280] sm:$0xff] %v5089
      %5094 = vst [vmem:[#allocation2 + $0x288] sm:$0xff] %v5090
      %5095 = vst [vmem:[#allocation2 + $0x290] sm:$0xff] %v5091
      %5096 = vst [vmem:[#allocation2 + $0x298] sm:$0xff] %v5092
      %v5097 = vld [vmem:[%s1295] ss:$8 sm:$0xf]
      %v5099 = vlaneseq
      %v5100 = vshrl.u32 %v5099, 7
      %v5101 = vsub.s32 0, %v5100
      %v5102 = vrot.slane %v5097, %v5101
      %v5103 = vlaneseq
      %v5104 = vshrl.u32 %v5103, 7
      %v5105 = vsub.s32 1, %v5104
      %v5106 = vrot.slane %v5097, %v5105
      %v5107 = vlaneseq
      %v5108 = vshrl.u32 %v5107, 7
      %v5109 = vsub.s32 2, %v5108
      %v5110 = vrot.slane %v5097, %v5109
      %v5111 = vlaneseq
      %v5112 = vshrl.u32 %v5111, 7
      %v5113 = vsub.s32 3, %v5112
      %v5114 = vrot.slane %v5097, %v5113
      %v5119 = vmul.f32 %v4425, %v5102
      %v5120 = vmul.f32 %v4424, %v5106
      %v5121 = vmul.f32 %v4423, %v5110
      %v5122 = vmul.f32 %v4426, %v5114
      %5123 = vst [vmem:[#allocation2 + $0x2a0] sm:$0xff] %v5119
      %5124 = vst [vmem:[#allocation2 + $0x2a8] sm:$0xff] %v5120
      %5125 = vst [vmem:[#allocation2 + $0x2b0] sm:$0xff] %v5121
      %5126 = vst [vmem:[#allocation2 + $0x2b8] sm:$0xff] %v5122
      %v5127 = vld [vmem:[%s1326] ss:$8 sm:$0xf]
      %v5129 = vlaneseq
      %v5130 = vshrl.u32 %v5129, 7
      %v5131 = vsub.s32 0, %v5130
      %v5132 = vrot.slane %v5127, %v5131
      %v5133 = vlaneseq
      %v5134 = vshrl.u32 %v5133, 7
      %v5135 = vsub.s32 1, %v5134
      %v5136 = vrot.slane %v5127, %v5135
      %v5137 = vlaneseq
      %v5138 = vshrl.u32 %v5137, 7
      %v5139 = vsub.s32 2, %v5138
      %v5140 = vrot.slane %v5127, %v5139
      %v5141 = vlaneseq
      %v5142 = vshrl.u32 %v5141, 7
      %v5143 = vsub.s32 3, %v5142
      %v5144 = vrot.slane %v5127, %v5143
      %v5149 = vmul.f32 %v4467, %v5132
      %v5150 = vmul.f32 %v4466, %v5136
      %v5151 = vmul.f32 %v4465, %v5140
      %v5152 = vmul.f32 %v4468, %v5144
      %5153 = vst [vmem:[#allocation2 + $0x2c0] sm:$0xff] %v5149
      %5154 = vst [vmem:[#allocation2 + $0x2c8] sm:$0xff] %v5150
      %5155 = vst [vmem:[#allocation2 + $0x2d0] sm:$0xff] %v5151
      %5156 = vst [vmem:[#allocation2 + $0x2d8] sm:$0xff] %v5152
      %v5157 = vld [vmem:[%s1357] ss:$8 sm:$0xf]
      %v5159 = vlaneseq
      %v5160 = vshrl.u32 %v5159, 7
      %v5161 = vsub.s32 0, %v5160
      %v5162 = vrot.slane %v5157, %v5161
      %v5163 = vlaneseq
      %v5164 = vshrl.u32 %v5163, 7
      %v5165 = vsub.s32 1, %v5164
      %v5166 = vrot.slane %v5157, %v5165
      %v5167 = vlaneseq
      %v5168 = vshrl.u32 %v5167, 7
      %v5169 = vsub.s32 2, %v5168
      %v5170 = vrot.slane %v5157, %v5169
      %v5171 = vlaneseq
      %v5172 = vshrl.u32 %v5171, 7
      %v5173 = vsub.s32 3, %v5172
      %v5174 = vrot.slane %v5157, %v5173
      %v5179 = vmul.f32 %v4509, %v5162
      %v5180 = vmul.f32 %v4508, %v5166
      %v5181 = vmul.f32 %v4507, %v5170
      %v5182 = vmul.f32 %v4510, %v5174
      %5183 = vst [vmem:[#allocation2 + $0x2e0] sm:$0xff] %v5179
      %5184 = vst [vmem:[#allocation2 + $0x2e8] sm:$0xff] %v5180
      %5185 = vst [vmem:[#allocation2 + $0x2f0] sm:$0xff] %v5181
      %5186 = vst [vmem:[#allocation2 + $0x2f8] sm:$0xff] %v5182
      %v5187 = vld [vmem:[%s1388] ss:$8 sm:$0xf]
      %v5189 = vlaneseq
      %v5190 = vshrl.u32 %v5189, 7
      %v5191 = vsub.s32 0, %v5190
      %v5192 = vrot.slane %v5187, %v5191
      %v5193 = vlaneseq
      %v5194 = vshrl.u32 %v5193, 7
      %v5195 = vsub.s32 1, %v5194
      %v5196 = vrot.slane %v5187, %v5195
      %v5197 = vlaneseq
      %v5198 = vshrl.u32 %v5197, 7
      %v5199 = vsub.s32 2, %v5198
      %v5200 = vrot.slane %v5187, %v5199
      %v5201 = vlaneseq
      %v5202 = vshrl.u32 %v5201, 7
      %v5203 = vsub.s32 3, %v5202
      %v5204 = vrot.slane %v5187, %v5203
      %v5209 = vmul.f32 %v4551, %v5192
      %v5210 = vmul.f32 %v4550, %v5196
      %v5211 = vmul.f32 %v4549, %v5200
      %v5212 = vmul.f32 %v4552, %v5204
      %5213 = vst [vmem:[#allocation2 + $0x300] sm:$0xff] %v5209
      %5214 = vst [vmem:[#allocation2 + $0x308] sm:$0xff] %v5210
      %5215 = vst [vmem:[#allocation2 + $0x310] sm:$0xff] %v5211
      %5216 = vst [vmem:[#allocation2 + $0x318] sm:$0xff] %v5212
      %v5217 = vld [vmem:[%s1419] ss:$8 sm:$0xf]
      %v5219 = vlaneseq
      %v5220 = vshrl.u32 %v5219, 7
      %v5221 = vsub.s32 0, %v5220
      %v5222 = vrot.slane %v5217, %v5221
      %v5223 = vlaneseq
      %v5224 = vshrl.u32 %v5223, 7
      %v5225 = vsub.s32 1, %v5224
      %v5226 = vrot.slane %v5217, %v5225
      %v5227 = vlaneseq
      %v5228 = vshrl.u32 %v5227, 7
      %v5229 = vsub.s32 2, %v5228
      %v5230 = vrot.slane %v5217, %v5229
      %v5231 = vlaneseq
      %v5232 = vshrl.u32 %v5231, 7
      %v5233 = vsub.s32 3, %v5232
      %v5234 = vrot.slane %v5217, %v5233
      %v5239 = vmul.f32 %v4593, %v5222
      %v5240 = vmul.f32 %v4592, %v5226
      %v5241 = vmul.f32 %v4591, %v5230
      %v5242 = vmul.f32 %v4594, %v5234
      %5243 = vst [vmem:[#allocation2 + $0x320] sm:$0xff] %v5239
      %5244 = vst [vmem:[#allocation2 + $0x328] sm:$0xff] %v5240
      %5245 = vst [vmem:[#allocation2 + $0x330] sm:$0xff] %v5241
      %5246 = vst [vmem:[#allocation2 + $0x338] sm:$0xff] %v5242
      %v5247 = vld [vmem:[%s1450] ss:$8 sm:$0xf]
      %v5249 = vlaneseq
      %v5250 = vshrl.u32 %v5249, 7
      %v5251 = vsub.s32 0, %v5250
      %v5252 = vrot.slane %v5247, %v5251
      %v5253 = vlaneseq
      %v5254 = vshrl.u32 %v5253, 7
      %v5255 = vsub.s32 1, %v5254
      %v5256 = vrot.slane %v5247, %v5255
      %v5257 = vlaneseq
      %v5258 = vshrl.u32 %v5257, 7
      %v5259 = vsub.s32 2, %v5258
      %v5260 = vrot.slane %v5247, %v5259
      %v5261 = vlaneseq
      %v5262 = vshrl.u32 %v5261, 7
      %v5263 = vsub.s32 3, %v5262
      %v5264 = vrot.slane %v5247, %v5263
      %v5269 = vmul.f32 %v4635, %v5252
      %v5270 = vmul.f32 %v4634, %v5256
      %v5271 = vmul.f32 %v4633, %v5260
      %v5272 = vmul.f32 %v4636, %v5264
      %5273 = vst [vmem:[#allocation2 + $0x340] sm:$0xff] %v5269
      %5274 = vst [vmem:[#allocation2 + $0x348] sm:$0xff] %v5270
      %5275 = vst [vmem:[#allocation2 + $0x350] sm:$0xff] %v5271
      %5276 = vst [vmem:[#allocation2 + $0x358] sm:$0xff] %v5272
      %v5277 = vld [vmem:[%s4] sm:$0xff]
      %v5278 = vld [vmem:[%s4 + $0x8] sm:$0xff]
      %v5279 = vld [vmem:[#allocation2] sm:$0xff]
      %v5280 = vld [vmem:[#allocation2 + $0x8] sm:$0xff]
      %v5281 = vld [vmem:[#allocation2 + $0x10] sm:$0xff]
      %v5282 = vld [vmem:[#allocation2 + $0x18] sm:$0xff]
      %v5283 = vld [vmem:[#allocation2 + $0x20] sm:$0xff]
      %v5284 = vld [vmem:[#allocation2 + $0x28] sm:$0xff]
      %v5285 = vld [vmem:[#allocation2 + $0x30] sm:$0xff]
      %v5286 = vld [vmem:[#allocation2 + $0x38] sm:$0xff]
      %v5287 = vld [vmem:[#allocation2 + $0x40] sm:$0xff]
      %v5288 = vld [vmem:[#allocation2 + $0x48] sm:$0xff]
      %v5289 = vld [vmem:[#allocation2 + $0x50] sm:$0xff]
      %v5290 = vld [vmem:[#allocation2 + $0x58] sm:$0xff]
      %v5291 = vld [vmem:[#allocation2 + $0x60] sm:$0xff]
      %v5292 = vld [vmem:[#allocation2 + $0x68] sm:$0xff]
      %v5293 = vld [vmem:[#allocation2 + $0x70] sm:$0xff]
      %v5294 = vld [vmem:[#allocation2 + $0x78] sm:$0xff]
      %v5295 = vld [vmem:[#allocation2 + $0x80] sm:$0xff]
      %v5296 = vld [vmem:[#allocation2 + $0x88] sm:$0xff]
      %v5297 = vld [vmem:[#allocation2 + $0x90] sm:$0xff]
      %v5298 = vld [vmem:[#allocation2 + $0x98] sm:$0xff]
      %v5299 = vld [vmem:[#allocation2 + $0xa0] sm:$0xff]
      %v5300 = vld [vmem:[#allocation2 + $0xa8] sm:$0xff]
      %v5301 = vld [vmem:[#allocation2 + $0xb0] sm:$0xff]
      %v5302 = vld [vmem:[#allocation2 + $0xb8] sm:$0xff]
      %v5303 = vld [vmem:[#allocation2 + $0xc0] sm:$0xff]
      %v5304 = vld [vmem:[#allocation2 + $0xc8] sm:$0xff]
      %v5305 = vld [vmem:[#allocation2 + $0xd0] sm:$0xff]
      %v5306 = vld [vmem:[#allocation2 + $0xd8] sm:$0xff]
      %v5307 = vld [vmem:[#allocation2 + $0xe0] sm:$0xff]
      %v5308 = vld [vmem:[#allocation2 + $0xe8] sm:$0xff]
      %v5309 = vld [vmem:[#allocation2 + $0xf0] sm:$0xff]
      %v5310 = vld [vmem:[#allocation2 + $0xf8] sm:$0xff]
      %v5311 = vld [vmem:[#allocation2 + $0x100] sm:$0xff]
      %v5312 = vld [vmem:[#allocation2 + $0x108] sm:$0xff]
      %v5313 = vld [vmem:[#allocation2 + $0x110] sm:$0xff]
      %v5314 = vld [vmem:[#allocation2 + $0x118] sm:$0xff]
      %v5315 = vld [vmem:[#allocation2 + $0x120] sm:$0xff]
      %v5316 = vld [vmem:[#allocation2 + $0x128] sm:$0xff]
      %v5317 = vld [vmem:[#allocation2 + $0x130] sm:$0xff]
      %v5318 = vld [vmem:[#allocation2 + $0x138] sm:$0xff]
      %v5319 = vld [vmem:[#allocation2 + $0x140] sm:$0xff]
      %v5320 = vld [vmem:[#allocation2 + $0x148] sm:$0xff]
      %v5321 = vld [vmem:[#allocation2 + $0x150] sm:$0xff]
      %v5322 = vld [vmem:[#allocation2 + $0x158] sm:$0xff]
      %v5323 = vld [vmem:[#allocation2 + $0x160] sm:$0xff]
      %v5324 = vld [vmem:[#allocation2 + $0x168] sm:$0xff]
      %v5325 = vld [vmem:[#allocation2 + $0x170] sm:$0xff]
      %v5326 = vld [vmem:[#allocation2 + $0x178] sm:$0xff]
      %v5327 = vld [vmem:[#allocation2 + $0x180] sm:$0xff]
      %v5328 = vld [vmem:[#allocation2 + $0x188] sm:$0xff]
      %v5329 = vld [vmem:[#allocation2 + $0x190] sm:$0xff]
      %v5330 = vld [vmem:[#allocation2 + $0x198] sm:$0xff]
      %v5331 = vld [vmem:[#allocation2 + $0x1a0] sm:$0xff]
      %v5332 = vld [vmem:[#allocation2 + $0x1a8] sm:$0xff]
      %v5333 = vld [vmem:[#allocation2 + $0x1b0] sm:$0xff]
      %v5334 = vld [vmem:[#allocation2 + $0x1b8] sm:$0xff]
      %v5335 = vld [vmem:[#allocation2 + $0x1c0] sm:$0xff]
      %v5336 = vld [vmem:[#allocation2 + $0x1c8] sm:$0xff]
      %v5337 = vld [vmem:[#allocation2 + $0x1d0] sm:$0xff]
      %v5338 = vld [vmem:[#allocation2 + $0x1d8] sm:$0xff]
      %v5339 = vld [vmem:[#allocation2 + $0x1e0] sm:$0xff]
      %v5340 = vld [vmem:[#allocation2 + $0x1e8] sm:$0xff]
      %v5341 = vld [vmem:[#allocation2 + $0x1f0] sm:$0xff]
      %v5342 = vld [vmem:[#allocation2 + $0x1f8] sm:$0xff]
      %v5343 = vld [vmem:[#allocation2 + $0x200] sm:$0xff]
      %v5344 = vld [vmem:[#allocation2 + $0x208] sm:$0xff]
      %v5345 = vld [vmem:[#allocation2 + $0x210] sm:$0xff]
      %v5346 = vld [vmem:[#allocation2 + $0x218] sm:$0xff]
      %v5347 = vld [vmem:[#allocation2 + $0x220] sm:$0xff]
      %v5348 = vld [vmem:[#allocation2 + $0x228] sm:$0xff]
      %v5349 = vld [vmem:[#allocation2 + $0x230] sm:$0xff]
      %v5350 = vld [vmem:[#allocation2 + $0x238] sm:$0xff]
      %v5351 = vld [vmem:[#allocation2 + $0x240] sm:$0xff]
      %v5352 = vld [vmem:[#allocation2 + $0x248] sm:$0xff]
      %v5353 = vld [vmem:[#allocation2 + $0x250] sm:$0xff]
      %v5354 = vld [vmem:[#allocation2 + $0x258] sm:$0xff]
      %v5355 = vld [vmem:[#allocation2 + $0x260] sm:$0xff]
      %v5356 = vld [vmem:[#allocation2 + $0x268] sm:$0xff]
      %v5357 = vld [vmem:[#allocation2 + $0x270] sm:$0xff]
      %v5358 = vld [vmem:[#allocation2 + $0x278] sm:$0xff]
      %v5359 = vld [vmem:[#allocation2 + $0x280] sm:$0xff]
      %v5360 = vld [vmem:[#allocation2 + $0x288] sm:$0xff]
      %v5361 = vld [vmem:[#allocation2 + $0x290] sm:$0xff]
      %v5362 = vld [vmem:[#allocation2 + $0x298] sm:$0xff]
      %v5363 = vld [vmem:[#allocation2 + $0x2a0] sm:$0xff]
      %v5364 = vld [vmem:[#allocation2 + $0x2a8] sm:$0xff]
      %v5365 = vld [vmem:[#allocation2 + $0x2b0] sm:$0xff]
      %v5366 = vld [vmem:[#allocation2 + $0x2b8] sm:$0xff]
      %v5367 = vld [vmem:[#allocation2 + $0x2c0] sm:$0xff]
      %v5368 = vld [vmem:[#allocation2 + $0x2c8] sm:$0xff]
      %v5369 = vld [vmem:[#allocation2 + $0x2d0] sm:$0xff]
      %v5370 = vld [vmem:[#allocation2 + $0x2d8] sm:$0xff]
      %v5371 = vld [vmem:[#allocation2 + $0x2e0] sm:$0xff]
      %v5372 = vld [vmem:[#allocation2 + $0x2e8] sm:$0xff]
      %v5373 = vld [vmem:[#allocation2 + $0x2f0] sm:$0xff]
      %v5374 = vld [vmem:[#allocation2 + $0x2f8] sm:$0xff]
      %v5375 = vld [vmem:[#allocation2 + $0x300] sm:$0xff]
      %v5376 = vld [vmem:[#allocation2 + $0x308] sm:$0xff]
      %v5377 = vld [vmem:[#allocation2 + $0x310] sm:$0xff]
      %v5378 = vld [vmem:[#allocation2 + $0x318] sm:$0xff]
      %v5379 = vld [vmem:[#allocation2 + $0x320] sm:$0xff]
      %v5380 = vld [vmem:[#allocation2 + $0x328] sm:$0xff]
      %v5381 = vld [vmem:[#allocation2 + $0x330] sm:$0xff]
      %v5382 = vld [vmem:[#allocation2 + $0x338] sm:$0xff]
      %v5383 = vld [vmem:[#allocation2 + $0x340] sm:$0xff]
      %v5384 = vld [vmem:[#allocation2 + $0x348] sm:$0xff]
      %v5385 = vld [vmem:[#allocation2 + $0x350] sm:$0xff]
      %v5386 = vld [vmem:[#allocation2 + $0x358] sm:$0xff]
      %v5388 = vsel %vm1591, %v5278, 0
      %5390 = vmatprep.subr.mxu0 %v5340
      %5391 = vmatpush1.msra.mxu0 %v5339
      %5392 = vmatprep.subr.mxu0 %v5336
      %5393 = vmatpush1.msra.mxu0 %v5335
      %5394 = vmatprep.subr.mxu0 %v5332
      %5395 = vmatpush1.msra.mxu0 %v5331
      %5396 = vmatprep.subr.mxu0 %v5328
      %5397 = vmatpush1.msra.mxu0 %v5327
      %5398 = vmatprep.subr.mxu0 %v5324
      %5399 = vmatpush1.msra.mxu0 %v5323
      %5400 = vmatprep.subr.mxu0 %v5320
      %5401 = vmatpush1.msra.mxu0 %v5319
      %5402 = vmatprep.subr.mxu0 %v5316
      %5403 = vmatpush1.msra.mxu0 %v5315
      %5404 = vmatprep.subr.mxu0 %v5312
      %5405 = vmatpush1.msra.mxu0 %v5311
      %5406 = vmatprep.subr.mxu0 %v5308
      %5407 = vmatpush1.msra.mxu0 %v5307
      %5408 = vmatprep.subr.mxu0 %v5304
      %5409 = vmatpush1.msra.mxu0 %v5303
      %5410 = vmatprep.subr.mxu0 %v5300
      %5411 = vmatpush1.msra.mxu0 %v5299
      %5412 = vmatprep.subr.mxu0 %v5296
      %5413 = vmatpush1.msra.mxu0 %v5295
      %5414 = vmatprep.subr.mxu0 %v5292
      %5415 = vmatpush1.msra.mxu0 %v5291
      %5416 = vmatprep.subr.mxu0 %v5288
      %5417 = vmatpush1.msra.mxu0 %v5287
      %5418 = vmatprep.subr.mxu0 %v5284
      %5419 = vmatpush1.msra.mxu0 %v5283
      %5420 = vmatprep.subr.mxu0 %v5280
      %5421 = vmatpush1.msra.mxu0 %v5279
      %5422 = vmatprep.subr.mxu0 0.0
      %5423 = vmatpush2.msra.mxu0 0.0
      %5424 = vmatprep.subr.mxu0 0.0
      %5425 = vmatpush2.msra.mxu0 0.0
      %5426 = vmatprep.subr.mxu0 0.0
      %5427 = vmatpush2.msra.mxu0 0.0
      %5428 = vmatprep.subr.mxu0 0.0
      %5429 = vmatpush2.msra.mxu0 0.0
      %5430 = vmatprep.subr.mxu0 0.0
      %5431 = vmatpush2.msra.mxu0 0.0
      %5432 = vmatprep.subr.mxu0 %v5384
      %5433 = vmatpush2.msra.mxu0 %v5383
      %5434 = vmatprep.subr.mxu0 %v5380
      %5435 = vmatpush2.msra.mxu0 %v5379
      %5436 = vmatprep.subr.mxu0 %v5376
      %5437 = vmatpush2.msra.mxu0 %v5375
      %5438 = vmatprep.subr.mxu0 %v5372
      %5439 = vmatpush2.msra.mxu0 %v5371
      %5440 = vmatprep.subr.mxu0 %v5368
      %5441 = vmatpush2.msra.mxu0 %v5367
      %5442 = vmatprep.subr.mxu0 %v5364
      %5443 = vmatpush2.msra.mxu0 %v5363
      %5444 = vmatprep.subr.mxu0 %v5360
      %5445 = vmatpush2.msra.mxu0 %v5359
      %5446 = vmatprep.subr.mxu0 %v5356
      %5447 = vmatpush2.msra.mxu0 %v5355
      %5448 = vmatprep.subr.mxu0 %v5352
      %5449 = vmatpush2.msra.mxu0 %v5351
      %5450 = vmatprep.subr.mxu0 %v5348
      %5451 = vmatpush2.msra.mxu0 %v5347
      %5452 = vmatprep.subr.mxu0 %v5344
      %5453 = vmatpush2.msra.mxu0 %v5343
      %5454 = vmatprep.mubr.f32.mxu0 %v5388
      %5455 = vmatmul.mubr.f32.gmra.mxu0 %v5277
      %v5456 = vpop.f32.mrf.mxu0
      %v5457 = vadd.f32 0.0, %v5456
      %v5458 = vpop.f32.mrf.mxu0
      %v5459 = vadd.f32 0.0, %v5458
      %5460 = vdwg.mxu0
      %5461 = vmatprep.subr.mxu0 %v5342
      %5462 = vmatpush1.msra.mxu0 %v5341
      %5463 = vmatprep.subr.mxu0 %v5338
      %5464 = vmatpush1.msra.mxu0 %v5337
      %5465 = vmatprep.subr.mxu0 %v5334
      %5466 = vmatpush1.msra.mxu0 %v5333
      %5467 = vmatprep.subr.mxu0 %v5330
      %5468 = vmatpush1.msra.mxu0 %v5329
      %5469 = vmatprep.subr.mxu0 %v5326
      %5470 = vmatpush1.msra.mxu0 %v5325
      %5471 = vmatprep.subr.mxu0 %v5322
      %5472 = vmatpush1.msra.mxu0 %v5321
      %5473 = vmatprep.subr.mxu0 %v5318
      %5474 = vmatpush1.msra.mxu0 %v5317
      %5475 = vmatprep.subr.mxu0 %v5314
      %5476 = vmatpush1.msra.mxu0 %v5313
      %5477 = vmatprep.subr.mxu0 %v5310
      %5478 = vmatpush1.msra.mxu0 %v5309
      %5479 = vmatprep.subr.mxu0 %v5306
      %5480 = vmatpush1.msra.mxu0 %v5305
      %5481 = vmatprep.subr.mxu0 %v5302
      %5482 = vmatpush1.msra.mxu0 %v5301
      %5483 = vmatprep.subr.mxu0 %v5298
      %5484 = vmatpush1.msra.mxu0 %v5297
      %5485 = vmatprep.subr.mxu0 %v5294
      %5486 = vmatpush1.msra.mxu0 %v5293
      %5487 = vmatprep.subr.mxu0 %v5290
      %5488 = vmatpush1.msra.mxu0 %v5289
      %5489 = vmatprep.subr.mxu0 %v5286
      %5490 = vmatpush1.msra.mxu0 %v5285
      %5491 = vmatprep.subr.mxu0 %v5282
      %5492 = vmatpush1.msra.mxu0 %v5281
      %5493 = vmatprep.subr.mxu0 0.0
      %5494 = vmatpush2.msra.mxu0 0.0
      %5495 = vmatprep.subr.mxu0 0.0
      %5496 = vmatpush2.msra.mxu0 0.0
      %5497 = vmatprep.subr.mxu0 0.0
      %5498 = vmatpush2.msra.mxu0 0.0
      %5499 = vmatprep.subr.mxu0 0.0
      %5500 = vmatpush2.msra.mxu0 0.0
      %5501 = vmatprep.subr.mxu0 0.0
      %5502 = vmatpush2.msra.mxu0 0.0
      %5503 = vmatprep.subr.mxu0 %v5386
      %5504 = vmatpush2.msra.mxu0 %v5385
      %5505 = vmatprep.subr.mxu0 %v5382
      %5506 = vmatpush2.msra.mxu0 %v5381
      %5507 = vmatprep.subr.mxu0 %v5378
      %5508 = vmatpush2.msra.mxu0 %v5377
      %5509 = vmatprep.subr.mxu0 %v5374
      %5510 = vmatpush2.msra.mxu0 %v5373
      %5511 = vmatprep.subr.mxu0 %v5370
      %5512 = vmatpush2.msra.mxu0 %v5369
      %5513 = vmatprep.subr.mxu0 %v5366
      %5514 = vmatpush2.msra.mxu0 %v5365
      %5515 = vmatprep.subr.mxu0 %v5362
      %5516 = vmatpush2.msra.mxu0 %v5361
      %5517 = vmatprep.subr.mxu0 %v5358
      %5518 = vmatpush2.msra.mxu0 %v5357
      %5519 = vmatprep.subr.mxu0 %v5354
      %5520 = vmatpush2.msra.mxu0 %v5353
      %5521 = vmatprep.subr.mxu0 %v5350
      %5522 = vmatpush2.msra.mxu0 %v5349
      %5523 = vmatprep.subr.mxu0 %v5346
      %5524 = vmatpush2.msra.mxu0 %v5345
      %5525 = vmatprep.mubr.f32.mxu0 %v5388
      %5526 = vmatmul.mubr.f32.gmra.mxu0 %v5277
      %v5527 = vpop.f32.mrf.mxu0
      %v5528 = vadd.f32 0.0, %v5527
      %v5529 = vpop.f32.mrf.mxu0
      %v5530 = vadd.f32 0.0, %v5529
      %5531 = vdwg.mxu0
      %v5532 = vld [vmem:[%s5] sm:$0xff]
      %5534 = vset.pattern.permute.xlu0 6
      %5535 = vperm.xlu0 %5534, %v5532
      %v5536 = vpop.permute.xlu0 %5535
      %v5538 = vmul.f32 %v5457, %v5536
      %v5539 = vmul.f32 %v5459, %v5536
      %v5540 = vmul.f32 %v5528, %v5536
      %v5541 = vmul.f32 %v5530, %v5536
      %5542 = vset.pattern.permute.xlu0 7
      %5543 = vperm.xlu0 %5542, %v5532
      %v5544 = vpop.permute.xlu0 %5543
      %v5546 = vadd.f32 %v5538, %v5544
      %v5547 = vadd.f32 %v5539, %v5544
      %v5548 = vadd.f32 %v5540, %v5544
      %v5549 = vadd.f32 %v5541, %v5544
      %v5550 = vmax.f32 %v5546, 0.0
      %v5551 = vmax.f32 %v5547, 0.0
      %v5552 = vmax.f32 %v5548, 0.0
      %v5553 = vmax.f32 %v5549, 0.0
      %v5554 = vadd.f32 %v374, %v5550
      %v5555 = vadd.f32 %v376, %v5551
      %v5556 = vadd.f32 %v445, %v5552
      %v5557 = vadd.f32 %v447, %v5553
      %v5562 = vcombine.low %v5554, %v5555
      %v5563 = vcombine.low %v5556, %v5557
      %5566 = vst [vmem:[%s278] sm:$0xff] %v5562
      %5567 = vst [vmem:[%s278 + $0x8] sm:$0xff] %v5563
      %p5568 = scmp.lt.s32.totalorder %s18, 1
      %s5569 = scalar_select %p5568, %s18, 1
      %s5570 = smul.addr %s5569, 4
      %s5571 = smul.addr %s5570, 4
      %s5572 = scalar_lea.vmem %s7, %s5571
      // Predicated region
      $region49: #{_lambda_.1} parent=47 // pred_check
        %p5573 = pneg %p188
      $region50: #{_lambda_.1} parent=47 // pred_check_branch
        %5575 = sbr.rel (%p5573) target = $region52
      $region51: #{_lambda_.1} parent=47 // pred_region
        _
      $region52: #{_lambda_.1} parent=47 // pred_fallthru
        _
    $region48: #{_lambda_.1} parent=5 // pred_fallthru
      _
    %p5576 = scmp.le.s32.totalorder 2, %s13
    // Predicated region
    $region53: #{_lambda_.1} parent=5 // pred_check
      %p5577 = pneg %p5576
    $region54: #{_lambda_.1} parent=5 // pred_check_branch
      %5579 = sbr.rel (%p5577) target = $region56
    $region55: #{_lambda_.1} parent=5 // pred_region
      %s5580 = ssub.s32 %s13, 2
      // Predicated region
      $region57: #{_lambda_.1} parent=55 // pred_check
        %p5581 = pneg %p194
      $region58: #{_lambda_.1} parent=55 // pred_check_branch
        %5583 = sbr.rel (%p5581) target = $region60
      $region59: #{_lambda_.1} parent=55 // pred_region
        %p5584 = scmp.lt.s32.totalorder %s19, 1
        %s5585 = scalar_select %p5584, %s19, 1
        %s5586 = smul.addr %s5585, 4
        %s5587 = smul.addr %s5586, 4
        %s5588 = scalar_lea.vmem %s7, %s5587
      $region60: #{_lambda_.1} parent=55 // pred_fallthru
        _
    $region56: #{_lambda_.1} parent=5 // pred_fallthru
      _
  $region6: #{_lambda_.1} parent=0 // loop_footer
    %s17 = sadd.s32 1, %s13
  $region7: #{_lambda_.1} parent=0 // loop_footer_branch
    %12 = sbr.rel target = $region3
  $region8: #{_lambda_.1} parent=0 // loop_exit
    _

</llo_original>
